<compile_context>
chip_gen: v7x
topology: tpu7x:2x2x1
jax: 0.10.0
libtpu: 0.0.40
codegen_flags: <defaults>
</compile_context>

<pallas_src>
import math

import numpy as np
import jax
import jax.numpy as jnp
from jax.experimental import pallas as pl
from jax.experimental.pallas import tpu as pltpu

# ---------------- model config (small, t5-like) ----------------
D_MODEL = 32
N_HEADS = 4
D_KV = 8                      # inner dim = N_HEADS * D_KV = 32
INNER = N_HEADS * D_KV
D_FF = 64
N_LAYERS = 2
EPS = 1e-6
NUM_BUCKETS = 32
MAX_DISTANCE = 128
NEG = -1e9                    # finite large-negative mask (not -inf)

# row offsets inside the packed per-layer weight slab (all sublane-aligned)
R_QKV = 0                          # sa_qkv^T  [3*INNER, D]
R_CAQ = R_QKV + 3 * INNER          # ca_q^T    [INNER, D]
R_FFWI = R_CAQ + INNER             # ff_wi^T   [D_FF, D]
R_SAO = R_FFWI + D_FF              # sa_o      [INNER, D]
R_CAO = R_SAO + INNER              # ca_o      [INNER, D]
R_FFWO = R_CAO + INNER             # ff_wo     [D_FF, D]
R_CAKV = R_FFWO + D_FF             # ca_kv^T   [2*INNER, D]
W_ROWS = R_CAKV + 2 * INNER        # = 384


# ---------------- fused Pallas kernel: whole decoder stack ----------------
def _decoder_stack_kernel(x_ref, enc_ref, bias_self_ref, bias_cross_ref,
                          w_ref, ln_ref, o_ref):
    """N_LAYERS T5 decoder blocks + final RMSNorm, fully VMEM-resident."""
    f32 = jnp.float32

    def rms(v, w):                      # v [N, D], w [1, D]
        var = jnp.mean(v * v, axis=-1, keepdims=True)
        return v * jax.lax.rsqrt(var + EPS) * w

    def cdot(a, b):
        # a [m, c] x b [n, c] -> [m, n]; contract last dims (no explicit .T).
        return jax.lax.dot_general(a, b, (((1,), (1,)), ((), ())),
                                   preferred_element_type=f32)

    def softmax(s):
        m = jnp.max(s, axis=-1, keepdims=True)
        p = jnp.exp(s - m)
        return p / jnp.sum(p, axis=-1, keepdims=True)

    x = x_ref[...]                       # [B*S, D]
    enc = enc_ref[...]                   # [B*Se, D]
    cross_bias = bias_cross_ref[...]     # [B*S, B*Se] block-diagonal mask

    # Hoisted cross-attn K/V projection (enc is layer-invariant): [B*Se, 2*I]
    kv_layers = [cdot(enc, w_ref[li, R_CAKV:R_CAKV + 2 * INNER, :])
                 for li in range(N_LAYERS)]

    for li in range(N_LAYERS):           # static Python unroll (L = 2)
        # ---------------- self-attention ----------------
        n = rms(x, ln_ref[3 * li:3 * li + 1, :])
        qkv = cdot(n, w_ref[li, R_QKV:R_QKV + 3 * INNER, :])      # [B*S, 3I]
        for h in range(N_HEADS):
            c = h * D_KV
            qh = qkv[:, c:c + D_KV]
            kh = qkv[:, INNER + c:INNER + c + D_KV]
            vh = qkv[:, 2 * INNER + c:2 * INNER + c + D_KV]
            # block-diag batch mask (+ rel-pos bias on layer 0) baked into const
            p = softmax(cdot(qh, kh) + bias_self_ref[li, h])
            head = jnp.dot(p, vh, preferred_element_type=f32)     # [B*S, d_kv]
            # per-head sublane-aligned O slice, accumulate into residual
            x = x + jnp.dot(head, w_ref[li, R_SAO + c:R_SAO + c + D_KV, :],
                            preferred_element_type=f32)

        # ---------------- cross-attention ----------------
        n = rms(x, ln_ref[3 * li + 1:3 * li + 2, :])
        q = cdot(n, w_ref[li, R_CAQ:R_CAQ + INNER, :])            # [B*S, I]
        kv = kv_layers[li]                                        # [B*Se, 2I]
        for h in range(N_HEADS):
            c = h * D_KV
            qh = q[:, c:c + D_KV]
            kh = kv[:, c:c + D_KV]
            vh = kv[:, INNER + c:INNER + c + D_KV]
            p = softmax(cdot(qh, kh) + cross_bias)
            head = jnp.dot(p, vh, preferred_element_type=f32)
            x = x + jnp.dot(head, w_ref[li, R_CAO + c:R_CAO + c + D_KV, :],
                            preferred_element_type=f32)

        # ---------------- feed-forward ----------------
        n = rms(x, ln_ref[3 * li + 2:3 * li + 3, :])
        hmid = jnp.maximum(cdot(n, w_ref[li, R_FFWI:R_FFWI + D_FF, :]), 0.0)
        x = x + jnp.dot(hmid, w_ref[li, R_FFWO:R_FFWO + D_FF, :],
                        preferred_element_type=f32)

    # final T5LayerNorm
    o_ref[...] = rms(x, ln_ref[3 * N_LAYERS:3 * N_LAYERS + 1, :])


# ---------------- rel-pos buckets (shape-static, numpy at pack time) -------
def _relative_position_bucket_np(q_len, k_len):
    # decoder self-attention: bidirectional=False
    ctx = np.arange(q_len)[:, None]
    mem = np.arange(k_len)[None, :]
    rel = mem - ctx
    rel = -np.minimum(rel, 0)
    max_exact = NUM_BUCKETS // 2
    is_small = rel < max_exact
    rel_f = np.maximum(rel.astype(np.float32), 1.0)
    large = max_exact + (np.log(rel_f / max_exact)
                         / math.log(MAX_DISTANCE / max_exact)
                         * (NUM_BUCKETS - max_exact)).astype(np.int32)
    large = np.minimum(large, NUM_BUCKETS - 1)
    return np.where(is_small, rel, large).astype(np.int32)


# ---------------- one-time host-side packing (outside jit) ----------------
def pack_params(params, B, S, S_enc):
    # ---- weight slab: [L, 384, D], every in-kernel slice is a row slice ----
    w_layers = []
    for li in range(N_LAYERS):
        w_layers.append(jnp.concatenate([
            params['sa_qkv'][li].T,    # [3I, D]  rows   0: 96
            params['ca_q'][li].T,      # [ I, D]  rows  96:128
            params['ff_wi'][li].T,     # [FF, D]  rows 128:192
            params['sa_o'][li],        # [ I, D]  rows 192:224
            params['ca_o'][li],        # [ I, D]  rows 224:256
            params['ff_wo'][li],       # [FF, D]  rows 256:320
            params['ca_kv'][li].T,     # [2I, D]  rows 320:384
        ], axis=0))
    w_all = jnp.stack(w_layers)                               # [L, 384, D]

    # ---- LayerNorm slab: [3L+1, D] (sa, ca, ff per layer; final last) ----
    ln_rows = []
    for li in range(N_LAYERS):
        ln_rows += [params['sa_ln'][li], params['ca_ln'][li], params['ff_ln'][li]]
    ln_rows.append(params['final_ln'][0])
    ln_w = jnp.stack(ln_rows)                                 # [3L+1, D]

    # ---- attention bias constants (block-diag batch mask + rel-pos) ----
    bs, bse = B * S, B * S_enc
    blk = np.kron(np.eye(B, dtype=np.float32), np.ones((S, S), np.float32))
    off_mask = (1.0 - blk) * NEG                              # [bs, bs]
    buckets = _relative_position_bucket_np(S, S)              # [S, S]
    rel = np.transpose(np.asarray(params['rel_emb'])[buckets], (2, 0, 1))  # [H,S,S]
    bias_self = np.zeros((N_LAYERS, N_HEADS, bs, bs), np.float32)
    bias_self[:] = off_mask
    for h in range(N_HEADS):                                  # layer 0 only
        bias_self[0, h] += np.kron(np.eye(B, dtype=np.float32), rel[h])

    blk_c = np.kron(np.eye(B, dtype=np.float32), np.ones((S, S_enc), np.float32))
    bias_cross = ((1.0 - blk_c) * NEG).astype(np.float32)     # [bs, bse]

    return dict(w_all=w_all, ln_w=ln_w,
                bias_self=jnp.asarray(bias_self),
                bias_cross=jnp.asarray(bias_cross))


# ---------------- wrapper: one pallas_call per forward ----------------
@jax.jit
def custom_t5_decoder_with_segment(x, enc, packed):
    B, S, D = x.shape
    S_enc = enc.shape[1]
    BS, BSe = B * S, B * S_enc

    inputs = (x.reshape(BS, D), enc.reshape(BSe, D),
              packed['bias_self'], packed['bias_cross'],
              packed['w_all'], packed['ln_w'])

    vmem = pl.BlockSpec(memory_space=pltpu.MemorySpace.VMEM)

    # advisory cost estimate for the XLA scheduler
    mm = 2 * N_LAYERS * (BS * D * 3 * INNER + BS * D * INNER
                         + BSe * D * 2 * INNER + 2 * BS * INNER * D
                         + BS * D * D_FF + BS * D_FF * D)
    att = 4 * N_LAYERS * N_HEADS * BS * D_KV * (BS + BSe)
    cost = pl.CostEstimate(
        flops=int(mm + att),
        transcendentals=int(N_LAYERS * N_HEADS * (BS * BS + BS * BSe)),
        bytes_accessed=int(4 * (sum(int(np.prod(a.shape)) for a in inputs)
                                + BS * D)))

    out = pl.pallas_call(
        _decoder_stack_kernel,
        out_shape=jax.ShapeDtypeStruct((BS, D), jnp.float32),
        in_specs=[vmem] * len(inputs),
        out_specs=vmem,
        cost_estimate=cost,
    )(*inputs)
    return out.reshape(B, S, D)


# ---------------- deterministic parameter init (natural orientation) -------
def init_params(key):
    keys = iter(jax.random.split(key, 64))

    def w(shape, scale=0.05):
        return (scale * jax.random.normal(next(keys), shape)).astype(jnp.float32)

    ones = jnp.ones((D_MODEL,), jnp.float32)
    sa_ln, sa_qkv, sa_o = [], [], []
    ca_ln, ca_q, ca_kv, ca_o = [], [], [], []
    ff_ln, ff_wi, ff_wo = [], [], []
    for _ in range(N_LAYERS):
        sa_ln.append(ones)
        sa_qkv.append(jnp.concatenate(           # fused [D, 3*inner] (Q|K|V)
            [w((D_MODEL, INNER)), w((D_MODEL, INNER)), w((D_MODEL, INNER))],
            axis=1))
        sa_o.append(w((INNER, D_MODEL)))
        ca_ln.append(ones)
        ca_q.append(w((D_MODEL, INNER)))
        ca_kv.append(jnp.concatenate(            # fused [D, 2*inner] (K|V)
            [w((D_MODEL, INNER)), w((D_MODEL, INNER))], axis=1))
        ca_o.append(w((INNER, D_MODEL)))
        ff_ln.append(ones)
        ff_wi.append(w((D_MODEL, D_FF)))
        ff_wo.append(w((D_FF, D_MODEL)))

    return dict(
        sa_ln=jnp.stack(sa_ln), sa_qkv=jnp.stack(sa_qkv), sa_o=jnp.stack(sa_o),
        ca_ln=jnp.stack(ca_ln), ca_q=jnp.stack(ca_q),
        ca_kv=jnp.stack(ca_kv), ca_o=jnp.stack(ca_o),
        ff_ln=jnp.stack(ff_ln), ff_wi=jnp.stack(ff_wi), ff_wo=jnp.stack(ff_wo),
        rel_emb=w((NUM_BUCKETS, N_HEADS), scale=0.1),   # layer-0 rel-pos table
        final_ln=jnp.ones((1, D_MODEL), jnp.float32),
    )


if __name__ == "__main__":
    key = jax.random.PRNGKey(0)
    k_p, k_x, k_e = jax.random.split(key, 3)

    B, S_DEC, S_ENC = 2, 8, 8
    params = init_params(k_p)
    # one-time preprocessing (weight packing, rel-pos gather, block masks)
    packed = pack_params(params, B, S_DEC, S_ENC)

    # segment_input ([memory ; segment] already concatenated): [B, S, D]
    x = jax.random.normal(k_x, (B, S_DEC, D_MODEL), jnp.float32)
    # encoder_hidden_states: [B, S_enc, D]
    enc = jax.random.normal(k_e, (B, S_ENC, D_MODEL), jnp.float32)

    out = custom_t5_decoder_with_segment(x, enc, packed)
    out = jax.block_until_ready(out)
    assert out.shape == (B, S_DEC, D_MODEL) and out.dtype == jnp.float32
    print("KERNEL_OK")
</pallas_src>

<mosaic_0001>
module attributes {stable_mosaic.version = 11 : i64} {
  func.func @_decoder_stack_kernel(%arg0: memref<16x32xf32, #tpu.memory_space<vmem>>, %arg1: memref<16x32xf32, #tpu.memory_space<vmem>>, %arg2: memref<2x4x16x16xf32, #tpu.memory_space<vmem>>, %arg3: memref<16x16xf32, #tpu.memory_space<vmem>>, %arg4: memref<2x384x32xf32, #tpu.memory_space<vmem>>, %arg5: memref<7x32xf32, #tpu.memory_space<vmem>>, %arg6: memref<16x32xf32, #tpu.memory_space<vmem>>) attributes {dimension_semantics = [], scalar_prefetch = 0 : i64, scratch_operands = 0 : i64, tpu.core_type = #tpu.core_type<tc>} {
    %c0 = arith.constant 0 : index
    %c0_0 = arith.constant 0 : index
    %0 = vector.load %arg0[%c0, %c0_0] : memref<16x32xf32, #tpu.memory_space<vmem>>, vector<16x32xf32>
    %c0_1 = arith.constant 0 : index
    %c0_2 = arith.constant 0 : index
    %1 = vector.load %arg1[%c0_1, %c0_2] : memref<16x32xf32, #tpu.memory_space<vmem>>, vector<16x32xf32>
    %c0_3 = arith.constant 0 : index
    %c0_4 = arith.constant 0 : index
    %2 = vector.load %arg3[%c0_3, %c0_4] : memref<16x16xf32, #tpu.memory_space<vmem>>, vector<16x16xf32>
    %c0_5 = arith.constant 0 : index
    %c320 = arith.constant 320 : index
    %c0_6 = arith.constant 0 : index
    %3 = vector.load %arg4[%c0_5, %c320, %c0_6] : memref<2x384x32xf32, #tpu.memory_space<vmem>>, vector<1x64x32xf32>
    %4 = vector.shape_cast %3 : vector<1x64x32xf32> to vector<64x32xf32>
    %cst = arith.constant dense<0.000000e+00> : vector<16x64xf32>
    %5 = tpu.matmul %1, %4, %cst {dimension_numbers = #tpu.dot_dimension_numbers<[1], [1], [0], [0], [0, 0, 1, 0], [], []>} : vector<16x32xf32>, vector<64x32xf32>, vector<16x64xf32> -> vector<16x64xf32>
    %c1 = arith.constant 1 : index
    %c320_7 = arith.constant 320 : index
    %c0_8 = arith.constant 0 : index
    %6 = vector.load %arg4[%c1, %c320_7, %c0_8] : memref<2x384x32xf32, #tpu.memory_space<vmem>>, vector<1x64x32xf32>
    %7 = vector.shape_cast %6 : vector<1x64x32xf32> to vector<64x32xf32>
    %cst_9 = arith.constant dense<0.000000e+00> : vector<16x64xf32>
    %8 = tpu.matmul %1, %7, %cst_9 {dimension_numbers = #tpu.dot_dimension_numbers<[1], [1], [0], [0], [0, 0, 1, 0], [], []>} : vector<16x32xf32>, vector<64x32xf32>, vector<16x64xf32> -> vector<16x64xf32>
    %c0_10 = arith.constant 0 : index
    %c0_11 = arith.constant 0 : index
    %9 = vector.load %arg5[%c0_10, %c0_11] : memref<7x32xf32, #tpu.memory_space<vmem>>, vector<1x32xf32>
    %10 = arith.mulf %0, %0 : vector<16x32xf32>
    %cst_12 = arith.constant dense<0.000000e+00> : vector<16xf32>
    %11 = vector.multi_reduction <add>, %10, %cst_12 [1] : vector<16x32xf32> to vector<16xf32>
    %12 = vector.shape_cast %11 : vector<16xf32> to vector<16x1xf32>
    %cst_13 = arith.constant 3.200000e+01 : f32
    %13 = vector.broadcast %cst_13 : f32 to vector<16x1xf32>
    %14 = arith.divf %12, %13 : vector<16x1xf32>
    %cst_14 = arith.constant 9.99999997E-7 : f32
    %15 = vector.broadcast %cst_14 : f32 to vector<16x1xf32>
    %16 = arith.addf %14, %15 : vector<16x1xf32>
    %17 = math.rsqrt %16 : vector<16x1xf32>
    %18 = vector.broadcast %17 : vector<16x1xf32> to vector<16x32xf32>
    %19 = arith.mulf %0, %18 : vector<16x32xf32>
    %20 = vector.broadcast %9 : vector<1x32xf32> to vector<16x32xf32>
    %21 = arith.mulf %19, %20 : vector<16x32xf32>
    %c0_15 = arith.constant 0 : index
    %c0_16 = arith.constant 0 : index
    %c0_17 = arith.constant 0 : index
    %22 = vector.load %arg4[%c0_15, %c0_16, %c0_17] : memref<2x384x32xf32, #tpu.memory_space<vmem>>, vector<1x96x32xf32>
    %23 = vector.shape_cast %22 : vector<1x96x32xf32> to vector<96x32xf32>
    %cst_18 = arith.constant dense<0.000000e+00> : vector<16x96xf32>
    %24 = tpu.matmul %21, %23, %cst_18 {dimension_numbers = #tpu.dot_dimension_numbers<[1], [1], [0], [0], [0, 0, 1, 0], [], []>} : vector<16x32xf32>, vector<96x32xf32>, vector<16x96xf32> -> vector<16x96xf32>
    %25 = vector.extract_strided_slice %24 {offsets = [0, 0], sizes = [16, 8], strides = [1, 1]} : vector<16x96xf32> to vector<16x8xf32>
    %26 = vector.extract_strided_slice %24 {offsets = [0, 32], sizes = [16, 8], strides = [1, 1]} : vector<16x96xf32> to vector<16x8xf32>
    %27 = vector.extract_strided_slice %24 {offsets = [0, 64], sizes = [16, 8], strides = [1, 1]} : vector<16x96xf32> to vector<16x8xf32>
    %cst_19 = arith.constant dense<0.000000e+00> : vector<16x16xf32>
    %28 = tpu.matmul %25, %26, %cst_19 {dimension_numbers = #tpu.dot_dimension_numbers<[1], [1], [0], [0], [0, 0, 1, 0], [], []>} : vector<16x8xf32>, vector<16x8xf32>, vector<16x16xf32> -> vector<16x16xf32>
    %c0_20 = arith.constant 0 : index
    %c0_21 = arith.constant 0 : index
    %c0_22 = arith.constant 0 : index
    %c0_23 = arith.constant 0 : index
    %29 = vector.load %arg2[%c0_20, %c0_21, %c0_22, %c0_23] : memref<2x4x16x16xf32, #tpu.memory_space<vmem>>, vector<1x1x16x16xf32>
    %30 = vector.shape_cast %29 : vector<1x1x16x16xf32> to vector<16x16xf32>
    %31 = arith.addf %28, %30 : vector<16x16xf32>
    %cst_24 = arith.constant dense<0xFF800000> : vector<16xf32>
    %32 = vector.multi_reduction <maximumf>, %31, %cst_24 [1] : vector<16x16xf32> to vector<16xf32>
    %33 = vector.shape_cast %32 : vector<16xf32> to vector<16x1xf32>
    %34 = vector.broadcast %33 : vector<16x1xf32> to vector<16x16xf32>
    %35 = arith.subf %31, %34 : vector<16x16xf32>
    %36 = math.exp %35 : vector<16x16xf32>
    %cst_25 = arith.constant dense<0.000000e+00> : vector<16xf32>
    %37 = vector.multi_reduction <add>, %36, %cst_25 [1] : vector<16x16xf32> to vector<16xf32>
    %38 = vector.shape_cast %37 : vector<16xf32> to vector<16x1xf32>
    %39 = vector.broadcast %38 : vector<16x1xf32> to vector<16x16xf32>
    %40 = arith.divf %36, %39 : vector<16x16xf32>
    %cst_26 = arith.constant dense<0.000000e+00> : vector<16x8xf32>
    %41 = tpu.matmul %40, %27, %cst_26 {dimension_numbers = #tpu.dot_dimension_numbers<[1], [0], [0], [1], [0, 0, 1, 1], [], []>} : vector<16x16xf32>, vector<16x8xf32>, vector<16x8xf32> -> vector<16x8xf32>
    %c0_27 = arith.constant 0 : index
    %c192 = arith.constant 192 : index
    %c0_28 = arith.constant 0 : index
    %42 = vector.load %arg4[%c0_27, %c192, %c0_28] : memref<2x384x32xf32, #tpu.memory_space<vmem>>, vector<1x8x32xf32>
    %43 = vector.shape_cast %42 : vector<1x8x32xf32> to vector<8x32xf32>
    %cst_29 = arith.constant dense<0.000000e+00> : vector<16x32xf32>
    %44 = tpu.matmul %41, %43, %cst_29 {dimension_numbers = #tpu.dot_dimension_numbers<[1], [0], [0], [1], [0, 0, 1, 1], [], []>} : vector<16x8xf32>, vector<8x32xf32>, vector<16x32xf32> -> vector<16x32xf32>
    %45 = arith.addf %0, %44 : vector<16x32xf32>
    %46 = vector.extract_strided_slice %24 {offsets = [0, 8], sizes = [16, 8], strides = [1, 1]} : vector<16x96xf32> to vector<16x8xf32>
    %47 = vector.extract_strided_slice %24 {offsets = [0, 40], sizes = [16, 8], strides = [1, 1]} : vector<16x96xf32> to vector<16x8xf32>
    %48 = vector.extract_strided_slice %24 {offsets = [0, 72], sizes = [16, 8], strides = [1, 1]} : vector<16x96xf32> to vector<16x8xf32>
    %cst_30 = arith.constant dense<0.000000e+00> : vector<16x16xf32>
    %49 = tpu.matmul %46, %47, %cst_30 {dimension_numbers = #tpu.dot_dimension_numbers<[1], [1], [0], [0], [0, 0, 1, 0], [], []>} : vector<16x8xf32>, vector<16x8xf32>, vector<16x16xf32> -> vector<16x16xf32>
    %c0_31 = arith.constant 0 : index
    %c1_32 = arith.constant 1 : index
    %c0_33 = arith.constant 0 : index
    %c0_34 = arith.constant 0 : index
    %50 = vector.load %arg2[%c0_31, %c1_32, %c0_33, %c0_34] : memref<2x4x16x16xf32, #tpu.memory_space<vmem>>, vector<1x1x16x16xf32>
    %51 = vector.shape_cast %50 : vector<1x1x16x16xf32> to vector<16x16xf32>
    %52 = arith.addf %49, %51 : vector<16x16xf32>
    %cst_35 = arith.constant dense<0xFF800000> : vector<16xf32>
    %53 = vector.multi_reduction <maximumf>, %52, %cst_35 [1] : vector<16x16xf32> to vector<16xf32>
    %54 = vector.shape_cast %53 : vector<16xf32> to vector<16x1xf32>
    %55 = vector.broadcast %54 : vector<16x1xf32> to vector<16x16xf32>
    %56 = arith.subf %52, %55 : vector<16x16xf32>
    %57 = math.exp %56 : vector<16x16xf32>
    %cst_36 = arith.constant dense<0.000000e+00> : vector<16xf32>
    %58 = vector.multi_reduction <add>, %57, %cst_36 [1] : vector<16x16xf32> to vector<16xf32>
    %59 = vector.shape_cast %58 : vector<16xf32> to vector<16x1xf32>
    %60 = vector.broadcast %59 : vector<16x1xf32> to vector<16x16xf32>
    %61 = arith.divf %57, %60 : vector<16x16xf32>
    %cst_37 = arith.constant dense<0.000000e+00> : vector<16x8xf32>
    %62 = tpu.matmul %61, %48, %cst_37 {dimension_numbers = #tpu.dot_dimension_numbers<[1], [0], [0], [1], [0, 0, 1, 1], [], []>} : vector<16x16xf32>, vector<16x8xf32>, vector<16x8xf32> -> vector<16x8xf32>
    %c0_38 = arith.constant 0 : index
    %c200 = arith.constant 200 : index
    %c0_39 = arith.constant 0 : index
    %63 = vector.load %arg4[%c0_38, %c200, %c0_39] : memref<2x384x32xf32, #tpu.memory_space<vmem>>, vector<1x8x32xf32>
    %64 = vector.shape_cast %63 : vector<1x8x32xf32> to vector<8x32xf32>
    %cst_40 = arith.constant dense<0.000000e+00> : vector<16x32xf32>
    %65 = tpu.matmul %62, %64, %cst_40 {dimension_numbers = #tpu.dot_dimension_numbers<[1], [0], [0], [1], [0, 0, 1, 1], [], []>} : vector<16x8xf32>, vector<8x32xf32>, vector<16x32xf32> -> vector<16x32xf32>
    %66 = arith.addf %45, %65 : vector<16x32xf32>
    %67 = vector.extract_strided_slice %24 {offsets = [0, 16], sizes = [16, 8], strides = [1, 1]} : vector<16x96xf32> to vector<16x8xf32>
    %68 = vector.extract_strided_slice %24 {offsets = [0, 48], sizes = [16, 8], strides = [1, 1]} : vector<16x96xf32> to vector<16x8xf32>
    %69 = vector.extract_strided_slice %24 {offsets = [0, 80], sizes = [16, 8], strides = [1, 1]} : vector<16x96xf32> to vector<16x8xf32>
    %cst_41 = arith.constant dense<0.000000e+00> : vector<16x16xf32>
    %70 = tpu.matmul %67, %68, %cst_41 {dimension_numbers = #tpu.dot_dimension_numbers<[1], [1], [0], [0], [0, 0, 1, 0], [], []>} : vector<16x8xf32>, vector<16x8xf32>, vector<16x16xf32> -> vector<16x16xf32>
    %c0_42 = arith.constant 0 : index
    %c2 = arith.constant 2 : index
    %c0_43 = arith.constant 0 : index
    %c0_44 = arith.constant 0 : index
    %71 = vector.load %arg2[%c0_42, %c2, %c0_43, %c0_44] : memref<2x4x16x16xf32, #tpu.memory_space<vmem>>, vector<1x1x16x16xf32>
    %72 = vector.shape_cast %71 : vector<1x1x16x16xf32> to vector<16x16xf32>
    %73 = arith.addf %70, %72 : vector<16x16xf32>
    %cst_45 = arith.constant dense<0xFF800000> : vector<16xf32>
    %74 = vector.multi_reduction <maximumf>, %73, %cst_45 [1] : vector<16x16xf32> to vector<16xf32>
    %75 = vector.shape_cast %74 : vector<16xf32> to vector<16x1xf32>
    %76 = vector.broadcast %75 : vector<16x1xf32> to vector<16x16xf32>
    %77 = arith.subf %73, %76 : vector<16x16xf32>
    %78 = math.exp %77 : vector<16x16xf32>
    %cst_46 = arith.constant dense<0.000000e+00> : vector<16xf32>
    %79 = vector.multi_reduction <add>, %78, %cst_46 [1] : vector<16x16xf32> to vector<16xf32>
    %80 = vector.shape_cast %79 : vector<16xf32> to vector<16x1xf32>
    %81 = vector.broadcast %80 : vector<16x1xf32> to vector<16x16xf32>
    %82 = arith.divf %78, %81 : vector<16x16xf32>
    %cst_47 = arith.constant dense<0.000000e+00> : vector<16x8xf32>
    %83 = tpu.matmul %82, %69, %cst_47 {dimension_numbers = #tpu.dot_dimension_numbers<[1], [0], [0], [1], [0, 0, 1, 1], [], []>} : vector<16x16xf32>, vector<16x8xf32>, vector<16x8xf32> -> vector<16x8xf32>
    %c0_48 = arith.constant 0 : index
    %c208 = arith.constant 208 : index
    %c0_49 = arith.constant 0 : index
    %84 = vector.load %arg4[%c0_48, %c208, %c0_49] : memref<2x384x32xf32, #tpu.memory_space<vmem>>, vector<1x8x32xf32>
    %85 = vector.shape_cast %84 : vector<1x8x32xf32> to vector<8x32xf32>
    %cst_50 = arith.constant dense<0.000000e+00> : vector<16x32xf32>
    %86 = tpu.matmul %83, %85, %cst_50 {dimension_numbers = #tpu.dot_dimension_numbers<[1], [0], [0], [1], [0, 0, 1, 1], [], []>} : vector<16x8xf32>, vector<8x32xf32>, vector<16x32xf32> -> vector<16x32xf32>
    %87 = arith.addf %66, %86 : vector<16x32xf32>
    %88 = vector.extract_strided_slice %24 {offsets = [0, 24], sizes = [16, 8], strides = [1, 1]} : vector<16x96xf32> to vector<16x8xf32>
    %89 = vector.extract_strided_slice %24 {offsets = [0, 56], sizes = [16, 8], strides = [1, 1]} : vector<16x96xf32> to vector<16x8xf32>
    %90 = vector.extract_strided_slice %24 {offsets = [0, 88], sizes = [16, 8], strides = [1, 1]} : vector<16x96xf32> to vector<16x8xf32>
    %cst_51 = arith.constant dense<0.000000e+00> : vector<16x16xf32>
    %91 = tpu.matmul %88, %89, %cst_51 {dimension_numbers = #tpu.dot_dimension_numbers<[1], [1], [0], [0], [0, 0, 1, 0], [], []>} : vector<16x8xf32>, vector<16x8xf32>, vector<16x16xf32> -> vector<16x16xf32>
    %c0_52 = arith.constant 0 : index
    %c3 = arith.constant 3 : index
    %c0_53 = arith.constant 0 : index
    %c0_54 = arith.constant 0 : index
    %92 = vector.load %arg2[%c0_52, %c3, %c0_53, %c0_54] : memref<2x4x16x16xf32, #tpu.memory_space<vmem>>, vector<1x1x16x16xf32>
    %93 = vector.shape_cast %92 : vector<1x1x16x16xf32> to vector<16x16xf32>
    %94 = arith.addf %91, %93 : vector<16x16xf32>
    %cst_55 = arith.constant dense<0xFF800000> : vector<16xf32>
    %95 = vector.multi_reduction <maximumf>, %94, %cst_55 [1] : vector<16x16xf32> to vector<16xf32>
    %96 = vector.shape_cast %95 : vector<16xf32> to vector<16x1xf32>
    %97 = vector.broadcast %96 : vector<16x1xf32> to vector<16x16xf32>
    %98 = arith.subf %94, %97 : vector<16x16xf32>
    %99 = math.exp %98 : vector<16x16xf32>
    %cst_56 = arith.constant dense<0.000000e+00> : vector<16xf32>
    %100 = vector.multi_reduction <add>, %99, %cst_56 [1] : vector<16x16xf32> to vector<16xf32>
    %101 = vector.shape_cast %100 : vector<16xf32> to vector<16x1xf32>
    %102 = vector.broadcast %101 : vector<16x1xf32> to vector<16x16xf32>
    %103 = arith.divf %99, %102 : vector<16x16xf32>
    %cst_57 = arith.constant dense<0.000000e+00> : vector<16x8xf32>
    %104 = tpu.matmul %103, %90, %cst_57 {dimension_numbers = #tpu.dot_dimension_numbers<[1], [0], [0], [1], [0, 0, 1, 1], [], []>} : vector<16x16xf32>, vector<16x8xf32>, vector<16x8xf32> -> vector<16x8xf32>
    %c0_58 = arith.constant 0 : index
    %c216 = arith.constant 216 : index
    %c0_59 = arith.constant 0 : index
    %105 = vector.load %arg4[%c0_58, %c216, %c0_59] : memref<2x384x32xf32, #tpu.memory_space<vmem>>, vector<1x8x32xf32>
    %106 = vector.shape_cast %105 : vector<1x8x32xf32> to vector<8x32xf32>
    %cst_60 = arith.constant dense<0.000000e+00> : vector<16x32xf32>
    %107 = tpu.matmul %104, %106, %cst_60 {dimension_numbers = #tpu.dot_dimension_numbers<[1], [0], [0], [1], [0, 0, 1, 1], [], []>} : vector<16x8xf32>, vector<8x32xf32>, vector<16x32xf32> -> vector<16x32xf32>
    %108 = arith.addf %87, %107 : vector<16x32xf32>
    %c1_61 = arith.constant 1 : index
    %c0_62 = arith.constant 0 : index
    %109 = vector.load %arg5[%c1_61, %c0_62] : memref<7x32xf32, #tpu.memory_space<vmem>>, vector<1x32xf32>
    %110 = arith.mulf %108, %108 : vector<16x32xf32>
    %cst_63 = arith.constant dense<0.000000e+00> : vector<16xf32>
    %111 = vector.multi_reduction <add>, %110, %cst_63 [1] : vector<16x32xf32> to vector<16xf32>
    %112 = vector.shape_cast %111 : vector<16xf32> to vector<16x1xf32>
    %cst_64 = arith.constant 3.200000e+01 : f32
    %113 = vector.broadcast %cst_64 : f32 to vector<16x1xf32>
    %114 = arith.divf %112, %113 : vector<16x1xf32>
    %cst_65 = arith.constant 9.99999997E-7 : f32
    %115 = vector.broadcast %cst_65 : f32 to vector<16x1xf32>
    %116 = arith.addf %114, %115 : vector<16x1xf32>
    %117 = math.rsqrt %116 : vector<16x1xf32>
    %118 = vector.broadcast %117 : vector<16x1xf32> to vector<16x32xf32>
    %119 = arith.mulf %108, %118 : vector<16x32xf32>
    %120 = vector.broadcast %109 : vector<1x32xf32> to vector<16x32xf32>
    %121 = arith.mulf %119, %120 : vector<16x32xf32>
    %c0_66 = arith.constant 0 : index
    %c96 = arith.constant 96 : index
    %c0_67 = arith.constant 0 : index
    %122 = vector.load %arg4[%c0_66, %c96, %c0_67] : memref<2x384x32xf32, #tpu.memory_space<vmem>>, vector<1x32x32xf32>
    %123 = vector.shape_cast %122 : vector<1x32x32xf32> to vector<32x32xf32>
    %cst_68 = arith.constant dense<0.000000e+00> : vector<16x32xf32>
    %124 = tpu.matmul %121, %123, %cst_68 {dimension_numbers = #tpu.dot_dimension_numbers<[1], [1], [0], [0], [0, 0, 1, 0], [], []>} : vector<16x32xf32>, vector<32x32xf32>, vector<16x32xf32> -> vector<16x32xf32>
    %125 = vector.extract_strided_slice %124 {offsets = [0, 0], sizes = [16, 8], strides = [1, 1]} : vector<16x32xf32> to vector<16x8xf32>
    %126 = vector.extract_strided_slice %5 {offsets = [0, 0], sizes = [16, 8], strides = [1, 1]} : vector<16x64xf32> to vector<16x8xf32>
    %127 = vector.extract_strided_slice %5 {offsets = [0, 32], sizes = [16, 8], strides = [1, 1]} : vector<16x64xf32> to vector<16x8xf32>
    %cst_69 = arith.constant dense<0.000000e+00> : vector<16x16xf32>
    %128 = tpu.matmul %125, %126, %cst_69 {dimension_numbers = #tpu.dot_dimension_numbers<[1], [1], [0], [0], [0, 0, 1, 0], [], []>} : vector<16x8xf32>, vector<16x8xf32>, vector<16x16xf32> -> vector<16x16xf32>
    %129 = arith.addf %128, %2 : vector<16x16xf32>
    %cst_70 = arith.constant dense<0xFF800000> : vector<16xf32>
    %130 = vector.multi_reduction <maximumf>, %129, %cst_70 [1] : vector<16x16xf32> to vector<16xf32>
    %131 = vector.shape_cast %130 : vector<16xf32> to vector<16x1xf32>
    %132 = vector.broadcast %131 : vector<16x1xf32> to vector<16x16xf32>
    %133 = arith.subf %129, %132 : vector<16x16xf32>
    %134 = math.exp %133 : vector<16x16xf32>
    %cst_71 = arith.constant dense<0.000000e+00> : vector<16xf32>
    %135 = vector.multi_reduction <add>, %134, %cst_71 [1] : vector<16x16xf32> to vector<16xf32>
    %136 = vector.shape_cast %135 : vector<16xf32> to vector<16x1xf32>
    %137 = vector.broadcast %136 : vector<16x1xf32> to vector<16x16xf32>
    %138 = arith.divf %134, %137 : vector<16x16xf32>
    %cst_72 = arith.constant dense<0.000000e+00> : vector<16x8xf32>
    %139 = tpu.matmul %138, %127, %cst_72 {dimension_numbers = #tpu.dot_dimension_numbers<[1], [0], [0], [1], [0, 0, 1, 1], [], []>} : vector<16x16xf32>, vector<16x8xf32>, vector<16x8xf32> -> vector<16x8xf32>
    %c0_73 = arith.constant 0 : index
    %c224 = arith.constant 224 : index
    %c0_74 = arith.constant 0 : index
    %140 = vector.load %arg4[%c0_73, %c224, %c0_74] : memref<2x384x32xf32, #tpu.memory_space<vmem>>, vector<1x8x32xf32>
    %141 = vector.shape_cast %140 : vector<1x8x32xf32> to vector<8x32xf32>
    %cst_75 = arith.constant dense<0.000000e+00> : vector<16x32xf32>
    %142 = tpu.matmul %139, %141, %cst_75 {dimension_numbers = #tpu.dot_dimension_numbers<[1], [0], [0], [1], [0, 0, 1, 1], [], []>} : vector<16x8xf32>, vector<8x32xf32>, vector<16x32xf32> -> vector<16x32xf32>
    %143 = arith.addf %108, %142 : vector<16x32xf32>
    %144 = vector.extract_strided_slice %124 {offsets = [0, 8], sizes = [16, 8], strides = [1, 1]} : vector<16x32xf32> to vector<16x8xf32>
    %145 = vector.extract_strided_slice %5 {offsets = [0, 8], sizes = [16, 8], strides = [1, 1]} : vector<16x64xf32> to vector<16x8xf32>
    %146 = vector.extract_strided_slice %5 {offsets = [0, 40], sizes = [16, 8], strides = [1, 1]} : vector<16x64xf32> to vector<16x8xf32>
    %cst_76 = arith.constant dense<0.000000e+00> : vector<16x16xf32>
    %147 = tpu.matmul %144, %145, %cst_76 {dimension_numbers = #tpu.dot_dimension_numbers<[1], [1], [0], [0], [0, 0, 1, 0], [], []>} : vector<16x8xf32>, vector<16x8xf32>, vector<16x16xf32> -> vector<16x16xf32>
    %148 = arith.addf %147, %2 : vector<16x16xf32>
    %cst_77 = arith.constant dense<0xFF800000> : vector<16xf32>
    %149 = vector.multi_reduction <maximumf>, %148, %cst_77 [1] : vector<16x16xf32> to vector<16xf32>
    %150 = vector.shape_cast %149 : vector<16xf32> to vector<16x1xf32>
    %151 = vector.broadcast %150 : vector<16x1xf32> to vector<16x16xf32>
    %152 = arith.subf %148, %151 : vector<16x16xf32>
    %153 = math.exp %152 : vector<16x16xf32>
    %cst_78 = arith.constant dense<0.000000e+00> : vector<16xf32>
    %154 = vector.multi_reduction <add>, %153, %cst_78 [1] : vector<16x16xf32> to vector<16xf32>
    %155 = vector.shape_cast %154 : vector<16xf32> to vector<16x1xf32>
    %156 = vector.broadcast %155 : vector<16x1xf32> to vector<16x16xf32>
    %157 = arith.divf %153, %156 : vector<16x16xf32>
    %cst_79 = arith.constant dense<0.000000e+00> : vector<16x8xf32>
    %158 = tpu.matmul %157, %146, %cst_79 {dimension_numbers = #tpu.dot_dimension_numbers<[1], [0], [0], [1], [0, 0, 1, 1], [], []>} : vector<16x16xf32>, vector<16x8xf32>, vector<16x8xf32> -> vector<16x8xf32>
    %c0_80 = arith.constant 0 : index
    %c232 = arith.constant 232 : index
    %c0_81 = arith.constant 0 : index
    %159 = vector.load %arg4[%c0_80, %c232, %c0_81] : memref<2x384x32xf32, #tpu.memory_space<vmem>>, vector<1x8x32xf32>
    %160 = vector.shape_cast %159 : vector<1x8x32xf32> to vector<8x32xf32>
    %cst_82 = arith.constant dense<0.000000e+00> : vector<16x32xf32>
    %161 = tpu.matmul %158, %160, %cst_82 {dimension_numbers = #tpu.dot_dimension_numbers<[1], [0], [0], [1], [0, 0, 1, 1], [], []>} : vector<16x8xf32>, vector<8x32xf32>, vector<16x32xf32> -> vector<16x32xf32>
    %162 = arith.addf %143, %161 : vector<16x32xf32>
    %163 = vector.extract_strided_slice %124 {offsets = [0, 16], sizes = [16, 8], strides = [1, 1]} : vector<16x32xf32> to vector<16x8xf32>
    %164 = vector.extract_strided_slice %5 {offsets = [0, 16], sizes = [16, 8], strides = [1, 1]} : vector<16x64xf32> to vector<16x8xf32>
    %165 = vector.extract_strided_slice %5 {offsets = [0, 48], sizes = [16, 8], strides = [1, 1]} : vector<16x64xf32> to vector<16x8xf32>
    %cst_83 = arith.constant dense<0.000000e+00> : vector<16x16xf32>
    %166 = tpu.matmul %163, %164, %cst_83 {dimension_numbers = #tpu.dot_dimension_numbers<[1], [1], [0], [0], [0, 0, 1, 0], [], []>} : vector<16x8xf32>, vector<16x8xf32>, vector<16x16xf32> -> vector<16x16xf32>
    %167 = arith.addf %166, %2 : vector<16x16xf32>
    %cst_84 = arith.constant dense<0xFF800000> : vector<16xf32>
    %168 = vector.multi_reduction <maximumf>, %167, %cst_84 [1] : vector<16x16xf32> to vector<16xf32>
    %169 = vector.shape_cast %168 : vector<16xf32> to vector<16x1xf32>
    %170 = vector.broadcast %169 : vector<16x1xf32> to vector<16x16xf32>
    %171 = arith.subf %167, %170 : vector<16x16xf32>
    %172 = math.exp %171 : vector<16x16xf32>
    %cst_85 = arith.constant dense<0.000000e+00> : vector<16xf32>
    %173 = vector.multi_reduction <add>, %172, %cst_85 [1] : vector<16x16xf32> to vector<16xf32>
    %174 = vector.shape_cast %173 : vector<16xf32> to vector<16x1xf32>
    %175 = vector.broadcast %174 : vector<16x1xf32> to vector<16x16xf32>
    %176 = arith.divf %172, %175 : vector<16x16xf32>
    %cst_86 = arith.constant dense<0.000000e+00> : vector<16x8xf32>
    %177 = tpu.matmul %176, %165, %cst_86 {dimension_numbers = #tpu.dot_dimension_numbers<[1], [0], [0], [1], [0, 0, 1, 1], [], []>} : vector<16x16xf32>, vector<16x8xf32>, vector<16x8xf32> -> vector<16x8xf32>
    %c0_87 = arith.constant 0 : index
    %c240 = arith.constant 240 : index
    %c0_88 = arith.constant 0 : index
    %178 = vector.load %arg4[%c0_87, %c240, %c0_88] : memref<2x384x32xf32, #tpu.memory_space<vmem>>, vector<1x8x32xf32>
    %179 = vector.shape_cast %178 : vector<1x8x32xf32> to vector<8x32xf32>
    %cst_89 = arith.constant dense<0.000000e+00> : vector<16x32xf32>
    %180 = tpu.matmul %177, %179, %cst_89 {dimension_numbers = #tpu.dot_dimension_numbers<[1], [0], [0], [1], [0, 0, 1, 1], [], []>} : vector<16x8xf32>, vector<8x32xf32>, vector<16x32xf32> -> vector<16x32xf32>
    %181 = arith.addf %162, %180 : vector<16x32xf32>
    %182 = vector.extract_strided_slice %124 {offsets = [0, 24], sizes = [16, 8], strides = [1, 1]} : vector<16x32xf32> to vector<16x8xf32>
    %183 = vector.extract_strided_slice %5 {offsets = [0, 24], sizes = [16, 8], strides = [1, 1]} : vector<16x64xf32> to vector<16x8xf32>
    %184 = vector.extract_strided_slice %5 {offsets = [0, 56], sizes = [16, 8], strides = [1, 1]} : vector<16x64xf32> to vector<16x8xf32>
    %cst_90 = arith.constant dense<0.000000e+00> : vector<16x16xf32>
    %185 = tpu.matmul %182, %183, %cst_90 {dimension_numbers = #tpu.dot_dimension_numbers<[1], [1], [0], [0], [0, 0, 1, 0], [], []>} : vector<16x8xf32>, vector<16x8xf32>, vector<16x16xf32> -> vector<16x16xf32>
    %186 = arith.addf %185, %2 : vector<16x16xf32>
    %cst_91 = arith.constant dense<0xFF800000> : vector<16xf32>
    %187 = vector.multi_reduction <maximumf>, %186, %cst_91 [1] : vector<16x16xf32> to vector<16xf32>
    %188 = vector.shape_cast %187 : vector<16xf32> to vector<16x1xf32>
    %189 = vector.broadcast %188 : vector<16x1xf32> to vector<16x16xf32>
    %190 = arith.subf %186, %189 : vector<16x16xf32>
    %191 = math.exp %190 : vector<16x16xf32>
    %cst_92 = arith.constant dense<0.000000e+00> : vector<16xf32>
    %192 = vector.multi_reduction <add>, %191, %cst_92 [1] : vector<16x16xf32> to vector<16xf32>
    %193 = vector.shape_cast %192 : vector<16xf32> to vector<16x1xf32>
    %194 = vector.broadcast %193 : vector<16x1xf32> to vector<16x16xf32>
    %195 = arith.divf %191, %194 : vector<16x16xf32>
    %cst_93 = arith.constant dense<0.000000e+00> : vector<16x8xf32>
    %196 = tpu.matmul %195, %184, %cst_93 {dimension_numbers = #tpu.dot_dimension_numbers<[1], [0], [0], [1], [0, 0, 1, 1], [], []>} : vector<16x16xf32>, vector<16x8xf32>, vector<16x8xf32> -> vector<16x8xf32>
    %c0_94 = arith.constant 0 : index
    %c248 = arith.constant 248 : index
    %c0_95 = arith.constant 0 : index
    %197 = vector.load %arg4[%c0_94, %c248, %c0_95] : memref<2x384x32xf32, #tpu.memory_space<vmem>>, vector<1x8x32xf32>
    %198 = vector.shape_cast %197 : vector<1x8x32xf32> to vector<8x32xf32>
    %cst_96 = arith.constant dense<0.000000e+00> : vector<16x32xf32>
    %199 = tpu.matmul %196, %198, %cst_96 {dimension_numbers = #tpu.dot_dimension_numbers<[1], [0], [0], [1], [0, 0, 1, 1], [], []>} : vector<16x8xf32>, vector<8x32xf32>, vector<16x32xf32> -> vector<16x32xf32>
    %200 = arith.addf %181, %199 : vector<16x32xf32>
    %c2_97 = arith.constant 2 : index
    %c0_98 = arith.constant 0 : index
    %201 = vector.load %arg5[%c2_97, %c0_98] : memref<7x32xf32, #tpu.memory_space<vmem>>, vector<1x32xf32>
    %202 = arith.mulf %200, %200 : vector<16x32xf32>
    %cst_99 = arith.constant dense<0.000000e+00> : vector<16xf32>
    %203 = vector.multi_reduction <add>, %202, %cst_99 [1] : vector<16x32xf32> to vector<16xf32>
    %204 = vector.shape_cast %203 : vector<16xf32> to vector<16x1xf32>
    %cst_100 = arith.constant 3.200000e+01 : f32
    %205 = vector.broadcast %cst_100 : f32 to vector<16x1xf32>
    %206 = arith.divf %204, %205 : vector<16x1xf32>
    %cst_101 = arith.constant 9.99999997E-7 : f32
    %207 = vector.broadcast %cst_101 : f32 to vector<16x1xf32>
    %208 = arith.addf %206, %207 : vector<16x1xf32>
    %209 = math.rsqrt %208 : vector<16x1xf32>
    %210 = vector.broadcast %209 : vector<16x1xf32> to vector<16x32xf32>
    %211 = arith.mulf %200, %210 : vector<16x32xf32>
    %212 = vector.broadcast %201 : vector<1x32xf32> to vector<16x32xf32>
    %213 = arith.mulf %211, %212 : vector<16x32xf32>
    %c0_102 = arith.constant 0 : index
    %c128 = arith.constant 128 : index
    %c0_103 = arith.constant 0 : index
    %214 = vector.load %arg4[%c0_102, %c128, %c0_103] : memref<2x384x32xf32, #tpu.memory_space<vmem>>, vector<1x64x32xf32>
    %215 = vector.shape_cast %214 : vector<1x64x32xf32> to vector<64x32xf32>
    %cst_104 = arith.constant dense<0.000000e+00> : vector<16x64xf32>
    %216 = tpu.matmul %213, %215, %cst_104 {dimension_numbers = #tpu.dot_dimension_numbers<[1], [1], [0], [0], [0, 0, 1, 0], [], []>} : vector<16x32xf32>, vector<64x32xf32>, vector<16x64xf32> -> vector<16x64xf32>
    %cst_105 = arith.constant 0.000000e+00 : f32
    %217 = vector.broadcast %cst_105 : f32 to vector<16x64xf32>
    %218 = arith.maximumf %216, %217 : vector<16x64xf32>
    %c0_106 = arith.constant 0 : index
    %c256 = arith.constant 256 : index
    %c0_107 = arith.constant 0 : index
    %219 = vector.load %arg4[%c0_106, %c256, %c0_107] : memref<2x384x32xf32, #tpu.memory_space<vmem>>, vector<1x64x32xf32>
    %220 = vector.shape_cast %219 : vector<1x64x32xf32> to vector<64x32xf32>
    %cst_108 = arith.constant dense<0.000000e+00> : vector<16x32xf32>
    %221 = tpu.matmul %218, %220, %cst_108 {dimension_numbers = #tpu.dot_dimension_numbers<[1], [0], [0], [1], [0, 0, 1, 1], [], []>} : vector<16x64xf32>, vector<64x32xf32>, vector<16x32xf32> -> vector<16x32xf32>
    %222 = arith.addf %200, %221 : vector<16x32xf32>
    %c3_109 = arith.constant 3 : index
    %c0_110 = arith.constant 0 : index
    %223 = vector.load %arg5[%c3_109, %c0_110] : memref<7x32xf32, #tpu.memory_space<vmem>>, vector<1x32xf32>
    %224 = arith.mulf %222, %222 : vector<16x32xf32>
    %cst_111 = arith.constant dense<0.000000e+00> : vector<16xf32>
    %225 = vector.multi_reduction <add>, %224, %cst_111 [1] : vector<16x32xf32> to vector<16xf32>
    %226 = vector.shape_cast %225 : vector<16xf32> to vector<16x1xf32>
    %cst_112 = arith.constant 3.200000e+01 : f32
    %227 = vector.broadcast %cst_112 : f32 to vector<16x1xf32>
    %228 = arith.divf %226, %227 : vector<16x1xf32>
    %cst_113 = arith.constant 9.99999997E-7 : f32
    %229 = vector.broadcast %cst_113 : f32 to vector<16x1xf32>
    %230 = arith.addf %228, %229 : vector<16x1xf32>
    %231 = math.rsqrt %230 : vector<16x1xf32>
    %232 = vector.broadcast %231 : vector<16x1xf32> to vector<16x32xf32>
    %233 = arith.mulf %222, %232 : vector<16x32xf32>
    %234 = vector.broadcast %223 : vector<1x32xf32> to vector<16x32xf32>
    %235 = arith.mulf %233, %234 : vector<16x32xf32>
    %c1_114 = arith.constant 1 : index
    %c0_115 = arith.constant 0 : index
    %c0_116 = arith.constant 0 : index
    %236 = vector.load %arg4[%c1_114, %c0_115, %c0_116] : memref<2x384x32xf32, #tpu.memory_space<vmem>>, vector<1x96x32xf32>
    %237 = vector.shape_cast %236 : vector<1x96x32xf32> to vector<96x32xf32>
    %cst_117 = arith.constant dense<0.000000e+00> : vector<16x96xf32>
    %238 = tpu.matmul %235, %237, %cst_117 {dimension_numbers = #tpu.dot_dimension_numbers<[1], [1], [0], [0], [0, 0, 1, 0], [], []>} : vector<16x32xf32>, vector<96x32xf32>, vector<16x96xf32> -> vector<16x96xf32>
    %239 = vector.extract_strided_slice %238 {offsets = [0, 0], sizes = [16, 8], strides = [1, 1]} : vector<16x96xf32> to vector<16x8xf32>
    %240 = vector.extract_strided_slice %238 {offsets = [0, 32], sizes = [16, 8], strides = [1, 1]} : vector<16x96xf32> to vector<16x8xf32>
    %241 = vector.extract_strided_slice %238 {offsets = [0, 64], sizes = [16, 8], strides = [1, 1]} : vector<16x96xf32> to vector<16x8xf32>
    %cst_118 = arith.constant dense<0.000000e+00> : vector<16x16xf32>
    %242 = tpu.matmul %239, %240, %cst_118 {dimension_numbers = #tpu.dot_dimension_numbers<[1], [1], [0], [0], [0, 0, 1, 0], [], []>} : vector<16x8xf32>, vector<16x8xf32>, vector<16x16xf32> -> vector<16x16xf32>
    %c1_119 = arith.constant 1 : index
    %c0_120 = arith.constant 0 : index
    %c0_121 = arith.constant 0 : index
    %c0_122 = arith.constant 0 : index
    %243 = vector.load %arg2[%c1_119, %c0_120, %c0_121, %c0_122] : memref<2x4x16x16xf32, #tpu.memory_space<vmem>>, vector<1x1x16x16xf32>
    %244 = vector.shape_cast %243 : vector<1x1x16x16xf32> to vector<16x16xf32>
    %245 = arith.addf %242, %244 : vector<16x16xf32>
    %cst_123 = arith.constant dense<0xFF800000> : vector<16xf32>
    %246 = vector.multi_reduction <maximumf>, %245, %cst_123 [1] : vector<16x16xf32> to vector<16xf32>
    %247 = vector.shape_cast %246 : vector<16xf32> to vector<16x1xf32>
    %248 = vector.broadcast %247 : vector<16x1xf32> to vector<16x16xf32>
    %249 = arith.subf %245, %248 : vector<16x16xf32>
    %250 = math.exp %249 : vector<16x16xf32>
    %cst_124 = arith.constant dense<0.000000e+00> : vector<16xf32>
    %251 = vector.multi_reduction <add>, %250, %cst_124 [1] : vector<16x16xf32> to vector<16xf32>
    %252 = vector.shape_cast %251 : vector<16xf32> to vector<16x1xf32>
    %253 = vector.broadcast %252 : vector<16x1xf32> to vector<16x16xf32>
    %254 = arith.divf %250, %253 : vector<16x16xf32>
    %cst_125 = arith.constant dense<0.000000e+00> : vector<16x8xf32>
    %255 = tpu.matmul %254, %241, %cst_125 {dimension_numbers = #tpu.dot_dimension_numbers<[1], [0], [0], [1], [0, 0, 1, 1], [], []>} : vector<16x16xf32>, vector<16x8xf32>, vector<16x8xf32> -> vector<16x8xf32>
    %c1_126 = arith.constant 1 : index
    %c192_127 = arith.constant 192 : index
    %c0_128 = arith.constant 0 : index
    %256 = vector.load %arg4[%c1_126, %c192_127, %c0_128] : memref<2x384x32xf32, #tpu.memory_space<vmem>>, vector<1x8x32xf32>
    %257 = vector.shape_cast %256 : vector<1x8x32xf32> to vector<8x32xf32>
    %cst_129 = arith.constant dense<0.000000e+00> : vector<16x32xf32>
    %258 = tpu.matmul %255, %257, %cst_129 {dimension_numbers = #tpu.dot_dimension_numbers<[1], [0], [0], [1], [0, 0, 1, 1], [], []>} : vector<16x8xf32>, vector<8x32xf32>, vector<16x32xf32> -> vector<16x32xf32>
    %259 = arith.addf %222, %258 : vector<16x32xf32>
    %260 = vector.extract_strided_slice %238 {offsets = [0, 8], sizes = [16, 8], strides = [1, 1]} : vector<16x96xf32> to vector<16x8xf32>
    %261 = vector.extract_strided_slice %238 {offsets = [0, 40], sizes = [16, 8], strides = [1, 1]} : vector<16x96xf32> to vector<16x8xf32>
    %262 = vector.extract_strided_slice %238 {offsets = [0, 72], sizes = [16, 8], strides = [1, 1]} : vector<16x96xf32> to vector<16x8xf32>
    %cst_130 = arith.constant dense<0.000000e+00> : vector<16x16xf32>
    %263 = tpu.matmul %260, %261, %cst_130 {dimension_numbers = #tpu.dot_dimension_numbers<[1], [1], [0], [0], [0, 0, 1, 0], [], []>} : vector<16x8xf32>, vector<16x8xf32>, vector<16x16xf32> -> vector<16x16xf32>
    %c1_131 = arith.constant 1 : index
    %c1_132 = arith.constant 1 : index
    %c0_133 = arith.constant 0 : index
    %c0_134 = arith.constant 0 : index
    %264 = vector.load %arg2[%c1_131, %c1_132, %c0_133, %c0_134] : memref<2x4x16x16xf32, #tpu.memory_space<vmem>>, vector<1x1x16x16xf32>
    %265 = vector.shape_cast %264 : vector<1x1x16x16xf32> to vector<16x16xf32>
    %266 = arith.addf %263, %265 : vector<16x16xf32>
    %cst_135 = arith.constant dense<0xFF800000> : vector<16xf32>
    %267 = vector.multi_reduction <maximumf>, %266, %cst_135 [1] : vector<16x16xf32> to vector<16xf32>
    %268 = vector.shape_cast %267 : vector<16xf32> to vector<16x1xf32>
    %269 = vector.broadcast %268 : vector<16x1xf32> to vector<16x16xf32>
    %270 = arith.subf %266, %269 : vector<16x16xf32>
    %271 = math.exp %270 : vector<16x16xf32>
    %cst_136 = arith.constant dense<0.000000e+00> : vector<16xf32>
    %272 = vector.multi_reduction <add>, %271, %cst_136 [1] : vector<16x16xf32> to vector<16xf32>
    %273 = vector.shape_cast %272 : vector<16xf32> to vector<16x1xf32>
    %274 = vector.broadcast %273 : vector<16x1xf32> to vector<16x16xf32>
    %275 = arith.divf %271, %274 : vector<16x16xf32>
    %cst_137 = arith.constant dense<0.000000e+00> : vector<16x8xf32>
    %276 = tpu.matmul %275, %262, %cst_137 {dimension_numbers = #tpu.dot_dimension_numbers<[1], [0], [0], [1], [0, 0, 1, 1], [], []>} : vector<16x16xf32>, vector<16x8xf32>, vector<16x8xf32> -> vector<16x8xf32>
    %c1_138 = arith.constant 1 : index
    %c200_139 = arith.constant 200 : index
    %c0_140 = arith.constant 0 : index
    %277 = vector.load %arg4[%c1_138, %c200_139, %c0_140] : memref<2x384x32xf32, #tpu.memory_space<vmem>>, vector<1x8x32xf32>
    %278 = vector.shape_cast %277 : vector<1x8x32xf32> to vector<8x32xf32>
    %cst_141 = arith.constant dense<0.000000e+00> : vector<16x32xf32>
    %279 = tpu.matmul %276, %278, %cst_141 {dimension_numbers = #tpu.dot_dimension_numbers<[1], [0], [0], [1], [0, 0, 1, 1], [], []>} : vector<16x8xf32>, vector<8x32xf32>, vector<16x32xf32> -> vector<16x32xf32>
    %280 = arith.addf %259, %279 : vector<16x32xf32>
    %281 = vector.extract_strided_slice %238 {offsets = [0, 16], sizes = [16, 8], strides = [1, 1]} : vector<16x96xf32> to vector<16x8xf32>
    %282 = vector.extract_strided_slice %238 {offsets = [0, 48], sizes = [16, 8], strides = [1, 1]} : vector<16x96xf32> to vector<16x8xf32>
    %283 = vector.extract_strided_slice %238 {offsets = [0, 80], sizes = [16, 8], strides = [1, 1]} : vector<16x96xf32> to vector<16x8xf32>
    %cst_142 = arith.constant dense<0.000000e+00> : vector<16x16xf32>
    %284 = tpu.matmul %281, %282, %cst_142 {dimension_numbers = #tpu.dot_dimension_numbers<[1], [1], [0], [0], [0, 0, 1, 0], [], []>} : vector<16x8xf32>, vector<16x8xf32>, vector<16x16xf32> -> vector<16x16xf32>
    %c1_143 = arith.constant 1 : index
    %c2_144 = arith.constant 2 : index
    %c0_145 = arith.constant 0 : index
    %c0_146 = arith.constant 0 : index
    %285 = vector.load %arg2[%c1_143, %c2_144, %c0_145, %c0_146] : memref<2x4x16x16xf32, #tpu.memory_space<vmem>>, vector<1x1x16x16xf32>
    %286 = vector.shape_cast %285 : vector<1x1x16x16xf32> to vector<16x16xf32>
    %287 = arith.addf %284, %286 : vector<16x16xf32>
    %cst_147 = arith.constant dense<0xFF800000> : vector<16xf32>
    %288 = vector.multi_reduction <maximumf>, %287, %cst_147 [1] : vector<16x16xf32> to vector<16xf32>
    %289 = vector.shape_cast %288 : vector<16xf32> to vector<16x1xf32>
    %290 = vector.broadcast %289 : vector<16x1xf32> to vector<16x16xf32>
    %291 = arith.subf %287, %290 : vector<16x16xf32>
    %292 = math.exp %291 : vector<16x16xf32>
    %cst_148 = arith.constant dense<0.000000e+00> : vector<16xf32>
    %293 = vector.multi_reduction <add>, %292, %cst_148 [1] : vector<16x16xf32> to vector<16xf32>
    %294 = vector.shape_cast %293 : vector<16xf32> to vector<16x1xf32>
    %295 = vector.broadcast %294 : vector<16x1xf32> to vector<16x16xf32>
    %296 = arith.divf %292, %295 : vector<16x16xf32>
    %cst_149 = arith.constant dense<0.000000e+00> : vector<16x8xf32>
    %297 = tpu.matmul %296, %283, %cst_149 {dimension_numbers = #tpu.dot_dimension_numbers<[1], [0], [0], [1], [0, 0, 1, 1], [], []>} : vector<16x16xf32>, vector<16x8xf32>, vector<16x8xf32> -> vector<16x8xf32>
    %c1_150 = arith.constant 1 : index
    %c208_151 = arith.constant 208 : index
    %c0_152 = arith.constant 0 : index
    %298 = vector.load %arg4[%c1_150, %c208_151, %c0_152] : memref<2x384x32xf32, #tpu.memory_space<vmem>>, vector<1x8x32xf32>
    %299 = vector.shape_cast %298 : vector<1x8x32xf32> to vector<8x32xf32>
    %cst_153 = arith.constant dense<0.000000e+00> : vector<16x32xf32>
    %300 = tpu.matmul %297, %299, %cst_153 {dimension_numbers = #tpu.dot_dimension_numbers<[1], [0], [0], [1], [0, 0, 1, 1], [], []>} : vector<16x8xf32>, vector<8x32xf32>, vector<16x32xf32> -> vector<16x32xf32>
    %301 = arith.addf %280, %300 : vector<16x32xf32>
    %302 = vector.extract_strided_slice %238 {offsets = [0, 24], sizes = [16, 8], strides = [1, 1]} : vector<16x96xf32> to vector<16x8xf32>
    %303 = vector.extract_strided_slice %238 {offsets = [0, 56], sizes = [16, 8], strides = [1, 1]} : vector<16x96xf32> to vector<16x8xf32>
    %304 = vector.extract_strided_slice %238 {offsets = [0, 88], sizes = [16, 8], strides = [1, 1]} : vector<16x96xf32> to vector<16x8xf32>
    %cst_154 = arith.constant dense<0.000000e+00> : vector<16x16xf32>
    %305 = tpu.matmul %302, %303, %cst_154 {dimension_numbers = #tpu.dot_dimension_numbers<[1], [1], [0], [0], [0, 0, 1, 0], [], []>} : vector<16x8xf32>, vector<16x8xf32>, vector<16x16xf32> -> vector<16x16xf32>
    %c1_155 = arith.constant 1 : index
    %c3_156 = arith.constant 3 : index
    %c0_157 = arith.constant 0 : index
    %c0_158 = arith.constant 0 : index
    %306 = vector.load %arg2[%c1_155, %c3_156, %c0_157, %c0_158] : memref<2x4x16x16xf32, #tpu.memory_space<vmem>>, vector<1x1x16x16xf32>
    %307 = vector.shape_cast %306 : vector<1x1x16x16xf32> to vector<16x16xf32>
    %308 = arith.addf %305, %307 : vector<16x16xf32>
    %cst_159 = arith.constant dense<0xFF800000> : vector<16xf32>
    %309 = vector.multi_reduction <maximumf>, %308, %cst_159 [1] : vector<16x16xf32> to vector<16xf32>
    %310 = vector.shape_cast %309 : vector<16xf32> to vector<16x1xf32>
    %311 = vector.broadcast %310 : vector<16x1xf32> to vector<16x16xf32>
    %312 = arith.subf %308, %311 : vector<16x16xf32>
    %313 = math.exp %312 : vector<16x16xf32>
    %cst_160 = arith.constant dense<0.000000e+00> : vector<16xf32>
    %314 = vector.multi_reduction <add>, %313, %cst_160 [1] : vector<16x16xf32> to vector<16xf32>
    %315 = vector.shape_cast %314 : vector<16xf32> to vector<16x1xf32>
    %316 = vector.broadcast %315 : vector<16x1xf32> to vector<16x16xf32>
    %317 = arith.divf %313, %316 : vector<16x16xf32>
    %cst_161 = arith.constant dense<0.000000e+00> : vector<16x8xf32>
    %318 = tpu.matmul %317, %304, %cst_161 {dimension_numbers = #tpu.dot_dimension_numbers<[1], [0], [0], [1], [0, 0, 1, 1], [], []>} : vector<16x16xf32>, vector<16x8xf32>, vector<16x8xf32> -> vector<16x8xf32>
    %c1_162 = arith.constant 1 : index
    %c216_163 = arith.constant 216 : index
    %c0_164 = arith.constant 0 : index
    %319 = vector.load %arg4[%c1_162, %c216_163, %c0_164] : memref<2x384x32xf32, #tpu.memory_space<vmem>>, vector<1x8x32xf32>
    %320 = vector.shape_cast %319 : vector<1x8x32xf32> to vector<8x32xf32>
    %cst_165 = arith.constant dense<0.000000e+00> : vector<16x32xf32>
    %321 = tpu.matmul %318, %320, %cst_165 {dimension_numbers = #tpu.dot_dimension_numbers<[1], [0], [0], [1], [0, 0, 1, 1], [], []>} : vector<16x8xf32>, vector<8x32xf32>, vector<16x32xf32> -> vector<16x32xf32>
    %322 = arith.addf %301, %321 : vector<16x32xf32>
    %c4 = arith.constant 4 : index
    %c0_166 = arith.constant 0 : index
    %323 = vector.load %arg5[%c4, %c0_166] : memref<7x32xf32, #tpu.memory_space<vmem>>, vector<1x32xf32>
    %324 = arith.mulf %322, %322 : vector<16x32xf32>
    %cst_167 = arith.constant dense<0.000000e+00> : vector<16xf32>
    %325 = vector.multi_reduction <add>, %324, %cst_167 [1] : vector<16x32xf32> to vector<16xf32>
    %326 = vector.shape_cast %325 : vector<16xf32> to vector<16x1xf32>
    %cst_168 = arith.constant 3.200000e+01 : f32
    %327 = vector.broadcast %cst_168 : f32 to vector<16x1xf32>
    %328 = arith.divf %326, %327 : vector<16x1xf32>
    %cst_169 = arith.constant 9.99999997E-7 : f32
    %329 = vector.broadcast %cst_169 : f32 to vector<16x1xf32>
    %330 = arith.addf %328, %329 : vector<16x1xf32>
    %331 = math.rsqrt %330 : vector<16x1xf32>
    %332 = vector.broadcast %331 : vector<16x1xf32> to vector<16x32xf32>
    %333 = arith.mulf %322, %332 : vector<16x32xf32>
    %334 = vector.broadcast %323 : vector<1x32xf32> to vector<16x32xf32>
    %335 = arith.mulf %333, %334 : vector<16x32xf32>
    %c1_170 = arith.constant 1 : index
    %c96_171 = arith.constant 96 : index
    %c0_172 = arith.constant 0 : index
    %336 = vector.load %arg4[%c1_170, %c96_171, %c0_172] : memref<2x384x32xf32, #tpu.memory_space<vmem>>, vector<1x32x32xf32>
    %337 = vector.shape_cast %336 : vector<1x32x32xf32> to vector<32x32xf32>
    %cst_173 = arith.constant dense<0.000000e+00> : vector<16x32xf32>
    %338 = tpu.matmul %335, %337, %cst_173 {dimension_numbers = #tpu.dot_dimension_numbers<[1], [1], [0], [0], [0, 0, 1, 0], [], []>} : vector<16x32xf32>, vector<32x32xf32>, vector<16x32xf32> -> vector<16x32xf32>
    %339 = vector.extract_strided_slice %338 {offsets = [0, 0], sizes = [16, 8], strides = [1, 1]} : vector<16x32xf32> to vector<16x8xf32>
    %340 = vector.extract_strided_slice %8 {offsets = [0, 0], sizes = [16, 8], strides = [1, 1]} : vector<16x64xf32> to vector<16x8xf32>
    %341 = vector.extract_strided_slice %8 {offsets = [0, 32], sizes = [16, 8], strides = [1, 1]} : vector<16x64xf32> to vector<16x8xf32>
    %cst_174 = arith.constant dense<0.000000e+00> : vector<16x16xf32>
    %342 = tpu.matmul %339, %340, %cst_174 {dimension_numbers = #tpu.dot_dimension_numbers<[1], [1], [0], [0], [0, 0, 1, 0], [], []>} : vector<16x8xf32>, vector<16x8xf32>, vector<16x16xf32> -> vector<16x16xf32>
    %343 = arith.addf %342, %2 : vector<16x16xf32>
    %cst_175 = arith.constant dense<0xFF800000> : vector<16xf32>
    %344 = vector.multi_reduction <maximumf>, %343, %cst_175 [1] : vector<16x16xf32> to vector<16xf32>
    %345 = vector.shape_cast %344 : vector<16xf32> to vector<16x1xf32>
    %346 = vector.broadcast %345 : vector<16x1xf32> to vector<16x16xf32>
    %347 = arith.subf %343, %346 : vector<16x16xf32>
    %348 = math.exp %347 : vector<16x16xf32>
    %cst_176 = arith.constant dense<0.000000e+00> : vector<16xf32>
    %349 = vector.multi_reduction <add>, %348, %cst_176 [1] : vector<16x16xf32> to vector<16xf32>
    %350 = vector.shape_cast %349 : vector<16xf32> to vector<16x1xf32>
    %351 = vector.broadcast %350 : vector<16x1xf32> to vector<16x16xf32>
    %352 = arith.divf %348, %351 : vector<16x16xf32>
    %cst_177 = arith.constant dense<0.000000e+00> : vector<16x8xf32>
    %353 = tpu.matmul %352, %341, %cst_177 {dimension_numbers = #tpu.dot_dimension_numbers<[1], [0], [0], [1], [0, 0, 1, 1], [], []>} : vector<16x16xf32>, vector<16x8xf32>, vector<16x8xf32> -> vector<16x8xf32>
    %c1_178 = arith.constant 1 : index
    %c224_179 = arith.constant 224 : index
    %c0_180 = arith.constant 0 : index
    %354 = vector.load %arg4[%c1_178, %c224_179, %c0_180] : memref<2x384x32xf32, #tpu.memory_space<vmem>>, vector<1x8x32xf32>
    %355 = vector.shape_cast %354 : vector<1x8x32xf32> to vector<8x32xf32>
    %cst_181 = arith.constant dense<0.000000e+00> : vector<16x32xf32>
    %356 = tpu.matmul %353, %355, %cst_181 {dimension_numbers = #tpu.dot_dimension_numbers<[1], [0], [0], [1], [0, 0, 1, 1], [], []>} : vector<16x8xf32>, vector<8x32xf32>, vector<16x32xf32> -> vector<16x32xf32>
    %357 = arith.addf %322, %356 : vector<16x32xf32>
    %358 = vector.extract_strided_slice %338 {offsets = [0, 8], sizes = [16, 8], strides = [1, 1]} : vector<16x32xf32> to vector<16x8xf32>
    %359 = vector.extract_strided_slice %8 {offsets = [0, 8], sizes = [16, 8], strides = [1, 1]} : vector<16x64xf32> to vector<16x8xf32>
    %360 = vector.extract_strided_slice %8 {offsets = [0, 40], sizes = [16, 8], strides = [1, 1]} : vector<16x64xf32> to vector<16x8xf32>
    %cst_182 = arith.constant dense<0.000000e+00> : vector<16x16xf32>
    %361 = tpu.matmul %358, %359, %cst_182 {dimension_numbers = #tpu.dot_dimension_numbers<[1], [1], [0], [0], [0, 0, 1, 0], [], []>} : vector<16x8xf32>, vector<16x8xf32>, vector<16x16xf32> -> vector<16x16xf32>
    %362 = arith.addf %361, %2 : vector<16x16xf32>
    %cst_183 = arith.constant dense<0xFF800000> : vector<16xf32>
    %363 = vector.multi_reduction <maximumf>, %362, %cst_183 [1] : vector<16x16xf32> to vector<16xf32>
    %364 = vector.shape_cast %363 : vector<16xf32> to vector<16x1xf32>
    %365 = vector.broadcast %364 : vector<16x1xf32> to vector<16x16xf32>
    %366 = arith.subf %362, %365 : vector<16x16xf32>
    %367 = math.exp %366 : vector<16x16xf32>
    %cst_184 = arith.constant dense<0.000000e+00> : vector<16xf32>
    %368 = vector.multi_reduction <add>, %367, %cst_184 [1] : vector<16x16xf32> to vector<16xf32>
    %369 = vector.shape_cast %368 : vector<16xf32> to vector<16x1xf32>
    %370 = vector.broadcast %369 : vector<16x1xf32> to vector<16x16xf32>
    %371 = arith.divf %367, %370 : vector<16x16xf32>
    %cst_185 = arith.constant dense<0.000000e+00> : vector<16x8xf32>
    %372 = tpu.matmul %371, %360, %cst_185 {dimension_numbers = #tpu.dot_dimension_numbers<[1], [0], [0], [1], [0, 0, 1, 1], [], []>} : vector<16x16xf32>, vector<16x8xf32>, vector<16x8xf32> -> vector<16x8xf32>
    %c1_186 = arith.constant 1 : index
    %c232_187 = arith.constant 232 : index
    %c0_188 = arith.constant 0 : index
    %373 = vector.load %arg4[%c1_186, %c232_187, %c0_188] : memref<2x384x32xf32, #tpu.memory_space<vmem>>, vector<1x8x32xf32>
    %374 = vector.shape_cast %373 : vector<1x8x32xf32> to vector<8x32xf32>
    %cst_189 = arith.constant dense<0.000000e+00> : vector<16x32xf32>
    %375 = tpu.matmul %372, %374, %cst_189 {dimension_numbers = #tpu.dot_dimension_numbers<[1], [0], [0], [1], [0, 0, 1, 1], [], []>} : vector<16x8xf32>, vector<8x32xf32>, vector<16x32xf32> -> vector<16x32xf32>
    %376 = arith.addf %357, %375 : vector<16x32xf32>
    %377 = vector.extract_strided_slice %338 {offsets = [0, 16], sizes = [16, 8], strides = [1, 1]} : vector<16x32xf32> to vector<16x8xf32>
    %378 = vector.extract_strided_slice %8 {offsets = [0, 16], sizes = [16, 8], strides = [1, 1]} : vector<16x64xf32> to vector<16x8xf32>
    %379 = vector.extract_strided_slice %8 {offsets = [0, 48], sizes = [16, 8], strides = [1, 1]} : vector<16x64xf32> to vector<16x8xf32>
    %cst_190 = arith.constant dense<0.000000e+00> : vector<16x16xf32>
    %380 = tpu.matmul %377, %378, %cst_190 {dimension_numbers = #tpu.dot_dimension_numbers<[1], [1], [0], [0], [0, 0, 1, 0], [], []>} : vector<16x8xf32>, vector<16x8xf32>, vector<16x16xf32> -> vector<16x16xf32>
    %381 = arith.addf %380, %2 : vector<16x16xf32>
    %cst_191 = arith.constant dense<0xFF800000> : vector<16xf32>
    %382 = vector.multi_reduction <maximumf>, %381, %cst_191 [1] : vector<16x16xf32> to vector<16xf32>
    %383 = vector.shape_cast %382 : vector<16xf32> to vector<16x1xf32>
    %384 = vector.broadcast %383 : vector<16x1xf32> to vector<16x16xf32>
    %385 = arith.subf %381, %384 : vector<16x16xf32>
    %386 = math.exp %385 : vector<16x16xf32>
    %cst_192 = arith.constant dense<0.000000e+00> : vector<16xf32>
    %387 = vector.multi_reduction <add>, %386, %cst_192 [1] : vector<16x16xf32> to vector<16xf32>
    %388 = vector.shape_cast %387 : vector<16xf32> to vector<16x1xf32>
    %389 = vector.broadcast %388 : vector<16x1xf32> to vector<16x16xf32>
    %390 = arith.divf %386, %389 : vector<16x16xf32>
    %cst_193 = arith.constant dense<0.000000e+00> : vector<16x8xf32>
    %391 = tpu.matmul %390, %379, %cst_193 {dimension_numbers = #tpu.dot_dimension_numbers<[1], [0], [0], [1], [0, 0, 1, 1], [], []>} : vector<16x16xf32>, vector<16x8xf32>, vector<16x8xf32> -> vector<16x8xf32>
    %c1_194 = arith.constant 1 : index
    %c240_195 = arith.constant 240 : index
    %c0_196 = arith.constant 0 : index
    %392 = vector.load %arg4[%c1_194, %c240_195, %c0_196] : memref<2x384x32xf32, #tpu.memory_space<vmem>>, vector<1x8x32xf32>
    %393 = vector.shape_cast %392 : vector<1x8x32xf32> to vector<8x32xf32>
    %cst_197 = arith.constant dense<0.000000e+00> : vector<16x32xf32>
    %394 = tpu.matmul %391, %393, %cst_197 {dimension_numbers = #tpu.dot_dimension_numbers<[1], [0], [0], [1], [0, 0, 1, 1], [], []>} : vector<16x8xf32>, vector<8x32xf32>, vector<16x32xf32> -> vector<16x32xf32>
    %395 = arith.addf %376, %394 : vector<16x32xf32>
    %396 = vector.extract_strided_slice %338 {offsets = [0, 24], sizes = [16, 8], strides = [1, 1]} : vector<16x32xf32> to vector<16x8xf32>
    %397 = vector.extract_strided_slice %8 {offsets = [0, 24], sizes = [16, 8], strides = [1, 1]} : vector<16x64xf32> to vector<16x8xf32>
    %398 = vector.extract_strided_slice %8 {offsets = [0, 56], sizes = [16, 8], strides = [1, 1]} : vector<16x64xf32> to vector<16x8xf32>
    %cst_198 = arith.constant dense<0.000000e+00> : vector<16x16xf32>
    %399 = tpu.matmul %396, %397, %cst_198 {dimension_numbers = #tpu.dot_dimension_numbers<[1], [1], [0], [0], [0, 0, 1, 0], [], []>} : vector<16x8xf32>, vector<16x8xf32>, vector<16x16xf32> -> vector<16x16xf32>
    %400 = arith.addf %399, %2 : vector<16x16xf32>
    %cst_199 = arith.constant dense<0xFF800000> : vector<16xf32>
    %401 = vector.multi_reduction <maximumf>, %400, %cst_199 [1] : vector<16x16xf32> to vector<16xf32>
    %402 = vector.shape_cast %401 : vector<16xf32> to vector<16x1xf32>
    %403 = vector.broadcast %402 : vector<16x1xf32> to vector<16x16xf32>
    %404 = arith.subf %400, %403 : vector<16x16xf32>
    %405 = math.exp %404 : vector<16x16xf32>
    %cst_200 = arith.constant dense<0.000000e+00> : vector<16xf32>
    %406 = vector.multi_reduction <add>, %405, %cst_200 [1] : vector<16x16xf32> to vector<16xf32>
    %407 = vector.shape_cast %406 : vector<16xf32> to vector<16x1xf32>
    %408 = vector.broadcast %407 : vector<16x1xf32> to vector<16x16xf32>
    %409 = arith.divf %405, %408 : vector<16x16xf32>
    %cst_201 = arith.constant dense<0.000000e+00> : vector<16x8xf32>
    %410 = tpu.matmul %409, %398, %cst_201 {dimension_numbers = #tpu.dot_dimension_numbers<[1], [0], [0], [1], [0, 0, 1, 1], [], []>} : vector<16x16xf32>, vector<16x8xf32>, vector<16x8xf32> -> vector<16x8xf32>
    %c1_202 = arith.constant 1 : index
    %c248_203 = arith.constant 248 : index
    %c0_204 = arith.constant 0 : index
    %411 = vector.load %arg4[%c1_202, %c248_203, %c0_204] : memref<2x384x32xf32, #tpu.memory_space<vmem>>, vector<1x8x32xf32>
    %412 = vector.shape_cast %411 : vector<1x8x32xf32> to vector<8x32xf32>
    %cst_205 = arith.constant dense<0.000000e+00> : vector<16x32xf32>
    %413 = tpu.matmul %410, %412, %cst_205 {dimension_numbers = #tpu.dot_dimension_numbers<[1], [0], [0], [1], [0, 0, 1, 1], [], []>} : vector<16x8xf32>, vector<8x32xf32>, vector<16x32xf32> -> vector<16x32xf32>
    %414 = arith.addf %395, %413 : vector<16x32xf32>
    %c5 = arith.constant 5 : index
    %c0_206 = arith.constant 0 : index
    %415 = vector.load %arg5[%c5, %c0_206] : memref<7x32xf32, #tpu.memory_space<vmem>>, vector<1x32xf32>
    %416 = arith.mulf %414, %414 : vector<16x32xf32>
    %cst_207 = arith.constant dense<0.000000e+00> : vector<16xf32>
    %417 = vector.multi_reduction <add>, %416, %cst_207 [1] : vector<16x32xf32> to vector<16xf32>
    %418 = vector.shape_cast %417 : vector<16xf32> to vector<16x1xf32>
    %cst_208 = arith.constant 3.200000e+01 : f32
    %419 = vector.broadcast %cst_208 : f32 to vector<16x1xf32>
    %420 = arith.divf %418, %419 : vector<16x1xf32>
    %cst_209 = arith.constant 9.99999997E-7 : f32
    %421 = vector.broadcast %cst_209 : f32 to vector<16x1xf32>
    %422 = arith.addf %420, %421 : vector<16x1xf32>
    %423 = math.rsqrt %422 : vector<16x1xf32>
    %424 = vector.broadcast %423 : vector<16x1xf32> to vector<16x32xf32>
    %425 = arith.mulf %414, %424 : vector<16x32xf32>
    %426 = vector.broadcast %415 : vector<1x32xf32> to vector<16x32xf32>
    %427 = arith.mulf %425, %426 : vector<16x32xf32>
    %c1_210 = arith.constant 1 : index
    %c128_211 = arith.constant 128 : index
    %c0_212 = arith.constant 0 : index
    %428 = vector.load %arg4[%c1_210, %c128_211, %c0_212] : memref<2x384x32xf32, #tpu.memory_space<vmem>>, vector<1x64x32xf32>
    %429 = vector.shape_cast %428 : vector<1x64x32xf32> to vector<64x32xf32>
    %cst_213 = arith.constant dense<0.000000e+00> : vector<16x64xf32>
    %430 = tpu.matmul %427, %429, %cst_213 {dimension_numbers = #tpu.dot_dimension_numbers<[1], [1], [0], [0], [0, 0, 1, 0], [], []>} : vector<16x32xf32>, vector<64x32xf32>, vector<16x64xf32> -> vector<16x64xf32>
    %cst_214 = arith.constant 0.000000e+00 : f32
    %431 = vector.broadcast %cst_214 : f32 to vector<16x64xf32>
    %432 = arith.maximumf %430, %431 : vector<16x64xf32>
    %c1_215 = arith.constant 1 : index
    %c256_216 = arith.constant 256 : index
    %c0_217 = arith.constant 0 : index
    %433 = vector.load %arg4[%c1_215, %c256_216, %c0_217] : memref<2x384x32xf32, #tpu.memory_space<vmem>>, vector<1x64x32xf32>
    %434 = vector.shape_cast %433 : vector<1x64x32xf32> to vector<64x32xf32>
    %cst_218 = arith.constant dense<0.000000e+00> : vector<16x32xf32>
    %435 = tpu.matmul %432, %434, %cst_218 {dimension_numbers = #tpu.dot_dimension_numbers<[1], [0], [0], [1], [0, 0, 1, 1], [], []>} : vector<16x64xf32>, vector<64x32xf32>, vector<16x32xf32> -> vector<16x32xf32>
    %436 = arith.addf %414, %435 : vector<16x32xf32>
    %c6 = arith.constant 6 : index
    %c0_219 = arith.constant 0 : index
    %437 = vector.load %arg5[%c6, %c0_219] : memref<7x32xf32, #tpu.memory_space<vmem>>, vector<1x32xf32>
    %438 = arith.mulf %436, %436 : vector<16x32xf32>
    %cst_220 = arith.constant dense<0.000000e+00> : vector<16xf32>
    %439 = vector.multi_reduction <add>, %438, %cst_220 [1] : vector<16x32xf32> to vector<16xf32>
    %440 = vector.shape_cast %439 : vector<16xf32> to vector<16x1xf32>
    %cst_221 = arith.constant 3.200000e+01 : f32
    %441 = vector.broadcast %cst_221 : f32 to vector<16x1xf32>
    %442 = arith.divf %440, %441 : vector<16x1xf32>
    %cst_222 = arith.constant 9.99999997E-7 : f32
    %443 = vector.broadcast %cst_222 : f32 to vector<16x1xf32>
    %444 = arith.addf %442, %443 : vector<16x1xf32>
    %445 = math.rsqrt %444 : vector<16x1xf32>
    %446 = vector.broadcast %445 : vector<16x1xf32> to vector<16x32xf32>
    %447 = arith.mulf %436, %446 : vector<16x32xf32>
    %448 = vector.broadcast %437 : vector<1x32xf32> to vector<16x32xf32>
    %449 = arith.mulf %447, %448 : vector<16x32xf32>
    %c0_223 = arith.constant 0 : index
    %c0_224 = arith.constant 0 : index
    %450 = vector.load %arg6[%c0_223, %c0_224] : memref<16x32xf32, #tpu.memory_space<vmem>>, vector<16x32xf32>
    tpu.vector_store %arg6[%c0_223, %c0_224], %449 {strides = array<i32>} : memref<16x32xf32, #tpu.memory_space<vmem>>, vector<16x32xf32>,
    return
  }
}

</mosaic_0001>

<llo_original>
// kernel: custom_t5_decoder_with_segment.1
$region0: #{custom_t5_decoder_with_segment.1}
  #allocation0 [shape = 'u32[]', space=smem, size = 0x4, offset = 0x4, fixed_abs, tag = 'smem constant byte address 0x4 - core index']
  #allocation1 [shape = 'u32[144,128]{1,0:T(1,128)}', space=vmem, size = 0x12000, scoped, tag = 'internal scratch']
  %s0 = inlined_call_operand.vmem [shape: f32[16,32], index: 0, kind: input, shape index: {}]
  %s1 = inlined_call_operand.vmem [shape: f32[16,32], index: 1, kind: input, shape index: {}]
  %s2 = inlined_call_operand.vmem [shape: f32[2,4,16,16], index: 2, kind: input, shape index: {}]
  %s3 = inlined_call_operand.vmem [shape: f32[16,16], index: 3, kind: input, shape index: {}]
  %s4 = inlined_call_operand.vmem [shape: f32[2,384,32], index: 4, kind: input, shape index: {}]
  %s5 = inlined_call_operand.vmem [shape: f32[7,32], index: 5, kind: input, shape index: {}]
  %s6 = inlined_call_operand.hbm [shape: f32[16,32], index: 6, kind: output, shape index: {}]
  %s7 = sld [smem:[#allocation0]]
  $region34: #{custom_t5_decoder_with_segment.1} parent=0
    _
  %s9 = ssub.s32 1, %s7
  %s10 = scalar_select 0, %s9, %s7
  $region1: #{custom_t5_decoder_with_segment.1} parent=0
    #allocation2 [shape = 'u8[8192]{0}', space=vmem, size = 0x2000, scoped, tag = 'output window, operand 0, single buffered']
    #allocation3 [shape = 's32[1]{0}', space=sflag, size = 0x4, scoped, tag = 'scoped memory for custom_t5_decoder_with_segment.1']
    %11 = vsyncpa [#allocation3], 0
    // Predicated region
    $region2: #{custom_t5_decoder_with_segment.1} parent=1 // pred_check
      _
    $region3: #{custom_t5_decoder_with_segment.1} parent=1 // pred_check_branch
      %13 = sbr.rel (0) target = $region5
    $region4: #{custom_t5_decoder_with_segment.1} parent=1 // pred_region
      _
    $region5: #{custom_t5_decoder_with_segment.1} parent=1 // pred_fallthru
      _
    // Predicated region
    $region6: #{custom_t5_decoder_with_segment.1} parent=1 // pred_check
      _
    $region7: #{custom_t5_decoder_with_segment.1} parent=1 // pred_check_branch
      %15 = sbr.rel (0) target = $region9
    $region8: #{custom_t5_decoder_with_segment.1} parent=1 // pred_region
      _
    $region9: #{custom_t5_decoder_with_segment.1} parent=1 // pred_fallthru
      _
    // Predicated region
    $region10: #{custom_t5_decoder_with_segment.1} parent=1 // pred_check
      _
    $region11: #{custom_t5_decoder_with_segment.1} parent=1 // pred_check_branch
      %17 = sbr.rel (0) target = $region13
    $region12: #{custom_t5_decoder_with_segment.1} parent=1 // pred_region
      _
    $region13: #{custom_t5_decoder_with_segment.1} parent=1 // pred_fallthru
      _
    // Predicated region
    $region14: #{custom_t5_decoder_with_segment.1} parent=1 // pred_check
      _
    $region15: #{custom_t5_decoder_with_segment.1} parent=1 // pred_check_branch
      %19 = sbr.rel (0) target = $region17
    $region16: #{custom_t5_decoder_with_segment.1} parent=1 // pred_region
      _
    $region17: #{custom_t5_decoder_with_segment.1} parent=1 // pred_fallthru
      _
    // Predicated region
    $region18: #{custom_t5_decoder_with_segment.1} parent=1 // pred_check
      _
    $region19: #{custom_t5_decoder_with_segment.1} parent=1 // pred_check_branch
      %21 = sbr.rel (0) target = $region21
    $region20: #{custom_t5_decoder_with_segment.1} parent=1 // pred_region
      _
    $region21: #{custom_t5_decoder_with_segment.1} parent=1 // pred_fallthru
      _
    // Predicated region
    $region22: #{custom_t5_decoder_with_segment.1} parent=1 // pred_check
      _
    $region23: #{custom_t5_decoder_with_segment.1} parent=1 // pred_check_branch
      %23 = sbr.rel (0) target = $region25
    $region24: #{custom_t5_decoder_with_segment.1} parent=1 // pred_region
      _
    $region25: #{custom_t5_decoder_with_segment.1} parent=1 // pred_fallthru
      _
    %v24 = vld [vmem:[%s0] sm:$0xff]
    %v25 = vld [vmem:[%s0 + $0x8] sm:$0xff]
    %v26 = vld [vmem:[%s1] sm:$0xff]
    %v27 = vld [vmem:[%s1 + $0x8] sm:$0xff]
    %v28 = vld [vmem:[%s3] sm:$0xff]
    %v29 = vld [vmem:[%s3 + $0x8] sm:$0xff]
    %v30 = vld [vmem:[%s4 + $0x140] sm:$0xff]
    %v31 = vld [vmem:[%s4 + $0x148] sm:$0xff]
    %v32 = vld [vmem:[%s4 + $0x150] sm:$0xff]
    %v33 = vld [vmem:[%s4 + $0x158] sm:$0xff]
    %v34 = vld [vmem:[%s4 + $0x160] sm:$0xff]
    %v35 = vld [vmem:[%s4 + $0x168] sm:$0xff]
    %v36 = vld [vmem:[%s4 + $0x170] sm:$0xff]
    %v37 = vld [vmem:[%s4 + $0x178] sm:$0xff]
    %vm38 = vcmask 261120
    %v40 = vsel %vm38, %v26, 0
    %v43 = vsel %vm38, %v27, 0
    %v46 = vsel %vm38, %v30, 0
    %v49 = vsel %vm38, %v31, 0
    %v52 = vsel %vm38, %v32, 0
    %v55 = vsel %vm38, %v33, 0
    %v58 = vsel %vm38, %v34, 0
    %v61 = vsel %vm38, %v35, 0
    %v64 = vsel %vm38, %v36, 0
    %v67 = vsel %vm38, %v37, 0
    %69 = vmatprep.subr.mxu0 0.0
    %70 = vmatpush1.xpose.msra.mxu0 %v46
    %71 = vmatprep.subr.mxu0 0.0
    %72 = vmatpush1.xpose.msra.mxu0 %v49
    %73 = vmatprep.subr.mxu0 0.0
    %74 = vmatpush1.xpose.msra.mxu0 %v52
    %75 = vmatprep.subr.mxu0 0.0
    %76 = vmatpush1.xpose.msra.mxu0 %v55
    %77 = vmatprep.subr.mxu0 0.0
    %78 = vmatpush1.xpose.msra.mxu0 %v58
    %79 = vmatprep.subr.mxu0 0.0
    %80 = vmatpush1.xpose.msra.mxu0 %v61
    %81 = vmatprep.subr.mxu0 0.0
    %82 = vmatpush1.xpose.msra.mxu0 %v64
    %83 = vmatprep.subr.mxu0 0.0
    %84 = vmatpush1.xpose.msra.mxu0 %v67
    %85 = vmatprep.subr.mxu0 0.0
    %86 = vmatpush1.xpose.msra.mxu0 0.0
    %87 = vmatprep.subr.mxu0 0.0
    %88 = vmatpush1.xpose.msra.mxu0 0.0
    %89 = vmatprep.subr.mxu0 0.0
    %90 = vmatpush1.xpose.msra.mxu0 0.0
    %91 = vmatprep.subr.mxu0 0.0
    %92 = vmatpush1.xpose.msra.mxu0 0.0
    %93 = vmatprep.subr.mxu0 0.0
    %94 = vmatpush1.xpose.msra.mxu0 0.0
    %95 = vmatprep.subr.mxu0 0.0
    %96 = vmatpush1.xpose.msra.mxu0 0.0
    %97 = vmatprep.subr.mxu0 0.0
    %98 = vmatpush1.xpose.msra.mxu0 0.0
    %99 = vmatprep.subr.mxu0 0.0
    %100 = vmatpush1.xpose.msra.mxu0 0.0
    %101 = vmatprep.subr.mxu0 0.0
    %102 = vmatpush1.xpose.msra.mxu0 0.0
    %103 = vmatprep.subr.mxu0 0.0
    %104 = vmatpush1.xpose.msra.mxu0 0.0
    %105 = vmatprep.subr.mxu0 0.0
    %106 = vmatpush1.xpose.msra.mxu0 0.0
    %107 = vmatprep.subr.mxu0 0.0
    %108 = vmatpush1.xpose.msra.mxu0 0.0
    %109 = vmatprep.subr.mxu0 0.0
    %110 = vmatpush1.xpose.msra.mxu0 0.0
    %111 = vmatprep.subr.mxu0 0.0
    %112 = vmatpush1.xpose.msra.mxu0 0.0
    %113 = vmatprep.subr.mxu0 0.0
    %114 = vmatpush1.xpose.msra.mxu0 0.0
    %115 = vmatprep.subr.mxu0 0.0
    %116 = vmatpush1.xpose.msra.mxu0 0.0
    %117 = vmatprep.subr.mxu0 0.0
    %118 = vmatpush1.xpose.msra.mxu0 0.0
    %119 = vmatprep.subr.mxu0 0.0
    %120 = vmatpush1.xpose.msra.mxu0 0.0
    %121 = vmatprep.subr.mxu0 0.0
    %122 = vmatpush1.xpose.msra.mxu0 0.0
    %123 = vmatprep.subr.mxu0 0.0
    %124 = vmatpush1.xpose.msra.mxu0 0.0
    %125 = vmatprep.subr.mxu0 0.0
    %126 = vmatpush1.xpose.msra.mxu0 0.0
    %127 = vmatprep.subr.mxu0 0.0
    %128 = vmatpush1.xpose.msra.mxu0 0.0
    %129 = vmatprep.subr.mxu0 0.0
    %130 = vmatpush1.xpose.msra.mxu0 0.0
    %131 = vmatprep.subr.mxu0 0.0
    %132 = vmatpush1.xpose.msra.mxu0 0.0
    %133 = vmatprep.mubr.f32.mxu0 0.0
    %134 = vmatmul.mubr.f32.gmra.mrb[0].mxu0 %v40
    %v135 = vpop.f32.mrb[0].mxu0
    %v136 = vadd.f32 0.0, %v135
    %v137 = vpop.f32.mrb[0].mxu0
    %138 = vmatprep.mubr.f32.mxu0 0.0
    %139 = vmatmul.mubr.f32.gmra.mrb[0].mxu0 %v43
    %v140 = vpop.f32.mrb[0].mxu0
    %v141 = vadd.f32 0.0, %v140
    %v142 = vpop.f32.mrb[0].mxu0
    %143 = vdwg.mxu0
    %s144 = scalar_lea.vmem %s4, 384
    %v145 = vld [vmem:[%s144 + $0x140] sm:$0xff]
    %v146 = vld [vmem:[%s144 + $0x148] sm:$0xff]
    %v147 = vld [vmem:[%s144 + $0x150] sm:$0xff]
    %v148 = vld [vmem:[%s144 + $0x158] sm:$0xff]
    %v149 = vld [vmem:[%s144 + $0x160] sm:$0xff]
    %v150 = vld [vmem:[%s144 + $0x168] sm:$0xff]
    %v151 = vld [vmem:[%s144 + $0x170] sm:$0xff]
    %v152 = vld [vmem:[%s144 + $0x178] sm:$0xff]
    %v154 = vsel %vm38, %v145, 0
    %v157 = vsel %vm38, %v146, 0
    %v160 = vsel %vm38, %v147, 0
    %v163 = vsel %vm38, %v148, 0
    %v166 = vsel %vm38, %v149, 0
    %v169 = vsel %vm38, %v150, 0
    %v172 = vsel %vm38, %v151, 0
    %v175 = vsel %vm38, %v152, 0
    %177 = vmatprep.subr.mxu0 0.0
    %178 = vmatpush1.xpose.msra.mxu0 %v154
    %179 = vmatprep.subr.mxu0 0.0
    %180 = vmatpush1.xpose.msra.mxu0 %v157
    %181 = vmatprep.subr.mxu0 0.0
    %182 = vmatpush1.xpose.msra.mxu0 %v160
    %183 = vmatprep.subr.mxu0 0.0
    %184 = vmatpush1.xpose.msra.mxu0 %v163
    %185 = vmatprep.subr.mxu0 0.0
    %186 = vmatpush1.xpose.msra.mxu0 %v166
    %187 = vmatprep.subr.mxu0 0.0
    %188 = vmatpush1.xpose.msra.mxu0 %v169
    %189 = vmatprep.subr.mxu0 0.0
    %190 = vmatpush1.xpose.msra.mxu0 %v172
    %191 = vmatprep.subr.mxu0 0.0
    %192 = vmatpush1.xpose.msra.mxu0 %v175
    %193 = vmatprep.subr.mxu0 0.0
    %194 = vmatpush1.xpose.msra.mxu0 0.0
    %195 = vmatprep.subr.mxu0 0.0
    %196 = vmatpush1.xpose.msra.mxu0 0.0
    %197 = vmatprep.subr.mxu0 0.0
    %198 = vmatpush1.xpose.msra.mxu0 0.0
    %199 = vmatprep.subr.mxu0 0.0
    %200 = vmatpush1.xpose.msra.mxu0 0.0
    %201 = vmatprep.subr.mxu0 0.0
    %202 = vmatpush1.xpose.msra.mxu0 0.0
    %203 = vmatprep.subr.mxu0 0.0
    %204 = vmatpush1.xpose.msra.mxu0 0.0
    %205 = vmatprep.subr.mxu0 0.0
    %206 = vmatpush1.xpose.msra.mxu0 0.0
    %207 = vmatprep.subr.mxu0 0.0
    %208 = vmatpush1.xpose.msra.mxu0 0.0
    %209 = vmatprep.subr.mxu0 0.0
    %210 = vmatpush1.xpose.msra.mxu0 0.0
    %211 = vmatprep.subr.mxu0 0.0
    %212 = vmatpush1.xpose.msra.mxu0 0.0
    %213 = vmatprep.subr.mxu0 0.0
    %214 = vmatpush1.xpose.msra.mxu0 0.0
    %215 = vmatprep.subr.mxu0 0.0
    %216 = vmatpush1.xpose.msra.mxu0 0.0
    %217 = vmatprep.subr.mxu0 0.0
    %218 = vmatpush1.xpose.msra.mxu0 0.0
    %219 = vmatprep.subr.mxu0 0.0
    %220 = vmatpush1.xpose.msra.mxu0 0.0
    %221 = vmatprep.subr.mxu0 0.0
    %222 = vmatpush1.xpose.msra.mxu0 0.0
    %223 = vmatprep.subr.mxu0 0.0
    %224 = vmatpush1.xpose.msra.mxu0 0.0
    %225 = vmatprep.subr.mxu0 0.0
    %226 = vmatpush1.xpose.msra.mxu0 0.0
    %227 = vmatprep.subr.mxu0 0.0
    %228 = vmatpush1.xpose.msra.mxu0 0.0
    %229 = vmatprep.subr.mxu0 0.0
    %230 = vmatpush1.xpose.msra.mxu0 0.0
    %231 = vmatprep.subr.mxu0 0.0
    %232 = vmatpush1.xpose.msra.mxu0 0.0
    %233 = vmatprep.subr.mxu0 0.0
    %234 = vmatpush1.xpose.msra.mxu0 0.0
    %235 = vmatprep.subr.mxu0 0.0
    %236 = vmatpush1.xpose.msra.mxu0 0.0
    %237 = vmatprep.subr.mxu0 0.0
    %238 = vmatpush1.xpose.msra.mxu0 0.0
    %239 = vmatprep.subr.mxu0 0.0
    %240 = vmatpush1.xpose.msra.mxu0 0.0
    %241 = vmatprep.mubr.f32.mxu0 0.0
    %242 = vmatmul.mubr.f32.gmra.mrb[0].mxu0 %v40
    %v243 = vpop.f32.mrb[0].mxu0
    %v244 = vadd.f32 0.0, %v243
    %v245 = vpop.f32.mrb[0].mxu0
    %246 = vmatprep.mubr.f32.mxu0 0.0
    %247 = vmatmul.mubr.f32.gmra.mrb[0].mxu0 %v43
    %v248 = vpop.f32.mrb[0].mxu0
    %v249 = vadd.f32 0.0, %v248
    %v250 = vpop.f32.mrb[0].mxu0
    %251 = vdwg.mxu0
    %v252 = vld [vmem:[%s5] sm:$0x1]
    %v253 = vmul.f32 %v24, %v24
    %v254 = vmul.f32 %v25, %v25
    %v255 = vsel %vm38, %v253, 0.0
    %256 = vadd.xlane.f32.xlu0 %v255
    %v257 = vpop.xlane.xlu0 %256
    %v258 = vsel %vm38, %v254, 0.0
    %259 = vadd.xlane.f32.xlu0 %v258
    %v260 = vpop.xlane.xlu0 %259
    %v261 = vrcp.pop 32.0
    %v262 = vmul.f32 %v257, %v261
    %v263 = vmul.f32 %v260, %v261
    %v264 = vadd.f32 %v262, 1e-06
    %v265 = vadd.f32 %v263, 1e-06
    %v266 = vrsqrt.pop %v264
    %v267 = vrsqrt.pop %v265
    %v268 = vmul.f32 %v24, %v266
    %v269 = vmul.f32 %v25, %v267
    %v270 = vlaneseq
    %v271 = vshrl.u32 %v270, 7
    %v272 = vsub.s32 0, %v271
    %v273 = vrot.slane %v252, %v272
    %v274 = vmul.f32 %v268, %v273
    %v275 = vmul.f32 %v269, %v273
    %v276 = vld [vmem:[%s4] sm:$0xff]
    %v277 = vld [vmem:[%s4 + $0x8] sm:$0xff]
    %v278 = vld [vmem:[%s4 + $0x10] sm:$0xff]
    %v279 = vld [vmem:[%s4 + $0x18] sm:$0xff]
    %v280 = vld [vmem:[%s4 + $0x20] sm:$0xff]
    %v281 = vld [vmem:[%s4 + $0x28] sm:$0xff]
    %v282 = vld [vmem:[%s4 + $0x30] sm:$0xff]
    %v283 = vld [vmem:[%s4 + $0x38] sm:$0xff]
    %v284 = vld [vmem:[%s4 + $0x40] sm:$0xff]
    %v285 = vld [vmem:[%s4 + $0x48] sm:$0xff]
    %v286 = vld [vmem:[%s4 + $0x50] sm:$0xff]
    %v287 = vld [vmem:[%s4 + $0x58] sm:$0xff]
    %v289 = vsel %vm38, %v274, 0
    %v292 = vsel %vm38, %v275, 0
    %v295 = vsel %vm38, %v276, 0
    %v298 = vsel %vm38, %v277, 0
    %v301 = vsel %vm38, %v278, 0
    %v304 = vsel %vm38, %v279, 0
    %v307 = vsel %vm38, %v280, 0
    %v310 = vsel %vm38, %v281, 0
    %v313 = vsel %vm38, %v282, 0
    %v316 = vsel %vm38, %v283, 0
    %v319 = vsel %vm38, %v284, 0
    %v322 = vsel %vm38, %v285, 0
    %v325 = vsel %vm38, %v286, 0
    %v328 = vsel %vm38, %v287, 0
    %330 = vmatprep.subr.mxu0 0.0
    %331 = vmatpush1.xpose.msra.mxu0 %v295
    %332 = vmatprep.subr.mxu0 0.0
    %333 = vmatpush1.xpose.msra.mxu0 %v298
    %334 = vmatprep.subr.mxu0 0.0
    %335 = vmatpush1.xpose.msra.mxu0 %v301
    %336 = vmatprep.subr.mxu0 0.0
    %337 = vmatpush1.xpose.msra.mxu0 %v304
    %338 = vmatprep.subr.mxu0 0.0
    %339 = vmatpush1.xpose.msra.mxu0 %v307
    %340 = vmatprep.subr.mxu0 0.0
    %341 = vmatpush1.xpose.msra.mxu0 %v310
    %342 = vmatprep.subr.mxu0 0.0
    %343 = vmatpush1.xpose.msra.mxu0 %v313
    %344 = vmatprep.subr.mxu0 0.0
    %345 = vmatpush1.xpose.msra.mxu0 %v316
    %346 = vmatprep.subr.mxu0 0.0
    %347 = vmatpush1.xpose.msra.mxu0 %v319
    %348 = vmatprep.subr.mxu0 0.0
    %349 = vmatpush1.xpose.msra.mxu0 %v322
    %350 = vmatprep.subr.mxu0 0.0
    %351 = vmatpush1.xpose.msra.mxu0 %v325
    %352 = vmatprep.subr.mxu0 0.0
    %353 = vmatpush1.xpose.msra.mxu0 %v328
    %354 = vmatprep.subr.mxu0 0.0
    %355 = vmatpush1.xpose.msra.mxu0 0.0
    %356 = vmatprep.subr.mxu0 0.0
    %357 = vmatpush1.xpose.msra.mxu0 0.0
    %358 = vmatprep.subr.mxu0 0.0
    %359 = vmatpush1.xpose.msra.mxu0 0.0
    %360 = vmatprep.subr.mxu0 0.0
    %361 = vmatpush1.xpose.msra.mxu0 0.0
    %362 = vmatprep.subr.mxu0 0.0
    %363 = vmatpush1.xpose.msra.mxu0 0.0
    %364 = vmatprep.subr.mxu0 0.0
    %365 = vmatpush1.xpose.msra.mxu0 0.0
    %366 = vmatprep.subr.mxu0 0.0
    %367 = vmatpush1.xpose.msra.mxu0 0.0
    %368 = vmatprep.subr.mxu0 0.0
    %369 = vmatpush1.xpose.msra.mxu0 0.0
    %370 = vmatprep.subr.mxu0 0.0
    %371 = vmatpush1.xpose.msra.mxu0 0.0
    %372 = vmatprep.subr.mxu0 0.0
    %373 = vmatpush1.xpose.msra.mxu0 0.0
    %374 = vmatprep.subr.mxu0 0.0
    %375 = vmatpush1.xpose.msra.mxu0 0.0
    %376 = vmatprep.subr.mxu0 0.0
    %377 = vmatpush1.xpose.msra.mxu0 0.0
    %378 = vmatprep.subr.mxu0 0.0
    %379 = vmatpush1.xpose.msra.mxu0 0.0
    %380 = vmatprep.subr.mxu0 0.0
    %381 = vmatpush1.xpose.msra.mxu0 0.0
    %382 = vmatprep.subr.mxu0 0.0
    %383 = vmatpush1.xpose.msra.mxu0 0.0
    %384 = vmatprep.subr.mxu0 0.0
    %385 = vmatpush1.xpose.msra.mxu0 0.0
    %386 = vmatprep.subr.mxu0 0.0
    %387 = vmatpush1.xpose.msra.mxu0 0.0
    %388 = vmatprep.subr.mxu0 0.0
    %389 = vmatpush1.xpose.msra.mxu0 0.0
    %390 = vmatprep.subr.mxu0 0.0
    %391 = vmatpush1.xpose.msra.mxu0 0.0
    %392 = vmatprep.subr.mxu0 0.0
    %393 = vmatpush1.xpose.msra.mxu0 0.0
    %394 = vmatprep.mubr.f32.mxu0 0.0
    %395 = vmatmul.mubr.f32.gmra.mrb[0].mxu0 %v289
    %v396 = vpop.f32.mrb[0].mxu0
    %v397 = vadd.f32 0.0, %v396
    %v398 = vpop.f32.mrb[0].mxu0
    %399 = vmatprep.mubr.f32.mxu0 0.0
    %400 = vmatmul.mubr.f32.gmra.mrb[0].mxu0 %v292
    %v401 = vpop.f32.mrb[0].mxu0
    %v402 = vadd.f32 0.0, %v401
    %v403 = vpop.f32.mrb[0].mxu0
    %404 = vdwg.mxu0
    %v405 = vld [vmem:[%s2] sm:$0xff]
    %v406 = vld [vmem:[%s2 + $0x8] sm:$0xff]
    %409 = vrot.lane.b32.xlu0 %v397, 96
    %v410 = vpop.permute.xlu0 %409
    %411 = vrot.lane.b32.xlu0 %v402, 96
    %v412 = vpop.permute.xlu0 %411
    %vm413 = vcmask 64512
    %v414 = vsel %vm413, %v397, 0
    %v416 = vsel %vm413, %v402, 0
    %v418 = vsel %vm413, %v410, 0
    %v420 = vsel %vm413, %v412, 0
    %422 = vmatprep.subr.mxu0 0.0
    %423 = vmatpush1.xpose.msra.mxu0 %v418
    %424 = vmatprep.subr.mxu0 0.0
    %425 = vmatpush1.xpose.msra.mxu0 %v420
    %426 = vmatprep.subr.mxu0 0.0
    %427 = vmatpush1.xpose.msra.mxu0 0.0
    %428 = vmatprep.subr.mxu0 0.0
    %429 = vmatpush1.xpose.msra.mxu0 0.0
    %430 = vmatprep.subr.mxu0 0.0
    %431 = vmatpush1.xpose.msra.mxu0 0.0
    %432 = vmatprep.subr.mxu0 0.0
    %433 = vmatpush1.xpose.msra.mxu0 0.0
    %434 = vmatprep.subr.mxu0 0.0
    %435 = vmatpush1.xpose.msra.mxu0 0.0
    %436 = vmatprep.subr.mxu0 0.0
    %437 = vmatpush1.xpose.msra.mxu0 0.0
    %438 = vmatprep.subr.mxu0 0.0
    %439 = vmatpush1.xpose.msra.mxu0 0.0
    %440 = vmatprep.subr.mxu0 0.0
    %441 = vmatpush1.xpose.msra.mxu0 0.0
    %442 = vmatprep.subr.mxu0 0.0
    %443 = vmatpush1.xpose.msra.mxu0 0.0
    %444 = vmatprep.subr.mxu0 0.0
    %445 = vmatpush1.xpose.msra.mxu0 0.0
    %446 = vmatprep.subr.mxu0 0.0
    %447 = vmatpush1.xpose.msra.mxu0 0.0
    %448 = vmatprep.subr.mxu0 0.0
    %449 = vmatpush1.xpose.msra.mxu0 0.0
    %450 = vmatprep.subr.mxu0 0.0
    %451 = vmatpush1.xpose.msra.mxu0 0.0
    %452 = vmatprep.subr.mxu0 0.0
    %453 = vmatpush1.xpose.msra.mxu0 0.0
    %454 = vmatprep.subr.mxu0 0.0
    %455 = vmatpush1.xpose.msra.mxu0 0.0
    %456 = vmatprep.subr.mxu0 0.0
    %457 = vmatpush1.xpose.msra.mxu0 0.0
    %458 = vmatprep.subr.mxu0 0.0
    %459 = vmatpush1.xpose.msra.mxu0 0.0
    %460 = vmatprep.subr.mxu0 0.0
    %461 = vmatpush1.xpose.msra.mxu0 0.0
    %462 = vmatprep.subr.mxu0 0.0
    %463 = vmatpush1.xpose.msra.mxu0 0.0
    %464 = vmatprep.subr.mxu0 0.0
    %465 = vmatpush1.xpose.msra.mxu0 0.0
    %466 = vmatprep.subr.mxu0 0.0
    %467 = vmatpush1.xpose.msra.mxu0 0.0
    %468 = vmatprep.subr.mxu0 0.0
    %469 = vmatpush1.xpose.msra.mxu0 0.0
    %470 = vmatprep.subr.mxu0 0.0
    %471 = vmatpush1.xpose.msra.mxu0 0.0
    %472 = vmatprep.subr.mxu0 0.0
    %473 = vmatpush1.xpose.msra.mxu0 0.0
    %474 = vmatprep.subr.mxu0 0.0
    %475 = vmatpush1.xpose.msra.mxu0 0.0
    %476 = vmatprep.subr.mxu0 0.0
    %477 = vmatpush1.xpose.msra.mxu0 0.0
    %478 = vmatprep.subr.mxu0 0.0
    %479 = vmatpush1.xpose.msra.mxu0 0.0
    %480 = vmatprep.subr.mxu0 0.0
    %481 = vmatpush1.xpose.msra.mxu0 0.0
    %482 = vmatprep.subr.mxu0 0.0
    %483 = vmatpush1.xpose.msra.mxu0 0.0
    %484 = vmatprep.subr.mxu0 0.0
    %485 = vmatpush1.xpose.msra.mxu0 0.0
    %486 = vmatprep.mubr.f32.mxu0 0.0
    %487 = vmatmul.mubr.f32.gmra.mrb[0].mxu0 %v414
    %v488 = vpop.f32.mrb[0].mxu0
    %v489 = vadd.f32 %v405, %v488
    %v490 = vpop.f32.mrb[0].mxu0
    %491 = vmatprep.mubr.f32.mxu0 0.0
    %492 = vmatmul.mubr.f32.gmra.mrb[0].mxu0 %v416
    %v493 = vpop.f32.mrb[0].mxu0
    %v494 = vadd.f32 %v406, %v493
    %v495 = vpop.f32.mrb[0].mxu0
    %496 = vdwg.mxu0
    %vm497 = vcmask 130048
    %v498 = vsel %vm497, %v489, -inf
    %499 = vmax.xlane.f32.xlu0 %v498
    %v500 = vpop.xlane.xlu0 %499
    %v501 = vsel %vm497, %v494, -inf
    %502 = vmax.xlane.f32.xlu0 %v501
    %v503 = vpop.xlane.xlu0 %502
    %v504 = vsub.f32 %v489, %v500
    %v505 = vsub.f32 %v494, %v503
    %v506 = vmul.f32 %v504, 1.442695
    %v507 = vpow.pop %v506
    %v508 = vmul.f32 %v505, 1.442695
    %v509 = vpow.pop %v508
    %v510 = vsel %vm497, %v507, 0.0
    %511 = vadd.xlane.f32.xlu0 %v510
    %v512 = vpop.xlane.xlu0 %511
    %v513 = vsel %vm497, %v509, 0.0
    %514 = vadd.xlane.f32.xlu0 %v513
    %v515 = vpop.xlane.xlu0 %514
    %v516 = vrcp.pop %v512
    %v517 = vmul.f32 %v507, %v516
    %v518 = vrcp.pop %v515
    %v519 = vmul.f32 %v509, %v518
    %520 = vrot.lane.b32.xlu0 %v397, 64
    %v521 = vpop.permute.xlu0 %520
    %522 = vrot.lane.b32.xlu0 %v402, 64
    %v523 = vpop.permute.xlu0 %522
    %v527 = vsel %vm497, %v517, 0
    %v530 = vsel %vm497, %v519, 0
    %532 = vmatprep.subr.mxu0 0.0
    %533 = vmatpush1.msra.mxu0 %v521
    %534 = vmatprep.subr.mxu0 0.0
    %535 = vmatpush1.msra.mxu0 %v523
    %536 = vmatprep.subr.mxu0 0.0
    %537 = vmatpush1.msra.mxu0 0.0
    %538 = vmatprep.subr.mxu0 0.0
    %539 = vmatpush1.msra.mxu0 0.0
    %540 = vmatprep.subr.mxu0 0.0
    %541 = vmatpush1.msra.mxu0 0.0
    %542 = vmatprep.subr.mxu0 0.0
    %543 = vmatpush1.msra.mxu0 0.0
    %544 = vmatprep.subr.mxu0 0.0
    %545 = vmatpush1.msra.mxu0 0.0
    %546 = vmatprep.subr.mxu0 0.0
    %547 = vmatpush1.msra.mxu0 0.0
    %548 = vmatprep.subr.mxu0 0.0
    %549 = vmatpush1.msra.mxu0 0.0
    %550 = vmatprep.subr.mxu0 0.0
    %551 = vmatpush1.msra.mxu0 0.0
    %552 = vmatprep.subr.mxu0 0.0
    %553 = vmatpush1.msra.mxu0 0.0
    %554 = vmatprep.subr.mxu0 0.0
    %555 = vmatpush1.msra.mxu0 0.0
    %556 = vmatprep.subr.mxu0 0.0
    %557 = vmatpush1.msra.mxu0 0.0
    %558 = vmatprep.subr.mxu0 0.0
    %559 = vmatpush1.msra.mxu0 0.0
    %560 = vmatprep.subr.mxu0 0.0
    %561 = vmatpush1.msra.mxu0 0.0
    %562 = vmatprep.subr.mxu0 0.0
    %563 = vmatpush1.msra.mxu0 0.0
    %564 = vmatprep.subr.mxu0 0.0
    %565 = vmatpush1.msra.mxu0 0.0
    %566 = vmatprep.subr.mxu0 0.0
    %567 = vmatpush1.msra.mxu0 0.0
    %568 = vmatprep.subr.mxu0 0.0
    %569 = vmatpush1.msra.mxu0 0.0
    %570 = vmatprep.subr.mxu0 0.0
    %571 = vmatpush1.msra.mxu0 0.0
    %572 = vmatprep.subr.mxu0 0.0
    %573 = vmatpush1.msra.mxu0 0.0
    %574 = vmatprep.subr.mxu0 0.0
    %575 = vmatpush1.msra.mxu0 0.0
    %576 = vmatprep.subr.mxu0 0.0
    %577 = vmatpush1.msra.mxu0 0.0
    %578 = vmatprep.subr.mxu0 0.0
    %579 = vmatpush1.msra.mxu0 0.0
    %580 = vmatprep.subr.mxu0 0.0
    %581 = vmatpush1.msra.mxu0 0.0
    %582 = vmatprep.subr.mxu0 0.0
    %583 = vmatpush1.msra.mxu0 0.0
    %584 = vmatprep.subr.mxu0 0.0
    %585 = vmatpush1.msra.mxu0 0.0
    %586 = vmatprep.subr.mxu0 0.0
    %587 = vmatpush1.msra.mxu0 0.0
    %588 = vmatprep.subr.mxu0 0.0
    %589 = vmatpush1.msra.mxu0 0.0
    %590 = vmatprep.subr.mxu0 0.0
    %591 = vmatpush1.msra.mxu0 0.0
    %592 = vmatprep.subr.mxu0 0.0
    %593 = vmatpush1.msra.mxu0 0.0
    %594 = vmatprep.subr.mxu0 0.0
    %595 = vmatpush1.msra.mxu0 0.0
    %596 = vmatprep.mubr.f32.mxu0 0.0
    %597 = vmatmul.mubr.f32.gmra.mrb[0].mxu0 %v527
    %v598 = vpop.f32.mrb[0].mxu0
    %v599 = vadd.f32 0.0, %v598
    %v600 = vpop.f32.mrb[0].mxu0
    %601 = vmatprep.mubr.f32.mxu0 0.0
    %602 = vmatmul.mubr.f32.gmra.mrb[0].mxu0 %v530
    %v603 = vpop.f32.mrb[0].mxu0
    %v604 = vadd.f32 0.0, %v603
    %v605 = vpop.f32.mrb[0].mxu0
    %606 = vdwg.mxu0
    %v607 = vld [vmem:[%s4 + $0xc0] sm:$0xff]
    %v609 = vsel %vm413, %v599, 0
    %v612 = vsel %vm413, %v604, 0
    %614 = vmatprep.subr.mxu0 0.0
    %615 = vmatpush1.msra.mxu0 %v607
    %616 = vmatprep.subr.mxu0 0.0
    %617 = vmatpush1.msra.mxu0 0.0
    %618 = vmatprep.subr.mxu0 0.0
    %619 = vmatpush1.msra.mxu0 0.0
    %620 = vmatprep.subr.mxu0 0.0
    %621 = vmatpush1.msra.mxu0 0.0
    %622 = vmatprep.subr.mxu0 0.0
    %623 = vmatpush1.msra.mxu0 0.0
    %624 = vmatprep.subr.mxu0 0.0
    %625 = vmatpush1.msra.mxu0 0.0
    %626 = vmatprep.subr.mxu0 0.0
    %627 = vmatpush1.msra.mxu0 0.0
    %628 = vmatprep.subr.mxu0 0.0
    %629 = vmatpush1.msra.mxu0 0.0
    %630 = vmatprep.subr.mxu0 0.0
    %631 = vmatpush1.msra.mxu0 0.0
    %632 = vmatprep.subr.mxu0 0.0
    %633 = vmatpush1.msra.mxu0 0.0
    %634 = vmatprep.subr.mxu0 0.0
    %635 = vmatpush1.msra.mxu0 0.0
    %636 = vmatprep.subr.mxu0 0.0
    %637 = vmatpush1.msra.mxu0 0.0
    %638 = vmatprep.subr.mxu0 0.0
    %639 = vmatpush1.msra.mxu0 0.0
    %640 = vmatprep.subr.mxu0 0.0
    %641 = vmatpush1.msra.mxu0 0.0
    %642 = vmatprep.subr.mxu0 0.0
    %643 = vmatpush1.msra.mxu0 0.0
    %644 = vmatprep.subr.mxu0 0.0
    %645 = vmatpush1.msra.mxu0 0.0
    %646 = vmatprep.subr.mxu0 0.0
    %647 = vmatpush1.msra.mxu0 0.0
    %648 = vmatprep.subr.mxu0 0.0
    %649 = vmatpush1.msra.mxu0 0.0
    %650 = vmatprep.subr.mxu0 0.0
    %651 = vmatpush1.msra.mxu0 0.0
    %652 = vmatprep.subr.mxu0 0.0
    %653 = vmatpush1.msra.mxu0 0.0
    %654 = vmatprep.subr.mxu0 0.0
    %655 = vmatpush1.msra.mxu0 0.0
    %656 = vmatprep.subr.mxu0 0.0
    %657 = vmatpush1.msra.mxu0 0.0
    %658 = vmatprep.subr.mxu0 0.0
    %659 = vmatpush1.msra.mxu0 0.0
    %660 = vmatprep.subr.mxu0 0.0
    %661 = vmatpush1.msra.mxu0 0.0
    %662 = vmatprep.subr.mxu0 0.0
    %663 = vmatpush1.msra.mxu0 0.0
    %664 = vmatprep.subr.mxu0 0.0
    %665 = vmatpush1.msra.mxu0 0.0
    %666 = vmatprep.subr.mxu0 0.0
    %667 = vmatpush1.msra.mxu0 0.0
    %668 = vmatprep.subr.mxu0 0.0
    %669 = vmatpush1.msra.mxu0 0.0
    %670 = vmatprep.subr.mxu0 0.0
    %671 = vmatpush1.msra.mxu0 0.0
    %672 = vmatprep.subr.mxu0 0.0
    %673 = vmatpush1.msra.mxu0 0.0
    %674 = vmatprep.subr.mxu0 0.0
    %675 = vmatpush1.msra.mxu0 0.0
    %676 = vmatprep.subr.mxu0 0.0
    %677 = vmatpush1.msra.mxu0 0.0
    %678 = vmatprep.mubr.f32.mxu0 0.0
    %679 = vmatmul.mubr.f32.gmra.mrb[0].mxu0 %v609
    %v680 = vpop.f32.mrb[0].mxu0
    %v681 = vadd.f32 0.0, %v680
    %v682 = vpop.f32.mrb[0].mxu0
    %683 = vmatprep.mubr.f32.mxu0 0.0
    %684 = vmatmul.mubr.f32.gmra.mrb[0].mxu0 %v612
    %v685 = vpop.f32.mrb[0].mxu0
    %v686 = vadd.f32 0.0, %v685
    %v687 = vpop.f32.mrb[0].mxu0
    %688 = vdwg.mxu0
    %v689 = vadd.f32 %v24, %v681
    %v690 = vadd.f32 %v25, %v686
    %s691 = scalar_lea.vmem %s2, 16
    %v692 = vld [vmem:[%s691] sm:$0xff]
    %v693 = vld [vmem:[%s691 + $0x8] sm:$0xff]
    %694 = vrot.lane.b32.xlu0 %v397, 120
    %v695 = vpop.permute.xlu0 %694
    %696 = vrot.lane.b32.xlu0 %v402, 120
    %v697 = vpop.permute.xlu0 %696
    %698 = vrot.lane.b32.xlu0 %v397, 88
    %v699 = vpop.permute.xlu0 %698
    %700 = vrot.lane.b32.xlu0 %v402, 88
    %v701 = vpop.permute.xlu0 %700
    %v702 = vsel %vm413, %v695, 0
    %v704 = vsel %vm413, %v697, 0
    %v706 = vsel %vm413, %v699, 0
    %v708 = vsel %vm413, %v701, 0
    %710 = vmatprep.subr.mxu0 0.0
    %711 = vmatpush1.xpose.msra.mxu0 %v706
    %712 = vmatprep.subr.mxu0 0.0
    %713 = vmatpush1.xpose.msra.mxu0 %v708
    %714 = vmatprep.subr.mxu0 0.0
    %715 = vmatpush1.xpose.msra.mxu0 0.0
    %716 = vmatprep.subr.mxu0 0.0
    %717 = vmatpush1.xpose.msra.mxu0 0.0
    %718 = vmatprep.subr.mxu0 0.0
    %719 = vmatpush1.xpose.msra.mxu0 0.0
    %720 = vmatprep.subr.mxu0 0.0
    %721 = vmatpush1.xpose.msra.mxu0 0.0
    %722 = vmatprep.subr.mxu0 0.0
    %723 = vmatpush1.xpose.msra.mxu0 0.0
    %724 = vmatprep.subr.mxu0 0.0
    %725 = vmatpush1.xpose.msra.mxu0 0.0
    %726 = vmatprep.subr.mxu0 0.0
    %727 = vmatpush1.xpose.msra.mxu0 0.0
    %728 = vmatprep.subr.mxu0 0.0
    %729 = vmatpush1.xpose.msra.mxu0 0.0
    %730 = vmatprep.subr.mxu0 0.0
    %731 = vmatpush1.xpose.msra.mxu0 0.0
    %732 = vmatprep.subr.mxu0 0.0
    %733 = vmatpush1.xpose.msra.mxu0 0.0
    %734 = vmatprep.subr.mxu0 0.0
    %735 = vmatpush1.xpose.msra.mxu0 0.0
    %736 = vmatprep.subr.mxu0 0.0
    %737 = vmatpush1.xpose.msra.mxu0 0.0
    %738 = vmatprep.subr.mxu0 0.0
    %739 = vmatpush1.xpose.msra.mxu0 0.0
    %740 = vmatprep.subr.mxu0 0.0
    %741 = vmatpush1.xpose.msra.mxu0 0.0
    %742 = vmatprep.subr.mxu0 0.0
    %743 = vmatpush1.xpose.msra.mxu0 0.0
    %744 = vmatprep.subr.mxu0 0.0
    %745 = vmatpush1.xpose.msra.mxu0 0.0
    %746 = vmatprep.subr.mxu0 0.0
    %747 = vmatpush1.xpose.msra.mxu0 0.0
    %748 = vmatprep.subr.mxu0 0.0
    %749 = vmatpush1.xpose.msra.mxu0 0.0
    %750 = vmatprep.subr.mxu0 0.0
    %751 = vmatpush1.xpose.msra.mxu0 0.0
    %752 = vmatprep.subr.mxu0 0.0
    %753 = vmatpush1.xpose.msra.mxu0 0.0
    %754 = vmatprep.subr.mxu0 0.0
    %755 = vmatpush1.xpose.msra.mxu0 0.0
    %756 = vmatprep.subr.mxu0 0.0
    %757 = vmatpush1.xpose.msra.mxu0 0.0
    %758 = vmatprep.subr.mxu0 0.0
    %759 = vmatpush1.xpose.msra.mxu0 0.0
    %760 = vmatprep.subr.mxu0 0.0
    %761 = vmatpush1.xpose.msra.mxu0 0.0
    %762 = vmatprep.subr.mxu0 0.0
    %763 = vmatpush1.xpose.msra.mxu0 0.0
    %764 = vmatprep.subr.mxu0 0.0
    %765 = vmatpush1.xpose.msra.mxu0 0.0
    %766 = vmatprep.subr.mxu0 0.0
    %767 = vmatpush1.xpose.msra.mxu0 0.0
    %768 = vmatprep.subr.mxu0 0.0
    %769 = vmatpush1.xpose.msra.mxu0 0.0
    %770 = vmatprep.subr.mxu0 0.0
    %771 = vmatpush1.xpose.msra.mxu0 0.0
    %772 = vmatprep.subr.mxu0 0.0
    %773 = vmatpush1.xpose.msra.mxu0 0.0
    %774 = vmatprep.mubr.f32.mxu0 0.0
    %775 = vmatmul.mubr.f32.gmra.mrb[0].mxu0 %v702
    %v776 = vpop.f32.mrb[0].mxu0
    %v777 = vadd.f32 %v692, %v776
    %v778 = vpop.f32.mrb[0].mxu0
    %779 = vmatprep.mubr.f32.mxu0 0.0
    %780 = vmatmul.mubr.f32.gmra.mrb[0].mxu0 %v704
    %v781 = vpop.f32.mrb[0].mxu0
    %v782 = vadd.f32 %v693, %v781
    %v783 = vpop.f32.mrb[0].mxu0
    %784 = vdwg.mxu0
    %v785 = vsel %vm497, %v777, -inf
    %786 = vmax.xlane.f32.xlu0 %v785
    %v787 = vpop.xlane.xlu0 %786
    %v788 = vsel %vm497, %v782, -inf
    %789 = vmax.xlane.f32.xlu0 %v788
    %v790 = vpop.xlane.xlu0 %789
    %v791 = vsub.f32 %v777, %v787
    %v792 = vsub.f32 %v782, %v790
    %v793 = vmul.f32 %v791, 1.442695
    %v794 = vpow.pop %v793
    %v795 = vmul.f32 %v792, 1.442695
    %v796 = vpow.pop %v795
    %v797 = vsel %vm497, %v794, 0.0
    %798 = vadd.xlane.f32.xlu0 %v797
    %v799 = vpop.xlane.xlu0 %798
    %v800 = vsel %vm497, %v796, 0.0
    %801 = vadd.xlane.f32.xlu0 %v800
    %v802 = vpop.xlane.xlu0 %801
    %v803 = vrcp.pop %v799
    %v804 = vmul.f32 %v794, %v803
    %v805 = vrcp.pop %v802
    %v806 = vmul.f32 %v796, %v805
    %807 = vrot.lane.b32.xlu0 %v397, 56
    %v808 = vpop.permute.xlu0 %807
    %809 = vrot.lane.b32.xlu0 %v402, 56
    %v810 = vpop.permute.xlu0 %809
    %v814 = vsel %vm497, %v804, 0
    %v817 = vsel %vm497, %v806, 0
    %819 = vmatprep.subr.mxu0 0.0
    %820 = vmatpush1.msra.mxu0 %v808
    %821 = vmatprep.subr.mxu0 0.0
    %822 = vmatpush1.msra.mxu0 %v810
    %823 = vmatprep.subr.mxu0 0.0
    %824 = vmatpush1.msra.mxu0 0.0
    %825 = vmatprep.subr.mxu0 0.0
    %826 = vmatpush1.msra.mxu0 0.0
    %827 = vmatprep.subr.mxu0 0.0
    %828 = vmatpush1.msra.mxu0 0.0
    %829 = vmatprep.subr.mxu0 0.0
    %830 = vmatpush1.msra.mxu0 0.0
    %831 = vmatprep.subr.mxu0 0.0
    %832 = vmatpush1.msra.mxu0 0.0
    %833 = vmatprep.subr.mxu0 0.0
    %834 = vmatpush1.msra.mxu0 0.0
    %835 = vmatprep.subr.mxu0 0.0
    %836 = vmatpush1.msra.mxu0 0.0
    %837 = vmatprep.subr.mxu0 0.0
    %838 = vmatpush1.msra.mxu0 0.0
    %839 = vmatprep.subr.mxu0 0.0
    %840 = vmatpush1.msra.mxu0 0.0
    %841 = vmatprep.subr.mxu0 0.0
    %842 = vmatpush1.msra.mxu0 0.0
    %843 = vmatprep.subr.mxu0 0.0
    %844 = vmatpush1.msra.mxu0 0.0
    %845 = vmatprep.subr.mxu0 0.0
    %846 = vmatpush1.msra.mxu0 0.0
    %847 = vmatprep.subr.mxu0 0.0
    %848 = vmatpush1.msra.mxu0 0.0
    %849 = vmatprep.subr.mxu0 0.0
    %850 = vmatpush1.msra.mxu0 0.0
    %851 = vmatprep.subr.mxu0 0.0
    %852 = vmatpush1.msra.mxu0 0.0
    %853 = vmatprep.subr.mxu0 0.0
    %854 = vmatpush1.msra.mxu0 0.0
    %855 = vmatprep.subr.mxu0 0.0
    %856 = vmatpush1.msra.mxu0 0.0
    %857 = vmatprep.subr.mxu0 0.0
    %858 = vmatpush1.msra.mxu0 0.0
    %859 = vmatprep.subr.mxu0 0.0
    %860 = vmatpush1.msra.mxu0 0.0
    %861 = vmatprep.subr.mxu0 0.0
    %862 = vmatpush1.msra.mxu0 0.0
    %863 = vmatprep.subr.mxu0 0.0
    %864 = vmatpush1.msra.mxu0 0.0
    %865 = vmatprep.subr.mxu0 0.0
    %866 = vmatpush1.msra.mxu0 0.0
    %867 = vmatprep.subr.mxu0 0.0
    %868 = vmatpush1.msra.mxu0 0.0
    %869 = vmatprep.subr.mxu0 0.0
    %870 = vmatpush1.msra.mxu0 0.0
    %871 = vmatprep.subr.mxu0 0.0
    %872 = vmatpush1.msra.mxu0 0.0
    %873 = vmatprep.subr.mxu0 0.0
    %874 = vmatpush1.msra.mxu0 0.0
    %875 = vmatprep.subr.mxu0 0.0
    %876 = vmatpush1.msra.mxu0 0.0
    %877 = vmatprep.subr.mxu0 0.0
    %878 = vmatpush1.msra.mxu0 0.0
    %879 = vmatprep.subr.mxu0 0.0
    %880 = vmatpush1.msra.mxu0 0.0
    %881 = vmatprep.subr.mxu0 0.0
    %882 = vmatpush1.msra.mxu0 0.0
    %883 = vmatprep.mubr.f32.mxu0 0.0
    %884 = vmatmul.mubr.f32.gmra.mrb[0].mxu0 %v814
    %v885 = vpop.f32.mrb[0].mxu0
    %v886 = vadd.f32 0.0, %v885
    %v887 = vpop.f32.mrb[0].mxu0
    %888 = vmatprep.mubr.f32.mxu0 0.0
    %889 = vmatmul.mubr.f32.gmra.mrb[0].mxu0 %v817
    %v890 = vpop.f32.mrb[0].mxu0
    %v891 = vadd.f32 0.0, %v890
    %v892 = vpop.f32.mrb[0].mxu0
    %893 = vdwg.mxu0
    %v894 = vld [vmem:[%s4 + $0xc8] sm:$0xff]
    %v896 = vsel %vm413, %v886, 0
    %v899 = vsel %vm413, %v891, 0
    %901 = vmatprep.subr.mxu0 0.0
    %902 = vmatpush1.msra.mxu0 %v894
    %903 = vmatprep.subr.mxu0 0.0
    %904 = vmatpush1.msra.mxu0 0.0
    %905 = vmatprep.subr.mxu0 0.0
    %906 = vmatpush1.msra.mxu0 0.0
    %907 = vmatprep.subr.mxu0 0.0
    %908 = vmatpush1.msra.mxu0 0.0
    %909 = vmatprep.subr.mxu0 0.0
    %910 = vmatpush1.msra.mxu0 0.0
    %911 = vmatprep.subr.mxu0 0.0
    %912 = vmatpush1.msra.mxu0 0.0
    %913 = vmatprep.subr.mxu0 0.0
    %914 = vmatpush1.msra.mxu0 0.0
    %915 = vmatprep.subr.mxu0 0.0
    %916 = vmatpush1.msra.mxu0 0.0
    %917 = vmatprep.subr.mxu0 0.0
    %918 = vmatpush1.msra.mxu0 0.0
    %919 = vmatprep.subr.mxu0 0.0
    %920 = vmatpush1.msra.mxu0 0.0
    %921 = vmatprep.subr.mxu0 0.0
    %922 = vmatpush1.msra.mxu0 0.0
    %923 = vmatprep.subr.mxu0 0.0
    %924 = vmatpush1.msra.mxu0 0.0
    %925 = vmatprep.subr.mxu0 0.0
    %926 = vmatpush1.msra.mxu0 0.0
    %927 = vmatprep.subr.mxu0 0.0
    %928 = vmatpush1.msra.mxu0 0.0
    %929 = vmatprep.subr.mxu0 0.0
    %930 = vmatpush1.msra.mxu0 0.0
    %931 = vmatprep.subr.mxu0 0.0
    %932 = vmatpush1.msra.mxu0 0.0
    %933 = vmatprep.subr.mxu0 0.0
    %934 = vmatpush1.msra.mxu0 0.0
    %935 = vmatprep.subr.mxu0 0.0
    %936 = vmatpush1.msra.mxu0 0.0
    %937 = vmatprep.subr.mxu0 0.0
    %938 = vmatpush1.msra.mxu0 0.0
    %939 = vmatprep.subr.mxu0 0.0
    %940 = vmatpush1.msra.mxu0 0.0
    %941 = vmatprep.subr.mxu0 0.0
    %942 = vmatpush1.msra.mxu0 0.0
    %943 = vmatprep.subr.mxu0 0.0
    %944 = vmatpush1.msra.mxu0 0.0
    %945 = vmatprep.subr.mxu0 0.0
    %946 = vmatpush1.msra.mxu0 0.0
    %947 = vmatprep.subr.mxu0 0.0
    %948 = vmatpush1.msra.mxu0 0.0
    %949 = vmatprep.subr.mxu0 0.0
    %950 = vmatpush1.msra.mxu0 0.0
    %951 = vmatprep.subr.mxu0 0.0
    %952 = vmatpush1.msra.mxu0 0.0
    %953 = vmatprep.subr.mxu0 0.0
    %954 = vmatpush1.msra.mxu0 0.0
    %955 = vmatprep.subr.mxu0 0.0
    %956 = vmatpush1.msra.mxu0 0.0
    %957 = vmatprep.subr.mxu0 0.0
    %958 = vmatpush1.msra.mxu0 0.0
    %959 = vmatprep.subr.mxu0 0.0
    %960 = vmatpush1.msra.mxu0 0.0
    %961 = vmatprep.subr.mxu0 0.0
    %962 = vmatpush1.msra.mxu0 0.0
    %963 = vmatprep.subr.mxu0 0.0
    %964 = vmatpush1.msra.mxu0 0.0
    %965 = vmatprep.mubr.f32.mxu0 0.0
    %966 = vmatmul.mubr.f32.gmra.mrb[0].mxu0 %v896
    %v967 = vpop.f32.mrb[0].mxu0
    %v968 = vadd.f32 0.0, %v967
    %v969 = vpop.f32.mrb[0].mxu0
    %970 = vmatprep.mubr.f32.mxu0 0.0
    %971 = vmatmul.mubr.f32.gmra.mrb[0].mxu0 %v899
    %v972 = vpop.f32.mrb[0].mxu0
    %v973 = vadd.f32 0.0, %v972
    %v974 = vpop.f32.mrb[0].mxu0
    %975 = vdwg.mxu0
    %v976 = vadd.f32 %v689, %v968
    %v977 = vadd.f32 %v690, %v973
    %s978 = scalar_lea.vmem %s2, 32
    %v979 = vld [vmem:[%s978] sm:$0xff]
    %v980 = vld [vmem:[%s978 + $0x8] sm:$0xff]
    %981 = vrot.lane.b32.xlu0 %v397, 112
    %v982 = vpop.permute.xlu0 %981
    %983 = vrot.lane.b32.xlu0 %v402, 112
    %v984 = vpop.permute.xlu0 %983
    %985 = vrot.lane.b32.xlu0 %v397, 80
    %v986 = vpop.permute.xlu0 %985
    %987 = vrot.lane.b32.xlu0 %v402, 80
    %v988 = vpop.permute.xlu0 %987
    %v989 = vsel %vm413, %v982, 0
    %v991 = vsel %vm413, %v984, 0
    %v993 = vsel %vm413, %v986, 0
    %v995 = vsel %vm413, %v988, 0
    %997 = vmatprep.subr.mxu0 0.0
    %998 = vmatpush1.xpose.msra.mxu0 %v993
    %999 = vmatprep.subr.mxu0 0.0
    %1000 = vmatpush1.xpose.msra.mxu0 %v995
    %1001 = vmatprep.subr.mxu0 0.0
    %1002 = vmatpush1.xpose.msra.mxu0 0.0
    %1003 = vmatprep.subr.mxu0 0.0
    %1004 = vmatpush1.xpose.msra.mxu0 0.0
    %1005 = vmatprep.subr.mxu0 0.0
    %1006 = vmatpush1.xpose.msra.mxu0 0.0
    %1007 = vmatprep.subr.mxu0 0.0
    %1008 = vmatpush1.xpose.msra.mxu0 0.0
    %1009 = vmatprep.subr.mxu0 0.0
    %1010 = vmatpush1.xpose.msra.mxu0 0.0
    %1011 = vmatprep.subr.mxu0 0.0
    %1012 = vmatpush1.xpose.msra.mxu0 0.0
    %1013 = vmatprep.subr.mxu0 0.0
    %1014 = vmatpush1.xpose.msra.mxu0 0.0
    %1015 = vmatprep.subr.mxu0 0.0
    %1016 = vmatpush1.xpose.msra.mxu0 0.0
    %1017 = vmatprep.subr.mxu0 0.0
    %1018 = vmatpush1.xpose.msra.mxu0 0.0
    %1019 = vmatprep.subr.mxu0 0.0
    %1020 = vmatpush1.xpose.msra.mxu0 0.0
    %1021 = vmatprep.subr.mxu0 0.0
    %1022 = vmatpush1.xpose.msra.mxu0 0.0
    %1023 = vmatprep.subr.mxu0 0.0
    %1024 = vmatpush1.xpose.msra.mxu0 0.0
    %1025 = vmatprep.subr.mxu0 0.0
    %1026 = vmatpush1.xpose.msra.mxu0 0.0
    %1027 = vmatprep.subr.mxu0 0.0
    %1028 = vmatpush1.xpose.msra.mxu0 0.0
    %1029 = vmatprep.subr.mxu0 0.0
    %1030 = vmatpush1.xpose.msra.mxu0 0.0
    %1031 = vmatprep.subr.mxu0 0.0
    %1032 = vmatpush1.xpose.msra.mxu0 0.0
    %1033 = vmatprep.subr.mxu0 0.0
    %1034 = vmatpush1.xpose.msra.mxu0 0.0
    %1035 = vmatprep.subr.mxu0 0.0
    %1036 = vmatpush1.xpose.msra.mxu0 0.0
    %1037 = vmatprep.subr.mxu0 0.0
    %1038 = vmatpush1.xpose.msra.mxu0 0.0
    %1039 = vmatprep.subr.mxu0 0.0
    %1040 = vmatpush1.xpose.msra.mxu0 0.0
    %1041 = vmatprep.subr.mxu0 0.0
    %1042 = vmatpush1.xpose.msra.mxu0 0.0
    %1043 = vmatprep.subr.mxu0 0.0
    %1044 = vmatpush1.xpose.msra.mxu0 0.0
    %1045 = vmatprep.subr.mxu0 0.0
    %1046 = vmatpush1.xpose.msra.mxu0 0.0
    %1047 = vmatprep.subr.mxu0 0.0
    %1048 = vmatpush1.xpose.msra.mxu0 0.0
    %1049 = vmatprep.subr.mxu0 0.0
    %1050 = vmatpush1.xpose.msra.mxu0 0.0
    %1051 = vmatprep.subr.mxu0 0.0
    %1052 = vmatpush1.xpose.msra.mxu0 0.0
    %1053 = vmatprep.subr.mxu0 0.0
    %1054 = vmatpush1.xpose.msra.mxu0 0.0
    %1055 = vmatprep.subr.mxu0 0.0
    %1056 = vmatpush1.xpose.msra.mxu0 0.0
    %1057 = vmatprep.subr.mxu0 0.0
    %1058 = vmatpush1.xpose.msra.mxu0 0.0
    %1059 = vmatprep.subr.mxu0 0.0
    %1060 = vmatpush1.xpose.msra.mxu0 0.0
    %1061 = vmatprep.mubr.f32.mxu0 0.0
    %1062 = vmatmul.mubr.f32.gmra.mrb[0].mxu0 %v989
    %v1063 = vpop.f32.mrb[0].mxu0
    %v1064 = vadd.f32 %v979, %v1063
    %v1065 = vpop.f32.mrb[0].mxu0
    %1066 = vmatprep.mubr.f32.mxu0 0.0
    %1067 = vmatmul.mubr.f32.gmra.mrb[0].mxu0 %v991
    %v1068 = vpop.f32.mrb[0].mxu0
    %v1069 = vadd.f32 %v980, %v1068
    %v1070 = vpop.f32.mrb[0].mxu0
    %1071 = vdwg.mxu0
    %v1072 = vsel %vm497, %v1064, -inf
    %1073 = vmax.xlane.f32.xlu0 %v1072
    %v1074 = vpop.xlane.xlu0 %1073
    %v1075 = vsel %vm497, %v1069, -inf
    %1076 = vmax.xlane.f32.xlu0 %v1075
    %v1077 = vpop.xlane.xlu0 %1076
    %v1078 = vsub.f32 %v1064, %v1074
    %v1079 = vsub.f32 %v1069, %v1077
    %v1080 = vmul.f32 %v1078, 1.442695
    %v1081 = vpow.pop %v1080
    %v1082 = vmul.f32 %v1079, 1.442695
    %v1083 = vpow.pop %v1082
    %v1084 = vsel %vm497, %v1081, 0.0
    %1085 = vadd.xlane.f32.xlu0 %v1084
    %v1086 = vpop.xlane.xlu0 %1085
    %v1087 = vsel %vm497, %v1083, 0.0
    %1088 = vadd.xlane.f32.xlu0 %v1087
    %v1089 = vpop.xlane.xlu0 %1088
    %v1090 = vrcp.pop %v1086
    %v1091 = vmul.f32 %v1081, %v1090
    %v1092 = vrcp.pop %v1089
    %v1093 = vmul.f32 %v1083, %v1092
    %1094 = vrot.lane.b32.xlu0 %v397, 48
    %v1095 = vpop.permute.xlu0 %1094
    %1096 = vrot.lane.b32.xlu0 %v402, 48
    %v1097 = vpop.permute.xlu0 %1096
    %v1101 = vsel %vm497, %v1091, 0
    %v1104 = vsel %vm497, %v1093, 0
    %1106 = vmatprep.subr.mxu0 0.0
    %1107 = vmatpush1.msra.mxu0 %v1095
    %1108 = vmatprep.subr.mxu0 0.0
    %1109 = vmatpush1.msra.mxu0 %v1097
    %1110 = vmatprep.subr.mxu0 0.0
    %1111 = vmatpush1.msra.mxu0 0.0
    %1112 = vmatprep.subr.mxu0 0.0
    %1113 = vmatpush1.msra.mxu0 0.0
    %1114 = vmatprep.subr.mxu0 0.0
    %1115 = vmatpush1.msra.mxu0 0.0
    %1116 = vmatprep.subr.mxu0 0.0
    %1117 = vmatpush1.msra.mxu0 0.0
    %1118 = vmatprep.subr.mxu0 0.0
    %1119 = vmatpush1.msra.mxu0 0.0
    %1120 = vmatprep.subr.mxu0 0.0
    %1121 = vmatpush1.msra.mxu0 0.0
    %1122 = vmatprep.subr.mxu0 0.0
    %1123 = vmatpush1.msra.mxu0 0.0
    %1124 = vmatprep.subr.mxu0 0.0
    %1125 = vmatpush1.msra.mxu0 0.0
    %1126 = vmatprep.subr.mxu0 0.0
    %1127 = vmatpush1.msra.mxu0 0.0
    %1128 = vmatprep.subr.mxu0 0.0
    %1129 = vmatpush1.msra.mxu0 0.0
    %1130 = vmatprep.subr.mxu0 0.0
    %1131 = vmatpush1.msra.mxu0 0.0
    %1132 = vmatprep.subr.mxu0 0.0
    %1133 = vmatpush1.msra.mxu0 0.0
    %1134 = vmatprep.subr.mxu0 0.0
    %1135 = vmatpush1.msra.mxu0 0.0
    %1136 = vmatprep.subr.mxu0 0.0
    %1137 = vmatpush1.msra.mxu0 0.0
    %1138 = vmatprep.subr.mxu0 0.0
    %1139 = vmatpush1.msra.mxu0 0.0
    %1140 = vmatprep.subr.mxu0 0.0
    %1141 = vmatpush1.msra.mxu0 0.0
    %1142 = vmatprep.subr.mxu0 0.0
    %1143 = vmatpush1.msra.mxu0 0.0
    %1144 = vmatprep.subr.mxu0 0.0
    %1145 = vmatpush1.msra.mxu0 0.0
    %1146 = vmatprep.subr.mxu0 0.0
    %1147 = vmatpush1.msra.mxu0 0.0
    %1148 = vmatprep.subr.mxu0 0.0
    %1149 = vmatpush1.msra.mxu0 0.0
    %1150 = vmatprep.subr.mxu0 0.0
    %1151 = vmatpush1.msra.mxu0 0.0
    %1152 = vmatprep.subr.mxu0 0.0
    %1153 = vmatpush1.msra.mxu0 0.0
    %1154 = vmatprep.subr.mxu0 0.0
    %1155 = vmatpush1.msra.mxu0 0.0
    %1156 = vmatprep.subr.mxu0 0.0
    %1157 = vmatpush1.msra.mxu0 0.0
    %1158 = vmatprep.subr.mxu0 0.0
    %1159 = vmatpush1.msra.mxu0 0.0
    %1160 = vmatprep.subr.mxu0 0.0
    %1161 = vmatpush1.msra.mxu0 0.0
    %1162 = vmatprep.subr.mxu0 0.0
    %1163 = vmatpush1.msra.mxu0 0.0
    %1164 = vmatprep.subr.mxu0 0.0
    %1165 = vmatpush1.msra.mxu0 0.0
    %1166 = vmatprep.subr.mxu0 0.0
    %1167 = vmatpush1.msra.mxu0 0.0
    %1168 = vmatprep.subr.mxu0 0.0
    %1169 = vmatpush1.msra.mxu0 0.0
    %1170 = vmatprep.mubr.f32.mxu0 0.0
    %1171 = vmatmul.mubr.f32.gmra.mrb[0].mxu0 %v1101
    %v1172 = vpop.f32.mrb[0].mxu0
    %v1173 = vadd.f32 0.0, %v1172
    %v1174 = vpop.f32.mrb[0].mxu0
    %1175 = vmatprep.mubr.f32.mxu0 0.0
    %1176 = vmatmul.mubr.f32.gmra.mrb[0].mxu0 %v1104
    %v1177 = vpop.f32.mrb[0].mxu0
    %v1178 = vadd.f32 0.0, %v1177
    %v1179 = vpop.f32.mrb[0].mxu0
    %1180 = vdwg.mxu0
    %v1181 = vld [vmem:[%s4 + $0xd0] sm:$0xff]
    %v1183 = vsel %vm413, %v1173, 0
    %v1186 = vsel %vm413, %v1178, 0
    %1188 = vmatprep.subr.mxu0 0.0
    %1189 = vmatpush1.msra.mxu0 %v1181
    %1190 = vmatprep.subr.mxu0 0.0
    %1191 = vmatpush1.msra.mxu0 0.0
    %1192 = vmatprep.subr.mxu0 0.0
    %1193 = vmatpush1.msra.mxu0 0.0
    %1194 = vmatprep.subr.mxu0 0.0
    %1195 = vmatpush1.msra.mxu0 0.0
    %1196 = vmatprep.subr.mxu0 0.0
    %1197 = vmatpush1.msra.mxu0 0.0
    %1198 = vmatprep.subr.mxu0 0.0
    %1199 = vmatpush1.msra.mxu0 0.0
    %1200 = vmatprep.subr.mxu0 0.0
    %1201 = vmatpush1.msra.mxu0 0.0
    %1202 = vmatprep.subr.mxu0 0.0
    %1203 = vmatpush1.msra.mxu0 0.0
    %1204 = vmatprep.subr.mxu0 0.0
    %1205 = vmatpush1.msra.mxu0 0.0
    %1206 = vmatprep.subr.mxu0 0.0
    %1207 = vmatpush1.msra.mxu0 0.0
    %1208 = vmatprep.subr.mxu0 0.0
    %1209 = vmatpush1.msra.mxu0 0.0
    %1210 = vmatprep.subr.mxu0 0.0
    %1211 = vmatpush1.msra.mxu0 0.0
    %1212 = vmatprep.subr.mxu0 0.0
    %1213 = vmatpush1.msra.mxu0 0.0
    %1214 = vmatprep.subr.mxu0 0.0
    %1215 = vmatpush1.msra.mxu0 0.0
    %1216 = vmatprep.subr.mxu0 0.0
    %1217 = vmatpush1.msra.mxu0 0.0
    %1218 = vmatprep.subr.mxu0 0.0
    %1219 = vmatpush1.msra.mxu0 0.0
    %1220 = vmatprep.subr.mxu0 0.0
    %1221 = vmatpush1.msra.mxu0 0.0
    %1222 = vmatprep.subr.mxu0 0.0
    %1223 = vmatpush1.msra.mxu0 0.0
    %1224 = vmatprep.subr.mxu0 0.0
    %1225 = vmatpush1.msra.mxu0 0.0
    %1226 = vmatprep.subr.mxu0 0.0
    %1227 = vmatpush1.msra.mxu0 0.0
    %1228 = vmatprep.subr.mxu0 0.0
    %1229 = vmatpush1.msra.mxu0 0.0
    %1230 = vmatprep.subr.mxu0 0.0
    %1231 = vmatpush1.msra.mxu0 0.0
    %1232 = vmatprep.subr.mxu0 0.0
    %1233 = vmatpush1.msra.mxu0 0.0
    %1234 = vmatprep.subr.mxu0 0.0
    %1235 = vmatpush1.msra.mxu0 0.0
    %1236 = vmatprep.subr.mxu0 0.0
    %1237 = vmatpush1.msra.mxu0 0.0
    %1238 = vmatprep.subr.mxu0 0.0
    %1239 = vmatpush1.msra.mxu0 0.0
    %1240 = vmatprep.subr.mxu0 0.0
    %1241 = vmatpush1.msra.mxu0 0.0
    %1242 = vmatprep.subr.mxu0 0.0
    %1243 = vmatpush1.msra.mxu0 0.0
    %1244 = vmatprep.subr.mxu0 0.0
    %1245 = vmatpush1.msra.mxu0 0.0
    %1246 = vmatprep.subr.mxu0 0.0
    %1247 = vmatpush1.msra.mxu0 0.0
    %1248 = vmatprep.subr.mxu0 0.0
    %1249 = vmatpush1.msra.mxu0 0.0
    %1250 = vmatprep.subr.mxu0 0.0
    %1251 = vmatpush1.msra.mxu0 0.0
    %1252 = vmatprep.mubr.f32.mxu0 0.0
    %1253 = vmatmul.mubr.f32.gmra.mrb[0].mxu0 %v1183
    %v1254 = vpop.f32.mrb[0].mxu0
    %v1255 = vadd.f32 0.0, %v1254
    %v1256 = vpop.f32.mrb[0].mxu0
    %1257 = vmatprep.mubr.f32.mxu0 0.0
    %1258 = vmatmul.mubr.f32.gmra.mrb[0].mxu0 %v1186
    %v1259 = vpop.f32.mrb[0].mxu0
    %v1260 = vadd.f32 0.0, %v1259
    %v1261 = vpop.f32.mrb[0].mxu0
    %1262 = vdwg.mxu0
    %v1263 = vadd.f32 %v976, %v1255
    %v1264 = vadd.f32 %v977, %v1260
    %s1265 = scalar_lea.vmem %s2, 48
    %v1266 = vld [vmem:[%s1265] sm:$0xff]
    %v1267 = vld [vmem:[%s1265 + $0x8] sm:$0xff]
    %1268 = vrot.lane.b32.xlu0 %v397, 104
    %v1269 = vpop.permute.xlu0 %1268
    %1270 = vrot.lane.b32.xlu0 %v402, 104
    %v1271 = vpop.permute.xlu0 %1270
    %1272 = vrot.lane.b32.xlu0 %v397, 72
    %v1273 = vpop.permute.xlu0 %1272
    %1274 = vrot.lane.b32.xlu0 %v402, 72
    %v1275 = vpop.permute.xlu0 %1274
    %v1276 = vsel %vm413, %v1269, 0
    %v1278 = vsel %vm413, %v1271, 0
    %v1280 = vsel %vm413, %v1273, 0
    %v1282 = vsel %vm413, %v1275, 0
    %1284 = vmatprep.subr.mxu0 0.0
    %1285 = vmatpush1.xpose.msra.mxu0 %v1280
    %1286 = vmatprep.subr.mxu0 0.0
    %1287 = vmatpush1.xpose.msra.mxu0 %v1282
    %1288 = vmatprep.subr.mxu0 0.0
    %1289 = vmatpush1.xpose.msra.mxu0 0.0
    %1290 = vmatprep.subr.mxu0 0.0
    %1291 = vmatpush1.xpose.msra.mxu0 0.0
    %1292 = vmatprep.subr.mxu0 0.0
    %1293 = vmatpush1.xpose.msra.mxu0 0.0
    %1294 = vmatprep.subr.mxu0 0.0
    %1295 = vmatpush1.xpose.msra.mxu0 0.0
    %1296 = vmatprep.subr.mxu0 0.0
    %1297 = vmatpush1.xpose.msra.mxu0 0.0
    %1298 = vmatprep.subr.mxu0 0.0
    %1299 = vmatpush1.xpose.msra.mxu0 0.0
    %1300 = vmatprep.subr.mxu0 0.0
    %1301 = vmatpush1.xpose.msra.mxu0 0.0
    %1302 = vmatprep.subr.mxu0 0.0
    %1303 = vmatpush1.xpose.msra.mxu0 0.0
    %1304 = vmatprep.subr.mxu0 0.0
    %1305 = vmatpush1.xpose.msra.mxu0 0.0
    %1306 = vmatprep.subr.mxu0 0.0
    %1307 = vmatpush1.xpose.msra.mxu0 0.0
    %1308 = vmatprep.subr.mxu0 0.0
    %1309 = vmatpush1.xpose.msra.mxu0 0.0
    %1310 = vmatprep.subr.mxu0 0.0
    %1311 = vmatpush1.xpose.msra.mxu0 0.0
    %1312 = vmatprep.subr.mxu0 0.0
    %1313 = vmatpush1.xpose.msra.mxu0 0.0
    %1314 = vmatprep.subr.mxu0 0.0
    %1315 = vmatpush1.xpose.msra.mxu0 0.0
    %1316 = vmatprep.subr.mxu0 0.0
    %1317 = vmatpush1.xpose.msra.mxu0 0.0
    %1318 = vmatprep.subr.mxu0 0.0
    %1319 = vmatpush1.xpose.msra.mxu0 0.0
    %1320 = vmatprep.subr.mxu0 0.0
    %1321 = vmatpush1.xpose.msra.mxu0 0.0
    %1322 = vmatprep.subr.mxu0 0.0
    %1323 = vmatpush1.xpose.msra.mxu0 0.0
    %1324 = vmatprep.subr.mxu0 0.0
    %1325 = vmatpush1.xpose.msra.mxu0 0.0
    %1326 = vmatprep.subr.mxu0 0.0
    %1327 = vmatpush1.xpose.msra.mxu0 0.0
    %1328 = vmatprep.subr.mxu0 0.0
    %1329 = vmatpush1.xpose.msra.mxu0 0.0
    %1330 = vmatprep.subr.mxu0 0.0
    %1331 = vmatpush1.xpose.msra.mxu0 0.0
    %1332 = vmatprep.subr.mxu0 0.0
    %1333 = vmatpush1.xpose.msra.mxu0 0.0
    %1334 = vmatprep.subr.mxu0 0.0
    %1335 = vmatpush1.xpose.msra.mxu0 0.0
    %1336 = vmatprep.subr.mxu0 0.0
    %1337 = vmatpush1.xpose.msra.mxu0 0.0
    %1338 = vmatprep.subr.mxu0 0.0
    %1339 = vmatpush1.xpose.msra.mxu0 0.0
    %1340 = vmatprep.subr.mxu0 0.0
    %1341 = vmatpush1.xpose.msra.mxu0 0.0
    %1342 = vmatprep.subr.mxu0 0.0
    %1343 = vmatpush1.xpose.msra.mxu0 0.0
    %1344 = vmatprep.subr.mxu0 0.0
    %1345 = vmatpush1.xpose.msra.mxu0 0.0
    %1346 = vmatprep.subr.mxu0 0.0
    %1347 = vmatpush1.xpose.msra.mxu0 0.0
    %1348 = vmatprep.mubr.f32.mxu0 0.0
    %1349 = vmatmul.mubr.f32.gmra.mrb[0].mxu0 %v1276
    %v1350 = vpop.f32.mrb[0].mxu0
    %v1351 = vadd.f32 %v1266, %v1350
    %v1352 = vpop.f32.mrb[0].mxu0
    %1353 = vmatprep.mubr.f32.mxu0 0.0
    %1354 = vmatmul.mubr.f32.gmra.mrb[0].mxu0 %v1278
    %v1355 = vpop.f32.mrb[0].mxu0
    %v1356 = vadd.f32 %v1267, %v1355
    %v1357 = vpop.f32.mrb[0].mxu0
    %1358 = vdwg.mxu0
    %v1359 = vsel %vm497, %v1351, -inf
    %1360 = vmax.xlane.f32.xlu0 %v1359
    %v1361 = vpop.xlane.xlu0 %1360
    %v1362 = vsel %vm497, %v1356, -inf
    %1363 = vmax.xlane.f32.xlu0 %v1362
    %v1364 = vpop.xlane.xlu0 %1363
    %v1365 = vsub.f32 %v1351, %v1361
    %v1366 = vsub.f32 %v1356, %v1364
    %v1367 = vmul.f32 %v1365, 1.442695
    %v1368 = vpow.pop %v1367
    %v1369 = vmul.f32 %v1366, 1.442695
    %v1370 = vpow.pop %v1369
    %v1371 = vsel %vm497, %v1368, 0.0
    %1372 = vadd.xlane.f32.xlu0 %v1371
    %v1373 = vpop.xlane.xlu0 %1372
    %v1374 = vsel %vm497, %v1370, 0.0
    %1375 = vadd.xlane.f32.xlu0 %v1374
    %v1376 = vpop.xlane.xlu0 %1375
    %v1377 = vrcp.pop %v1373
    %v1378 = vmul.f32 %v1368, %v1377
    %v1379 = vrcp.pop %v1376
    %v1380 = vmul.f32 %v1370, %v1379
    %1381 = vrot.lane.b32.xlu0 %v397, 40
    %v1382 = vpop.permute.xlu0 %1381
    %1383 = vrot.lane.b32.xlu0 %v402, 40
    %v1384 = vpop.permute.xlu0 %1383
    %v1388 = vsel %vm497, %v1378, 0
    %v1391 = vsel %vm497, %v1380, 0
    %1393 = vmatprep.subr.mxu0 0.0
    %1394 = vmatpush1.msra.mxu0 %v1382
    %1395 = vmatprep.subr.mxu0 0.0
    %1396 = vmatpush1.msra.mxu0 %v1384
    %1397 = vmatprep.subr.mxu0 0.0
    %1398 = vmatpush1.msra.mxu0 0.0
    %1399 = vmatprep.subr.mxu0 0.0
    %1400 = vmatpush1.msra.mxu0 0.0
    %1401 = vmatprep.subr.mxu0 0.0
    %1402 = vmatpush1.msra.mxu0 0.0
    %1403 = vmatprep.subr.mxu0 0.0
    %1404 = vmatpush1.msra.mxu0 0.0
    %1405 = vmatprep.subr.mxu0 0.0
    %1406 = vmatpush1.msra.mxu0 0.0
    %1407 = vmatprep.subr.mxu0 0.0
    %1408 = vmatpush1.msra.mxu0 0.0
    %1409 = vmatprep.subr.mxu0 0.0
    %1410 = vmatpush1.msra.mxu0 0.0
    %1411 = vmatprep.subr.mxu0 0.0
    %1412 = vmatpush1.msra.mxu0 0.0
    %1413 = vmatprep.subr.mxu0 0.0
    %1414 = vmatpush1.msra.mxu0 0.0
    %1415 = vmatprep.subr.mxu0 0.0
    %1416 = vmatpush1.msra.mxu0 0.0
    %1417 = vmatprep.subr.mxu0 0.0
    %1418 = vmatpush1.msra.mxu0 0.0
    %1419 = vmatprep.subr.mxu0 0.0
    %1420 = vmatpush1.msra.mxu0 0.0
    %1421 = vmatprep.subr.mxu0 0.0
    %1422 = vmatpush1.msra.mxu0 0.0
    %1423 = vmatprep.subr.mxu0 0.0
    %1424 = vmatpush1.msra.mxu0 0.0
    %1425 = vmatprep.subr.mxu0 0.0
    %1426 = vmatpush1.msra.mxu0 0.0
    %1427 = vmatprep.subr.mxu0 0.0
    %1428 = vmatpush1.msra.mxu0 0.0
    %1429 = vmatprep.subr.mxu0 0.0
    %1430 = vmatpush1.msra.mxu0 0.0
    %1431 = vmatprep.subr.mxu0 0.0
    %1432 = vmatpush1.msra.mxu0 0.0
    %1433 = vmatprep.subr.mxu0 0.0
    %1434 = vmatpush1.msra.mxu0 0.0
    %1435 = vmatprep.subr.mxu0 0.0
    %1436 = vmatpush1.msra.mxu0 0.0
    %1437 = vmatprep.subr.mxu0 0.0
    %1438 = vmatpush1.msra.mxu0 0.0
    %1439 = vmatprep.subr.mxu0 0.0
    %1440 = vmatpush1.msra.mxu0 0.0
    %1441 = vmatprep.subr.mxu0 0.0
    %1442 = vmatpush1.msra.mxu0 0.0
    %1443 = vmatprep.subr.mxu0 0.0
    %1444 = vmatpush1.msra.mxu0 0.0
    %1445 = vmatprep.subr.mxu0 0.0
    %1446 = vmatpush1.msra.mxu0 0.0
    %1447 = vmatprep.subr.mxu0 0.0
    %1448 = vmatpush1.msra.mxu0 0.0
    %1449 = vmatprep.subr.mxu0 0.0
    %1450 = vmatpush1.msra.mxu0 0.0
    %1451 = vmatprep.subr.mxu0 0.0
    %1452 = vmatpush1.msra.mxu0 0.0
    %1453 = vmatprep.subr.mxu0 0.0
    %1454 = vmatpush1.msra.mxu0 0.0
    %1455 = vmatprep.subr.mxu0 0.0
    %1456 = vmatpush1.msra.mxu0 0.0
    %1457 = vmatprep.mubr.f32.mxu0 0.0
    %1458 = vmatmul.mubr.f32.gmra.mrb[0].mxu0 %v1388
    %v1459 = vpop.f32.mrb[0].mxu0
    %v1460 = vadd.f32 0.0, %v1459
    %v1461 = vpop.f32.mrb[0].mxu0
    %1462 = vmatprep.mubr.f32.mxu0 0.0
    %1463 = vmatmul.mubr.f32.gmra.mrb[0].mxu0 %v1391
    %v1464 = vpop.f32.mrb[0].mxu0
    %v1465 = vadd.f32 0.0, %v1464
    %v1466 = vpop.f32.mrb[0].mxu0
    %1467 = vdwg.mxu0
    %v1468 = vld [vmem:[%s4 + $0xd8] sm:$0xff]
    %v1470 = vsel %vm413, %v1460, 0
    %v1473 = vsel %vm413, %v1465, 0
    %1475 = vmatprep.subr.mxu0 0.0
    %1476 = vmatpush1.msra.mxu0 %v1468
    %1477 = vmatprep.subr.mxu0 0.0
    %1478 = vmatpush1.msra.mxu0 0.0
    %1479 = vmatprep.subr.mxu0 0.0
    %1480 = vmatpush1.msra.mxu0 0.0
    %1481 = vmatprep.subr.mxu0 0.0
    %1482 = vmatpush1.msra.mxu0 0.0
    %1483 = vmatprep.subr.mxu0 0.0
    %1484 = vmatpush1.msra.mxu0 0.0
    %1485 = vmatprep.subr.mxu0 0.0
    %1486 = vmatpush1.msra.mxu0 0.0
    %1487 = vmatprep.subr.mxu0 0.0
    %1488 = vmatpush1.msra.mxu0 0.0
    %1489 = vmatprep.subr.mxu0 0.0
    %1490 = vmatpush1.msra.mxu0 0.0
    %1491 = vmatprep.subr.mxu0 0.0
    %1492 = vmatpush1.msra.mxu0 0.0
    %1493 = vmatprep.subr.mxu0 0.0
    %1494 = vmatpush1.msra.mxu0 0.0
    %1495 = vmatprep.subr.mxu0 0.0
    %1496 = vmatpush1.msra.mxu0 0.0
    %1497 = vmatprep.subr.mxu0 0.0
    %1498 = vmatpush1.msra.mxu0 0.0
    %1499 = vmatprep.subr.mxu0 0.0
    %1500 = vmatpush1.msra.mxu0 0.0
    %1501 = vmatprep.subr.mxu0 0.0
    %1502 = vmatpush1.msra.mxu0 0.0
    %1503 = vmatprep.subr.mxu0 0.0
    %1504 = vmatpush1.msra.mxu0 0.0
    %1505 = vmatprep.subr.mxu0 0.0
    %1506 = vmatpush1.msra.mxu0 0.0
    %1507 = vmatprep.subr.mxu0 0.0
    %1508 = vmatpush1.msra.mxu0 0.0
    %1509 = vmatprep.subr.mxu0 0.0
    %1510 = vmatpush1.msra.mxu0 0.0
    %1511 = vmatprep.subr.mxu0 0.0
    %1512 = vmatpush1.msra.mxu0 0.0
    %1513 = vmatprep.subr.mxu0 0.0
    %1514 = vmatpush1.msra.mxu0 0.0
    %1515 = vmatprep.subr.mxu0 0.0
    %1516 = vmatpush1.msra.mxu0 0.0
    %1517 = vmatprep.subr.mxu0 0.0
    %1518 = vmatpush1.msra.mxu0 0.0
    %1519 = vmatprep.subr.mxu0 0.0
    %1520 = vmatpush1.msra.mxu0 0.0
    %1521 = vmatprep.subr.mxu0 0.0
    %1522 = vmatpush1.msra.mxu0 0.0
    %1523 = vmatprep.subr.mxu0 0.0
    %1524 = vmatpush1.msra.mxu0 0.0
    %1525 = vmatprep.subr.mxu0 0.0
    %1526 = vmatpush1.msra.mxu0 0.0
    %1527 = vmatprep.subr.mxu0 0.0
    %1528 = vmatpush1.msra.mxu0 0.0
    %1529 = vmatprep.subr.mxu0 0.0
    %1530 = vmatpush1.msra.mxu0 0.0
    %1531 = vmatprep.subr.mxu0 0.0
    %1532 = vmatpush1.msra.mxu0 0.0
    %1533 = vmatprep.subr.mxu0 0.0
    %1534 = vmatpush1.msra.mxu0 0.0
    %1535 = vmatprep.subr.mxu0 0.0
    %1536 = vmatpush1.msra.mxu0 0.0
    %1537 = vmatprep.subr.mxu0 0.0
    %1538 = vmatpush1.msra.mxu0 0.0
    %1539 = vmatprep.mubr.f32.mxu0 0.0
    %1540 = vmatmul.mubr.f32.gmra.mrb[0].mxu0 %v1470
    %v1541 = vpop.f32.mrb[0].mxu0
    %v1542 = vadd.f32 0.0, %v1541
    %v1543 = vpop.f32.mrb[0].mxu0
    %1544 = vmatprep.mubr.f32.mxu0 0.0
    %1545 = vmatmul.mubr.f32.gmra.mrb[0].mxu0 %v1473
    %v1546 = vpop.f32.mrb[0].mxu0
    %v1547 = vadd.f32 0.0, %v1546
    %v1548 = vpop.f32.mrb[0].mxu0
    %1549 = vdwg.mxu0
    %v1550 = vadd.f32 %v1263, %v1542
    %v1551 = vadd.f32 %v1264, %v1547
    %v1552 = vld [vmem:[%s5 + $0x1] sm:$0x1]
    %v1553 = vmul.f32 %v1550, %v1550
    %v1554 = vmul.f32 %v1551, %v1551
    %v1555 = vsel %vm38, %v1553, 0.0
    %1556 = vadd.xlane.f32.xlu0 %v1555
    %v1557 = vpop.xlane.xlu0 %1556
    %v1558 = vsel %vm38, %v1554, 0.0
    %1559 = vadd.xlane.f32.xlu0 %v1558
    %v1560 = vpop.xlane.xlu0 %1559
    %v1561 = vmul.f32 %v1557, %v261
    %v1562 = vmul.f32 %v1560, %v261
    %v1563 = vadd.f32 %v1561, 1e-06
    %v1564 = vadd.f32 %v1562, 1e-06
    %v1565 = vrsqrt.pop %v1563
    %v1566 = vrsqrt.pop %v1564
    %v1567 = vmul.f32 %v1550, %v1565
    %v1568 = vmul.f32 %v1551, %v1566
    %v1569 = vlaneseq
    %v1570 = vshrl.u32 %v1569, 7
    %v1571 = vsub.s32 0, %v1570
    %v1572 = vrot.slane %v1552, %v1571
    %v1573 = vmul.f32 %v1567, %v1572
    %v1574 = vmul.f32 %v1568, %v1572
    %v1575 = vld [vmem:[%s4 + $0x60] sm:$0xff]
    %v1576 = vld [vmem:[%s4 + $0x68] sm:$0xff]
    %v1577 = vld [vmem:[%s4 + $0x70] sm:$0xff]
    %v1578 = vld [vmem:[%s4 + $0x78] sm:$0xff]
    %v1580 = vsel %vm38, %v1573, 0
    %v1583 = vsel %vm38, %v1574, 0
    %v1586 = vsel %vm38, %v1575, 0
    %v1589 = vsel %vm38, %v1576, 0
    %v1592 = vsel %vm38, %v1577, 0
    %v1595 = vsel %vm38, %v1578, 0
    %1597 = vmatprep.subr.mxu0 0.0
    %1598 = vmatpush1.xpose.msra.mxu0 %v1586
    %1599 = vmatprep.subr.mxu0 0.0
    %1600 = vmatpush1.xpose.msra.mxu0 %v1589
    %1601 = vmatprep.subr.mxu0 0.0
    %1602 = vmatpush1.xpose.msra.mxu0 %v1592
    %1603 = vmatprep.subr.mxu0 0.0
    %1604 = vmatpush1.xpose.msra.mxu0 %v1595
    %1605 = vmatprep.subr.mxu0 0.0
    %1606 = vmatpush1.xpose.msra.mxu0 0.0
    %1607 = vmatprep.subr.mxu0 0.0
    %1608 = vmatpush1.xpose.msra.mxu0 0.0
    %1609 = vmatprep.subr.mxu0 0.0
    %1610 = vmatpush1.xpose.msra.mxu0 0.0
    %1611 = vmatprep.subr.mxu0 0.0
    %1612 = vmatpush1.xpose.msra.mxu0 0.0
    %1613 = vmatprep.subr.mxu0 0.0
    %1614 = vmatpush1.xpose.msra.mxu0 0.0
    %1615 = vmatprep.subr.mxu0 0.0
    %1616 = vmatpush1.xpose.msra.mxu0 0.0
    %1617 = vmatprep.subr.mxu0 0.0
    %1618 = vmatpush1.xpose.msra.mxu0 0.0
    %1619 = vmatprep.subr.mxu0 0.0
    %1620 = vmatpush1.xpose.msra.mxu0 0.0
    %1621 = vmatprep.subr.mxu0 0.0
    %1622 = vmatpush1.xpose.msra.mxu0 0.0
    %1623 = vmatprep.subr.mxu0 0.0
    %1624 = vmatpush1.xpose.msra.mxu0 0.0
    %1625 = vmatprep.subr.mxu0 0.0
    %1626 = vmatpush1.xpose.msra.mxu0 0.0
    %1627 = vmatprep.subr.mxu0 0.0
    %1628 = vmatpush1.xpose.msra.mxu0 0.0
    %1629 = vmatprep.subr.mxu0 0.0
    %1630 = vmatpush1.xpose.msra.mxu0 0.0
    %1631 = vmatprep.subr.mxu0 0.0
    %1632 = vmatpush1.xpose.msra.mxu0 0.0
    %1633 = vmatprep.subr.mxu0 0.0
    %1634 = vmatpush1.xpose.msra.mxu0 0.0
    %1635 = vmatprep.subr.mxu0 0.0
    %1636 = vmatpush1.xpose.msra.mxu0 0.0
    %1637 = vmatprep.subr.mxu0 0.0
    %1638 = vmatpush1.xpose.msra.mxu0 0.0
    %1639 = vmatprep.subr.mxu0 0.0
    %1640 = vmatpush1.xpose.msra.mxu0 0.0
    %1641 = vmatprep.subr.mxu0 0.0
    %1642 = vmatpush1.xpose.msra.mxu0 0.0
    %1643 = vmatprep.subr.mxu0 0.0
    %1644 = vmatpush1.xpose.msra.mxu0 0.0
    %1645 = vmatprep.subr.mxu0 0.0
    %1646 = vmatpush1.xpose.msra.mxu0 0.0
    %1647 = vmatprep.subr.mxu0 0.0
    %1648 = vmatpush1.xpose.msra.mxu0 0.0
    %1649 = vmatprep.subr.mxu0 0.0
    %1650 = vmatpush1.xpose.msra.mxu0 0.0
    %1651 = vmatprep.subr.mxu0 0.0
    %1652 = vmatpush1.xpose.msra.mxu0 0.0
    %1653 = vmatprep.subr.mxu0 0.0
    %1654 = vmatpush1.xpose.msra.mxu0 0.0
    %1655 = vmatprep.subr.mxu0 0.0
    %1656 = vmatpush1.xpose.msra.mxu0 0.0
    %1657 = vmatprep.subr.mxu0 0.0
    %1658 = vmatpush1.xpose.msra.mxu0 0.0
    %1659 = vmatprep.subr.mxu0 0.0
    %1660 = vmatpush1.xpose.msra.mxu0 0.0
    %1661 = vmatprep.mubr.f32.mxu0 0.0
    %1662 = vmatmul.mubr.f32.gmra.mrb[0].mxu0 %v1580
    %v1663 = vpop.f32.mrb[0].mxu0
    %v1664 = vadd.f32 0.0, %v1663
    %v1665 = vpop.f32.mrb[0].mxu0
    %1666 = vmatprep.mubr.f32.mxu0 0.0
    %1667 = vmatmul.mubr.f32.gmra.mrb[0].mxu0 %v1583
    %v1668 = vpop.f32.mrb[0].mxu0
    %v1669 = vadd.f32 0.0, %v1668
    %v1670 = vpop.f32.mrb[0].mxu0
    %1671 = vdwg.mxu0
    %v1673 = vsel %vm413, %v1664, 0
    %v1676 = vsel %vm413, %v1669, 0
    %v1679 = vsel %vm413, %v136, 0
    %v1682 = vsel %vm413, %v141, 0
    %1684 = vmatprep.subr.mxu0 0.0
    %1685 = vmatpush1.xpose.msra.mxu0 %v1679
    %1686 = vmatprep.subr.mxu0 0.0
    %1687 = vmatpush1.xpose.msra.mxu0 %v1682
    %1688 = vmatprep.subr.mxu0 0.0
    %1689 = vmatpush1.xpose.msra.mxu0 0.0
    %1690 = vmatprep.subr.mxu0 0.0
    %1691 = vmatpush1.xpose.msra.mxu0 0.0
    %1692 = vmatprep.subr.mxu0 0.0
    %1693 = vmatpush1.xpose.msra.mxu0 0.0
    %1694 = vmatprep.subr.mxu0 0.0
    %1695 = vmatpush1.xpose.msra.mxu0 0.0
    %1696 = vmatprep.subr.mxu0 0.0
    %1697 = vmatpush1.xpose.msra.mxu0 0.0
    %1698 = vmatprep.subr.mxu0 0.0
    %1699 = vmatpush1.xpose.msra.mxu0 0.0
    %1700 = vmatprep.subr.mxu0 0.0
    %1701 = vmatpush1.xpose.msra.mxu0 0.0
    %1702 = vmatprep.subr.mxu0 0.0
    %1703 = vmatpush1.xpose.msra.mxu0 0.0
    %1704 = vmatprep.subr.mxu0 0.0
    %1705 = vmatpush1.xpose.msra.mxu0 0.0
    %1706 = vmatprep.subr.mxu0 0.0
    %1707 = vmatpush1.xpose.msra.mxu0 0.0
    %1708 = vmatprep.subr.mxu0 0.0
    %1709 = vmatpush1.xpose.msra.mxu0 0.0
    %1710 = vmatprep.subr.mxu0 0.0
    %1711 = vmatpush1.xpose.msra.mxu0 0.0
    %1712 = vmatprep.subr.mxu0 0.0
    %1713 = vmatpush1.xpose.msra.mxu0 0.0
    %1714 = vmatprep.subr.mxu0 0.0
    %1715 = vmatpush1.xpose.msra.mxu0 0.0
    %1716 = vmatprep.subr.mxu0 0.0
    %1717 = vmatpush1.xpose.msra.mxu0 0.0
    %1718 = vmatprep.subr.mxu0 0.0
    %1719 = vmatpush1.xpose.msra.mxu0 0.0
    %1720 = vmatprep.subr.mxu0 0.0
    %1721 = vmatpush1.xpose.msra.mxu0 0.0
    %1722 = vmatprep.subr.mxu0 0.0
    %1723 = vmatpush1.xpose.msra.mxu0 0.0
    %1724 = vmatprep.subr.mxu0 0.0
    %1725 = vmatpush1.xpose.msra.mxu0 0.0
    %1726 = vmatprep.subr.mxu0 0.0
    %1727 = vmatpush1.xpose.msra.mxu0 0.0
    %1728 = vmatprep.subr.mxu0 0.0
    %1729 = vmatpush1.xpose.msra.mxu0 0.0
    %1730 = vmatprep.subr.mxu0 0.0
    %1731 = vmatpush1.xpose.msra.mxu0 0.0
    %1732 = vmatprep.subr.mxu0 0.0
    %1733 = vmatpush1.xpose.msra.mxu0 0.0
    %1734 = vmatprep.subr.mxu0 0.0
    %1735 = vmatpush1.xpose.msra.mxu0 0.0
    %1736 = vmatprep.subr.mxu0 0.0
    %1737 = vmatpush1.xpose.msra.mxu0 0.0
    %1738 = vmatprep.subr.mxu0 0.0
    %1739 = vmatpush1.xpose.msra.mxu0 0.0
    %1740 = vmatprep.subr.mxu0 0.0
    %1741 = vmatpush1.xpose.msra.mxu0 0.0
    %1742 = vmatprep.subr.mxu0 0.0
    %1743 = vmatpush1.xpose.msra.mxu0 0.0
    %1744 = vmatprep.subr.mxu0 0.0
    %1745 = vmatpush1.xpose.msra.mxu0 0.0
    %1746 = vmatprep.subr.mxu0 0.0
    %1747 = vmatpush1.xpose.msra.mxu0 0.0
    %1748 = vmatprep.mubr.f32.mxu0 0.0
    %1749 = vmatmul.mubr.f32.gmra.mrb[0].mxu0 %v1673
    %v1750 = vpop.f32.mrb[0].mxu0
    %v1751 = vadd.f32 %v28, %v1750
    %v1752 = vpop.f32.mrb[0].mxu0
    %1753 = vmatprep.mubr.f32.mxu0 0.0
    %1754 = vmatmul.mubr.f32.gmra.mrb[0].mxu0 %v1676
    %v1755 = vpop.f32.mrb[0].mxu0
    %v1756 = vadd.f32 %v29, %v1755
    %v1757 = vpop.f32.mrb[0].mxu0
    %1758 = vdwg.mxu0
    %v1759 = vsel %vm497, %v1751, -inf
    %1760 = vmax.xlane.f32.xlu0 %v1759
    %v1761 = vpop.xlane.xlu0 %1760
    %v1762 = vsel %vm497, %v1756, -inf
    %1763 = vmax.xlane.f32.xlu0 %v1762
    %v1764 = vpop.xlane.xlu0 %1763
    %v1765 = vsub.f32 %v1751, %v1761
    %v1766 = vsub.f32 %v1756, %v1764
    %v1767 = vmul.f32 %v1765, 1.442695
    %v1768 = vpow.pop %v1767
    %v1769 = vmul.f32 %v1766, 1.442695
    %v1770 = vpow.pop %v1769
    %v1771 = vsel %vm497, %v1768, 0.0
    %1772 = vadd.xlane.f32.xlu0 %v1771
    %v1773 = vpop.xlane.xlu0 %1772
    %v1774 = vsel %vm497, %v1770, 0.0
    %1775 = vadd.xlane.f32.xlu0 %v1774
    %v1776 = vpop.xlane.xlu0 %1775
    %v1777 = vrcp.pop %v1773
    %v1778 = vmul.f32 %v1768, %v1777
    %v1779 = vrcp.pop %v1776
    %v1780 = vmul.f32 %v1770, %v1779
    %1781 = vrot.lane.b32.xlu0 %v136, 96
    %v1782 = vpop.permute.xlu0 %1781
    %1783 = vrot.lane.b32.xlu0 %v141, 96
    %v1784 = vpop.permute.xlu0 %1783
    %v1788 = vsel %vm497, %v1778, 0
    %v1791 = vsel %vm497, %v1780, 0
    %1793 = vmatprep.subr.mxu0 0.0
    %1794 = vmatpush1.msra.mxu0 %v1782
    %1795 = vmatprep.subr.mxu0 0.0
    %1796 = vmatpush1.msra.mxu0 %v1784
    %1797 = vmatprep.subr.mxu0 0.0
    %1798 = vmatpush1.msra.mxu0 0.0
    %1799 = vmatprep.subr.mxu0 0.0
    %1800 = vmatpush1.msra.mxu0 0.0
    %1801 = vmatprep.subr.mxu0 0.0
    %1802 = vmatpush1.msra.mxu0 0.0
    %1803 = vmatprep.subr.mxu0 0.0
    %1804 = vmatpush1.msra.mxu0 0.0
    %1805 = vmatprep.subr.mxu0 0.0
    %1806 = vmatpush1.msra.mxu0 0.0
    %1807 = vmatprep.subr.mxu0 0.0
    %1808 = vmatpush1.msra.mxu0 0.0
    %1809 = vmatprep.subr.mxu0 0.0
    %1810 = vmatpush1.msra.mxu0 0.0
    %1811 = vmatprep.subr.mxu0 0.0
    %1812 = vmatpush1.msra.mxu0 0.0
    %1813 = vmatprep.subr.mxu0 0.0
    %1814 = vmatpush1.msra.mxu0 0.0
    %1815 = vmatprep.subr.mxu0 0.0
    %1816 = vmatpush1.msra.mxu0 0.0
    %1817 = vmatprep.subr.mxu0 0.0
    %1818 = vmatpush1.msra.mxu0 0.0
    %1819 = vmatprep.subr.mxu0 0.0
    %1820 = vmatpush1.msra.mxu0 0.0
    %1821 = vmatprep.subr.mxu0 0.0
    %1822 = vmatpush1.msra.mxu0 0.0
    %1823 = vmatprep.subr.mxu0 0.0
    %1824 = vmatpush1.msra.mxu0 0.0
    %1825 = vmatprep.subr.mxu0 0.0
    %1826 = vmatpush1.msra.mxu0 0.0
    %1827 = vmatprep.subr.mxu0 0.0
    %1828 = vmatpush1.msra.mxu0 0.0
    %1829 = vmatprep.subr.mxu0 0.0
    %1830 = vmatpush1.msra.mxu0 0.0
    %1831 = vmatprep.subr.mxu0 0.0
    %1832 = vmatpush1.msra.mxu0 0.0
    %1833 = vmatprep.subr.mxu0 0.0
    %1834 = vmatpush1.msra.mxu0 0.0
    %1835 = vmatprep.subr.mxu0 0.0
    %1836 = vmatpush1.msra.mxu0 0.0
    %1837 = vmatprep.subr.mxu0 0.0
    %1838 = vmatpush1.msra.mxu0 0.0
    %1839 = vmatprep.subr.mxu0 0.0
    %1840 = vmatpush1.msra.mxu0 0.0
    %1841 = vmatprep.subr.mxu0 0.0
    %1842 = vmatpush1.msra.mxu0 0.0
    %1843 = vmatprep.subr.mxu0 0.0
    %1844 = vmatpush1.msra.mxu0 0.0
    %1845 = vmatprep.subr.mxu0 0.0
    %1846 = vmatpush1.msra.mxu0 0.0
    %1847 = vmatprep.subr.mxu0 0.0
    %1848 = vmatpush1.msra.mxu0 0.0
    %1849 = vmatprep.subr.mxu0 0.0
    %1850 = vmatpush1.msra.mxu0 0.0
    %1851 = vmatprep.subr.mxu0 0.0
    %1852 = vmatpush1.msra.mxu0 0.0
    %1853 = vmatprep.subr.mxu0 0.0
    %1854 = vmatpush1.msra.mxu0 0.0
    %1855 = vmatprep.subr.mxu0 0.0
    %1856 = vmatpush1.msra.mxu0 0.0
    %1857 = vmatprep.mubr.f32.mxu0 0.0
    %1858 = vmatmul.mubr.f32.gmra.mrb[0].mxu0 %v1788
    %v1859 = vpop.f32.mrb[0].mxu0
    %v1860 = vadd.f32 0.0, %v1859
    %v1861 = vpop.f32.mrb[0].mxu0
    %1862 = vmatprep.mubr.f32.mxu0 0.0
    %1863 = vmatmul.mubr.f32.gmra.mrb[0].mxu0 %v1791
    %v1864 = vpop.f32.mrb[0].mxu0
    %v1865 = vadd.f32 0.0, %v1864
    %v1866 = vpop.f32.mrb[0].mxu0
    %1867 = vdwg.mxu0
    %v1868 = vld [vmem:[%s4 + $0xe0] sm:$0xff]
    %v1870 = vsel %vm413, %v1860, 0
    %v1873 = vsel %vm413, %v1865, 0
    %1875 = vmatprep.subr.mxu0 0.0
    %1876 = vmatpush1.msra.mxu0 %v1868
    %1877 = vmatprep.subr.mxu0 0.0
    %1878 = vmatpush1.msra.mxu0 0.0
    %1879 = vmatprep.subr.mxu0 0.0
    %1880 = vmatpush1.msra.mxu0 0.0
    %1881 = vmatprep.subr.mxu0 0.0
    %1882 = vmatpush1.msra.mxu0 0.0
    %1883 = vmatprep.subr.mxu0 0.0
    %1884 = vmatpush1.msra.mxu0 0.0
    %1885 = vmatprep.subr.mxu0 0.0
    %1886 = vmatpush1.msra.mxu0 0.0
    %1887 = vmatprep.subr.mxu0 0.0
    %1888 = vmatpush1.msra.mxu0 0.0
    %1889 = vmatprep.subr.mxu0 0.0
    %1890 = vmatpush1.msra.mxu0 0.0
    %1891 = vmatprep.subr.mxu0 0.0
    %1892 = vmatpush1.msra.mxu0 0.0
    %1893 = vmatprep.subr.mxu0 0.0
    %1894 = vmatpush1.msra.mxu0 0.0
    %1895 = vmatprep.subr.mxu0 0.0
    %1896 = vmatpush1.msra.mxu0 0.0
    %1897 = vmatprep.subr.mxu0 0.0
    %1898 = vmatpush1.msra.mxu0 0.0
    %1899 = vmatprep.subr.mxu0 0.0
    %1900 = vmatpush1.msra.mxu0 0.0
    %1901 = vmatprep.subr.mxu0 0.0
    %1902 = vmatpush1.msra.mxu0 0.0
    %1903 = vmatprep.subr.mxu0 0.0
    %1904 = vmatpush1.msra.mxu0 0.0
    %1905 = vmatprep.subr.mxu0 0.0
    %1906 = vmatpush1.msra.mxu0 0.0
    %1907 = vmatprep.subr.mxu0 0.0
    %1908 = vmatpush1.msra.mxu0 0.0
    %1909 = vmatprep.subr.mxu0 0.0
    %1910 = vmatpush1.msra.mxu0 0.0
    %1911 = vmatprep.subr.mxu0 0.0
    %1912 = vmatpush1.msra.mxu0 0.0
    %1913 = vmatprep.subr.mxu0 0.0
    %1914 = vmatpush1.msra.mxu0 0.0
    %1915 = vmatprep.subr.mxu0 0.0
    %1916 = vmatpush1.msra.mxu0 0.0
    %1917 = vmatprep.subr.mxu0 0.0
    %1918 = vmatpush1.msra.mxu0 0.0
    %1919 = vmatprep.subr.mxu0 0.0
    %1920 = vmatpush1.msra.mxu0 0.0
    %1921 = vmatprep.subr.mxu0 0.0
    %1922 = vmatpush1.msra.mxu0 0.0
    %1923 = vmatprep.subr.mxu0 0.0
    %1924 = vmatpush1.msra.mxu0 0.0
    %1925 = vmatprep.subr.mxu0 0.0
    %1926 = vmatpush1.msra.mxu0 0.0
    %1927 = vmatprep.subr.mxu0 0.0
    %1928 = vmatpush1.msra.mxu0 0.0
    %1929 = vmatprep.subr.mxu0 0.0
    %1930 = vmatpush1.msra.mxu0 0.0
    %1931 = vmatprep.subr.mxu0 0.0
    %1932 = vmatpush1.msra.mxu0 0.0
    %1933 = vmatprep.subr.mxu0 0.0
    %1934 = vmatpush1.msra.mxu0 0.0
    %1935 = vmatprep.subr.mxu0 0.0
    %1936 = vmatpush1.msra.mxu0 0.0
    %1937 = vmatprep.subr.mxu0 0.0
    %1938 = vmatpush1.msra.mxu0 0.0
    %1939 = vmatprep.mubr.f32.mxu0 0.0
    %1940 = vmatmul.mubr.f32.gmra.mrb[0].mxu0 %v1870
    %v1941 = vpop.f32.mrb[0].mxu0
    %v1942 = vadd.f32 0.0, %v1941
    %v1943 = vpop.f32.mrb[0].mxu0
    %1944 = vmatprep.mubr.f32.mxu0 0.0
    %1945 = vmatmul.mubr.f32.gmra.mrb[0].mxu0 %v1873
    %v1946 = vpop.f32.mrb[0].mxu0
    %v1947 = vadd.f32 0.0, %v1946
    %v1948 = vpop.f32.mrb[0].mxu0
    %1949 = vdwg.mxu0
    %v1950 = vadd.f32 %v1550, %v1942
    %v1951 = vadd.f32 %v1551, %v1947
    %1952 = vrot.lane.b32.xlu0 %v1664, 120
    %v1953 = vpop.permute.xlu0 %1952
    %1954 = vrot.lane.b32.xlu0 %v1669, 120
    %v1955 = vpop.permute.xlu0 %1954
    %1956 = vrot.lane.b32.xlu0 %v136, 120
    %v1957 = vpop.permute.xlu0 %1956
    %1958 = vrot.lane.b32.xlu0 %v141, 120
    %v1959 = vpop.permute.xlu0 %1958
    %v1960 = vsel %vm413, %v1953, 0
    %v1962 = vsel %vm413, %v1955, 0
    %v1964 = vsel %vm413, %v1957, 0
    %v1966 = vsel %vm413, %v1959, 0
    %1968 = vmatprep.subr.mxu0 0.0
    %1969 = vmatpush1.xpose.msra.mxu0 %v1964
    %1970 = vmatprep.subr.mxu0 0.0
    %1971 = vmatpush1.xpose.msra.mxu0 %v1966
    %1972 = vmatprep.subr.mxu0 0.0
    %1973 = vmatpush1.xpose.msra.mxu0 0.0
    %1974 = vmatprep.subr.mxu0 0.0
    %1975 = vmatpush1.xpose.msra.mxu0 0.0
    %1976 = vmatprep.subr.mxu0 0.0
    %1977 = vmatpush1.xpose.msra.mxu0 0.0
    %1978 = vmatprep.subr.mxu0 0.0
    %1979 = vmatpush1.xpose.msra.mxu0 0.0
    %1980 = vmatprep.subr.mxu0 0.0
    %1981 = vmatpush1.xpose.msra.mxu0 0.0
    %1982 = vmatprep.subr.mxu0 0.0
    %1983 = vmatpush1.xpose.msra.mxu0 0.0
    %1984 = vmatprep.subr.mxu0 0.0
    %1985 = vmatpush1.xpose.msra.mxu0 0.0
    %1986 = vmatprep.subr.mxu0 0.0
    %1987 = vmatpush1.xpose.msra.mxu0 0.0
    %1988 = vmatprep.subr.mxu0 0.0
    %1989 = vmatpush1.xpose.msra.mxu0 0.0
    %1990 = vmatprep.subr.mxu0 0.0
    %1991 = vmatpush1.xpose.msra.mxu0 0.0
    %1992 = vmatprep.subr.mxu0 0.0
    %1993 = vmatpush1.xpose.msra.mxu0 0.0
    %1994 = vmatprep.subr.mxu0 0.0
    %1995 = vmatpush1.xpose.msra.mxu0 0.0
    %1996 = vmatprep.subr.mxu0 0.0
    %1997 = vmatpush1.xpose.msra.mxu0 0.0
    %1998 = vmatprep.subr.mxu0 0.0
    %1999 = vmatpush1.xpose.msra.mxu0 0.0
    %2000 = vmatprep.subr.mxu0 0.0
    %2001 = vmatpush1.xpose.msra.mxu0 0.0
    %2002 = vmatprep.subr.mxu0 0.0
    %2003 = vmatpush1.xpose.msra.mxu0 0.0
    %2004 = vmatprep.subr.mxu0 0.0
    %2005 = vmatpush1.xpose.msra.mxu0 0.0
    %2006 = vmatprep.subr.mxu0 0.0
    %2007 = vmatpush1.xpose.msra.mxu0 0.0
    %2008 = vmatprep.subr.mxu0 0.0
    %2009 = vmatpush1.xpose.msra.mxu0 0.0
    %2010 = vmatprep.subr.mxu0 0.0
    %2011 = vmatpush1.xpose.msra.mxu0 0.0
    %2012 = vmatprep.subr.mxu0 0.0
    %2013 = vmatpush1.xpose.msra.mxu0 0.0
    %2014 = vmatprep.subr.mxu0 0.0
    %2015 = vmatpush1.xpose.msra.mxu0 0.0
    %2016 = vmatprep.subr.mxu0 0.0
    %2017 = vmatpush1.xpose.msra.mxu0 0.0
    %2018 = vmatprep.subr.mxu0 0.0
    %2019 = vmatpush1.xpose.msra.mxu0 0.0
    %2020 = vmatprep.subr.mxu0 0.0
    %2021 = vmatpush1.xpose.msra.mxu0 0.0
    %2022 = vmatprep.subr.mxu0 0.0
    %2023 = vmatpush1.xpose.msra.mxu0 0.0
    %2024 = vmatprep.subr.mxu0 0.0
    %2025 = vmatpush1.xpose.msra.mxu0 0.0
    %2026 = vmatprep.subr.mxu0 0.0
    %2027 = vmatpush1.xpose.msra.mxu0 0.0
    %2028 = vmatprep.subr.mxu0 0.0
    %2029 = vmatpush1.xpose.msra.mxu0 0.0
    %2030 = vmatprep.subr.mxu0 0.0
    %2031 = vmatpush1.xpose.msra.mxu0 0.0
    %2032 = vmatprep.mubr.f32.mxu0 0.0
    %2033 = vmatmul.mubr.f32.gmra.mrb[0].mxu0 %v1960
    %v2034 = vpop.f32.mrb[0].mxu0
    %v2035 = vadd.f32 %v28, %v2034
    %v2036 = vpop.f32.mrb[0].mxu0
    %2037 = vmatprep.mubr.f32.mxu0 0.0
    %2038 = vmatmul.mubr.f32.gmra.mrb[0].mxu0 %v1962
    %v2039 = vpop.f32.mrb[0].mxu0
    %v2040 = vadd.f32 %v29, %v2039
    %v2041 = vpop.f32.mrb[0].mxu0
    %2042 = vdwg.mxu0
    %v2043 = vsel %vm497, %v2035, -inf
    %2044 = vmax.xlane.f32.xlu0 %v2043
    %v2045 = vpop.xlane.xlu0 %2044
    %v2046 = vsel %vm497, %v2040, -inf
    %2047 = vmax.xlane.f32.xlu0 %v2046
    %v2048 = vpop.xlane.xlu0 %2047
    %v2049 = vsub.f32 %v2035, %v2045
    %v2050 = vsub.f32 %v2040, %v2048
    %v2051 = vmul.f32 %v2049, 1.442695
    %v2052 = vpow.pop %v2051
    %v2053 = vmul.f32 %v2050, 1.442695
    %v2054 = vpow.pop %v2053
    %v2055 = vsel %vm497, %v2052, 0.0
    %2056 = vadd.xlane.f32.xlu0 %v2055
    %v2057 = vpop.xlane.xlu0 %2056
    %v2058 = vsel %vm497, %v2054, 0.0
    %2059 = vadd.xlane.f32.xlu0 %v2058
    %v2060 = vpop.xlane.xlu0 %2059
    %v2061 = vrcp.pop %v2057
    %v2062 = vmul.f32 %v2052, %v2061
    %v2063 = vrcp.pop %v2060
    %v2064 = vmul.f32 %v2054, %v2063
    %2065 = vrot.lane.b32.xlu0 %v136, 88
    %v2066 = vpop.permute.xlu0 %2065
    %2067 = vrot.lane.b32.xlu0 %v141, 88
    %v2068 = vpop.permute.xlu0 %2067
    %v2072 = vsel %vm497, %v2062, 0
    %v2075 = vsel %vm497, %v2064, 0
    %2077 = vmatprep.subr.mxu0 0.0
    %2078 = vmatpush1.msra.mxu0 %v2066
    %2079 = vmatprep.subr.mxu0 0.0
    %2080 = vmatpush1.msra.mxu0 %v2068
    %2081 = vmatprep.subr.mxu0 0.0
    %2082 = vmatpush1.msra.mxu0 0.0
    %2083 = vmatprep.subr.mxu0 0.0
    %2084 = vmatpush1.msra.mxu0 0.0
    %2085 = vmatprep.subr.mxu0 0.0
    %2086 = vmatpush1.msra.mxu0 0.0
    %2087 = vmatprep.subr.mxu0 0.0
    %2088 = vmatpush1.msra.mxu0 0.0
    %2089 = vmatprep.subr.mxu0 0.0
    %2090 = vmatpush1.msra.mxu0 0.0
    %2091 = vmatprep.subr.mxu0 0.0
    %2092 = vmatpush1.msra.mxu0 0.0
    %2093 = vmatprep.subr.mxu0 0.0
    %2094 = vmatpush1.msra.mxu0 0.0
    %2095 = vmatprep.subr.mxu0 0.0
    %2096 = vmatpush1.msra.mxu0 0.0
    %2097 = vmatprep.subr.mxu0 0.0
    %2098 = vmatpush1.msra.mxu0 0.0
    %2099 = vmatprep.subr.mxu0 0.0
    %2100 = vmatpush1.msra.mxu0 0.0
    %2101 = vmatprep.subr.mxu0 0.0
    %2102 = vmatpush1.msra.mxu0 0.0
    %2103 = vmatprep.subr.mxu0 0.0
    %2104 = vmatpush1.msra.mxu0 0.0
    %2105 = vmatprep.subr.mxu0 0.0
    %2106 = vmatpush1.msra.mxu0 0.0
    %2107 = vmatprep.subr.mxu0 0.0
    %2108 = vmatpush1.msra.mxu0 0.0
    %2109 = vmatprep.subr.mxu0 0.0
    %2110 = vmatpush1.msra.mxu0 0.0
    %2111 = vmatprep.subr.mxu0 0.0
    %2112 = vmatpush1.msra.mxu0 0.0
    %2113 = vmatprep.subr.mxu0 0.0
    %2114 = vmatpush1.msra.mxu0 0.0
    %2115 = vmatprep.subr.mxu0 0.0
    %2116 = vmatpush1.msra.mxu0 0.0
    %2117 = vmatprep.subr.mxu0 0.0
    %2118 = vmatpush1.msra.mxu0 0.0
    %2119 = vmatprep.subr.mxu0 0.0
    %2120 = vmatpush1.msra.mxu0 0.0
    %2121 = vmatprep.subr.mxu0 0.0
    %2122 = vmatpush1.msra.mxu0 0.0
    %2123 = vmatprep.subr.mxu0 0.0
    %2124 = vmatpush1.msra.mxu0 0.0
    %2125 = vmatprep.subr.mxu0 0.0
    %2126 = vmatpush1.msra.mxu0 0.0
    %2127 = vmatprep.subr.mxu0 0.0
    %2128 = vmatpush1.msra.mxu0 0.0
    %2129 = vmatprep.subr.mxu0 0.0
    %2130 = vmatpush1.msra.mxu0 0.0
    %2131 = vmatprep.subr.mxu0 0.0
    %2132 = vmatpush1.msra.mxu0 0.0
    %2133 = vmatprep.subr.mxu0 0.0
    %2134 = vmatpush1.msra.mxu0 0.0
    %2135 = vmatprep.subr.mxu0 0.0
    %2136 = vmatpush1.msra.mxu0 0.0
    %2137 = vmatprep.subr.mxu0 0.0
    %2138 = vmatpush1.msra.mxu0 0.0
    %2139 = vmatprep.subr.mxu0 0.0
    %2140 = vmatpush1.msra.mxu0 0.0
    %2141 = vmatprep.mubr.f32.mxu0 0.0
    %2142 = vmatmul.mubr.f32.gmra.mrb[0].mxu0 %v2072
    %v2143 = vpop.f32.mrb[0].mxu0
    %v2144 = vadd.f32 0.0, %v2143
    %v2145 = vpop.f32.mrb[0].mxu0
    %2146 = vmatprep.mubr.f32.mxu0 0.0
    %2147 = vmatmul.mubr.f32.gmra.mrb[0].mxu0 %v2075
    %v2148 = vpop.f32.mrb[0].mxu0
    %v2149 = vadd.f32 0.0, %v2148
    %v2150 = vpop.f32.mrb[0].mxu0
    %2151 = vdwg.mxu0
    %v2152 = vld [vmem:[%s4 + $0xe8] sm:$0xff]
    %v2154 = vsel %vm413, %v2144, 0
    %v2157 = vsel %vm413, %v2149, 0
    %2159 = vmatprep.subr.mxu0 0.0
    %2160 = vmatpush1.msra.mxu0 %v2152
    %2161 = vmatprep.subr.mxu0 0.0
    %2162 = vmatpush1.msra.mxu0 0.0
    %2163 = vmatprep.subr.mxu0 0.0
    %2164 = vmatpush1.msra.mxu0 0.0
    %2165 = vmatprep.subr.mxu0 0.0
    %2166 = vmatpush1.msra.mxu0 0.0
    %2167 = vmatprep.subr.mxu0 0.0
    %2168 = vmatpush1.msra.mxu0 0.0
    %2169 = vmatprep.subr.mxu0 0.0
    %2170 = vmatpush1.msra.mxu0 0.0
    %2171 = vmatprep.subr.mxu0 0.0
    %2172 = vmatpush1.msra.mxu0 0.0
    %2173 = vmatprep.subr.mxu0 0.0
    %2174 = vmatpush1.msra.mxu0 0.0
    %2175 = vmatprep.subr.mxu0 0.0
    %2176 = vmatpush1.msra.mxu0 0.0
    %2177 = vmatprep.subr.mxu0 0.0
    %2178 = vmatpush1.msra.mxu0 0.0
    %2179 = vmatprep.subr.mxu0 0.0
    %2180 = vmatpush1.msra.mxu0 0.0
    %2181 = vmatprep.subr.mxu0 0.0
    %2182 = vmatpush1.msra.mxu0 0.0
    %2183 = vmatprep.subr.mxu0 0.0
    %2184 = vmatpush1.msra.mxu0 0.0
    %2185 = vmatprep.subr.mxu0 0.0
    %2186 = vmatpush1.msra.mxu0 0.0
    %2187 = vmatprep.subr.mxu0 0.0
    %2188 = vmatpush1.msra.mxu0 0.0
    %2189 = vmatprep.subr.mxu0 0.0
    %2190 = vmatpush1.msra.mxu0 0.0
    %2191 = vmatprep.subr.mxu0 0.0
    %2192 = vmatpush1.msra.mxu0 0.0
    %2193 = vmatprep.subr.mxu0 0.0
    %2194 = vmatpush1.msra.mxu0 0.0
    %2195 = vmatprep.subr.mxu0 0.0
    %2196 = vmatpush1.msra.mxu0 0.0
    %2197 = vmatprep.subr.mxu0 0.0
    %2198 = vmatpush1.msra.mxu0 0.0
    %2199 = vmatprep.subr.mxu0 0.0
    %2200 = vmatpush1.msra.mxu0 0.0
    %2201 = vmatprep.subr.mxu0 0.0
    %2202 = vmatpush1.msra.mxu0 0.0
    %2203 = vmatprep.subr.mxu0 0.0
    %2204 = vmatpush1.msra.mxu0 0.0
    %2205 = vmatprep.subr.mxu0 0.0
    %2206 = vmatpush1.msra.mxu0 0.0
    %2207 = vmatprep.subr.mxu0 0.0
    %2208 = vmatpush1.msra.mxu0 0.0
    %2209 = vmatprep.subr.mxu0 0.0
    %2210 = vmatpush1.msra.mxu0 0.0
    %2211 = vmatprep.subr.mxu0 0.0
    %2212 = vmatpush1.msra.mxu0 0.0
    %2213 = vmatprep.subr.mxu0 0.0
    %2214 = vmatpush1.msra.mxu0 0.0
    %2215 = vmatprep.subr.mxu0 0.0
    %2216 = vmatpush1.msra.mxu0 0.0
    %2217 = vmatprep.subr.mxu0 0.0
    %2218 = vmatpush1.msra.mxu0 0.0
    %2219 = vmatprep.subr.mxu0 0.0
    %2220 = vmatpush1.msra.mxu0 0.0
    %2221 = vmatprep.subr.mxu0 0.0
    %2222 = vmatpush1.msra.mxu0 0.0
    %2223 = vmatprep.mubr.f32.mxu0 0.0
    %2224 = vmatmul.mubr.f32.gmra.mrb[0].mxu0 %v2154
    %v2225 = vpop.f32.mrb[0].mxu0
    %v2226 = vadd.f32 0.0, %v2225
    %v2227 = vpop.f32.mrb[0].mxu0
    %2228 = vmatprep.mubr.f32.mxu0 0.0
    %2229 = vmatmul.mubr.f32.gmra.mrb[0].mxu0 %v2157
    %v2230 = vpop.f32.mrb[0].mxu0
    %v2231 = vadd.f32 0.0, %v2230
    %v2232 = vpop.f32.mrb[0].mxu0
    %2233 = vdwg.mxu0
    %v2234 = vadd.f32 %v1950, %v2226
    %v2235 = vadd.f32 %v1951, %v2231
    %2236 = vrot.lane.b32.xlu0 %v1664, 112
    %v2237 = vpop.permute.xlu0 %2236
    %2238 = vrot.lane.b32.xlu0 %v1669, 112
    %v2239 = vpop.permute.xlu0 %2238
    %2240 = vrot.lane.b32.xlu0 %v136, 112
    %v2241 = vpop.permute.xlu0 %2240
    %2242 = vrot.lane.b32.xlu0 %v141, 112
    %v2243 = vpop.permute.xlu0 %2242
    %v2244 = vsel %vm413, %v2237, 0
    %v2246 = vsel %vm413, %v2239, 0
    %v2248 = vsel %vm413, %v2241, 0
    %v2250 = vsel %vm413, %v2243, 0
    %2252 = vmatprep.subr.mxu0 0.0
    %2253 = vmatpush1.xpose.msra.mxu0 %v2248
    %2254 = vmatprep.subr.mxu0 0.0
    %2255 = vmatpush1.xpose.msra.mxu0 %v2250
    %2256 = vmatprep.subr.mxu0 0.0
    %2257 = vmatpush1.xpose.msra.mxu0 0.0
    %2258 = vmatprep.subr.mxu0 0.0
    %2259 = vmatpush1.xpose.msra.mxu0 0.0
    %2260 = vmatprep.subr.mxu0 0.0
    %2261 = vmatpush1.xpose.msra.mxu0 0.0
    %2262 = vmatprep.subr.mxu0 0.0
    %2263 = vmatpush1.xpose.msra.mxu0 0.0
    %2264 = vmatprep.subr.mxu0 0.0
    %2265 = vmatpush1.xpose.msra.mxu0 0.0
    %2266 = vmatprep.subr.mxu0 0.0
    %2267 = vmatpush1.xpose.msra.mxu0 0.0
    %2268 = vmatprep.subr.mxu0 0.0
    %2269 = vmatpush1.xpose.msra.mxu0 0.0
    %2270 = vmatprep.subr.mxu0 0.0
    %2271 = vmatpush1.xpose.msra.mxu0 0.0
    %2272 = vmatprep.subr.mxu0 0.0
    %2273 = vmatpush1.xpose.msra.mxu0 0.0
    %2274 = vmatprep.subr.mxu0 0.0
    %2275 = vmatpush1.xpose.msra.mxu0 0.0
    %2276 = vmatprep.subr.mxu0 0.0
    %2277 = vmatpush1.xpose.msra.mxu0 0.0
    %2278 = vmatprep.subr.mxu0 0.0
    %2279 = vmatpush1.xpose.msra.mxu0 0.0
    %2280 = vmatprep.subr.mxu0 0.0
    %2281 = vmatpush1.xpose.msra.mxu0 0.0
    %2282 = vmatprep.subr.mxu0 0.0
    %2283 = vmatpush1.xpose.msra.mxu0 0.0
    %2284 = vmatprep.subr.mxu0 0.0
    %2285 = vmatpush1.xpose.msra.mxu0 0.0
    %2286 = vmatprep.subr.mxu0 0.0
    %2287 = vmatpush1.xpose.msra.mxu0 0.0
    %2288 = vmatprep.subr.mxu0 0.0
    %2289 = vmatpush1.xpose.msra.mxu0 0.0
    %2290 = vmatprep.subr.mxu0 0.0
    %2291 = vmatpush1.xpose.msra.mxu0 0.0
    %2292 = vmatprep.subr.mxu0 0.0
    %2293 = vmatpush1.xpose.msra.mxu0 0.0
    %2294 = vmatprep.subr.mxu0 0.0
    %2295 = vmatpush1.xpose.msra.mxu0 0.0
    %2296 = vmatprep.subr.mxu0 0.0
    %2297 = vmatpush1.xpose.msra.mxu0 0.0
    %2298 = vmatprep.subr.mxu0 0.0
    %2299 = vmatpush1.xpose.msra.mxu0 0.0
    %2300 = vmatprep.subr.mxu0 0.0
    %2301 = vmatpush1.xpose.msra.mxu0 0.0
    %2302 = vmatprep.subr.mxu0 0.0
    %2303 = vmatpush1.xpose.msra.mxu0 0.0
    %2304 = vmatprep.subr.mxu0 0.0
    %2305 = vmatpush1.xpose.msra.mxu0 0.0
    %2306 = vmatprep.subr.mxu0 0.0
    %2307 = vmatpush1.xpose.msra.mxu0 0.0
    %2308 = vmatprep.subr.mxu0 0.0
    %2309 = vmatpush1.xpose.msra.mxu0 0.0
    %2310 = vmatprep.subr.mxu0 0.0
    %2311 = vmatpush1.xpose.msra.mxu0 0.0
    %2312 = vmatprep.subr.mxu0 0.0
    %2313 = vmatpush1.xpose.msra.mxu0 0.0
    %2314 = vmatprep.subr.mxu0 0.0
    %2315 = vmatpush1.xpose.msra.mxu0 0.0
    %2316 = vmatprep.mubr.f32.mxu0 0.0
    %2317 = vmatmul.mubr.f32.gmra.mrb[0].mxu0 %v2244
    %v2318 = vpop.f32.mrb[0].mxu0
    %v2319 = vadd.f32 %v28, %v2318
    %v2320 = vpop.f32.mrb[0].mxu0
    %2321 = vmatprep.mubr.f32.mxu0 0.0
    %2322 = vmatmul.mubr.f32.gmra.mrb[0].mxu0 %v2246
    %v2323 = vpop.f32.mrb[0].mxu0
    %v2324 = vadd.f32 %v29, %v2323
    %v2325 = vpop.f32.mrb[0].mxu0
    %2326 = vdwg.mxu0
    %v2327 = vsel %vm497, %v2319, -inf
    %2328 = vmax.xlane.f32.xlu0 %v2327
    %v2329 = vpop.xlane.xlu0 %2328
    %v2330 = vsel %vm497, %v2324, -inf
    %2331 = vmax.xlane.f32.xlu0 %v2330
    %v2332 = vpop.xlane.xlu0 %2331
    %v2333 = vsub.f32 %v2319, %v2329
    %v2334 = vsub.f32 %v2324, %v2332
    %v2335 = vmul.f32 %v2333, 1.442695
    %v2336 = vpow.pop %v2335
    %v2337 = vmul.f32 %v2334, 1.442695
    %v2338 = vpow.pop %v2337
    %v2339 = vsel %vm497, %v2336, 0.0
    %2340 = vadd.xlane.f32.xlu0 %v2339
    %v2341 = vpop.xlane.xlu0 %2340
    %v2342 = vsel %vm497, %v2338, 0.0
    %2343 = vadd.xlane.f32.xlu0 %v2342
    %v2344 = vpop.xlane.xlu0 %2343
    %v2345 = vrcp.pop %v2341
    %v2346 = vmul.f32 %v2336, %v2345
    %v2347 = vrcp.pop %v2344
    %v2348 = vmul.f32 %v2338, %v2347
    %2349 = vrot.lane.b32.xlu0 %v136, 80
    %v2350 = vpop.permute.xlu0 %2349
    %2351 = vrot.lane.b32.xlu0 %v141, 80
    %v2352 = vpop.permute.xlu0 %2351
    %v2356 = vsel %vm497, %v2346, 0
    %v2359 = vsel %vm497, %v2348, 0
    %2361 = vmatprep.subr.mxu0 0.0
    %2362 = vmatpush1.msra.mxu0 %v2350
    %2363 = vmatprep.subr.mxu0 0.0
    %2364 = vmatpush1.msra.mxu0 %v2352
    %2365 = vmatprep.subr.mxu0 0.0
    %2366 = vmatpush1.msra.mxu0 0.0
    %2367 = vmatprep.subr.mxu0 0.0
    %2368 = vmatpush1.msra.mxu0 0.0
    %2369 = vmatprep.subr.mxu0 0.0
    %2370 = vmatpush1.msra.mxu0 0.0
    %2371 = vmatprep.subr.mxu0 0.0
    %2372 = vmatpush1.msra.mxu0 0.0
    %2373 = vmatprep.subr.mxu0 0.0
    %2374 = vmatpush1.msra.mxu0 0.0
    %2375 = vmatprep.subr.mxu0 0.0
    %2376 = vmatpush1.msra.mxu0 0.0
    %2377 = vmatprep.subr.mxu0 0.0
    %2378 = vmatpush1.msra.mxu0 0.0
    %2379 = vmatprep.subr.mxu0 0.0
    %2380 = vmatpush1.msra.mxu0 0.0
    %2381 = vmatprep.subr.mxu0 0.0
    %2382 = vmatpush1.msra.mxu0 0.0
    %2383 = vmatprep.subr.mxu0 0.0
    %2384 = vmatpush1.msra.mxu0 0.0
    %2385 = vmatprep.subr.mxu0 0.0
    %2386 = vmatpush1.msra.mxu0 0.0
    %2387 = vmatprep.subr.mxu0 0.0
    %2388 = vmatpush1.msra.mxu0 0.0
    %2389 = vmatprep.subr.mxu0 0.0
    %2390 = vmatpush1.msra.mxu0 0.0
    %2391 = vmatprep.subr.mxu0 0.0
    %2392 = vmatpush1.msra.mxu0 0.0
    %2393 = vmatprep.subr.mxu0 0.0
    %2394 = vmatpush1.msra.mxu0 0.0
    %2395 = vmatprep.subr.mxu0 0.0
    %2396 = vmatpush1.msra.mxu0 0.0
    %2397 = vmatprep.subr.mxu0 0.0
    %2398 = vmatpush1.msra.mxu0 0.0
    %2399 = vmatprep.subr.mxu0 0.0
    %2400 = vmatpush1.msra.mxu0 0.0
    %2401 = vmatprep.subr.mxu0 0.0
    %2402 = vmatpush1.msra.mxu0 0.0
    %2403 = vmatprep.subr.mxu0 0.0
    %2404 = vmatpush1.msra.mxu0 0.0
    %2405 = vmatprep.subr.mxu0 0.0
    %2406 = vmatpush1.msra.mxu0 0.0
    %2407 = vmatprep.subr.mxu0 0.0
    %2408 = vmatpush1.msra.mxu0 0.0
    %2409 = vmatprep.subr.mxu0 0.0
    %2410 = vmatpush1.msra.mxu0 0.0
    %2411 = vmatprep.subr.mxu0 0.0
    %2412 = vmatpush1.msra.mxu0 0.0
    %2413 = vmatprep.subr.mxu0 0.0
    %2414 = vmatpush1.msra.mxu0 0.0
    %2415 = vmatprep.subr.mxu0 0.0
    %2416 = vmatpush1.msra.mxu0 0.0
    %2417 = vmatprep.subr.mxu0 0.0
    %2418 = vmatpush1.msra.mxu0 0.0
    %2419 = vmatprep.subr.mxu0 0.0
    %2420 = vmatpush1.msra.mxu0 0.0
    %2421 = vmatprep.subr.mxu0 0.0
    %2422 = vmatpush1.msra.mxu0 0.0
    %2423 = vmatprep.subr.mxu0 0.0
    %2424 = vmatpush1.msra.mxu0 0.0
    %2425 = vmatprep.mubr.f32.mxu0 0.0
    %2426 = vmatmul.mubr.f32.gmra.mrb[0].mxu0 %v2356
    %v2427 = vpop.f32.mrb[0].mxu0
    %v2428 = vadd.f32 0.0, %v2427
    %v2429 = vpop.f32.mrb[0].mxu0
    %2430 = vmatprep.mubr.f32.mxu0 0.0
    %2431 = vmatmul.mubr.f32.gmra.mrb[0].mxu0 %v2359
    %v2432 = vpop.f32.mrb[0].mxu0
    %v2433 = vadd.f32 0.0, %v2432
    %v2434 = vpop.f32.mrb[0].mxu0
    %2435 = vdwg.mxu0
    %v2436 = vld [vmem:[%s4 + $0xf0] sm:$0xff]
    %v2438 = vsel %vm413, %v2428, 0
    %v2441 = vsel %vm413, %v2433, 0
    %2443 = vmatprep.subr.mxu0 0.0
    %2444 = vmatpush1.msra.mxu0 %v2436
    %2445 = vmatprep.subr.mxu0 0.0
    %2446 = vmatpush1.msra.mxu0 0.0
    %2447 = vmatprep.subr.mxu0 0.0
    %2448 = vmatpush1.msra.mxu0 0.0
    %2449 = vmatprep.subr.mxu0 0.0
    %2450 = vmatpush1.msra.mxu0 0.0
    %2451 = vmatprep.subr.mxu0 0.0
    %2452 = vmatpush1.msra.mxu0 0.0
    %2453 = vmatprep.subr.mxu0 0.0
    %2454 = vmatpush1.msra.mxu0 0.0
    %2455 = vmatprep.subr.mxu0 0.0
    %2456 = vmatpush1.msra.mxu0 0.0
    %2457 = vmatprep.subr.mxu0 0.0
    %2458 = vmatpush1.msra.mxu0 0.0
    %2459 = vmatprep.subr.mxu0 0.0
    %2460 = vmatpush1.msra.mxu0 0.0
    %2461 = vmatprep.subr.mxu0 0.0
    %2462 = vmatpush1.msra.mxu0 0.0
    %2463 = vmatprep.subr.mxu0 0.0
    %2464 = vmatpush1.msra.mxu0 0.0
    %2465 = vmatprep.subr.mxu0 0.0
    %2466 = vmatpush1.msra.mxu0 0.0
    %2467 = vmatprep.subr.mxu0 0.0
    %2468 = vmatpush1.msra.mxu0 0.0
    %2469 = vmatprep.subr.mxu0 0.0
    %2470 = vmatpush1.msra.mxu0 0.0
    %2471 = vmatprep.subr.mxu0 0.0
    %2472 = vmatpush1.msra.mxu0 0.0
    %2473 = vmatprep.subr.mxu0 0.0
    %2474 = vmatpush1.msra.mxu0 0.0
    %2475 = vmatprep.subr.mxu0 0.0
    %2476 = vmatpush1.msra.mxu0 0.0
    %2477 = vmatprep.subr.mxu0 0.0
    %2478 = vmatpush1.msra.mxu0 0.0
    %2479 = vmatprep.subr.mxu0 0.0
    %2480 = vmatpush1.msra.mxu0 0.0
    %2481 = vmatprep.subr.mxu0 0.0
    %2482 = vmatpush1.msra.mxu0 0.0
    %2483 = vmatprep.subr.mxu0 0.0
    %2484 = vmatpush1.msra.mxu0 0.0
    %2485 = vmatprep.subr.mxu0 0.0
    %2486 = vmatpush1.msra.mxu0 0.0
    %2487 = vmatprep.subr.mxu0 0.0
    %2488 = vmatpush1.msra.mxu0 0.0
    %2489 = vmatprep.subr.mxu0 0.0
    %2490 = vmatpush1.msra.mxu0 0.0
    %2491 = vmatprep.subr.mxu0 0.0
    %2492 = vmatpush1.msra.mxu0 0.0
    %2493 = vmatprep.subr.mxu0 0.0
    %2494 = vmatpush1.msra.mxu0 0.0
    %2495 = vmatprep.subr.mxu0 0.0
    %2496 = vmatpush1.msra.mxu0 0.0
    %2497 = vmatprep.subr.mxu0 0.0
    %2498 = vmatpush1.msra.mxu0 0.0
    %2499 = vmatprep.subr.mxu0 0.0
    %2500 = vmatpush1.msra.mxu0 0.0
    %2501 = vmatprep.subr.mxu0 0.0
    %2502 = vmatpush1.msra.mxu0 0.0
    %2503 = vmatprep.subr.mxu0 0.0
    %2504 = vmatpush1.msra.mxu0 0.0
    %2505 = vmatprep.subr.mxu0 0.0
    %2506 = vmatpush1.msra.mxu0 0.0
    %2507 = vmatprep.mubr.f32.mxu0 0.0
    %2508 = vmatmul.mubr.f32.gmra.mrb[0].mxu0 %v2438
    %v2509 = vpop.f32.mrb[0].mxu0
    %v2510 = vadd.f32 0.0, %v2509
    %v2511 = vpop.f32.mrb[0].mxu0
    %2512 = vmatprep.mubr.f32.mxu0 0.0
    %2513 = vmatmul.mubr.f32.gmra.mrb[0].mxu0 %v2441
    %v2514 = vpop.f32.mrb[0].mxu0
    %v2515 = vadd.f32 0.0, %v2514
    %v2516 = vpop.f32.mrb[0].mxu0
    %2517 = vdwg.mxu0
    %v2518 = vadd.f32 %v2234, %v2510
    %v2519 = vadd.f32 %v2235, %v2515
    %2520 = vrot.lane.b32.xlu0 %v1664, 104
    %v2521 = vpop.permute.xlu0 %2520
    %2522 = vrot.lane.b32.xlu0 %v1669, 104
    %v2523 = vpop.permute.xlu0 %2522
    %2524 = vrot.lane.b32.xlu0 %v136, 104
    %v2525 = vpop.permute.xlu0 %2524
    %2526 = vrot.lane.b32.xlu0 %v141, 104
    %v2527 = vpop.permute.xlu0 %2526
    %v2528 = vsel %vm413, %v2521, 0
    %v2530 = vsel %vm413, %v2523, 0
    %v2532 = vsel %vm413, %v2525, 0
    %v2534 = vsel %vm413, %v2527, 0
    %2536 = vmatprep.subr.mxu0 0.0
    %2537 = vmatpush1.xpose.msra.mxu0 %v2532
    %2538 = vmatprep.subr.mxu0 0.0
    %2539 = vmatpush1.xpose.msra.mxu0 %v2534
    %2540 = vmatprep.subr.mxu0 0.0
    %2541 = vmatpush1.xpose.msra.mxu0 0.0
    %2542 = vmatprep.subr.mxu0 0.0
    %2543 = vmatpush1.xpose.msra.mxu0 0.0
    %2544 = vmatprep.subr.mxu0 0.0
    %2545 = vmatpush1.xpose.msra.mxu0 0.0
    %2546 = vmatprep.subr.mxu0 0.0
    %2547 = vmatpush1.xpose.msra.mxu0 0.0
    %2548 = vmatprep.subr.mxu0 0.0
    %2549 = vmatpush1.xpose.msra.mxu0 0.0
    %2550 = vmatprep.subr.mxu0 0.0
    %2551 = vmatpush1.xpose.msra.mxu0 0.0
    %2552 = vmatprep.subr.mxu0 0.0
    %2553 = vmatpush1.xpose.msra.mxu0 0.0
    %2554 = vmatprep.subr.mxu0 0.0
    %2555 = vmatpush1.xpose.msra.mxu0 0.0
    %2556 = vmatprep.subr.mxu0 0.0
    %2557 = vmatpush1.xpose.msra.mxu0 0.0
    %2558 = vmatprep.subr.mxu0 0.0
    %2559 = vmatpush1.xpose.msra.mxu0 0.0
    %2560 = vmatprep.subr.mxu0 0.0
    %2561 = vmatpush1.xpose.msra.mxu0 0.0
    %2562 = vmatprep.subr.mxu0 0.0
    %2563 = vmatpush1.xpose.msra.mxu0 0.0
    %2564 = vmatprep.subr.mxu0 0.0
    %2565 = vmatpush1.xpose.msra.mxu0 0.0
    %2566 = vmatprep.subr.mxu0 0.0
    %2567 = vmatpush1.xpose.msra.mxu0 0.0
    %2568 = vmatprep.subr.mxu0 0.0
    %2569 = vmatpush1.xpose.msra.mxu0 0.0
    %2570 = vmatprep.subr.mxu0 0.0
    %2571 = vmatpush1.xpose.msra.mxu0 0.0
    %2572 = vmatprep.subr.mxu0 0.0
    %2573 = vmatpush1.xpose.msra.mxu0 0.0
    %2574 = vmatprep.subr.mxu0 0.0
    %2575 = vmatpush1.xpose.msra.mxu0 0.0
    %2576 = vmatprep.subr.mxu0 0.0
    %2577 = vmatpush1.xpose.msra.mxu0 0.0
    %2578 = vmatprep.subr.mxu0 0.0
    %2579 = vmatpush1.xpose.msra.mxu0 0.0
    %2580 = vmatprep.subr.mxu0 0.0
    %2581 = vmatpush1.xpose.msra.mxu0 0.0
    %2582 = vmatprep.subr.mxu0 0.0
    %2583 = vmatpush1.xpose.msra.mxu0 0.0
    %2584 = vmatprep.subr.mxu0 0.0
    %2585 = vmatpush1.xpose.msra.mxu0 0.0
    %2586 = vmatprep.subr.mxu0 0.0
    %2587 = vmatpush1.xpose.msra.mxu0 0.0
    %2588 = vmatprep.subr.mxu0 0.0
    %2589 = vmatpush1.xpose.msra.mxu0 0.0
    %2590 = vmatprep.subr.mxu0 0.0
    %2591 = vmatpush1.xpose.msra.mxu0 0.0
    %2592 = vmatprep.subr.mxu0 0.0
    %2593 = vmatpush1.xpose.msra.mxu0 0.0
    %2594 = vmatprep.subr.mxu0 0.0
    %2595 = vmatpush1.xpose.msra.mxu0 0.0
    %2596 = vmatprep.subr.mxu0 0.0
    %2597 = vmatpush1.xpose.msra.mxu0 0.0
    %2598 = vmatprep.subr.mxu0 0.0
    %2599 = vmatpush1.xpose.msra.mxu0 0.0
    %2600 = vmatprep.mubr.f32.mxu0 0.0
    %2601 = vmatmul.mubr.f32.gmra.mrb[0].mxu0 %v2528
    %v2602 = vpop.f32.mrb[0].mxu0
    %v2603 = vadd.f32 %v28, %v2602
    %v2604 = vpop.f32.mrb[0].mxu0
    %2605 = vmatprep.mubr.f32.mxu0 0.0
    %2606 = vmatmul.mubr.f32.gmra.mrb[0].mxu0 %v2530
    %v2607 = vpop.f32.mrb[0].mxu0
    %v2608 = vadd.f32 %v29, %v2607
    %v2609 = vpop.f32.mrb[0].mxu0
    %2610 = vdwg.mxu0
    %v2611 = vsel %vm497, %v2603, -inf
    %2612 = vmax.xlane.f32.xlu0 %v2611
    %v2613 = vpop.xlane.xlu0 %2612
    %v2614 = vsel %vm497, %v2608, -inf
    %2615 = vmax.xlane.f32.xlu0 %v2614
    %v2616 = vpop.xlane.xlu0 %2615
    %v2617 = vsub.f32 %v2603, %v2613
    %v2618 = vsub.f32 %v2608, %v2616
    %v2619 = vmul.f32 %v2617, 1.442695
    %v2620 = vpow.pop %v2619
    %v2621 = vmul.f32 %v2618, 1.442695
    %v2622 = vpow.pop %v2621
    %v2623 = vsel %vm497, %v2620, 0.0
    %2624 = vadd.xlane.f32.xlu0 %v2623
    %v2625 = vpop.xlane.xlu0 %2624
    %v2626 = vsel %vm497, %v2622, 0.0
    %2627 = vadd.xlane.f32.xlu0 %v2626
    %v2628 = vpop.xlane.xlu0 %2627
    %v2629 = vrcp.pop %v2625
    %v2630 = vmul.f32 %v2620, %v2629
    %v2631 = vrcp.pop %v2628
    %v2632 = vmul.f32 %v2622, %v2631
    %2633 = vrot.lane.b32.xlu0 %v136, 72
    %v2634 = vpop.permute.xlu0 %2633
    %2635 = vrot.lane.b32.xlu0 %v141, 72
    %v2636 = vpop.permute.xlu0 %2635
    %v2640 = vsel %vm497, %v2630, 0
    %v2643 = vsel %vm497, %v2632, 0
    %2645 = vmatprep.subr.mxu0 0.0
    %2646 = vmatpush1.msra.mxu0 %v2634
    %2647 = vmatprep.subr.mxu0 0.0
    %2648 = vmatpush1.msra.mxu0 %v2636
    %2649 = vmatprep.subr.mxu0 0.0
    %2650 = vmatpush1.msra.mxu0 0.0
    %2651 = vmatprep.subr.mxu0 0.0
    %2652 = vmatpush1.msra.mxu0 0.0
    %2653 = vmatprep.subr.mxu0 0.0
    %2654 = vmatpush1.msra.mxu0 0.0
    %2655 = vmatprep.subr.mxu0 0.0
    %2656 = vmatpush1.msra.mxu0 0.0
    %2657 = vmatprep.subr.mxu0 0.0
    %2658 = vmatpush1.msra.mxu0 0.0
    %2659 = vmatprep.subr.mxu0 0.0
    %2660 = vmatpush1.msra.mxu0 0.0
    %2661 = vmatprep.subr.mxu0 0.0
    %2662 = vmatpush1.msra.mxu0 0.0
    %2663 = vmatprep.subr.mxu0 0.0
    %2664 = vmatpush1.msra.mxu0 0.0
    %2665 = vmatprep.subr.mxu0 0.0
    %2666 = vmatpush1.msra.mxu0 0.0
    %2667 = vmatprep.subr.mxu0 0.0
    %2668 = vmatpush1.msra.mxu0 0.0
    %2669 = vmatprep.subr.mxu0 0.0
    %2670 = vmatpush1.msra.mxu0 0.0
    %2671 = vmatprep.subr.mxu0 0.0
    %2672 = vmatpush1.msra.mxu0 0.0
    %2673 = vmatprep.subr.mxu0 0.0
    %2674 = vmatpush1.msra.mxu0 0.0
    %2675 = vmatprep.subr.mxu0 0.0
    %2676 = vmatpush1.msra.mxu0 0.0
    %2677 = vmatprep.subr.mxu0 0.0
    %2678 = vmatpush1.msra.mxu0 0.0
    %2679 = vmatprep.subr.mxu0 0.0
    %2680 = vmatpush1.msra.mxu0 0.0
    %2681 = vmatprep.subr.mxu0 0.0
    %2682 = vmatpush1.msra.mxu0 0.0
    %2683 = vmatprep.subr.mxu0 0.0
    %2684 = vmatpush1.msra.mxu0 0.0
    %2685 = vmatprep.subr.mxu0 0.0
    %2686 = vmatpush1.msra.mxu0 0.0
    %2687 = vmatprep.subr.mxu0 0.0
    %2688 = vmatpush1.msra.mxu0 0.0
    %2689 = vmatprep.subr.mxu0 0.0
    %2690 = vmatpush1.msra.mxu0 0.0
    %2691 = vmatprep.subr.mxu0 0.0
    %2692 = vmatpush1.msra.mxu0 0.0
    %2693 = vmatprep.subr.mxu0 0.0
    %2694 = vmatpush1.msra.mxu0 0.0
    %2695 = vmatprep.subr.mxu0 0.0
    %2696 = vmatpush1.msra.mxu0 0.0
    %2697 = vmatprep.subr.mxu0 0.0
    %2698 = vmatpush1.msra.mxu0 0.0
    %2699 = vmatprep.subr.mxu0 0.0
    %2700 = vmatpush1.msra.mxu0 0.0
    %2701 = vmatprep.subr.mxu0 0.0
    %2702 = vmatpush1.msra.mxu0 0.0
    %2703 = vmatprep.subr.mxu0 0.0
    %2704 = vmatpush1.msra.mxu0 0.0
    %2705 = vmatprep.subr.mxu0 0.0
    %2706 = vmatpush1.msra.mxu0 0.0
    %2707 = vmatprep.subr.mxu0 0.0
    %2708 = vmatpush1.msra.mxu0 0.0
    %2709 = vmatprep.mubr.f32.mxu0 0.0
    %2710 = vmatmul.mubr.f32.gmra.mrb[0].mxu0 %v2640
    %v2711 = vpop.f32.mrb[0].mxu0
    %v2712 = vadd.f32 0.0, %v2711
    %v2713 = vpop.f32.mrb[0].mxu0
    %2714 = vmatprep.mubr.f32.mxu0 0.0
    %2715 = vmatmul.mubr.f32.gmra.mrb[0].mxu0 %v2643
    %v2716 = vpop.f32.mrb[0].mxu0
    %v2717 = vadd.f32 0.0, %v2716
    %v2718 = vpop.f32.mrb[0].mxu0
    %2719 = vdwg.mxu0
    %v2720 = vld [vmem:[%s4 + $0xf8] sm:$0xff]
    %v2722 = vsel %vm413, %v2712, 0
    %v2725 = vsel %vm413, %v2717, 0
    %2727 = vmatprep.subr.mxu0 0.0
    %2728 = vmatpush1.msra.mxu0 %v2720
    %2729 = vmatprep.subr.mxu0 0.0
    %2730 = vmatpush1.msra.mxu0 0.0
    %2731 = vmatprep.subr.mxu0 0.0
    %2732 = vmatpush1.msra.mxu0 0.0
    %2733 = vmatprep.subr.mxu0 0.0
    %2734 = vmatpush1.msra.mxu0 0.0
    %2735 = vmatprep.subr.mxu0 0.0
    %2736 = vmatpush1.msra.mxu0 0.0
    %2737 = vmatprep.subr.mxu0 0.0
    %2738 = vmatpush1.msra.mxu0 0.0
    %2739 = vmatprep.subr.mxu0 0.0
    %2740 = vmatpush1.msra.mxu0 0.0
    %2741 = vmatprep.subr.mxu0 0.0
    %2742 = vmatpush1.msra.mxu0 0.0
    %2743 = vmatprep.subr.mxu0 0.0
    %2744 = vmatpush1.msra.mxu0 0.0
    %2745 = vmatprep.subr.mxu0 0.0
    %2746 = vmatpush1.msra.mxu0 0.0
    %2747 = vmatprep.subr.mxu0 0.0
    %2748 = vmatpush1.msra.mxu0 0.0
    %2749 = vmatprep.subr.mxu0 0.0
    %2750 = vmatpush1.msra.mxu0 0.0
    %2751 = vmatprep.subr.mxu0 0.0
    %2752 = vmatpush1.msra.mxu0 0.0
    %2753 = vmatprep.subr.mxu0 0.0
    %2754 = vmatpush1.msra.mxu0 0.0
    %2755 = vmatprep.subr.mxu0 0.0
    %2756 = vmatpush1.msra.mxu0 0.0
    %2757 = vmatprep.subr.mxu0 0.0
    %2758 = vmatpush1.msra.mxu0 0.0
    %2759 = vmatprep.subr.mxu0 0.0
    %2760 = vmatpush1.msra.mxu0 0.0
    %2761 = vmatprep.subr.mxu0 0.0
    %2762 = vmatpush1.msra.mxu0 0.0
    %2763 = vmatprep.subr.mxu0 0.0
    %2764 = vmatpush1.msra.mxu0 0.0
    %2765 = vmatprep.subr.mxu0 0.0
    %2766 = vmatpush1.msra.mxu0 0.0
    %2767 = vmatprep.subr.mxu0 0.0
    %2768 = vmatpush1.msra.mxu0 0.0
    %2769 = vmatprep.subr.mxu0 0.0
    %2770 = vmatpush1.msra.mxu0 0.0
    %2771 = vmatprep.subr.mxu0 0.0
    %2772 = vmatpush1.msra.mxu0 0.0
    %2773 = vmatprep.subr.mxu0 0.0
    %2774 = vmatpush1.msra.mxu0 0.0
    %2775 = vmatprep.subr.mxu0 0.0
    %2776 = vmatpush1.msra.mxu0 0.0
    %2777 = vmatprep.subr.mxu0 0.0
    %2778 = vmatpush1.msra.mxu0 0.0
    %2779 = vmatprep.subr.mxu0 0.0
    %2780 = vmatpush1.msra.mxu0 0.0
    %2781 = vmatprep.subr.mxu0 0.0
    %2782 = vmatpush1.msra.mxu0 0.0
    %2783 = vmatprep.subr.mxu0 0.0
    %2784 = vmatpush1.msra.mxu0 0.0
    %2785 = vmatprep.subr.mxu0 0.0
    %2786 = vmatpush1.msra.mxu0 0.0
    %2787 = vmatprep.subr.mxu0 0.0
    %2788 = vmatpush1.msra.mxu0 0.0
    %2789 = vmatprep.subr.mxu0 0.0
    %2790 = vmatpush1.msra.mxu0 0.0
    %2791 = vmatprep.mubr.f32.mxu0 0.0
    %2792 = vmatmul.mubr.f32.gmra.mrb[0].mxu0 %v2722
    %v2793 = vpop.f32.mrb[0].mxu0
    %v2794 = vadd.f32 0.0, %v2793
    %v2795 = vpop.f32.mrb[0].mxu0
    %2796 = vmatprep.mubr.f32.mxu0 0.0
    %2797 = vmatmul.mubr.f32.gmra.mrb[0].mxu0 %v2725
    %v2798 = vpop.f32.mrb[0].mxu0
    %v2799 = vadd.f32 0.0, %v2798
    %v2800 = vpop.f32.mrb[0].mxu0
    %2801 = vdwg.mxu0
    %v2802 = vadd.f32 %v2518, %v2794
    %v2803 = vadd.f32 %v2519, %v2799
    %v2804 = vld [vmem:[%s5 + $0x2] sm:$0x1]
    %v2805 = vmul.f32 %v2802, %v2802
    %v2806 = vmul.f32 %v2803, %v2803
    %v2807 = vsel %vm38, %v2805, 0.0
    %2808 = vadd.xlane.f32.xlu0 %v2807
    %v2809 = vpop.xlane.xlu0 %2808
    %v2810 = vsel %vm38, %v2806, 0.0
    %2811 = vadd.xlane.f32.xlu0 %v2810
    %v2812 = vpop.xlane.xlu0 %2811
    %v2813 = vmul.f32 %v2809, %v261
    %v2814 = vmul.f32 %v2812, %v261
    %v2815 = vadd.f32 %v2813, 1e-06
    %v2816 = vadd.f32 %v2814, 1e-06
    %v2817 = vrsqrt.pop %v2815
    %v2818 = vrsqrt.pop %v2816
    %v2819 = vmul.f32 %v2802, %v2817
    %v2820 = vmul.f32 %v2803, %v2818
    %v2821 = vlaneseq
    %v2822 = vshrl.u32 %v2821, 7
    %v2823 = vsub.s32 0, %v2822
    %v2824 = vrot.slane %v2804, %v2823
    %v2825 = vmul.f32 %v2819, %v2824
    %v2826 = vmul.f32 %v2820, %v2824
    %v2827 = vld [vmem:[%s4 + $0x80] sm:$0xff]
    %v2828 = vld [vmem:[%s4 + $0x88] sm:$0xff]
    %v2829 = vld [vmem:[%s4 + $0x90] sm:$0xff]
    %v2830 = vld [vmem:[%s4 + $0x98] sm:$0xff]
    %v2831 = vld [vmem:[%s4 + $0xa0] sm:$0xff]
    %v2832 = vld [vmem:[%s4 + $0xa8] sm:$0xff]
    %v2833 = vld [vmem:[%s4 + $0xb0] sm:$0xff]
    %v2834 = vld [vmem:[%s4 + $0xb8] sm:$0xff]
    %v2836 = vsel %vm38, %v2825, 0
    %v2839 = vsel %vm38, %v2826, 0
    %v2842 = vsel %vm38, %v2827, 0
    %v2845 = vsel %vm38, %v2828, 0
    %v2848 = vsel %vm38, %v2829, 0
    %v2851 = vsel %vm38, %v2830, 0
    %v2854 = vsel %vm38, %v2831, 0
    %v2857 = vsel %vm38, %v2832, 0
    %v2860 = vsel %vm38, %v2833, 0
    %v2863 = vsel %vm38, %v2834, 0
    %2865 = vmatprep.subr.mxu0 0.0
    %2866 = vmatpush1.xpose.msra.mxu0 %v2842
    %2867 = vmatprep.subr.mxu0 0.0
    %2868 = vmatpush1.xpose.msra.mxu0 %v2845
    %2869 = vmatprep.subr.mxu0 0.0
    %2870 = vmatpush1.xpose.msra.mxu0 %v2848
    %2871 = vmatprep.subr.mxu0 0.0
    %2872 = vmatpush1.xpose.msra.mxu0 %v2851
    %2873 = vmatprep.subr.mxu0 0.0
    %2874 = vmatpush1.xpose.msra.mxu0 %v2854
    %2875 = vmatprep.subr.mxu0 0.0
    %2876 = vmatpush1.xpose.msra.mxu0 %v2857
    %2877 = vmatprep.subr.mxu0 0.0
    %2878 = vmatpush1.xpose.msra.mxu0 %v2860
    %2879 = vmatprep.subr.mxu0 0.0
    %2880 = vmatpush1.xpose.msra.mxu0 %v2863
    %2881 = vmatprep.subr.mxu0 0.0
    %2882 = vmatpush1.xpose.msra.mxu0 0.0
    %2883 = vmatprep.subr.mxu0 0.0
    %2884 = vmatpush1.xpose.msra.mxu0 0.0
    %2885 = vmatprep.subr.mxu0 0.0
    %2886 = vmatpush1.xpose.msra.mxu0 0.0
    %2887 = vmatprep.subr.mxu0 0.0
    %2888 = vmatpush1.xpose.msra.mxu0 0.0
    %2889 = vmatprep.subr.mxu0 0.0
    %2890 = vmatpush1.xpose.msra.mxu0 0.0
    %2891 = vmatprep.subr.mxu0 0.0
    %2892 = vmatpush1.xpose.msra.mxu0 0.0
    %2893 = vmatprep.subr.mxu0 0.0
    %2894 = vmatpush1.xpose.msra.mxu0 0.0
    %2895 = vmatprep.subr.mxu0 0.0
    %2896 = vmatpush1.xpose.msra.mxu0 0.0
    %2897 = vmatprep.subr.mxu0 0.0
    %2898 = vmatpush1.xpose.msra.mxu0 0.0
    %2899 = vmatprep.subr.mxu0 0.0
    %2900 = vmatpush1.xpose.msra.mxu0 0.0
    %2901 = vmatprep.subr.mxu0 0.0
    %2902 = vmatpush1.xpose.msra.mxu0 0.0
    %2903 = vmatprep.subr.mxu0 0.0
    %2904 = vmatpush1.xpose.msra.mxu0 0.0
    %2905 = vmatprep.subr.mxu0 0.0
    %2906 = vmatpush1.xpose.msra.mxu0 0.0
    %2907 = vmatprep.subr.mxu0 0.0
    %2908 = vmatpush1.xpose.msra.mxu0 0.0
    %2909 = vmatprep.subr.mxu0 0.0
    %2910 = vmatpush1.xpose.msra.mxu0 0.0
    %2911 = vmatprep.subr.mxu0 0.0
    %2912 = vmatpush1.xpose.msra.mxu0 0.0
    %2913 = vmatprep.subr.mxu0 0.0
    %2914 = vmatpush1.xpose.msra.mxu0 0.0
    %2915 = vmatprep.subr.mxu0 0.0
    %2916 = vmatpush1.xpose.msra.mxu0 0.0
    %2917 = vmatprep.subr.mxu0 0.0
    %2918 = vmatpush1.xpose.msra.mxu0 0.0
    %2919 = vmatprep.subr.mxu0 0.0
    %2920 = vmatpush1.xpose.msra.mxu0 0.0
    %2921 = vmatprep.subr.mxu0 0.0
    %2922 = vmatpush1.xpose.msra.mxu0 0.0
    %2923 = vmatprep.subr.mxu0 0.0
    %2924 = vmatpush1.xpose.msra.mxu0 0.0
    %2925 = vmatprep.subr.mxu0 0.0
    %2926 = vmatpush1.xpose.msra.mxu0 0.0
    %2927 = vmatprep.subr.mxu0 0.0
    %2928 = vmatpush1.xpose.msra.mxu0 0.0
    %2929 = vmatprep.mubr.f32.mxu0 0.0
    %2930 = vmatmul.mubr.f32.gmra.mrb[0].mxu0 %v2836
    %v2931 = vpop.f32.mrb[0].mxu0
    %v2932 = vadd.f32 0.0, %v2931
    %v2933 = vpop.f32.mrb[0].mxu0
    %2934 = vmatprep.mubr.f32.mxu0 0.0
    %2935 = vmatmul.mubr.f32.gmra.mrb[0].mxu0 %v2839
    %v2936 = vpop.f32.mrb[0].mxu0
    %v2937 = vadd.f32 0.0, %v2936
    %v2938 = vpop.f32.mrb[0].mxu0
    %2939 = vdwg.mxu0
    %v2940 = vmax.f32 %v2932, 0.0
    %v2941 = vmax.f32 %v2937, 0.0
    %v2942 = vld [vmem:[%s4 + $0x100] sm:$0xff]
    %v2943 = vld [vmem:[%s4 + $0x108] sm:$0xff]
    %v2944 = vld [vmem:[%s4 + $0x110] sm:$0xff]
    %v2945 = vld [vmem:[%s4 + $0x118] sm:$0xff]
    %v2946 = vld [vmem:[%s4 + $0x120] sm:$0xff]
    %v2947 = vld [vmem:[%s4 + $0x128] sm:$0xff]
    %v2948 = vld [vmem:[%s4 + $0x130] sm:$0xff]
    %v2949 = vld [vmem:[%s4 + $0x138] sm:$0xff]
    %vm2950 = vcmask 523264
    %v2952 = vsel %vm2950, %v2940, 0
    %v2955 = vsel %vm2950, %v2941, 0
    %2957 = vmatprep.subr.mxu0 0.0
    %2958 = vmatpush1.msra.mxu0 %v2942
    %2959 = vmatprep.subr.mxu0 0.0
    %2960 = vmatpush1.msra.mxu0 %v2943
    %2961 = vmatprep.subr.mxu0 0.0
    %2962 = vmatpush1.msra.mxu0 %v2944
    %2963 = vmatprep.subr.mxu0 0.0
    %2964 = vmatpush1.msra.mxu0 %v2945
    %2965 = vmatprep.subr.mxu0 0.0
    %2966 = vmatpush1.msra.mxu0 %v2946
    %2967 = vmatprep.subr.mxu0 0.0
    %2968 = vmatpush1.msra.mxu0 %v2947
    %2969 = vmatprep.subr.mxu0 0.0
    %2970 = vmatpush1.msra.mxu0 %v2948
    %2971 = vmatprep.subr.mxu0 0.0
    %2972 = vmatpush1.msra.mxu0 %v2949
    %2973 = vmatprep.subr.mxu0 0.0
    %2974 = vmatpush1.msra.mxu0 0.0
    %2975 = vmatprep.subr.mxu0 0.0
    %2976 = vmatpush1.msra.mxu0 0.0
    %2977 = vmatprep.subr.mxu0 0.0
    %2978 = vmatpush1.msra.mxu0 0.0
    %2979 = vmatprep.subr.mxu0 0.0
    %2980 = vmatpush1.msra.mxu0 0.0
    %2981 = vmatprep.subr.mxu0 0.0
    %2982 = vmatpush1.msra.mxu0 0.0
    %2983 = vmatprep.subr.mxu0 0.0
    %2984 = vmatpush1.msra.mxu0 0.0
    %2985 = vmatprep.subr.mxu0 0.0
    %2986 = vmatpush1.msra.mxu0 0.0
    %2987 = vmatprep.subr.mxu0 0.0
    %2988 = vmatpush1.msra.mxu0 0.0
    %2989 = vmatprep.subr.mxu0 0.0
    %2990 = vmatpush1.msra.mxu0 0.0
    %2991 = vmatprep.subr.mxu0 0.0
    %2992 = vmatpush1.msra.mxu0 0.0
    %2993 = vmatprep.subr.mxu0 0.0
    %2994 = vmatpush1.msra.mxu0 0.0
    %2995 = vmatprep.subr.mxu0 0.0
    %2996 = vmatpush1.msra.mxu0 0.0
    %2997 = vmatprep.subr.mxu0 0.0
    %2998 = vmatpush1.msra.mxu0 0.0
    %2999 = vmatprep.subr.mxu0 0.0
    %3000 = vmatpush1.msra.mxu0 0.0
    %3001 = vmatprep.subr.mxu0 0.0
    %3002 = vmatpush1.msra.mxu0 0.0
    %3003 = vmatprep.subr.mxu0 0.0
    %3004 = vmatpush1.msra.mxu0 0.0
    %3005 = vmatprep.subr.mxu0 0.0
    %3006 = vmatpush1.msra.mxu0 0.0
    %3007 = vmatprep.subr.mxu0 0.0
    %3008 = vmatpush1.msra.mxu0 0.0
    %3009 = vmatprep.subr.mxu0 0.0
    %3010 = vmatpush1.msra.mxu0 0.0
    %3011 = vmatprep.subr.mxu0 0.0
    %3012 = vmatpush1.msra.mxu0 0.0
    %3013 = vmatprep.subr.mxu0 0.0
    %3014 = vmatpush1.msra.mxu0 0.0
    %3015 = vmatprep.subr.mxu0 0.0
    %3016 = vmatpush1.msra.mxu0 0.0
    %3017 = vmatprep.subr.mxu0 0.0
    %3018 = vmatpush1.msra.mxu0 0.0
    %3019 = vmatprep.subr.mxu0 0.0
    %3020 = vmatpush1.msra.mxu0 0.0
    %3021 = vmatprep.mubr.f32.mxu0 0.0
    %3022 = vmatmul.mubr.f32.gmra.mrb[0].mxu0 %v2952
    %v3023 = vpop.f32.mrb[0].mxu0
    %v3024 = vadd.f32 0.0, %v3023
    %v3025 = vpop.f32.mrb[0].mxu0
    %3026 = vmatprep.mubr.f32.mxu0 0.0
    %3027 = vmatmul.mubr.f32.gmra.mrb[0].mxu0 %v2955
    %v3028 = vpop.f32.mrb[0].mxu0
    %v3029 = vadd.f32 0.0, %v3028
    %v3030 = vpop.f32.mrb[0].mxu0
    %3031 = vdwg.mxu0
    %v3032 = vadd.f32 %v2802, %v3024
    %v3033 = vadd.f32 %v2803, %v3029
    %v3034 = vld [vmem:[%s5 + $0x3] sm:$0x1]
    %v3035 = vmul.f32 %v3032, %v3032
    %v3036 = vmul.f32 %v3033, %v3033
    %v3037 = vsel %vm38, %v3035, 0.0
    %3038 = vadd.xlane.f32.xlu0 %v3037
    %v3039 = vpop.xlane.xlu0 %3038
    %v3040 = vsel %vm38, %v3036, 0.0
    %3041 = vadd.xlane.f32.xlu0 %v3040
    %v3042 = vpop.xlane.xlu0 %3041
    %v3043 = vmul.f32 %v3039, %v261
    %v3044 = vmul.f32 %v3042, %v261
    %v3045 = vadd.f32 %v3043, 1e-06
    %v3046 = vadd.f32 %v3044, 1e-06
    %v3047 = vrsqrt.pop %v3045
    %v3048 = vrsqrt.pop %v3046
    %v3049 = vmul.f32 %v3032, %v3047
    %v3050 = vmul.f32 %v3033, %v3048
    %v3051 = vlaneseq
    %v3052 = vshrl.u32 %v3051, 7
    %v3053 = vsub.s32 0, %v3052
    %v3054 = vrot.slane %v3034, %v3053
    %v3055 = vmul.f32 %v3049, %v3054
    %v3056 = vmul.f32 %v3050, %v3054
    %v3057 = vld [vmem:[%s144] sm:$0xff]
    %v3058 = vld [vmem:[%s144 + $0x8] sm:$0xff]
    %v3059 = vld [vmem:[%s144 + $0x10] sm:$0xff]
    %v3060 = vld [vmem:[%s144 + $0x18] sm:$0xff]
    %v3061 = vld [vmem:[%s144 + $0x20] sm:$0xff]
    %v3062 = vld [vmem:[%s144 + $0x28] sm:$0xff]
    %v3063 = vld [vmem:[%s144 + $0x30] sm:$0xff]
    %v3064 = vld [vmem:[%s144 + $0x38] sm:$0xff]
    %v3065 = vld [vmem:[%s144 + $0x40] sm:$0xff]
    %v3066 = vld [vmem:[%s144 + $0x48] sm:$0xff]
    %v3067 = vld [vmem:[%s144 + $0x50] sm:$0xff]
    %v3068 = vld [vmem:[%s144 + $0x58] sm:$0xff]
    %v3070 = vsel %vm38, %v3055, 0
    %v3073 = vsel %vm38, %v3056, 0
    %v3076 = vsel %vm38, %v3057, 0
    %v3079 = vsel %vm38, %v3058, 0
    %v3082 = vsel %vm38, %v3059, 0
    %v3085 = vsel %vm38, %v3060, 0
    %v3088 = vsel %vm38, %v3061, 0
    %v3091 = vsel %vm38, %v3062, 0
    %v3094 = vsel %vm38, %v3063, 0
    %v3097 = vsel %vm38, %v3064, 0
    %v3100 = vsel %vm38, %v3065, 0
    %v3103 = vsel %vm38, %v3066, 0
    %v3106 = vsel %vm38, %v3067, 0
    %v3109 = vsel %vm38, %v3068, 0
    %3111 = vmatprep.subr.mxu0 0.0
    %3112 = vmatpush1.xpose.msra.mxu0 %v3076
    %3113 = vmatprep.subr.mxu0 0.0
    %3114 = vmatpush1.xpose.msra.mxu0 %v3079
    %3115 = vmatprep.subr.mxu0 0.0
    %3116 = vmatpush1.xpose.msra.mxu0 %v3082
    %3117 = vmatprep.subr.mxu0 0.0
    %3118 = vmatpush1.xpose.msra.mxu0 %v3085
    %3119 = vmatprep.subr.mxu0 0.0
    %3120 = vmatpush1.xpose.msra.mxu0 %v3088
    %3121 = vmatprep.subr.mxu0 0.0
    %3122 = vmatpush1.xpose.msra.mxu0 %v3091
    %3123 = vmatprep.subr.mxu0 0.0
    %3124 = vmatpush1.xpose.msra.mxu0 %v3094
    %3125 = vmatprep.subr.mxu0 0.0
    %3126 = vmatpush1.xpose.msra.mxu0 %v3097
    %3127 = vmatprep.subr.mxu0 0.0
    %3128 = vmatpush1.xpose.msra.mxu0 %v3100
    %3129 = vmatprep.subr.mxu0 0.0
    %3130 = vmatpush1.xpose.msra.mxu0 %v3103
    %3131 = vmatprep.subr.mxu0 0.0
    %3132 = vmatpush1.xpose.msra.mxu0 %v3106
    %3133 = vmatprep.subr.mxu0 0.0
    %3134 = vmatpush1.xpose.msra.mxu0 %v3109
    %3135 = vmatprep.subr.mxu0 0.0
    %3136 = vmatpush1.xpose.msra.mxu0 0.0
    %3137 = vmatprep.subr.mxu0 0.0
    %3138 = vmatpush1.xpose.msra.mxu0 0.0
    %3139 = vmatprep.subr.mxu0 0.0
    %3140 = vmatpush1.xpose.msra.mxu0 0.0
    %3141 = vmatprep.subr.mxu0 0.0
    %3142 = vmatpush1.xpose.msra.mxu0 0.0
    %3143 = vmatprep.subr.mxu0 0.0
    %3144 = vmatpush1.xpose.msra.mxu0 0.0
    %3145 = vmatprep.subr.mxu0 0.0
    %3146 = vmatpush1.xpose.msra.mxu0 0.0
    %3147 = vmatprep.subr.mxu0 0.0
    %3148 = vmatpush1.xpose.msra.mxu0 0.0
    %3149 = vmatprep.subr.mxu0 0.0
    %3150 = vmatpush1.xpose.msra.mxu0 0.0
    %3151 = vmatprep.subr.mxu0 0.0
    %3152 = vmatpush1.xpose.msra.mxu0 0.0
    %3153 = vmatprep.subr.mxu0 0.0
    %3154 = vmatpush1.xpose.msra.mxu0 0.0
    %3155 = vmatprep.subr.mxu0 0.0
    %3156 = vmatpush1.xpose.msra.mxu0 0.0
    %3157 = vmatprep.subr.mxu0 0.0
    %3158 = vmatpush1.xpose.msra.mxu0 0.0
    %3159 = vmatprep.subr.mxu0 0.0
    %3160 = vmatpush1.xpose.msra.mxu0 0.0
    %3161 = vmatprep.subr.mxu0 0.0
    %3162 = vmatpush1.xpose.msra.mxu0 0.0
    %3163 = vmatprep.subr.mxu0 0.0
    %3164 = vmatpush1.xpose.msra.mxu0 0.0
    %3165 = vmatprep.subr.mxu0 0.0
    %3166 = vmatpush1.xpose.msra.mxu0 0.0
    %3167 = vmatprep.subr.mxu0 0.0
    %3168 = vmatpush1.xpose.msra.mxu0 0.0
    %3169 = vmatprep.subr.mxu0 0.0
    %3170 = vmatpush1.xpose.msra.mxu0 0.0
    %3171 = vmatprep.subr.mxu0 0.0
    %3172 = vmatpush1.xpose.msra.mxu0 0.0
    %3173 = vmatprep.subr.mxu0 0.0
    %3174 = vmatpush1.xpose.msra.mxu0 0.0
    %3175 = vmatprep.mubr.f32.mxu0 0.0
    %3176 = vmatmul.mubr.f32.gmra.mrb[0].mxu0 %v3070
    %v3177 = vpop.f32.mrb[0].mxu0
    %v3178 = vadd.f32 0.0, %v3177
    %v3179 = vpop.f32.mrb[0].mxu0
    %3180 = vmatprep.mubr.f32.mxu0 0.0
    %3181 = vmatmul.mubr.f32.gmra.mrb[0].mxu0 %v3073
    %v3182 = vpop.f32.mrb[0].mxu0
    %v3183 = vadd.f32 0.0, %v3182
    %v3184 = vpop.f32.mrb[0].mxu0
    %3185 = vdwg.mxu0
    %s3186 = scalar_lea.vmem %s2, 64
    %v3187 = vld [vmem:[%s3186] sm:$0xff]
    %v3188 = vld [vmem:[%s3186 + $0x8] sm:$0xff]
    %3191 = vrot.lane.b32.xlu0 %v3178, 96
    %v3192 = vpop.permute.xlu0 %3191
    %3193 = vrot.lane.b32.xlu0 %v3183, 96
    %v3194 = vpop.permute.xlu0 %3193
    %v3195 = vsel %vm413, %v3178, 0
    %v3197 = vsel %vm413, %v3183, 0
    %v3199 = vsel %vm413, %v3192, 0
    %v3201 = vsel %vm413, %v3194, 0
    %3203 = vmatprep.subr.mxu0 0.0
    %3204 = vmatpush1.xpose.msra.mxu0 %v3199
    %3205 = vmatprep.subr.mxu0 0.0
    %3206 = vmatpush1.xpose.msra.mxu0 %v3201
    %3207 = vmatprep.subr.mxu0 0.0
    %3208 = vmatpush1.xpose.msra.mxu0 0.0
    %3209 = vmatprep.subr.mxu0 0.0
    %3210 = vmatpush1.xpose.msra.mxu0 0.0
    %3211 = vmatprep.subr.mxu0 0.0
    %3212 = vmatpush1.xpose.msra.mxu0 0.0
    %3213 = vmatprep.subr.mxu0 0.0
    %3214 = vmatpush1.xpose.msra.mxu0 0.0
    %3215 = vmatprep.subr.mxu0 0.0
    %3216 = vmatpush1.xpose.msra.mxu0 0.0
    %3217 = vmatprep.subr.mxu0 0.0
    %3218 = vmatpush1.xpose.msra.mxu0 0.0
    %3219 = vmatprep.subr.mxu0 0.0
    %3220 = vmatpush1.xpose.msra.mxu0 0.0
    %3221 = vmatprep.subr.mxu0 0.0
    %3222 = vmatpush1.xpose.msra.mxu0 0.0
    %3223 = vmatprep.subr.mxu0 0.0
    %3224 = vmatpush1.xpose.msra.mxu0 0.0
    %3225 = vmatprep.subr.mxu0 0.0
    %3226 = vmatpush1.xpose.msra.mxu0 0.0
    %3227 = vmatprep.subr.mxu0 0.0
    %3228 = vmatpush1.xpose.msra.mxu0 0.0
    %3229 = vmatprep.subr.mxu0 0.0
    %3230 = vmatpush1.xpose.msra.mxu0 0.0
    %3231 = vmatprep.subr.mxu0 0.0
    %3232 = vmatpush1.xpose.msra.mxu0 0.0
    %3233 = vmatprep.subr.mxu0 0.0
    %3234 = vmatpush1.xpose.msra.mxu0 0.0
    %3235 = vmatprep.subr.mxu0 0.0
    %3236 = vmatpush1.xpose.msra.mxu0 0.0
    %3237 = vmatprep.subr.mxu0 0.0
    %3238 = vmatpush1.xpose.msra.mxu0 0.0
    %3239 = vmatprep.subr.mxu0 0.0
    %3240 = vmatpush1.xpose.msra.mxu0 0.0
    %3241 = vmatprep.subr.mxu0 0.0
    %3242 = vmatpush1.xpose.msra.mxu0 0.0
    %3243 = vmatprep.subr.mxu0 0.0
    %3244 = vmatpush1.xpose.msra.mxu0 0.0
    %3245 = vmatprep.subr.mxu0 0.0
    %3246 = vmatpush1.xpose.msra.mxu0 0.0
    %3247 = vmatprep.subr.mxu0 0.0
    %3248 = vmatpush1.xpose.msra.mxu0 0.0
    %3249 = vmatprep.subr.mxu0 0.0
    %3250 = vmatpush1.xpose.msra.mxu0 0.0
    %3251 = vmatprep.subr.mxu0 0.0
    %3252 = vmatpush1.xpose.msra.mxu0 0.0
    %3253 = vmatprep.subr.mxu0 0.0
    %3254 = vmatpush1.xpose.msra.mxu0 0.0
    %3255 = vmatprep.subr.mxu0 0.0
    %3256 = vmatpush1.xpose.msra.mxu0 0.0
    %3257 = vmatprep.subr.mxu0 0.0
    %3258 = vmatpush1.xpose.msra.mxu0 0.0
    %3259 = vmatprep.subr.mxu0 0.0
    %3260 = vmatpush1.xpose.msra.mxu0 0.0
    %3261 = vmatprep.subr.mxu0 0.0
    %3262 = vmatpush1.xpose.msra.mxu0 0.0
    %3263 = vmatprep.subr.mxu0 0.0
    %3264 = vmatpush1.xpose.msra.mxu0 0.0
    %3265 = vmatprep.subr.mxu0 0.0
    %3266 = vmatpush1.xpose.msra.mxu0 0.0
    %3267 = vmatprep.mubr.f32.mxu0 0.0
    %3268 = vmatmul.mubr.f32.gmra.mrb[0].mxu0 %v3195
    %v3269 = vpop.f32.mrb[0].mxu0
    %v3270 = vadd.f32 %v3187, %v3269
    %v3271 = vpop.f32.mrb[0].mxu0
    %3272 = vmatprep.mubr.f32.mxu0 0.0
    %3273 = vmatmul.mubr.f32.gmra.mrb[0].mxu0 %v3197
    %v3274 = vpop.f32.mrb[0].mxu0
    %v3275 = vadd.f32 %v3188, %v3274
    %v3276 = vpop.f32.mrb[0].mxu0
    %3277 = vdwg.mxu0
    %v3278 = vsel %vm497, %v3270, -inf
    %3279 = vmax.xlane.f32.xlu0 %v3278
    %v3280 = vpop.xlane.xlu0 %3279
    %v3281 = vsel %vm497, %v3275, -inf
    %3282 = vmax.xlane.f32.xlu0 %v3281
    %v3283 = vpop.xlane.xlu0 %3282
    %v3284 = vsub.f32 %v3270, %v3280
    %v3285 = vsub.f32 %v3275, %v3283
    %v3286 = vmul.f32 %v3284, 1.442695
    %v3287 = vpow.pop %v3286
    %v3288 = vmul.f32 %v3285, 1.442695
    %v3289 = vpow.pop %v3288
    %v3290 = vsel %vm497, %v3287, 0.0
    %3291 = vadd.xlane.f32.xlu0 %v3290
    %v3292 = vpop.xlane.xlu0 %3291
    %v3293 = vsel %vm497, %v3289, 0.0
    %3294 = vadd.xlane.f32.xlu0 %v3293
    %v3295 = vpop.xlane.xlu0 %3294
    %v3296 = vrcp.pop %v3292
    %v3297 = vmul.f32 %v3287, %v3296
    %v3298 = vrcp.pop %v3295
    %v3299 = vmul.f32 %v3289, %v3298
    %3300 = vrot.lane.b32.xlu0 %v3178, 64
    %v3301 = vpop.permute.xlu0 %3300
    %3302 = vrot.lane.b32.xlu0 %v3183, 64
    %v3303 = vpop.permute.xlu0 %3302
    %v3307 = vsel %vm497, %v3297, 0
    %v3310 = vsel %vm497, %v3299, 0
    %3312 = vmatprep.subr.mxu0 0.0
    %3313 = vmatpush1.msra.mxu0 %v3301
    %3314 = vmatprep.subr.mxu0 0.0
    %3315 = vmatpush1.msra.mxu0 %v3303
    %3316 = vmatprep.subr.mxu0 0.0
    %3317 = vmatpush1.msra.mxu0 0.0
    %3318 = vmatprep.subr.mxu0 0.0
    %3319 = vmatpush1.msra.mxu0 0.0
    %3320 = vmatprep.subr.mxu0 0.0
    %3321 = vmatpush1.msra.mxu0 0.0
    %3322 = vmatprep.subr.mxu0 0.0
    %3323 = vmatpush1.msra.mxu0 0.0
    %3324 = vmatprep.subr.mxu0 0.0
    %3325 = vmatpush1.msra.mxu0 0.0
    %3326 = vmatprep.subr.mxu0 0.0
    %3327 = vmatpush1.msra.mxu0 0.0
    %3328 = vmatprep.subr.mxu0 0.0
    %3329 = vmatpush1.msra.mxu0 0.0
    %3330 = vmatprep.subr.mxu0 0.0
    %3331 = vmatpush1.msra.mxu0 0.0
    %3332 = vmatprep.subr.mxu0 0.0
    %3333 = vmatpush1.msra.mxu0 0.0
    %3334 = vmatprep.subr.mxu0 0.0
    %3335 = vmatpush1.msra.mxu0 0.0
    %3336 = vmatprep.subr.mxu0 0.0
    %3337 = vmatpush1.msra.mxu0 0.0
    %3338 = vmatprep.subr.mxu0 0.0
    %3339 = vmatpush1.msra.mxu0 0.0
    %3340 = vmatprep.subr.mxu0 0.0
    %3341 = vmatpush1.msra.mxu0 0.0
    %3342 = vmatprep.subr.mxu0 0.0
    %3343 = vmatpush1.msra.mxu0 0.0
    %3344 = vmatprep.subr.mxu0 0.0
    %3345 = vmatpush1.msra.mxu0 0.0
    %3346 = vmatprep.subr.mxu0 0.0
    %3347 = vmatpush1.msra.mxu0 0.0
    %3348 = vmatprep.subr.mxu0 0.0
    %3349 = vmatpush1.msra.mxu0 0.0
    %3350 = vmatprep.subr.mxu0 0.0
    %3351 = vmatpush1.msra.mxu0 0.0
    %3352 = vmatprep.subr.mxu0 0.0
    %3353 = vmatpush1.msra.mxu0 0.0
    %3354 = vmatprep.subr.mxu0 0.0
    %3355 = vmatpush1.msra.mxu0 0.0
    %3356 = vmatprep.subr.mxu0 0.0
    %3357 = vmatpush1.msra.mxu0 0.0
    %3358 = vmatprep.subr.mxu0 0.0
    %3359 = vmatpush1.msra.mxu0 0.0
    %3360 = vmatprep.subr.mxu0 0.0
    %3361 = vmatpush1.msra.mxu0 0.0
    %3362 = vmatprep.subr.mxu0 0.0
    %3363 = vmatpush1.msra.mxu0 0.0
    %3364 = vmatprep.subr.mxu0 0.0
    %3365 = vmatpush1.msra.mxu0 0.0
    %3366 = vmatprep.subr.mxu0 0.0
    %3367 = vmatpush1.msra.mxu0 0.0
    %3368 = vmatprep.subr.mxu0 0.0
    %3369 = vmatpush1.msra.mxu0 0.0
    %3370 = vmatprep.subr.mxu0 0.0
    %3371 = vmatpush1.msra.mxu0 0.0
    %3372 = vmatprep.subr.mxu0 0.0
    %3373 = vmatpush1.msra.mxu0 0.0
    %3374 = vmatprep.subr.mxu0 0.0
    %3375 = vmatpush1.msra.mxu0 0.0
    %3376 = vmatprep.mubr.f32.mxu0 0.0
    %3377 = vmatmul.mubr.f32.gmra.mrb[0].mxu0 %v3307
    %v3378 = vpop.f32.mrb[0].mxu0
    %v3379 = vadd.f32 0.0, %v3378
    %v3380 = vpop.f32.mrb[0].mxu0
    %3381 = vmatprep.mubr.f32.mxu0 0.0
    %3382 = vmatmul.mubr.f32.gmra.mrb[0].mxu0 %v3310
    %v3383 = vpop.f32.mrb[0].mxu0
    %v3384 = vadd.f32 0.0, %v3383
    %v3385 = vpop.f32.mrb[0].mxu0
    %3386 = vdwg.mxu0
    %v3387 = vld [vmem:[%s144 + $0xc0] sm:$0xff]
    %v3389 = vsel %vm413, %v3379, 0
    %v3392 = vsel %vm413, %v3384, 0
    %3394 = vmatprep.subr.mxu0 0.0
    %3395 = vmatpush1.msra.mxu0 %v3387
    %3396 = vmatprep.subr.mxu0 0.0
    %3397 = vmatpush1.msra.mxu0 0.0
    %3398 = vmatprep.subr.mxu0 0.0
    %3399 = vmatpush1.msra.mxu0 0.0
    %3400 = vmatprep.subr.mxu0 0.0
    %3401 = vmatpush1.msra.mxu0 0.0
    %3402 = vmatprep.subr.mxu0 0.0
    %3403 = vmatpush1.msra.mxu0 0.0
    %3404 = vmatprep.subr.mxu0 0.0
    %3405 = vmatpush1.msra.mxu0 0.0
    %3406 = vmatprep.subr.mxu0 0.0
    %3407 = vmatpush1.msra.mxu0 0.0
    %3408 = vmatprep.subr.mxu0 0.0
    %3409 = vmatpush1.msra.mxu0 0.0
    %3410 = vmatprep.subr.mxu0 0.0
    %3411 = vmatpush1.msra.mxu0 0.0
    %3412 = vmatprep.subr.mxu0 0.0
    %3413 = vmatpush1.msra.mxu0 0.0
    %3414 = vmatprep.subr.mxu0 0.0
    %3415 = vmatpush1.msra.mxu0 0.0
    %3416 = vmatprep.subr.mxu0 0.0
    %3417 = vmatpush1.msra.mxu0 0.0
    %3418 = vmatprep.subr.mxu0 0.0
    %3419 = vmatpush1.msra.mxu0 0.0
    %3420 = vmatprep.subr.mxu0 0.0
    %3421 = vmatpush1.msra.mxu0 0.0
    %3422 = vmatprep.subr.mxu0 0.0
    %3423 = vmatpush1.msra.mxu0 0.0
    %3424 = vmatprep.subr.mxu0 0.0
    %3425 = vmatpush1.msra.mxu0 0.0
    %3426 = vmatprep.subr.mxu0 0.0
    %3427 = vmatpush1.msra.mxu0 0.0
    %3428 = vmatprep.subr.mxu0 0.0
    %3429 = vmatpush1.msra.mxu0 0.0
    %3430 = vmatprep.subr.mxu0 0.0
    %3431 = vmatpush1.msra.mxu0 0.0
    %3432 = vmatprep.subr.mxu0 0.0
    %3433 = vmatpush1.msra.mxu0 0.0
    %3434 = vmatprep.subr.mxu0 0.0
    %3435 = vmatpush1.msra.mxu0 0.0
    %3436 = vmatprep.subr.mxu0 0.0
    %3437 = vmatpush1.msra.mxu0 0.0
    %3438 = vmatprep.subr.mxu0 0.0
    %3439 = vmatpush1.msra.mxu0 0.0
    %3440 = vmatprep.subr.mxu0 0.0
    %3441 = vmatpush1.msra.mxu0 0.0
    %3442 = vmatprep.subr.mxu0 0.0
    %3443 = vmatpush1.msra.mxu0 0.0
    %3444 = vmatprep.subr.mxu0 0.0
    %3445 = vmatpush1.msra.mxu0 0.0
    %3446 = vmatprep.subr.mxu0 0.0
    %3447 = vmatpush1.msra.mxu0 0.0
    %3448 = vmatprep.subr.mxu0 0.0
    %3449 = vmatpush1.msra.mxu0 0.0
    %3450 = vmatprep.subr.mxu0 0.0
    %3451 = vmatpush1.msra.mxu0 0.0
    %3452 = vmatprep.subr.mxu0 0.0
    %3453 = vmatpush1.msra.mxu0 0.0
    %3454 = vmatprep.subr.mxu0 0.0
    %3455 = vmatpush1.msra.mxu0 0.0
    %3456 = vmatprep.subr.mxu0 0.0
    %3457 = vmatpush1.msra.mxu0 0.0
    %3458 = vmatprep.mubr.f32.mxu0 0.0
    %3459 = vmatmul.mubr.f32.gmra.mrb[0].mxu0 %v3389
    %v3460 = vpop.f32.mrb[0].mxu0
    %v3461 = vadd.f32 0.0, %v3460
    %v3462 = vpop.f32.mrb[0].mxu0
    %3463 = vmatprep.mubr.f32.mxu0 0.0
    %3464 = vmatmul.mubr.f32.gmra.mrb[0].mxu0 %v3392
    %v3465 = vpop.f32.mrb[0].mxu0
    %v3466 = vadd.f32 0.0, %v3465
    %v3467 = vpop.f32.mrb[0].mxu0
    %3468 = vdwg.mxu0
    %v3469 = vadd.f32 %v3032, %v3461
    %v3470 = vadd.f32 %v3033, %v3466
    %s3471 = scalar_lea.vmem %s2, 80
    %v3472 = vld [vmem:[%s3471] sm:$0xff]
    %v3473 = vld [vmem:[%s3471 + $0x8] sm:$0xff]
    %3474 = vrot.lane.b32.xlu0 %v3178, 120
    %v3475 = vpop.permute.xlu0 %3474
    %3476 = vrot.lane.b32.xlu0 %v3183, 120
    %v3477 = vpop.permute.xlu0 %3476
    %3478 = vrot.lane.b32.xlu0 %v3178, 88
    %v3479 = vpop.permute.xlu0 %3478
    %3480 = vrot.lane.b32.xlu0 %v3183, 88
    %v3481 = vpop.permute.xlu0 %3480
    %v3482 = vsel %vm413, %v3475, 0
    %v3484 = vsel %vm413, %v3477, 0
    %v3486 = vsel %vm413, %v3479, 0
    %v3488 = vsel %vm413, %v3481, 0
    %3490 = vmatprep.subr.mxu0 0.0
    %3491 = vmatpush1.xpose.msra.mxu0 %v3486
    %3492 = vmatprep.subr.mxu0 0.0
    %3493 = vmatpush1.xpose.msra.mxu0 %v3488
    %3494 = vmatprep.subr.mxu0 0.0
    %3495 = vmatpush1.xpose.msra.mxu0 0.0
    %3496 = vmatprep.subr.mxu0 0.0
    %3497 = vmatpush1.xpose.msra.mxu0 0.0
    %3498 = vmatprep.subr.mxu0 0.0
    %3499 = vmatpush1.xpose.msra.mxu0 0.0
    %3500 = vmatprep.subr.mxu0 0.0
    %3501 = vmatpush1.xpose.msra.mxu0 0.0
    %3502 = vmatprep.subr.mxu0 0.0
    %3503 = vmatpush1.xpose.msra.mxu0 0.0
    %3504 = vmatprep.subr.mxu0 0.0
    %3505 = vmatpush1.xpose.msra.mxu0 0.0
    %3506 = vmatprep.subr.mxu0 0.0
    %3507 = vmatpush1.xpose.msra.mxu0 0.0
    %3508 = vmatprep.subr.mxu0 0.0
    %3509 = vmatpush1.xpose.msra.mxu0 0.0
    %3510 = vmatprep.subr.mxu0 0.0
    %3511 = vmatpush1.xpose.msra.mxu0 0.0
    %3512 = vmatprep.subr.mxu0 0.0
    %3513 = vmatpush1.xpose.msra.mxu0 0.0
    %3514 = vmatprep.subr.mxu0 0.0
    %3515 = vmatpush1.xpose.msra.mxu0 0.0
    %3516 = vmatprep.subr.mxu0 0.0
    %3517 = vmatpush1.xpose.msra.mxu0 0.0
    %3518 = vmatprep.subr.mxu0 0.0
    %3519 = vmatpush1.xpose.msra.mxu0 0.0
    %3520 = vmatprep.subr.mxu0 0.0
    %3521 = vmatpush1.xpose.msra.mxu0 0.0
    %3522 = vmatprep.subr.mxu0 0.0
    %3523 = vmatpush1.xpose.msra.mxu0 0.0
    %3524 = vmatprep.subr.mxu0 0.0
    %3525 = vmatpush1.xpose.msra.mxu0 0.0
    %3526 = vmatprep.subr.mxu0 0.0
    %3527 = vmatpush1.xpose.msra.mxu0 0.0
    %3528 = vmatprep.subr.mxu0 0.0
    %3529 = vmatpush1.xpose.msra.mxu0 0.0
    %3530 = vmatprep.subr.mxu0 0.0
    %3531 = vmatpush1.xpose.msra.mxu0 0.0
    %3532 = vmatprep.subr.mxu0 0.0
    %3533 = vmatpush1.xpose.msra.mxu0 0.0
    %3534 = vmatprep.subr.mxu0 0.0
    %3535 = vmatpush1.xpose.msra.mxu0 0.0
    %3536 = vmatprep.subr.mxu0 0.0
    %3537 = vmatpush1.xpose.msra.mxu0 0.0
    %3538 = vmatprep.subr.mxu0 0.0
    %3539 = vmatpush1.xpose.msra.mxu0 0.0
    %3540 = vmatprep.subr.mxu0 0.0
    %3541 = vmatpush1.xpose.msra.mxu0 0.0
    %3542 = vmatprep.subr.mxu0 0.0
    %3543 = vmatpush1.xpose.msra.mxu0 0.0
    %3544 = vmatprep.subr.mxu0 0.0
    %3545 = vmatpush1.xpose.msra.mxu0 0.0
    %3546 = vmatprep.subr.mxu0 0.0
    %3547 = vmatpush1.xpose.msra.mxu0 0.0
    %3548 = vmatprep.subr.mxu0 0.0
    %3549 = vmatpush1.xpose.msra.mxu0 0.0
    %3550 = vmatprep.subr.mxu0 0.0
    %3551 = vmatpush1.xpose.msra.mxu0 0.0
    %3552 = vmatprep.subr.mxu0 0.0
    %3553 = vmatpush1.xpose.msra.mxu0 0.0
    %3554 = vmatprep.mubr.f32.mxu0 0.0
    %3555 = vmatmul.mubr.f32.gmra.mrb[0].mxu0 %v3482
    %v3556 = vpop.f32.mrb[0].mxu0
    %v3557 = vadd.f32 %v3472, %v3556
    %v3558 = vpop.f32.mrb[0].mxu0
    %3559 = vmatprep.mubr.f32.mxu0 0.0
    %3560 = vmatmul.mubr.f32.gmra.mrb[0].mxu0 %v3484
    %v3561 = vpop.f32.mrb[0].mxu0
    %v3562 = vadd.f32 %v3473, %v3561
    %v3563 = vpop.f32.mrb[0].mxu0
    %3564 = vdwg.mxu0
    %v3565 = vsel %vm497, %v3557, -inf
    %3566 = vmax.xlane.f32.xlu0 %v3565
    %v3567 = vpop.xlane.xlu0 %3566
    %v3568 = vsel %vm497, %v3562, -inf
    %3569 = vmax.xlane.f32.xlu0 %v3568
    %v3570 = vpop.xlane.xlu0 %3569
    %v3571 = vsub.f32 %v3557, %v3567
    %v3572 = vsub.f32 %v3562, %v3570
    %v3573 = vmul.f32 %v3571, 1.442695
    %v3574 = vpow.pop %v3573
    %v3575 = vmul.f32 %v3572, 1.442695
    %v3576 = vpow.pop %v3575
    %v3577 = vsel %vm497, %v3574, 0.0
    %3578 = vadd.xlane.f32.xlu0 %v3577
    %v3579 = vpop.xlane.xlu0 %3578
    %v3580 = vsel %vm497, %v3576, 0.0
    %3581 = vadd.xlane.f32.xlu0 %v3580
    %v3582 = vpop.xlane.xlu0 %3581
    %v3583 = vrcp.pop %v3579
    %v3584 = vmul.f32 %v3574, %v3583
    %v3585 = vrcp.pop %v3582
    %v3586 = vmul.f32 %v3576, %v3585
    %3587 = vrot.lane.b32.xlu0 %v3178, 56
    %v3588 = vpop.permute.xlu0 %3587
    %3589 = vrot.lane.b32.xlu0 %v3183, 56
    %v3590 = vpop.permute.xlu0 %3589
    %v3594 = vsel %vm497, %v3584, 0
    %v3597 = vsel %vm497, %v3586, 0
    %3599 = vmatprep.subr.mxu0 0.0
    %3600 = vmatpush1.msra.mxu0 %v3588
    %3601 = vmatprep.subr.mxu0 0.0
    %3602 = vmatpush1.msra.mxu0 %v3590
    %3603 = vmatprep.subr.mxu0 0.0
    %3604 = vmatpush1.msra.mxu0 0.0
    %3605 = vmatprep.subr.mxu0 0.0
    %3606 = vmatpush1.msra.mxu0 0.0
    %3607 = vmatprep.subr.mxu0 0.0
    %3608 = vmatpush1.msra.mxu0 0.0
    %3609 = vmatprep.subr.mxu0 0.0
    %3610 = vmatpush1.msra.mxu0 0.0
    %3611 = vmatprep.subr.mxu0 0.0
    %3612 = vmatpush1.msra.mxu0 0.0
    %3613 = vmatprep.subr.mxu0 0.0
    %3614 = vmatpush1.msra.mxu0 0.0
    %3615 = vmatprep.subr.mxu0 0.0
    %3616 = vmatpush1.msra.mxu0 0.0
    %3617 = vmatprep.subr.mxu0 0.0
    %3618 = vmatpush1.msra.mxu0 0.0
    %3619 = vmatprep.subr.mxu0 0.0
    %3620 = vmatpush1.msra.mxu0 0.0
    %3621 = vmatprep.subr.mxu0 0.0
    %3622 = vmatpush1.msra.mxu0 0.0
    %3623 = vmatprep.subr.mxu0 0.0
    %3624 = vmatpush1.msra.mxu0 0.0
    %3625 = vmatprep.subr.mxu0 0.0
    %3626 = vmatpush1.msra.mxu0 0.0
    %3627 = vmatprep.subr.mxu0 0.0
    %3628 = vmatpush1.msra.mxu0 0.0
    %3629 = vmatprep.subr.mxu0 0.0
    %3630 = vmatpush1.msra.mxu0 0.0
    %3631 = vmatprep.subr.mxu0 0.0
    %3632 = vmatpush1.msra.mxu0 0.0
    %3633 = vmatprep.subr.mxu0 0.0
    %3634 = vmatpush1.msra.mxu0 0.0
    %3635 = vmatprep.subr.mxu0 0.0
    %3636 = vmatpush1.msra.mxu0 0.0
    %3637 = vmatprep.subr.mxu0 0.0
    %3638 = vmatpush1.msra.mxu0 0.0
    %3639 = vmatprep.subr.mxu0 0.0
    %3640 = vmatpush1.msra.mxu0 0.0
    %3641 = vmatprep.subr.mxu0 0.0
    %3642 = vmatpush1.msra.mxu0 0.0
    %3643 = vmatprep.subr.mxu0 0.0
    %3644 = vmatpush1.msra.mxu0 0.0
    %3645 = vmatprep.subr.mxu0 0.0
    %3646 = vmatpush1.msra.mxu0 0.0
    %3647 = vmatprep.subr.mxu0 0.0
    %3648 = vmatpush1.msra.mxu0 0.0
    %3649 = vmatprep.subr.mxu0 0.0
    %3650 = vmatpush1.msra.mxu0 0.0
    %3651 = vmatprep.subr.mxu0 0.0
    %3652 = vmatpush1.msra.mxu0 0.0
    %3653 = vmatprep.subr.mxu0 0.0
    %3654 = vmatpush1.msra.mxu0 0.0
    %3655 = vmatprep.subr.mxu0 0.0
    %3656 = vmatpush1.msra.mxu0 0.0
    %3657 = vmatprep.subr.mxu0 0.0
    %3658 = vmatpush1.msra.mxu0 0.0
    %3659 = vmatprep.subr.mxu0 0.0
    %3660 = vmatpush1.msra.mxu0 0.0
    %3661 = vmatprep.subr.mxu0 0.0
    %3662 = vmatpush1.msra.mxu0 0.0
    %3663 = vmatprep.mubr.f32.mxu0 0.0
    %3664 = vmatmul.mubr.f32.gmra.mrb[0].mxu0 %v3594
    %v3665 = vpop.f32.mrb[0].mxu0
    %v3666 = vadd.f32 0.0, %v3665
    %v3667 = vpop.f32.mrb[0].mxu0
    %3668 = vmatprep.mubr.f32.mxu0 0.0
    %3669 = vmatmul.mubr.f32.gmra.mrb[0].mxu0 %v3597
    %v3670 = vpop.f32.mrb[0].mxu0
    %v3671 = vadd.f32 0.0, %v3670
    %v3672 = vpop.f32.mrb[0].mxu0
    %3673 = vdwg.mxu0
    %v3674 = vld [vmem:[%s144 + $0xc8] sm:$0xff]
    %v3676 = vsel %vm413, %v3666, 0
    %v3679 = vsel %vm413, %v3671, 0
    %3681 = vmatprep.subr.mxu0 0.0
    %3682 = vmatpush1.msra.mxu0 %v3674
    %3683 = vmatprep.subr.mxu0 0.0
    %3684 = vmatpush1.msra.mxu0 0.0
    %3685 = vmatprep.subr.mxu0 0.0
    %3686 = vmatpush1.msra.mxu0 0.0
    %3687 = vmatprep.subr.mxu0 0.0
    %3688 = vmatpush1.msra.mxu0 0.0
    %3689 = vmatprep.subr.mxu0 0.0
    %3690 = vmatpush1.msra.mxu0 0.0
    %3691 = vmatprep.subr.mxu0 0.0
    %3692 = vmatpush1.msra.mxu0 0.0
    %3693 = vmatprep.subr.mxu0 0.0
    %3694 = vmatpush1.msra.mxu0 0.0
    %3695 = vmatprep.subr.mxu0 0.0
    %3696 = vmatpush1.msra.mxu0 0.0
    %3697 = vmatprep.subr.mxu0 0.0
    %3698 = vmatpush1.msra.mxu0 0.0
    %3699 = vmatprep.subr.mxu0 0.0
    %3700 = vmatpush1.msra.mxu0 0.0
    %3701 = vmatprep.subr.mxu0 0.0
    %3702 = vmatpush1.msra.mxu0 0.0
    %3703 = vmatprep.subr.mxu0 0.0
    %3704 = vmatpush1.msra.mxu0 0.0
    %3705 = vmatprep.subr.mxu0 0.0
    %3706 = vmatpush1.msra.mxu0 0.0
    %3707 = vmatprep.subr.mxu0 0.0
    %3708 = vmatpush1.msra.mxu0 0.0
    %3709 = vmatprep.subr.mxu0 0.0
    %3710 = vmatpush1.msra.mxu0 0.0
    %3711 = vmatprep.subr.mxu0 0.0
    %3712 = vmatpush1.msra.mxu0 0.0
    %3713 = vmatprep.subr.mxu0 0.0
    %3714 = vmatpush1.msra.mxu0 0.0
    %3715 = vmatprep.subr.mxu0 0.0
    %3716 = vmatpush1.msra.mxu0 0.0
    %3717 = vmatprep.subr.mxu0 0.0
    %3718 = vmatpush1.msra.mxu0 0.0
    %3719 = vmatprep.subr.mxu0 0.0
    %3720 = vmatpush1.msra.mxu0 0.0
    %3721 = vmatprep.subr.mxu0 0.0
    %3722 = vmatpush1.msra.mxu0 0.0
    %3723 = vmatprep.subr.mxu0 0.0
    %3724 = vmatpush1.msra.mxu0 0.0
    %3725 = vmatprep.subr.mxu0 0.0
    %3726 = vmatpush1.msra.mxu0 0.0
    %3727 = vmatprep.subr.mxu0 0.0
    %3728 = vmatpush1.msra.mxu0 0.0
    %3729 = vmatprep.subr.mxu0 0.0
    %3730 = vmatpush1.msra.mxu0 0.0
    %3731 = vmatprep.subr.mxu0 0.0
    %3732 = vmatpush1.msra.mxu0 0.0
    %3733 = vmatprep.subr.mxu0 0.0
    %3734 = vmatpush1.msra.mxu0 0.0
    %3735 = vmatprep.subr.mxu0 0.0
    %3736 = vmatpush1.msra.mxu0 0.0
    %3737 = vmatprep.subr.mxu0 0.0
    %3738 = vmatpush1.msra.mxu0 0.0
    %3739 = vmatprep.subr.mxu0 0.0
    %3740 = vmatpush1.msra.mxu0 0.0
    %3741 = vmatprep.subr.mxu0 0.0
    %3742 = vmatpush1.msra.mxu0 0.0
    %3743 = vmatprep.subr.mxu0 0.0
    %3744 = vmatpush1.msra.mxu0 0.0
    %3745 = vmatprep.mubr.f32.mxu0 0.0
    %3746 = vmatmul.mubr.f32.gmra.mrb[0].mxu0 %v3676
    %v3747 = vpop.f32.mrb[0].mxu0
    %v3748 = vadd.f32 0.0, %v3747
    %v3749 = vpop.f32.mrb[0].mxu0
    %3750 = vmatprep.mubr.f32.mxu0 0.0
    %3751 = vmatmul.mubr.f32.gmra.mrb[0].mxu0 %v3679
    %v3752 = vpop.f32.mrb[0].mxu0
    %v3753 = vadd.f32 0.0, %v3752
    %v3754 = vpop.f32.mrb[0].mxu0
    %3755 = vdwg.mxu0
    %v3756 = vadd.f32 %v3469, %v3748
    %v3757 = vadd.f32 %v3470, %v3753
    %s3758 = scalar_lea.vmem %s2, 96
    %v3759 = vld [vmem:[%s3758] sm:$0xff]
    %v3760 = vld [vmem:[%s3758 + $0x8] sm:$0xff]
    %3761 = vrot.lane.b32.xlu0 %v3178, 112
    %v3762 = vpop.permute.xlu0 %3761
    %3763 = vrot.lane.b32.xlu0 %v3183, 112
    %v3764 = vpop.permute.xlu0 %3763
    %3765 = vrot.lane.b32.xlu0 %v3178, 80
    %v3766 = vpop.permute.xlu0 %3765
    %3767 = vrot.lane.b32.xlu0 %v3183, 80
    %v3768 = vpop.permute.xlu0 %3767
    %v3769 = vsel %vm413, %v3762, 0
    %v3771 = vsel %vm413, %v3764, 0
    %v3773 = vsel %vm413, %v3766, 0
    %v3775 = vsel %vm413, %v3768, 0
    %3777 = vmatprep.subr.mxu0 0.0
    %3778 = vmatpush1.xpose.msra.mxu0 %v3773
    %3779 = vmatprep.subr.mxu0 0.0
    %3780 = vmatpush1.xpose.msra.mxu0 %v3775
    %3781 = vmatprep.subr.mxu0 0.0
    %3782 = vmatpush1.xpose.msra.mxu0 0.0
    %3783 = vmatprep.subr.mxu0 0.0
    %3784 = vmatpush1.xpose.msra.mxu0 0.0
    %3785 = vmatprep.subr.mxu0 0.0
    %3786 = vmatpush1.xpose.msra.mxu0 0.0
    %3787 = vmatprep.subr.mxu0 0.0
    %3788 = vmatpush1.xpose.msra.mxu0 0.0
    %3789 = vmatprep.subr.mxu0 0.0
    %3790 = vmatpush1.xpose.msra.mxu0 0.0
    %3791 = vmatprep.subr.mxu0 0.0
    %3792 = vmatpush1.xpose.msra.mxu0 0.0
    %3793 = vmatprep.subr.mxu0 0.0
    %3794 = vmatpush1.xpose.msra.mxu0 0.0
    %3795 = vmatprep.subr.mxu0 0.0
    %3796 = vmatpush1.xpose.msra.mxu0 0.0
    %3797 = vmatprep.subr.mxu0 0.0
    %3798 = vmatpush1.xpose.msra.mxu0 0.0
    %3799 = vmatprep.subr.mxu0 0.0
    %3800 = vmatpush1.xpose.msra.mxu0 0.0
    %3801 = vmatprep.subr.mxu0 0.0
    %3802 = vmatpush1.xpose.msra.mxu0 0.0
    %3803 = vmatprep.subr.mxu0 0.0
    %3804 = vmatpush1.xpose.msra.mxu0 0.0
    %3805 = vmatprep.subr.mxu0 0.0
    %3806 = vmatpush1.xpose.msra.mxu0 0.0
    %3807 = vmatprep.subr.mxu0 0.0
    %3808 = vmatpush1.xpose.msra.mxu0 0.0
    %3809 = vmatprep.subr.mxu0 0.0
    %3810 = vmatpush1.xpose.msra.mxu0 0.0
    %3811 = vmatprep.subr.mxu0 0.0
    %3812 = vmatpush1.xpose.msra.mxu0 0.0
    %3813 = vmatprep.subr.mxu0 0.0
    %3814 = vmatpush1.xpose.msra.mxu0 0.0
    %3815 = vmatprep.subr.mxu0 0.0
    %3816 = vmatpush1.xpose.msra.mxu0 0.0
    %3817 = vmatprep.subr.mxu0 0.0
    %3818 = vmatpush1.xpose.msra.mxu0 0.0
    %3819 = vmatprep.subr.mxu0 0.0
    %3820 = vmatpush1.xpose.msra.mxu0 0.0
    %3821 = vmatprep.subr.mxu0 0.0
    %3822 = vmatpush1.xpose.msra.mxu0 0.0
    %3823 = vmatprep.subr.mxu0 0.0
    %3824 = vmatpush1.xpose.msra.mxu0 0.0
    %3825 = vmatprep.subr.mxu0 0.0
    %3826 = vmatpush1.xpose.msra.mxu0 0.0
    %3827 = vmatprep.subr.mxu0 0.0
    %3828 = vmatpush1.xpose.msra.mxu0 0.0
    %3829 = vmatprep.subr.mxu0 0.0
    %3830 = vmatpush1.xpose.msra.mxu0 0.0
    %3831 = vmatprep.subr.mxu0 0.0
    %3832 = vmatpush1.xpose.msra.mxu0 0.0
    %3833 = vmatprep.subr.mxu0 0.0
    %3834 = vmatpush1.xpose.msra.mxu0 0.0
    %3835 = vmatprep.subr.mxu0 0.0
    %3836 = vmatpush1.xpose.msra.mxu0 0.0
    %3837 = vmatprep.subr.mxu0 0.0
    %3838 = vmatpush1.xpose.msra.mxu0 0.0
    %3839 = vmatprep.subr.mxu0 0.0
    %3840 = vmatpush1.xpose.msra.mxu0 0.0
    %3841 = vmatprep.mubr.f32.mxu0 0.0
    %3842 = vmatmul.mubr.f32.gmra.mrb[0].mxu0 %v3769
    %v3843 = vpop.f32.mrb[0].mxu0
    %v3844 = vadd.f32 %v3759, %v3843
    %v3845 = vpop.f32.mrb[0].mxu0
    %3846 = vmatprep.mubr.f32.mxu0 0.0
    %3847 = vmatmul.mubr.f32.gmra.mrb[0].mxu0 %v3771
    %v3848 = vpop.f32.mrb[0].mxu0
    %v3849 = vadd.f32 %v3760, %v3848
    %v3850 = vpop.f32.mrb[0].mxu0
    %3851 = vdwg.mxu0
    %v3852 = vsel %vm497, %v3844, -inf
    %3853 = vmax.xlane.f32.xlu0 %v3852
    %v3854 = vpop.xlane.xlu0 %3853
    %v3855 = vsel %vm497, %v3849, -inf
    %3856 = vmax.xlane.f32.xlu0 %v3855
    %v3857 = vpop.xlane.xlu0 %3856
    %v3858 = vsub.f32 %v3844, %v3854
    %v3859 = vsub.f32 %v3849, %v3857
    %v3860 = vmul.f32 %v3858, 1.442695
    %v3861 = vpow.pop %v3860
    %v3862 = vmul.f32 %v3859, 1.442695
    %v3863 = vpow.pop %v3862
    %v3864 = vsel %vm497, %v3861, 0.0
    %3865 = vadd.xlane.f32.xlu0 %v3864
    %v3866 = vpop.xlane.xlu0 %3865
    %v3867 = vsel %vm497, %v3863, 0.0
    %3868 = vadd.xlane.f32.xlu0 %v3867
    %v3869 = vpop.xlane.xlu0 %3868
    %v3870 = vrcp.pop %v3866
    %v3871 = vmul.f32 %v3861, %v3870
    %v3872 = vrcp.pop %v3869
    %v3873 = vmul.f32 %v3863, %v3872
    %3874 = vrot.lane.b32.xlu0 %v3178, 48
    %v3875 = vpop.permute.xlu0 %3874
    %3876 = vrot.lane.b32.xlu0 %v3183, 48
    %v3877 = vpop.permute.xlu0 %3876
    %v3881 = vsel %vm497, %v3871, 0
    %v3884 = vsel %vm497, %v3873, 0
    %3886 = vmatprep.subr.mxu0 0.0
    %3887 = vmatpush1.msra.mxu0 %v3875
    %3888 = vmatprep.subr.mxu0 0.0
    %3889 = vmatpush1.msra.mxu0 %v3877
    %3890 = vmatprep.subr.mxu0 0.0
    %3891 = vmatpush1.msra.mxu0 0.0
    %3892 = vmatprep.subr.mxu0 0.0
    %3893 = vmatpush1.msra.mxu0 0.0
    %3894 = vmatprep.subr.mxu0 0.0
    %3895 = vmatpush1.msra.mxu0 0.0
    %3896 = vmatprep.subr.mxu0 0.0
    %3897 = vmatpush1.msra.mxu0 0.0
    %3898 = vmatprep.subr.mxu0 0.0
    %3899 = vmatpush1.msra.mxu0 0.0
    %3900 = vmatprep.subr.mxu0 0.0
    %3901 = vmatpush1.msra.mxu0 0.0
    %3902 = vmatprep.subr.mxu0 0.0
    %3903 = vmatpush1.msra.mxu0 0.0
    %3904 = vmatprep.subr.mxu0 0.0
    %3905 = vmatpush1.msra.mxu0 0.0
    %3906 = vmatprep.subr.mxu0 0.0
    %3907 = vmatpush1.msra.mxu0 0.0
    %3908 = vmatprep.subr.mxu0 0.0
    %3909 = vmatpush1.msra.mxu0 0.0
    %3910 = vmatprep.subr.mxu0 0.0
    %3911 = vmatpush1.msra.mxu0 0.0
    %3912 = vmatprep.subr.mxu0 0.0
    %3913 = vmatpush1.msra.mxu0 0.0
    %3914 = vmatprep.subr.mxu0 0.0
    %3915 = vmatpush1.msra.mxu0 0.0
    %3916 = vmatprep.subr.mxu0 0.0
    %3917 = vmatpush1.msra.mxu0 0.0
    %3918 = vmatprep.subr.mxu0 0.0
    %3919 = vmatpush1.msra.mxu0 0.0
    %3920 = vmatprep.subr.mxu0 0.0
    %3921 = vmatpush1.msra.mxu0 0.0
    %3922 = vmatprep.subr.mxu0 0.0
    %3923 = vmatpush1.msra.mxu0 0.0
    %3924 = vmatprep.subr.mxu0 0.0
    %3925 = vmatpush1.msra.mxu0 0.0
    %3926 = vmatprep.subr.mxu0 0.0
    %3927 = vmatpush1.msra.mxu0 0.0
    %3928 = vmatprep.subr.mxu0 0.0
    %3929 = vmatpush1.msra.mxu0 0.0
    %3930 = vmatprep.subr.mxu0 0.0
    %3931 = vmatpush1.msra.mxu0 0.0
    %3932 = vmatprep.subr.mxu0 0.0
    %3933 = vmatpush1.msra.mxu0 0.0
    %3934 = vmatprep.subr.mxu0 0.0
    %3935 = vmatpush1.msra.mxu0 0.0
    %3936 = vmatprep.subr.mxu0 0.0
    %3937 = vmatpush1.msra.mxu0 0.0
    %3938 = vmatprep.subr.mxu0 0.0
    %3939 = vmatpush1.msra.mxu0 0.0
    %3940 = vmatprep.subr.mxu0 0.0
    %3941 = vmatpush1.msra.mxu0 0.0
    %3942 = vmatprep.subr.mxu0 0.0
    %3943 = vmatpush1.msra.mxu0 0.0
    %3944 = vmatprep.subr.mxu0 0.0
    %3945 = vmatpush1.msra.mxu0 0.0
    %3946 = vmatprep.subr.mxu0 0.0
    %3947 = vmatpush1.msra.mxu0 0.0
    %3948 = vmatprep.subr.mxu0 0.0
    %3949 = vmatpush1.msra.mxu0 0.0
    %3950 = vmatprep.mubr.f32.mxu0 0.0
    %3951 = vmatmul.mubr.f32.gmra.mrb[0].mxu0 %v3881
    %v3952 = vpop.f32.mrb[0].mxu0
    %v3953 = vadd.f32 0.0, %v3952
    %v3954 = vpop.f32.mrb[0].mxu0
    %3955 = vmatprep.mubr.f32.mxu0 0.0
    %3956 = vmatmul.mubr.f32.gmra.mrb[0].mxu0 %v3884
    %v3957 = vpop.f32.mrb[0].mxu0
    %v3958 = vadd.f32 0.0, %v3957
    %v3959 = vpop.f32.mrb[0].mxu0
    %3960 = vdwg.mxu0
    %v3961 = vld [vmem:[%s144 + $0xd0] sm:$0xff]
    %v3963 = vsel %vm413, %v3953, 0
    %v3966 = vsel %vm413, %v3958, 0
    %3968 = vmatprep.subr.mxu0 0.0
    %3969 = vmatpush1.msra.mxu0 %v3961
    %3970 = vmatprep.subr.mxu0 0.0
    %3971 = vmatpush1.msra.mxu0 0.0
    %3972 = vmatprep.subr.mxu0 0.0
    %3973 = vmatpush1.msra.mxu0 0.0
    %3974 = vmatprep.subr.mxu0 0.0
    %3975 = vmatpush1.msra.mxu0 0.0
    %3976 = vmatprep.subr.mxu0 0.0
    %3977 = vmatpush1.msra.mxu0 0.0
    %3978 = vmatprep.subr.mxu0 0.0
    %3979 = vmatpush1.msra.mxu0 0.0
    %3980 = vmatprep.subr.mxu0 0.0
    %3981 = vmatpush1.msra.mxu0 0.0
    %3982 = vmatprep.subr.mxu0 0.0
    %3983 = vmatpush1.msra.mxu0 0.0
    %3984 = vmatprep.subr.mxu0 0.0
    %3985 = vmatpush1.msra.mxu0 0.0
    %3986 = vmatprep.subr.mxu0 0.0
    %3987 = vmatpush1.msra.mxu0 0.0
    %3988 = vmatprep.subr.mxu0 0.0
    %3989 = vmatpush1.msra.mxu0 0.0
    %3990 = vmatprep.subr.mxu0 0.0
    %3991 = vmatpush1.msra.mxu0 0.0
    %3992 = vmatprep.subr.mxu0 0.0
    %3993 = vmatpush1.msra.mxu0 0.0
    %3994 = vmatprep.subr.mxu0 0.0
    %3995 = vmatpush1.msra.mxu0 0.0
    %3996 = vmatprep.subr.mxu0 0.0
    %3997 = vmatpush1.msra.mxu0 0.0
    %3998 = vmatprep.subr.mxu0 0.0
    %3999 = vmatpush1.msra.mxu0 0.0
    %4000 = vmatprep.subr.mxu0 0.0
    %4001 = vmatpush1.msra.mxu0 0.0
    %4002 = vmatprep.subr.mxu0 0.0
    %4003 = vmatpush1.msra.mxu0 0.0
    %4004 = vmatprep.subr.mxu0 0.0
    %4005 = vmatpush1.msra.mxu0 0.0
    %4006 = vmatprep.subr.mxu0 0.0
    %4007 = vmatpush1.msra.mxu0 0.0
    %4008 = vmatprep.subr.mxu0 0.0
    %4009 = vmatpush1.msra.mxu0 0.0
    %4010 = vmatprep.subr.mxu0 0.0
    %4011 = vmatpush1.msra.mxu0 0.0
    %4012 = vmatprep.subr.mxu0 0.0
    %4013 = vmatpush1.msra.mxu0 0.0
    %4014 = vmatprep.subr.mxu0 0.0
    %4015 = vmatpush1.msra.mxu0 0.0
    %4016 = vmatprep.subr.mxu0 0.0
    %4017 = vmatpush1.msra.mxu0 0.0
    %4018 = vmatprep.subr.mxu0 0.0
    %4019 = vmatpush1.msra.mxu0 0.0
    %4020 = vmatprep.subr.mxu0 0.0
    %4021 = vmatpush1.msra.mxu0 0.0
    %4022 = vmatprep.subr.mxu0 0.0
    %4023 = vmatpush1.msra.mxu0 0.0
    %4024 = vmatprep.subr.mxu0 0.0
    %4025 = vmatpush1.msra.mxu0 0.0
    %4026 = vmatprep.subr.mxu0 0.0
    %4027 = vmatpush1.msra.mxu0 0.0
    %4028 = vmatprep.subr.mxu0 0.0
    %4029 = vmatpush1.msra.mxu0 0.0
    %4030 = vmatprep.subr.mxu0 0.0
    %4031 = vmatpush1.msra.mxu0 0.0
    %4032 = vmatprep.mubr.f32.mxu0 0.0
    %4033 = vmatmul.mubr.f32.gmra.mrb[0].mxu0 %v3963
    %v4034 = vpop.f32.mrb[0].mxu0
    %v4035 = vadd.f32 0.0, %v4034
    %v4036 = vpop.f32.mrb[0].mxu0
    %4037 = vmatprep.mubr.f32.mxu0 0.0
    %4038 = vmatmul.mubr.f32.gmra.mrb[0].mxu0 %v3966
    %v4039 = vpop.f32.mrb[0].mxu0
    %v4040 = vadd.f32 0.0, %v4039
    %v4041 = vpop.f32.mrb[0].mxu0
    %4042 = vdwg.mxu0
    %v4043 = vadd.f32 %v3756, %v4035
    %v4044 = vadd.f32 %v3757, %v4040
    %s4045 = scalar_lea.vmem %s2, 112
    %v4046 = vld [vmem:[%s4045] sm:$0xff]
    %v4047 = vld [vmem:[%s4045 + $0x8] sm:$0xff]
    %4048 = vrot.lane.b32.xlu0 %v3178, 104
    %v4049 = vpop.permute.xlu0 %4048
    %4050 = vrot.lane.b32.xlu0 %v3183, 104
    %v4051 = vpop.permute.xlu0 %4050
    %4052 = vrot.lane.b32.xlu0 %v3178, 72
    %v4053 = vpop.permute.xlu0 %4052
    %4054 = vrot.lane.b32.xlu0 %v3183, 72
    %v4055 = vpop.permute.xlu0 %4054
    %v4056 = vsel %vm413, %v4049, 0
    %v4058 = vsel %vm413, %v4051, 0
    %v4060 = vsel %vm413, %v4053, 0
    %v4062 = vsel %vm413, %v4055, 0
    %4064 = vmatprep.subr.mxu0 0.0
    %4065 = vmatpush1.xpose.msra.mxu0 %v4060
    %4066 = vmatprep.subr.mxu0 0.0
    %4067 = vmatpush1.xpose.msra.mxu0 %v4062
    %4068 = vmatprep.subr.mxu0 0.0
    %4069 = vmatpush1.xpose.msra.mxu0 0.0
    %4070 = vmatprep.subr.mxu0 0.0
    %4071 = vmatpush1.xpose.msra.mxu0 0.0
    %4072 = vmatprep.subr.mxu0 0.0
    %4073 = vmatpush1.xpose.msra.mxu0 0.0
    %4074 = vmatprep.subr.mxu0 0.0
    %4075 = vmatpush1.xpose.msra.mxu0 0.0
    %4076 = vmatprep.subr.mxu0 0.0
    %4077 = vmatpush1.xpose.msra.mxu0 0.0
    %4078 = vmatprep.subr.mxu0 0.0
    %4079 = vmatpush1.xpose.msra.mxu0 0.0
    %4080 = vmatprep.subr.mxu0 0.0
    %4081 = vmatpush1.xpose.msra.mxu0 0.0
    %4082 = vmatprep.subr.mxu0 0.0
    %4083 = vmatpush1.xpose.msra.mxu0 0.0
    %4084 = vmatprep.subr.mxu0 0.0
    %4085 = vmatpush1.xpose.msra.mxu0 0.0
    %4086 = vmatprep.subr.mxu0 0.0
    %4087 = vmatpush1.xpose.msra.mxu0 0.0
    %4088 = vmatprep.subr.mxu0 0.0
    %4089 = vmatpush1.xpose.msra.mxu0 0.0
    %4090 = vmatprep.subr.mxu0 0.0
    %4091 = vmatpush1.xpose.msra.mxu0 0.0
    %4092 = vmatprep.subr.mxu0 0.0
    %4093 = vmatpush1.xpose.msra.mxu0 0.0
    %4094 = vmatprep.subr.mxu0 0.0
    %4095 = vmatpush1.xpose.msra.mxu0 0.0
    %4096 = vmatprep.subr.mxu0 0.0
    %4097 = vmatpush1.xpose.msra.mxu0 0.0
    %4098 = vmatprep.subr.mxu0 0.0
    %4099 = vmatpush1.xpose.msra.mxu0 0.0
    %4100 = vmatprep.subr.mxu0 0.0
    %4101 = vmatpush1.xpose.msra.mxu0 0.0
    %4102 = vmatprep.subr.mxu0 0.0
    %4103 = vmatpush1.xpose.msra.mxu0 0.0
    %4104 = vmatprep.subr.mxu0 0.0
    %4105 = vmatpush1.xpose.msra.mxu0 0.0
    %4106 = vmatprep.subr.mxu0 0.0
    %4107 = vmatpush1.xpose.msra.mxu0 0.0
    %4108 = vmatprep.subr.mxu0 0.0
    %4109 = vmatpush1.xpose.msra.mxu0 0.0
    %4110 = vmatprep.subr.mxu0 0.0
    %4111 = vmatpush1.xpose.msra.mxu0 0.0
    %4112 = vmatprep.subr.mxu0 0.0
    %4113 = vmatpush1.xpose.msra.mxu0 0.0
    %4114 = vmatprep.subr.mxu0 0.0
    %4115 = vmatpush1.xpose.msra.mxu0 0.0
    %4116 = vmatprep.subr.mxu0 0.0
    %4117 = vmatpush1.xpose.msra.mxu0 0.0
    %4118 = vmatprep.subr.mxu0 0.0
    %4119 = vmatpush1.xpose.msra.mxu0 0.0
    %4120 = vmatprep.subr.mxu0 0.0
    %4121 = vmatpush1.xpose.msra.mxu0 0.0
    %4122 = vmatprep.subr.mxu0 0.0
    %4123 = vmatpush1.xpose.msra.mxu0 0.0
    %4124 = vmatprep.subr.mxu0 0.0
    %4125 = vmatpush1.xpose.msra.mxu0 0.0
    %4126 = vmatprep.subr.mxu0 0.0
    %4127 = vmatpush1.xpose.msra.mxu0 0.0
    %4128 = vmatprep.mubr.f32.mxu0 0.0
    %4129 = vmatmul.mubr.f32.gmra.mrb[0].mxu0 %v4056
    %v4130 = vpop.f32.mrb[0].mxu0
    %v4131 = vadd.f32 %v4046, %v4130
    %v4132 = vpop.f32.mrb[0].mxu0
    %4133 = vmatprep.mubr.f32.mxu0 0.0
    %4134 = vmatmul.mubr.f32.gmra.mrb[0].mxu0 %v4058
    %v4135 = vpop.f32.mrb[0].mxu0
    %v4136 = vadd.f32 %v4047, %v4135
    %v4137 = vpop.f32.mrb[0].mxu0
    %4138 = vdwg.mxu0
    %v4139 = vsel %vm497, %v4131, -inf
    %4140 = vmax.xlane.f32.xlu0 %v4139
    %v4141 = vpop.xlane.xlu0 %4140
    %v4142 = vsel %vm497, %v4136, -inf
    %4143 = vmax.xlane.f32.xlu0 %v4142
    %v4144 = vpop.xlane.xlu0 %4143
    %v4145 = vsub.f32 %v4131, %v4141
    %v4146 = vsub.f32 %v4136, %v4144
    %v4147 = vmul.f32 %v4145, 1.442695
    %v4148 = vpow.pop %v4147
    %v4149 = vmul.f32 %v4146, 1.442695
    %v4150 = vpow.pop %v4149
    %v4151 = vsel %vm497, %v4148, 0.0
    %4152 = vadd.xlane.f32.xlu0 %v4151
    %v4153 = vpop.xlane.xlu0 %4152
    %v4154 = vsel %vm497, %v4150, 0.0
    %4155 = vadd.xlane.f32.xlu0 %v4154
    %v4156 = vpop.xlane.xlu0 %4155
    %v4157 = vrcp.pop %v4153
    %v4158 = vmul.f32 %v4148, %v4157
    %v4159 = vrcp.pop %v4156
    %v4160 = vmul.f32 %v4150, %v4159
    %4161 = vrot.lane.b32.xlu0 %v3178, 40
    %v4162 = vpop.permute.xlu0 %4161
    %4163 = vrot.lane.b32.xlu0 %v3183, 40
    %v4164 = vpop.permute.xlu0 %4163
    %v4168 = vsel %vm497, %v4158, 0
    %v4171 = vsel %vm497, %v4160, 0
    %4173 = vmatprep.subr.mxu0 0.0
    %4174 = vmatpush1.msra.mxu0 %v4162
    %4175 = vmatprep.subr.mxu0 0.0
    %4176 = vmatpush1.msra.mxu0 %v4164
    %4177 = vmatprep.subr.mxu0 0.0
    %4178 = vmatpush1.msra.mxu0 0.0
    %4179 = vmatprep.subr.mxu0 0.0
    %4180 = vmatpush1.msra.mxu0 0.0
    %4181 = vmatprep.subr.mxu0 0.0
    %4182 = vmatpush1.msra.mxu0 0.0
    %4183 = vmatprep.subr.mxu0 0.0
    %4184 = vmatpush1.msra.mxu0 0.0
    %4185 = vmatprep.subr.mxu0 0.0
    %4186 = vmatpush1.msra.mxu0 0.0
    %4187 = vmatprep.subr.mxu0 0.0
    %4188 = vmatpush1.msra.mxu0 0.0
    %4189 = vmatprep.subr.mxu0 0.0
    %4190 = vmatpush1.msra.mxu0 0.0
    %4191 = vmatprep.subr.mxu0 0.0
    %4192 = vmatpush1.msra.mxu0 0.0
    %4193 = vmatprep.subr.mxu0 0.0
    %4194 = vmatpush1.msra.mxu0 0.0
    %4195 = vmatprep.subr.mxu0 0.0
    %4196 = vmatpush1.msra.mxu0 0.0
    %4197 = vmatprep.subr.mxu0 0.0
    %4198 = vmatpush1.msra.mxu0 0.0
    %4199 = vmatprep.subr.mxu0 0.0
    %4200 = vmatpush1.msra.mxu0 0.0
    %4201 = vmatprep.subr.mxu0 0.0
    %4202 = vmatpush1.msra.mxu0 0.0
    %4203 = vmatprep.subr.mxu0 0.0
    %4204 = vmatpush1.msra.mxu0 0.0
    %4205 = vmatprep.subr.mxu0 0.0
    %4206 = vmatpush1.msra.mxu0 0.0
    %4207 = vmatprep.subr.mxu0 0.0
    %4208 = vmatpush1.msra.mxu0 0.0
    %4209 = vmatprep.subr.mxu0 0.0
    %4210 = vmatpush1.msra.mxu0 0.0
    %4211 = vmatprep.subr.mxu0 0.0
    %4212 = vmatpush1.msra.mxu0 0.0
    %4213 = vmatprep.subr.mxu0 0.0
    %4214 = vmatpush1.msra.mxu0 0.0
    %4215 = vmatprep.subr.mxu0 0.0
    %4216 = vmatpush1.msra.mxu0 0.0
    %4217 = vmatprep.subr.mxu0 0.0
    %4218 = vmatpush1.msra.mxu0 0.0
    %4219 = vmatprep.subr.mxu0 0.0
    %4220 = vmatpush1.msra.mxu0 0.0
    %4221 = vmatprep.subr.mxu0 0.0
    %4222 = vmatpush1.msra.mxu0 0.0
    %4223 = vmatprep.subr.mxu0 0.0
    %4224 = vmatpush1.msra.mxu0 0.0
    %4225 = vmatprep.subr.mxu0 0.0
    %4226 = vmatpush1.msra.mxu0 0.0
    %4227 = vmatprep.subr.mxu0 0.0
    %4228 = vmatpush1.msra.mxu0 0.0
    %4229 = vmatprep.subr.mxu0 0.0
    %4230 = vmatpush1.msra.mxu0 0.0
    %4231 = vmatprep.subr.mxu0 0.0
    %4232 = vmatpush1.msra.mxu0 0.0
    %4233 = vmatprep.subr.mxu0 0.0
    %4234 = vmatpush1.msra.mxu0 0.0
    %4235 = vmatprep.subr.mxu0 0.0
    %4236 = vmatpush1.msra.mxu0 0.0
    %4237 = vmatprep.mubr.f32.mxu0 0.0
    %4238 = vmatmul.mubr.f32.gmra.mrb[0].mxu0 %v4168
    %v4239 = vpop.f32.mrb[0].mxu0
    %v4240 = vadd.f32 0.0, %v4239
    %v4241 = vpop.f32.mrb[0].mxu0
    %4242 = vmatprep.mubr.f32.mxu0 0.0
    %4243 = vmatmul.mubr.f32.gmra.mrb[0].mxu0 %v4171
    %v4244 = vpop.f32.mrb[0].mxu0
    %v4245 = vadd.f32 0.0, %v4244
    %v4246 = vpop.f32.mrb[0].mxu0
    %4247 = vdwg.mxu0
    %v4248 = vld [vmem:[%s144 + $0xd8] sm:$0xff]
    %v4250 = vsel %vm413, %v4240, 0
    %v4253 = vsel %vm413, %v4245, 0
    %4255 = vmatprep.subr.mxu0 0.0
    %4256 = vmatpush1.msra.mxu0 %v4248
    %4257 = vmatprep.subr.mxu0 0.0
    %4258 = vmatpush1.msra.mxu0 0.0
    %4259 = vmatprep.subr.mxu0 0.0
    %4260 = vmatpush1.msra.mxu0 0.0
    %4261 = vmatprep.subr.mxu0 0.0
    %4262 = vmatpush1.msra.mxu0 0.0
    %4263 = vmatprep.subr.mxu0 0.0
    %4264 = vmatpush1.msra.mxu0 0.0
    %4265 = vmatprep.subr.mxu0 0.0
    %4266 = vmatpush1.msra.mxu0 0.0
    %4267 = vmatprep.subr.mxu0 0.0
    %4268 = vmatpush1.msra.mxu0 0.0
    %4269 = vmatprep.subr.mxu0 0.0
    %4270 = vmatpush1.msra.mxu0 0.0
    %4271 = vmatprep.subr.mxu0 0.0
    %4272 = vmatpush1.msra.mxu0 0.0
    %4273 = vmatprep.subr.mxu0 0.0
    %4274 = vmatpush1.msra.mxu0 0.0
    %4275 = vmatprep.subr.mxu0 0.0
    %4276 = vmatpush1.msra.mxu0 0.0
    %4277 = vmatprep.subr.mxu0 0.0
    %4278 = vmatpush1.msra.mxu0 0.0
    %4279 = vmatprep.subr.mxu0 0.0
    %4280 = vmatpush1.msra.mxu0 0.0
    %4281 = vmatprep.subr.mxu0 0.0
    %4282 = vmatpush1.msra.mxu0 0.0
    %4283 = vmatprep.subr.mxu0 0.0
    %4284 = vmatpush1.msra.mxu0 0.0
    %4285 = vmatprep.subr.mxu0 0.0
    %4286 = vmatpush1.msra.mxu0 0.0
    %4287 = vmatprep.subr.mxu0 0.0
    %4288 = vmatpush1.msra.mxu0 0.0
    %4289 = vmatprep.subr.mxu0 0.0
    %4290 = vmatpush1.msra.mxu0 0.0
    %4291 = vmatprep.subr.mxu0 0.0
    %4292 = vmatpush1.msra.mxu0 0.0
    %4293 = vmatprep.subr.mxu0 0.0
    %4294 = vmatpush1.msra.mxu0 0.0
    %4295 = vmatprep.subr.mxu0 0.0
    %4296 = vmatpush1.msra.mxu0 0.0
    %4297 = vmatprep.subr.mxu0 0.0
    %4298 = vmatpush1.msra.mxu0 0.0
    %4299 = vmatprep.subr.mxu0 0.0
    %4300 = vmatpush1.msra.mxu0 0.0
    %4301 = vmatprep.subr.mxu0 0.0
    %4302 = vmatpush1.msra.mxu0 0.0
    %4303 = vmatprep.subr.mxu0 0.0
    %4304 = vmatpush1.msra.mxu0 0.0
    %4305 = vmatprep.subr.mxu0 0.0
    %4306 = vmatpush1.msra.mxu0 0.0
    %4307 = vmatprep.subr.mxu0 0.0
    %4308 = vmatpush1.msra.mxu0 0.0
    %4309 = vmatprep.subr.mxu0 0.0
    %4310 = vmatpush1.msra.mxu0 0.0
    %4311 = vmatprep.subr.mxu0 0.0
    %4312 = vmatpush1.msra.mxu0 0.0
    %4313 = vmatprep.subr.mxu0 0.0
    %4314 = vmatpush1.msra.mxu0 0.0
    %4315 = vmatprep.subr.mxu0 0.0
    %4316 = vmatpush1.msra.mxu0 0.0
    %4317 = vmatprep.subr.mxu0 0.0
    %4318 = vmatpush1.msra.mxu0 0.0
    %4319 = vmatprep.mubr.f32.mxu0 0.0
    %4320 = vmatmul.mubr.f32.gmra.mrb[0].mxu0 %v4250
    %v4321 = vpop.f32.mrb[0].mxu0
    %v4322 = vadd.f32 0.0, %v4321
    %v4323 = vpop.f32.mrb[0].mxu0
    %4324 = vmatprep.mubr.f32.mxu0 0.0
    %4325 = vmatmul.mubr.f32.gmra.mrb[0].mxu0 %v4253
    %v4326 = vpop.f32.mrb[0].mxu0
    %v4327 = vadd.f32 0.0, %v4326
    %v4328 = vpop.f32.mrb[0].mxu0
    %4329 = vdwg.mxu0
    %v4330 = vadd.f32 %v4043, %v4322
    %v4331 = vadd.f32 %v4044, %v4327
    %v4332 = vld [vmem:[%s5 + $0x4] sm:$0x1]
    %v4333 = vmul.f32 %v4330, %v4330
    %v4334 = vmul.f32 %v4331, %v4331
    %v4335 = vsel %vm38, %v4333, 0.0
    %4336 = vadd.xlane.f32.xlu0 %v4335
    %v4337 = vpop.xlane.xlu0 %4336
    %v4338 = vsel %vm38, %v4334, 0.0
    %4339 = vadd.xlane.f32.xlu0 %v4338
    %v4340 = vpop.xlane.xlu0 %4339
    %v4341 = vmul.f32 %v4337, %v261
    %v4342 = vmul.f32 %v4340, %v261
    %v4343 = vadd.f32 %v4341, 1e-06
    %v4344 = vadd.f32 %v4342, 1e-06
    %v4345 = vrsqrt.pop %v4343
    %v4346 = vrsqrt.pop %v4344
    %v4347 = vmul.f32 %v4330, %v4345
    %v4348 = vmul.f32 %v4331, %v4346
    %v4349 = vlaneseq
    %v4350 = vshrl.u32 %v4349, 7
    %v4351 = vsub.s32 0, %v4350
    %v4352 = vrot.slane %v4332, %v4351
    %v4353 = vmul.f32 %v4347, %v4352
    %v4354 = vmul.f32 %v4348, %v4352
    %v4355 = vld [vmem:[%s144 + $0x60] sm:$0xff]
    %v4356 = vld [vmem:[%s144 + $0x68] sm:$0xff]
    %v4357 = vld [vmem:[%s144 + $0x70] sm:$0xff]
    %v4358 = vld [vmem:[%s144 + $0x78] sm:$0xff]
    %v4360 = vsel %vm38, %v4353, 0
    %v4363 = vsel %vm38, %v4354, 0
    %v4366 = vsel %vm38, %v4355, 0
    %v4369 = vsel %vm38, %v4356, 0
    %v4372 = vsel %vm38, %v4357, 0
    %v4375 = vsel %vm38, %v4358, 0
    %4377 = vmatprep.subr.mxu0 0.0
    %4378 = vmatpush1.xpose.msra.mxu0 %v4366
    %4379 = vmatprep.subr.mxu0 0.0
    %4380 = vmatpush1.xpose.msra.mxu0 %v4369
    %4381 = vmatprep.subr.mxu0 0.0
    %4382 = vmatpush1.xpose.msra.mxu0 %v4372
    %4383 = vmatprep.subr.mxu0 0.0
    %4384 = vmatpush1.xpose.msra.mxu0 %v4375
    %4385 = vmatprep.subr.mxu0 0.0
    %4386 = vmatpush1.xpose.msra.mxu0 0.0
    %4387 = vmatprep.subr.mxu0 0.0
    %4388 = vmatpush1.xpose.msra.mxu0 0.0
    %4389 = vmatprep.subr.mxu0 0.0
    %4390 = vmatpush1.xpose.msra.mxu0 0.0
    %4391 = vmatprep.subr.mxu0 0.0
    %4392 = vmatpush1.xpose.msra.mxu0 0.0
    %4393 = vmatprep.subr.mxu0 0.0
    %4394 = vmatpush1.xpose.msra.mxu0 0.0
    %4395 = vmatprep.subr.mxu0 0.0
    %4396 = vmatpush1.xpose.msra.mxu0 0.0
    %4397 = vmatprep.subr.mxu0 0.0
    %4398 = vmatpush1.xpose.msra.mxu0 0.0
    %4399 = vmatprep.subr.mxu0 0.0
    %4400 = vmatpush1.xpose.msra.mxu0 0.0
    %4401 = vmatprep.subr.mxu0 0.0
    %4402 = vmatpush1.xpose.msra.mxu0 0.0
    %4403 = vmatprep.subr.mxu0 0.0
    %4404 = vmatpush1.xpose.msra.mxu0 0.0
    %4405 = vmatprep.subr.mxu0 0.0
    %4406 = vmatpush1.xpose.msra.mxu0 0.0
    %4407 = vmatprep.subr.mxu0 0.0
    %4408 = vmatpush1.xpose.msra.mxu0 0.0
    %4409 = vmatprep.subr.mxu0 0.0
    %4410 = vmatpush1.xpose.msra.mxu0 0.0
    %4411 = vmatprep.subr.mxu0 0.0
    %4412 = vmatpush1.xpose.msra.mxu0 0.0
    %4413 = vmatprep.subr.mxu0 0.0
    %4414 = vmatpush1.xpose.msra.mxu0 0.0
    %4415 = vmatprep.subr.mxu0 0.0
    %4416 = vmatpush1.xpose.msra.mxu0 0.0
    %4417 = vmatprep.subr.mxu0 0.0
    %4418 = vmatpush1.xpose.msra.mxu0 0.0
    %4419 = vmatprep.subr.mxu0 0.0
    %4420 = vmatpush1.xpose.msra.mxu0 0.0
    %4421 = vmatprep.subr.mxu0 0.0
    %4422 = vmatpush1.xpose.msra.mxu0 0.0
    %4423 = vmatprep.subr.mxu0 0.0
    %4424 = vmatpush1.xpose.msra.mxu0 0.0
    %4425 = vmatprep.subr.mxu0 0.0
    %4426 = vmatpush1.xpose.msra.mxu0 0.0
    %4427 = vmatprep.subr.mxu0 0.0
    %4428 = vmatpush1.xpose.msra.mxu0 0.0
    %4429 = vmatprep.subr.mxu0 0.0
    %4430 = vmatpush1.xpose.msra.mxu0 0.0
    %4431 = vmatprep.subr.mxu0 0.0
    %4432 = vmatpush1.xpose.msra.mxu0 0.0
    %4433 = vmatprep.subr.mxu0 0.0
    %4434 = vmatpush1.xpose.msra.mxu0 0.0
    %4435 = vmatprep.subr.mxu0 0.0
    %4436 = vmatpush1.xpose.msra.mxu0 0.0
    %4437 = vmatprep.subr.mxu0 0.0
    %4438 = vmatpush1.xpose.msra.mxu0 0.0
    %4439 = vmatprep.subr.mxu0 0.0
    %4440 = vmatpush1.xpose.msra.mxu0 0.0
    %4441 = vmatprep.mubr.f32.mxu0 0.0
    %4442 = vmatmul.mubr.f32.gmra.mrb[0].mxu0 %v4360
    %v4443 = vpop.f32.mrb[0].mxu0
    %v4444 = vadd.f32 0.0, %v4443
    %v4445 = vpop.f32.mrb[0].mxu0
    %4446 = vmatprep.mubr.f32.mxu0 0.0
    %4447 = vmatmul.mubr.f32.gmra.mrb[0].mxu0 %v4363
    %v4448 = vpop.f32.mrb[0].mxu0
    %v4449 = vadd.f32 0.0, %v4448
    %v4450 = vpop.f32.mrb[0].mxu0
    %4451 = vdwg.mxu0
    %v4453 = vsel %vm413, %v4444, 0
    %v4456 = vsel %vm413, %v4449, 0
    %v4459 = vsel %vm413, %v244, 0
    %v4462 = vsel %vm413, %v249, 0
    %4464 = vmatprep.subr.mxu0 0.0
    %4465 = vmatpush1.xpose.msra.mxu0 %v4459
    %4466 = vmatprep.subr.mxu0 0.0
    %4467 = vmatpush1.xpose.msra.mxu0 %v4462
    %4468 = vmatprep.subr.mxu0 0.0
    %4469 = vmatpush1.xpose.msra.mxu0 0.0
    %4470 = vmatprep.subr.mxu0 0.0
    %4471 = vmatpush1.xpose.msra.mxu0 0.0
    %4472 = vmatprep.subr.mxu0 0.0
    %4473 = vmatpush1.xpose.msra.mxu0 0.0
    %4474 = vmatprep.subr.mxu0 0.0
    %4475 = vmatpush1.xpose.msra.mxu0 0.0
    %4476 = vmatprep.subr.mxu0 0.0
    %4477 = vmatpush1.xpose.msra.mxu0 0.0
    %4478 = vmatprep.subr.mxu0 0.0
    %4479 = vmatpush1.xpose.msra.mxu0 0.0
    %4480 = vmatprep.subr.mxu0 0.0
    %4481 = vmatpush1.xpose.msra.mxu0 0.0
    %4482 = vmatprep.subr.mxu0 0.0
    %4483 = vmatpush1.xpose.msra.mxu0 0.0
    %4484 = vmatprep.subr.mxu0 0.0
    %4485 = vmatpush1.xpose.msra.mxu0 0.0
    %4486 = vmatprep.subr.mxu0 0.0
    %4487 = vmatpush1.xpose.msra.mxu0 0.0
    %4488 = vmatprep.subr.mxu0 0.0
    %4489 = vmatpush1.xpose.msra.mxu0 0.0
    %4490 = vmatprep.subr.mxu0 0.0
    %4491 = vmatpush1.xpose.msra.mxu0 0.0
    %4492 = vmatprep.subr.mxu0 0.0
    %4493 = vmatpush1.xpose.msra.mxu0 0.0
    %4494 = vmatprep.subr.mxu0 0.0
    %4495 = vmatpush1.xpose.msra.mxu0 0.0
    %4496 = vmatprep.subr.mxu0 0.0
    %4497 = vmatpush1.xpose.msra.mxu0 0.0
    %4498 = vmatprep.subr.mxu0 0.0
    %4499 = vmatpush1.xpose.msra.mxu0 0.0
    %4500 = vmatprep.subr.mxu0 0.0
    %4501 = vmatpush1.xpose.msra.mxu0 0.0
    %4502 = vmatprep.subr.mxu0 0.0
    %4503 = vmatpush1.xpose.msra.mxu0 0.0
    %4504 = vmatprep.subr.mxu0 0.0
    %4505 = vmatpush1.xpose.msra.mxu0 0.0
    %4506 = vmatprep.subr.mxu0 0.0
    %4507 = vmatpush1.xpose.msra.mxu0 0.0
    %4508 = vmatprep.subr.mxu0 0.0
    %4509 = vmatpush1.xpose.msra.mxu0 0.0
    %4510 = vmatprep.subr.mxu0 0.0
    %4511 = vmatpush1.xpose.msra.mxu0 0.0
    %4512 = vmatprep.subr.mxu0 0.0
    %4513 = vmatpush1.xpose.msra.mxu0 0.0
    %4514 = vmatprep.subr.mxu0 0.0
    %4515 = vmatpush1.xpose.msra.mxu0 0.0
    %4516 = vmatprep.subr.mxu0 0.0
    %4517 = vmatpush1.xpose.msra.mxu0 0.0
    %4518 = vmatprep.subr.mxu0 0.0
    %4519 = vmatpush1.xpose.msra.mxu0 0.0
    %4520 = vmatprep.subr.mxu0 0.0
    %4521 = vmatpush1.xpose.msra.mxu0 0.0
    %4522 = vmatprep.subr.mxu0 0.0
    %4523 = vmatpush1.xpose.msra.mxu0 0.0
    %4524 = vmatprep.subr.mxu0 0.0
    %4525 = vmatpush1.xpose.msra.mxu0 0.0
    %4526 = vmatprep.subr.mxu0 0.0
    %4527 = vmatpush1.xpose.msra.mxu0 0.0
    %4528 = vmatprep.mubr.f32.mxu0 0.0
    %4529 = vmatmul.mubr.f32.gmra.mrb[0].mxu0 %v4453
    %v4530 = vpop.f32.mrb[0].mxu0
    %v4531 = vadd.f32 %v28, %v4530
    %v4532 = vpop.f32.mrb[0].mxu0
    %4533 = vmatprep.mubr.f32.mxu0 0.0
    %4534 = vmatmul.mubr.f32.gmra.mrb[0].mxu0 %v4456
    %v4535 = vpop.f32.mrb[0].mxu0
    %v4536 = vadd.f32 %v29, %v4535
    %v4537 = vpop.f32.mrb[0].mxu0
    %4538 = vdwg.mxu0
    %v4539 = vsel %vm497, %v4531, -inf
    %4540 = vmax.xlane.f32.xlu0 %v4539
    %v4541 = vpop.xlane.xlu0 %4540
    %v4542 = vsel %vm497, %v4536, -inf
    %4543 = vmax.xlane.f32.xlu0 %v4542
    %v4544 = vpop.xlane.xlu0 %4543
    %v4545 = vsub.f32 %v4531, %v4541
    %v4546 = vsub.f32 %v4536, %v4544
    %v4547 = vmul.f32 %v4545, 1.442695
    %v4548 = vpow.pop %v4547
    %v4549 = vmul.f32 %v4546, 1.442695
    %v4550 = vpow.pop %v4549
    %v4551 = vsel %vm497, %v4548, 0.0
    %4552 = vadd.xlane.f32.xlu0 %v4551
    %v4553 = vpop.xlane.xlu0 %4552
    %v4554 = vsel %vm497, %v4550, 0.0
    %4555 = vadd.xlane.f32.xlu0 %v4554
    %v4556 = vpop.xlane.xlu0 %4555
    %v4557 = vrcp.pop %v4553
    %v4558 = vmul.f32 %v4548, %v4557
    %v4559 = vrcp.pop %v4556
    %v4560 = vmul.f32 %v4550, %v4559
    %4561 = vrot.lane.b32.xlu0 %v244, 96
    %v4562 = vpop.permute.xlu0 %4561
    %4563 = vrot.lane.b32.xlu0 %v249, 96
    %v4564 = vpop.permute.xlu0 %4563
    %v4568 = vsel %vm497, %v4558, 0
    %v4571 = vsel %vm497, %v4560, 0
    %4573 = vmatprep.subr.mxu0 0.0
    %4574 = vmatpush1.msra.mxu0 %v4562
    %4575 = vmatprep.subr.mxu0 0.0
    %4576 = vmatpush1.msra.mxu0 %v4564
    %4577 = vmatprep.subr.mxu0 0.0
    %4578 = vmatpush1.msra.mxu0 0.0
    %4579 = vmatprep.subr.mxu0 0.0
    %4580 = vmatpush1.msra.mxu0 0.0
    %4581 = vmatprep.subr.mxu0 0.0
    %4582 = vmatpush1.msra.mxu0 0.0
    %4583 = vmatprep.subr.mxu0 0.0
    %4584 = vmatpush1.msra.mxu0 0.0
    %4585 = vmatprep.subr.mxu0 0.0
    %4586 = vmatpush1.msra.mxu0 0.0
    %4587 = vmatprep.subr.mxu0 0.0
    %4588 = vmatpush1.msra.mxu0 0.0
    %4589 = vmatprep.subr.mxu0 0.0
    %4590 = vmatpush1.msra.mxu0 0.0
    %4591 = vmatprep.subr.mxu0 0.0
    %4592 = vmatpush1.msra.mxu0 0.0
    %4593 = vmatprep.subr.mxu0 0.0
    %4594 = vmatpush1.msra.mxu0 0.0
    %4595 = vmatprep.subr.mxu0 0.0
    %4596 = vmatpush1.msra.mxu0 0.0
    %4597 = vmatprep.subr.mxu0 0.0
    %4598 = vmatpush1.msra.mxu0 0.0
    %4599 = vmatprep.subr.mxu0 0.0
    %4600 = vmatpush1.msra.mxu0 0.0
    %4601 = vmatprep.subr.mxu0 0.0
    %4602 = vmatpush1.msra.mxu0 0.0
    %4603 = vmatprep.subr.mxu0 0.0
    %4604 = vmatpush1.msra.mxu0 0.0
    %4605 = vmatprep.subr.mxu0 0.0
    %4606 = vmatpush1.msra.mxu0 0.0
    %4607 = vmatprep.subr.mxu0 0.0
    %4608 = vmatpush1.msra.mxu0 0.0
    %4609 = vmatprep.subr.mxu0 0.0
    %4610 = vmatpush1.msra.mxu0 0.0
    %4611 = vmatprep.subr.mxu0 0.0
    %4612 = vmatpush1.msra.mxu0 0.0
    %4613 = vmatprep.subr.mxu0 0.0
    %4614 = vmatpush1.msra.mxu0 0.0
    %4615 = vmatprep.subr.mxu0 0.0
    %4616 = vmatpush1.msra.mxu0 0.0
    %4617 = vmatprep.subr.mxu0 0.0
    %4618 = vmatpush1.msra.mxu0 0.0
    %4619 = vmatprep.subr.mxu0 0.0
    %4620 = vmatpush1.msra.mxu0 0.0
    %4621 = vmatprep.subr.mxu0 0.0
    %4622 = vmatpush1.msra.mxu0 0.0
    %4623 = vmatprep.subr.mxu0 0.0
    %4624 = vmatpush1.msra.mxu0 0.0
    %4625 = vmatprep.subr.mxu0 0.0
    %4626 = vmatpush1.msra.mxu0 0.0
    %4627 = vmatprep.subr.mxu0 0.0
    %4628 = vmatpush1.msra.mxu0 0.0
    %4629 = vmatprep.subr.mxu0 0.0
    %4630 = vmatpush1.msra.mxu0 0.0
    %4631 = vmatprep.subr.mxu0 0.0
    %4632 = vmatpush1.msra.mxu0 0.0
    %4633 = vmatprep.subr.mxu0 0.0
    %4634 = vmatpush1.msra.mxu0 0.0
    %4635 = vmatprep.subr.mxu0 0.0
    %4636 = vmatpush1.msra.mxu0 0.0
    %4637 = vmatprep.mubr.f32.mxu0 0.0
    %4638 = vmatmul.mubr.f32.gmra.mrb[0].mxu0 %v4568
    %v4639 = vpop.f32.mrb[0].mxu0
    %v4640 = vadd.f32 0.0, %v4639
    %v4641 = vpop.f32.mrb[0].mxu0
    %4642 = vmatprep.mubr.f32.mxu0 0.0
    %4643 = vmatmul.mubr.f32.gmra.mrb[0].mxu0 %v4571
    %v4644 = vpop.f32.mrb[0].mxu0
    %v4645 = vadd.f32 0.0, %v4644
    %v4646 = vpop.f32.mrb[0].mxu0
    %4647 = vdwg.mxu0
    %v4648 = vld [vmem:[%s144 + $0xe0] sm:$0xff]
    %v4650 = vsel %vm413, %v4640, 0
    %v4653 = vsel %vm413, %v4645, 0
    %4655 = vmatprep.subr.mxu0 0.0
    %4656 = vmatpush1.msra.mxu0 %v4648
    %4657 = vmatprep.subr.mxu0 0.0
    %4658 = vmatpush1.msra.mxu0 0.0
    %4659 = vmatprep.subr.mxu0 0.0
    %4660 = vmatpush1.msra.mxu0 0.0
    %4661 = vmatprep.subr.mxu0 0.0
    %4662 = vmatpush1.msra.mxu0 0.0
    %4663 = vmatprep.subr.mxu0 0.0
    %4664 = vmatpush1.msra.mxu0 0.0
    %4665 = vmatprep.subr.mxu0 0.0
    %4666 = vmatpush1.msra.mxu0 0.0
    %4667 = vmatprep.subr.mxu0 0.0
    %4668 = vmatpush1.msra.mxu0 0.0
    %4669 = vmatprep.subr.mxu0 0.0
    %4670 = vmatpush1.msra.mxu0 0.0
    %4671 = vmatprep.subr.mxu0 0.0
    %4672 = vmatpush1.msra.mxu0 0.0
    %4673 = vmatprep.subr.mxu0 0.0
    %4674 = vmatpush1.msra.mxu0 0.0
    %4675 = vmatprep.subr.mxu0 0.0
    %4676 = vmatpush1.msra.mxu0 0.0
    %4677 = vmatprep.subr.mxu0 0.0
    %4678 = vmatpush1.msra.mxu0 0.0
    %4679 = vmatprep.subr.mxu0 0.0
    %4680 = vmatpush1.msra.mxu0 0.0
    %4681 = vmatprep.subr.mxu0 0.0
    %4682 = vmatpush1.msra.mxu0 0.0
    %4683 = vmatprep.subr.mxu0 0.0
    %4684 = vmatpush1.msra.mxu0 0.0
    %4685 = vmatprep.subr.mxu0 0.0
    %4686 = vmatpush1.msra.mxu0 0.0
    %4687 = vmatprep.subr.mxu0 0.0
    %4688 = vmatpush1.msra.mxu0 0.0
    %4689 = vmatprep.subr.mxu0 0.0
    %4690 = vmatpush1.msra.mxu0 0.0
    %4691 = vmatprep.subr.mxu0 0.0
    %4692 = vmatpush1.msra.mxu0 0.0
    %4693 = vmatprep.subr.mxu0 0.0
    %4694 = vmatpush1.msra.mxu0 0.0
    %4695 = vmatprep.subr.mxu0 0.0
    %4696 = vmatpush1.msra.mxu0 0.0
    %4697 = vmatprep.subr.mxu0 0.0
    %4698 = vmatpush1.msra.mxu0 0.0
    %4699 = vmatprep.subr.mxu0 0.0
    %4700 = vmatpush1.msra.mxu0 0.0
    %4701 = vmatprep.subr.mxu0 0.0
    %4702 = vmatpush1.msra.mxu0 0.0
    %4703 = vmatprep.subr.mxu0 0.0
    %4704 = vmatpush1.msra.mxu0 0.0
    %4705 = vmatprep.subr.mxu0 0.0
    %4706 = vmatpush1.msra.mxu0 0.0
    %4707 = vmatprep.subr.mxu0 0.0
    %4708 = vmatpush1.msra.mxu0 0.0
    %4709 = vmatprep.subr.mxu0 0.0
    %4710 = vmatpush1.msra.mxu0 0.0
    %4711 = vmatprep.subr.mxu0 0.0
    %4712 = vmatpush1.msra.mxu0 0.0
    %4713 = vmatprep.subr.mxu0 0.0
    %4714 = vmatpush1.msra.mxu0 0.0
    %4715 = vmatprep.subr.mxu0 0.0
    %4716 = vmatpush1.msra.mxu0 0.0
    %4717 = vmatprep.subr.mxu0 0.0
    %4718 = vmatpush1.msra.mxu0 0.0
    %4719 = vmatprep.mubr.f32.mxu0 0.0
    %4720 = vmatmul.mubr.f32.gmra.mrb[0].mxu0 %v4650
    %v4721 = vpop.f32.mrb[0].mxu0
    %v4722 = vadd.f32 0.0, %v4721
    %v4723 = vpop.f32.mrb[0].mxu0
    %4724 = vmatprep.mubr.f32.mxu0 0.0
    %4725 = vmatmul.mubr.f32.gmra.mrb[0].mxu0 %v4653
    %v4726 = vpop.f32.mrb[0].mxu0
    %v4727 = vadd.f32 0.0, %v4726
    %v4728 = vpop.f32.mrb[0].mxu0
    %4729 = vdwg.mxu0
    %v4730 = vadd.f32 %v4330, %v4722
    %v4731 = vadd.f32 %v4331, %v4727
    %4732 = vrot.lane.b32.xlu0 %v4444, 120
    %v4733 = vpop.permute.xlu0 %4732
    %4734 = vrot.lane.b32.xlu0 %v4449, 120
    %v4735 = vpop.permute.xlu0 %4734
    %4736 = vrot.lane.b32.xlu0 %v244, 120
    %v4737 = vpop.permute.xlu0 %4736
    %4738 = vrot.lane.b32.xlu0 %v249, 120
    %v4739 = vpop.permute.xlu0 %4738
    %v4740 = vsel %vm413, %v4733, 0
    %v4742 = vsel %vm413, %v4735, 0
    %v4744 = vsel %vm413, %v4737, 0
    %v4746 = vsel %vm413, %v4739, 0
    %4748 = vmatprep.subr.mxu0 0.0
    %4749 = vmatpush1.xpose.msra.mxu0 %v4744
    %4750 = vmatprep.subr.mxu0 0.0
    %4751 = vmatpush1.xpose.msra.mxu0 %v4746
    %4752 = vmatprep.subr.mxu0 0.0
    %4753 = vmatpush1.xpose.msra.mxu0 0.0
    %4754 = vmatprep.subr.mxu0 0.0
    %4755 = vmatpush1.xpose.msra.mxu0 0.0
    %4756 = vmatprep.subr.mxu0 0.0
    %4757 = vmatpush1.xpose.msra.mxu0 0.0
    %4758 = vmatprep.subr.mxu0 0.0
    %4759 = vmatpush1.xpose.msra.mxu0 0.0
    %4760 = vmatprep.subr.mxu0 0.0
    %4761 = vmatpush1.xpose.msra.mxu0 0.0
    %4762 = vmatprep.subr.mxu0 0.0
    %4763 = vmatpush1.xpose.msra.mxu0 0.0
    %4764 = vmatprep.subr.mxu0 0.0
    %4765 = vmatpush1.xpose.msra.mxu0 0.0
    %4766 = vmatprep.subr.mxu0 0.0
    %4767 = vmatpush1.xpose.msra.mxu0 0.0
    %4768 = vmatprep.subr.mxu0 0.0
    %4769 = vmatpush1.xpose.msra.mxu0 0.0
    %4770 = vmatprep.subr.mxu0 0.0
    %4771 = vmatpush1.xpose.msra.mxu0 0.0
    %4772 = vmatprep.subr.mxu0 0.0
    %4773 = vmatpush1.xpose.msra.mxu0 0.0
    %4774 = vmatprep.subr.mxu0 0.0
    %4775 = vmatpush1.xpose.msra.mxu0 0.0
    %4776 = vmatprep.subr.mxu0 0.0
    %4777 = vmatpush1.xpose.msra.mxu0 0.0
    %4778 = vmatprep.subr.mxu0 0.0
    %4779 = vmatpush1.xpose.msra.mxu0 0.0
    %4780 = vmatprep.subr.mxu0 0.0
    %4781 = vmatpush1.xpose.msra.mxu0 0.0
    %4782 = vmatprep.subr.mxu0 0.0
    %4783 = vmatpush1.xpose.msra.mxu0 0.0
    %4784 = vmatprep.subr.mxu0 0.0
    %4785 = vmatpush1.xpose.msra.mxu0 0.0
    %4786 = vmatprep.subr.mxu0 0.0
    %4787 = vmatpush1.xpose.msra.mxu0 0.0
    %4788 = vmatprep.subr.mxu0 0.0
    %4789 = vmatpush1.xpose.msra.mxu0 0.0
    %4790 = vmatprep.subr.mxu0 0.0
    %4791 = vmatpush1.xpose.msra.mxu0 0.0
    %4792 = vmatprep.subr.mxu0 0.0
    %4793 = vmatpush1.xpose.msra.mxu0 0.0
    %4794 = vmatprep.subr.mxu0 0.0
    %4795 = vmatpush1.xpose.msra.mxu0 0.0
    %4796 = vmatprep.subr.mxu0 0.0
    %4797 = vmatpush1.xpose.msra.mxu0 0.0
    %4798 = vmatprep.subr.mxu0 0.0
    %4799 = vmatpush1.xpose.msra.mxu0 0.0
    %4800 = vmatprep.subr.mxu0 0.0
    %4801 = vmatpush1.xpose.msra.mxu0 0.0
    %4802 = vmatprep.subr.mxu0 0.0
    %4803 = vmatpush1.xpose.msra.mxu0 0.0
    %4804 = vmatprep.subr.mxu0 0.0
    %4805 = vmatpush1.xpose.msra.mxu0 0.0
    %4806 = vmatprep.subr.mxu0 0.0
    %4807 = vmatpush1.xpose.msra.mxu0 0.0
    %4808 = vmatprep.subr.mxu0 0.0
    %4809 = vmatpush1.xpose.msra.mxu0 0.0
    %4810 = vmatprep.subr.mxu0 0.0
    %4811 = vmatpush1.xpose.msra.mxu0 0.0
    %4812 = vmatprep.mubr.f32.mxu0 0.0
    %4813 = vmatmul.mubr.f32.gmra.mrb[0].mxu0 %v4740
    %v4814 = vpop.f32.mrb[0].mxu0
    %v4815 = vadd.f32 %v28, %v4814
    %v4816 = vpop.f32.mrb[0].mxu0
    %4817 = vmatprep.mubr.f32.mxu0 0.0
    %4818 = vmatmul.mubr.f32.gmra.mrb[0].mxu0 %v4742
    %v4819 = vpop.f32.mrb[0].mxu0
    %v4820 = vadd.f32 %v29, %v4819
    %v4821 = vpop.f32.mrb[0].mxu0
    %4822 = vdwg.mxu0
    %v4823 = vsel %vm497, %v4815, -inf
    %4824 = vmax.xlane.f32.xlu0 %v4823
    %v4825 = vpop.xlane.xlu0 %4824
    %v4826 = vsel %vm497, %v4820, -inf
    %4827 = vmax.xlane.f32.xlu0 %v4826
    %v4828 = vpop.xlane.xlu0 %4827
    %v4829 = vsub.f32 %v4815, %v4825
    %v4830 = vsub.f32 %v4820, %v4828
    %v4831 = vmul.f32 %v4829, 1.442695
    %v4832 = vpow.pop %v4831
    %v4833 = vmul.f32 %v4830, 1.442695
    %v4834 = vpow.pop %v4833
    %v4835 = vsel %vm497, %v4832, 0.0
    %4836 = vadd.xlane.f32.xlu0 %v4835
    %v4837 = vpop.xlane.xlu0 %4836
    %v4838 = vsel %vm497, %v4834, 0.0
    %4839 = vadd.xlane.f32.xlu0 %v4838
    %v4840 = vpop.xlane.xlu0 %4839
    %v4841 = vrcp.pop %v4837
    %v4842 = vmul.f32 %v4832, %v4841
    %v4843 = vrcp.pop %v4840
    %v4844 = vmul.f32 %v4834, %v4843
    %4845 = vrot.lane.b32.xlu0 %v244, 88
    %v4846 = vpop.permute.xlu0 %4845
    %4847 = vrot.lane.b32.xlu0 %v249, 88
    %v4848 = vpop.permute.xlu0 %4847
    %v4852 = vsel %vm497, %v4842, 0
    %v4855 = vsel %vm497, %v4844, 0
    %4857 = vmatprep.subr.mxu0 0.0
    %4858 = vmatpush1.msra.mxu0 %v4846
    %4859 = vmatprep.subr.mxu0 0.0
    %4860 = vmatpush1.msra.mxu0 %v4848
    %4861 = vmatprep.subr.mxu0 0.0
    %4862 = vmatpush1.msra.mxu0 0.0
    %4863 = vmatprep.subr.mxu0 0.0
    %4864 = vmatpush1.msra.mxu0 0.0
    %4865 = vmatprep.subr.mxu0 0.0
    %4866 = vmatpush1.msra.mxu0 0.0
    %4867 = vmatprep.subr.mxu0 0.0
    %4868 = vmatpush1.msra.mxu0 0.0
    %4869 = vmatprep.subr.mxu0 0.0
    %4870 = vmatpush1.msra.mxu0 0.0
    %4871 = vmatprep.subr.mxu0 0.0
    %4872 = vmatpush1.msra.mxu0 0.0
    %4873 = vmatprep.subr.mxu0 0.0
    %4874 = vmatpush1.msra.mxu0 0.0
    %4875 = vmatprep.subr.mxu0 0.0
    %4876 = vmatpush1.msra.mxu0 0.0
    %4877 = vmatprep.subr.mxu0 0.0
    %4878 = vmatpush1.msra.mxu0 0.0
    %4879 = vmatprep.subr.mxu0 0.0
    %4880 = vmatpush1.msra.mxu0 0.0
    %4881 = vmatprep.subr.mxu0 0.0
    %4882 = vmatpush1.msra.mxu0 0.0
    %4883 = vmatprep.subr.mxu0 0.0
    %4884 = vmatpush1.msra.mxu0 0.0
    %4885 = vmatprep.subr.mxu0 0.0
    %4886 = vmatpush1.msra.mxu0 0.0
    %4887 = vmatprep.subr.mxu0 0.0
    %4888 = vmatpush1.msra.mxu0 0.0
    %4889 = vmatprep.subr.mxu0 0.0
    %4890 = vmatpush1.msra.mxu0 0.0
    %4891 = vmatprep.subr.mxu0 0.0
    %4892 = vmatpush1.msra.mxu0 0.0
    %4893 = vmatprep.subr.mxu0 0.0
    %4894 = vmatpush1.msra.mxu0 0.0
    %4895 = vmatprep.subr.mxu0 0.0
    %4896 = vmatpush1.msra.mxu0 0.0
    %4897 = vmatprep.subr.mxu0 0.0
    %4898 = vmatpush1.msra.mxu0 0.0
    %4899 = vmatprep.subr.mxu0 0.0
    %4900 = vmatpush1.msra.mxu0 0.0
    %4901 = vmatprep.subr.mxu0 0.0
    %4902 = vmatpush1.msra.mxu0 0.0
    %4903 = vmatprep.subr.mxu0 0.0
    %4904 = vmatpush1.msra.mxu0 0.0
    %4905 = vmatprep.subr.mxu0 0.0
    %4906 = vmatpush1.msra.mxu0 0.0
    %4907 = vmatprep.subr.mxu0 0.0
    %4908 = vmatpush1.msra.mxu0 0.0
    %4909 = vmatprep.subr.mxu0 0.0
    %4910 = vmatpush1.msra.mxu0 0.0
    %4911 = vmatprep.subr.mxu0 0.0
    %4912 = vmatpush1.msra.mxu0 0.0
    %4913 = vmatprep.subr.mxu0 0.0
    %4914 = vmatpush1.msra.mxu0 0.0
    %4915 = vmatprep.subr.mxu0 0.0
    %4916 = vmatpush1.msra.mxu0 0.0
    %4917 = vmatprep.subr.mxu0 0.0
    %4918 = vmatpush1.msra.mxu0 0.0
    %4919 = vmatprep.subr.mxu0 0.0
    %4920 = vmatpush1.msra.mxu0 0.0
    %4921 = vmatprep.mubr.f32.mxu0 0.0
    %4922 = vmatmul.mubr.f32.gmra.mrb[0].mxu0 %v4852
    %v4923 = vpop.f32.mrb[0].mxu0
    %v4924 = vadd.f32 0.0, %v4923
    %v4925 = vpop.f32.mrb[0].mxu0
    %4926 = vmatprep.mubr.f32.mxu0 0.0
    %4927 = vmatmul.mubr.f32.gmra.mrb[0].mxu0 %v4855
    %v4928 = vpop.f32.mrb[0].mxu0
    %v4929 = vadd.f32 0.0, %v4928
    %v4930 = vpop.f32.mrb[0].mxu0
    %4931 = vdwg.mxu0
    %v4932 = vld [vmem:[%s144 + $0xe8] sm:$0xff]
    %v4934 = vsel %vm413, %v4924, 0
    %v4937 = vsel %vm413, %v4929, 0
    %4939 = vmatprep.subr.mxu0 0.0
    %4940 = vmatpush1.msra.mxu0 %v4932
    %4941 = vmatprep.subr.mxu0 0.0
    %4942 = vmatpush1.msra.mxu0 0.0
    %4943 = vmatprep.subr.mxu0 0.0
    %4944 = vmatpush1.msra.mxu0 0.0
    %4945 = vmatprep.subr.mxu0 0.0
    %4946 = vmatpush1.msra.mxu0 0.0
    %4947 = vmatprep.subr.mxu0 0.0
    %4948 = vmatpush1.msra.mxu0 0.0
    %4949 = vmatprep.subr.mxu0 0.0
    %4950 = vmatpush1.msra.mxu0 0.0
    %4951 = vmatprep.subr.mxu0 0.0
    %4952 = vmatpush1.msra.mxu0 0.0
    %4953 = vmatprep.subr.mxu0 0.0
    %4954 = vmatpush1.msra.mxu0 0.0
    %4955 = vmatprep.subr.mxu0 0.0
    %4956 = vmatpush1.msra.mxu0 0.0
    %4957 = vmatprep.subr.mxu0 0.0
    %4958 = vmatpush1.msra.mxu0 0.0
    %4959 = vmatprep.subr.mxu0 0.0
    %4960 = vmatpush1.msra.mxu0 0.0
    %4961 = vmatprep.subr.mxu0 0.0
    %4962 = vmatpush1.msra.mxu0 0.0
    %4963 = vmatprep.subr.mxu0 0.0
    %4964 = vmatpush1.msra.mxu0 0.0
    %4965 = vmatprep.subr.mxu0 0.0
    %4966 = vmatpush1.msra.mxu0 0.0
    %4967 = vmatprep.subr.mxu0 0.0
    %4968 = vmatpush1.msra.mxu0 0.0
    %4969 = vmatprep.subr.mxu0 0.0
    %4970 = vmatpush1.msra.mxu0 0.0
    %4971 = vmatprep.subr.mxu0 0.0
    %4972 = vmatpush1.msra.mxu0 0.0
    %4973 = vmatprep.subr.mxu0 0.0
    %4974 = vmatpush1.msra.mxu0 0.0
    %4975 = vmatprep.subr.mxu0 0.0
    %4976 = vmatpush1.msra.mxu0 0.0
    %4977 = vmatprep.subr.mxu0 0.0
    %4978 = vmatpush1.msra.mxu0 0.0
    %4979 = vmatprep.subr.mxu0 0.0
    %4980 = vmatpush1.msra.mxu0 0.0
    %4981 = vmatprep.subr.mxu0 0.0
    %4982 = vmatpush1.msra.mxu0 0.0
    %4983 = vmatprep.subr.mxu0 0.0
    %4984 = vmatpush1.msra.mxu0 0.0
    %4985 = vmatprep.subr.mxu0 0.0
    %4986 = vmatpush1.msra.mxu0 0.0
    %4987 = vmatprep.subr.mxu0 0.0
    %4988 = vmatpush1.msra.mxu0 0.0
    %4989 = vmatprep.subr.mxu0 0.0
    %4990 = vmatpush1.msra.mxu0 0.0
    %4991 = vmatprep.subr.mxu0 0.0
    %4992 = vmatpush1.msra.mxu0 0.0
    %4993 = vmatprep.subr.mxu0 0.0
    %4994 = vmatpush1.msra.mxu0 0.0
    %4995 = vmatprep.subr.mxu0 0.0
    %4996 = vmatpush1.msra.mxu0 0.0
    %4997 = vmatprep.subr.mxu0 0.0
    %4998 = vmatpush1.msra.mxu0 0.0
    %4999 = vmatprep.subr.mxu0 0.0
    %5000 = vmatpush1.msra.mxu0 0.0
    %5001 = vmatprep.subr.mxu0 0.0
    %5002 = vmatpush1.msra.mxu0 0.0
    %5003 = vmatprep.mubr.f32.mxu0 0.0
    %5004 = vmatmul.mubr.f32.gmra.mrb[0].mxu0 %v4934
    %v5005 = vpop.f32.mrb[0].mxu0
    %v5006 = vadd.f32 0.0, %v5005
    %v5007 = vpop.f32.mrb[0].mxu0
    %5008 = vmatprep.mubr.f32.mxu0 0.0
    %5009 = vmatmul.mubr.f32.gmra.mrb[0].mxu0 %v4937
    %v5010 = vpop.f32.mrb[0].mxu0
    %v5011 = vadd.f32 0.0, %v5010
    %v5012 = vpop.f32.mrb[0].mxu0
    %5013 = vdwg.mxu0
    %v5014 = vadd.f32 %v4730, %v5006
    %v5015 = vadd.f32 %v4731, %v5011
    %5016 = vrot.lane.b32.xlu0 %v4444, 112
    %v5017 = vpop.permute.xlu0 %5016
    %5018 = vrot.lane.b32.xlu0 %v4449, 112
    %v5019 = vpop.permute.xlu0 %5018
    %5020 = vrot.lane.b32.xlu0 %v244, 112
    %v5021 = vpop.permute.xlu0 %5020
    %5022 = vrot.lane.b32.xlu0 %v249, 112
    %v5023 = vpop.permute.xlu0 %5022
    %v5024 = vsel %vm413, %v5017, 0
    %v5026 = vsel %vm413, %v5019, 0
    %v5028 = vsel %vm413, %v5021, 0
    %v5030 = vsel %vm413, %v5023, 0
    %5032 = vmatprep.subr.mxu0 0.0
    %5033 = vmatpush1.xpose.msra.mxu0 %v5028
    %5034 = vmatprep.subr.mxu0 0.0
    %5035 = vmatpush1.xpose.msra.mxu0 %v5030
    %5036 = vmatprep.subr.mxu0 0.0
    %5037 = vmatpush1.xpose.msra.mxu0 0.0
    %5038 = vmatprep.subr.mxu0 0.0
    %5039 = vmatpush1.xpose.msra.mxu0 0.0
    %5040 = vmatprep.subr.mxu0 0.0
    %5041 = vmatpush1.xpose.msra.mxu0 0.0
    %5042 = vmatprep.subr.mxu0 0.0
    %5043 = vmatpush1.xpose.msra.mxu0 0.0
    %5044 = vmatprep.subr.mxu0 0.0
    %5045 = vmatpush1.xpose.msra.mxu0 0.0
    %5046 = vmatprep.subr.mxu0 0.0
    %5047 = vmatpush1.xpose.msra.mxu0 0.0
    %5048 = vmatprep.subr.mxu0 0.0
    %5049 = vmatpush1.xpose.msra.mxu0 0.0
    %5050 = vmatprep.subr.mxu0 0.0
    %5051 = vmatpush1.xpose.msra.mxu0 0.0
    %5052 = vmatprep.subr.mxu0 0.0
    %5053 = vmatpush1.xpose.msra.mxu0 0.0
    %5054 = vmatprep.subr.mxu0 0.0
    %5055 = vmatpush1.xpose.msra.mxu0 0.0
    %5056 = vmatprep.subr.mxu0 0.0
    %5057 = vmatpush1.xpose.msra.mxu0 0.0
    %5058 = vmatprep.subr.mxu0 0.0
    %5059 = vmatpush1.xpose.msra.mxu0 0.0
    %5060 = vmatprep.subr.mxu0 0.0
    %5061 = vmatpush1.xpose.msra.mxu0 0.0
    %5062 = vmatprep.subr.mxu0 0.0
    %5063 = vmatpush1.xpose.msra.mxu0 0.0
    %5064 = vmatprep.subr.mxu0 0.0
    %5065 = vmatpush1.xpose.msra.mxu0 0.0
    %5066 = vmatprep.subr.mxu0 0.0
    %5067 = vmatpush1.xpose.msra.mxu0 0.0
    %5068 = vmatprep.subr.mxu0 0.0
    %5069 = vmatpush1.xpose.msra.mxu0 0.0
    %5070 = vmatprep.subr.mxu0 0.0
    %5071 = vmatpush1.xpose.msra.mxu0 0.0
    %5072 = vmatprep.subr.mxu0 0.0
    %5073 = vmatpush1.xpose.msra.mxu0 0.0
    %5074 = vmatprep.subr.mxu0 0.0
    %5075 = vmatpush1.xpose.msra.mxu0 0.0
    %5076 = vmatprep.subr.mxu0 0.0
    %5077 = vmatpush1.xpose.msra.mxu0 0.0
    %5078 = vmatprep.subr.mxu0 0.0
    %5079 = vmatpush1.xpose.msra.mxu0 0.0
    %5080 = vmatprep.subr.mxu0 0.0
    %5081 = vmatpush1.xpose.msra.mxu0 0.0
    %5082 = vmatprep.subr.mxu0 0.0
    %5083 = vmatpush1.xpose.msra.mxu0 0.0
    %5084 = vmatprep.subr.mxu0 0.0
    %5085 = vmatpush1.xpose.msra.mxu0 0.0
    %5086 = vmatprep.subr.mxu0 0.0
    %5087 = vmatpush1.xpose.msra.mxu0 0.0
    %5088 = vmatprep.subr.mxu0 0.0
    %5089 = vmatpush1.xpose.msra.mxu0 0.0
    %5090 = vmatprep.subr.mxu0 0.0
    %5091 = vmatpush1.xpose.msra.mxu0 0.0
    %5092 = vmatprep.subr.mxu0 0.0
    %5093 = vmatpush1.xpose.msra.mxu0 0.0
    %5094 = vmatprep.subr.mxu0 0.0
    %5095 = vmatpush1.xpose.msra.mxu0 0.0
    %5096 = vmatprep.mubr.f32.mxu0 0.0
    %5097 = vmatmul.mubr.f32.gmra.mrb[0].mxu0 %v5024
    %v5098 = vpop.f32.mrb[0].mxu0
    %v5099 = vadd.f32 %v28, %v5098
    %v5100 = vpop.f32.mrb[0].mxu0
    %5101 = vmatprep.mubr.f32.mxu0 0.0
    %5102 = vmatmul.mubr.f32.gmra.mrb[0].mxu0 %v5026
    %v5103 = vpop.f32.mrb[0].mxu0
    %v5104 = vadd.f32 %v29, %v5103
    %v5105 = vpop.f32.mrb[0].mxu0
    %5106 = vdwg.mxu0
    %v5107 = vsel %vm497, %v5099, -inf
    %5108 = vmax.xlane.f32.xlu0 %v5107
    %v5109 = vpop.xlane.xlu0 %5108
    %v5110 = vsel %vm497, %v5104, -inf
    %5111 = vmax.xlane.f32.xlu0 %v5110
    %v5112 = vpop.xlane.xlu0 %5111
    %v5113 = vsub.f32 %v5099, %v5109
    %v5114 = vsub.f32 %v5104, %v5112
    %v5115 = vmul.f32 %v5113, 1.442695
    %v5116 = vpow.pop %v5115
    %v5117 = vmul.f32 %v5114, 1.442695
    %v5118 = vpow.pop %v5117
    %v5119 = vsel %vm497, %v5116, 0.0
    %5120 = vadd.xlane.f32.xlu0 %v5119
    %v5121 = vpop.xlane.xlu0 %5120
    %v5122 = vsel %vm497, %v5118, 0.0
    %5123 = vadd.xlane.f32.xlu0 %v5122
    %v5124 = vpop.xlane.xlu0 %5123
    %v5125 = vrcp.pop %v5121
    %v5126 = vmul.f32 %v5116, %v5125
    %v5127 = vrcp.pop %v5124
    %v5128 = vmul.f32 %v5118, %v5127
    %5129 = vrot.lane.b32.xlu0 %v244, 80
    %v5130 = vpop.permute.xlu0 %5129
    %5131 = vrot.lane.b32.xlu0 %v249, 80
    %v5132 = vpop.permute.xlu0 %5131
    %v5136 = vsel %vm497, %v5126, 0
    %v5139 = vsel %vm497, %v5128, 0
    %5141 = vmatprep.subr.mxu0 0.0
    %5142 = vmatpush1.msra.mxu0 %v5130
    %5143 = vmatprep.subr.mxu0 0.0
    %5144 = vmatpush1.msra.mxu0 %v5132
    %5145 = vmatprep.subr.mxu0 0.0
    %5146 = vmatpush1.msra.mxu0 0.0
    %5147 = vmatprep.subr.mxu0 0.0
    %5148 = vmatpush1.msra.mxu0 0.0
    %5149 = vmatprep.subr.mxu0 0.0
    %5150 = vmatpush1.msra.mxu0 0.0
    %5151 = vmatprep.subr.mxu0 0.0
    %5152 = vmatpush1.msra.mxu0 0.0
    %5153 = vmatprep.subr.mxu0 0.0
    %5154 = vmatpush1.msra.mxu0 0.0
    %5155 = vmatprep.subr.mxu0 0.0
    %5156 = vmatpush1.msra.mxu0 0.0
    %5157 = vmatprep.subr.mxu0 0.0
    %5158 = vmatpush1.msra.mxu0 0.0
    %5159 = vmatprep.subr.mxu0 0.0
    %5160 = vmatpush1.msra.mxu0 0.0
    %5161 = vmatprep.subr.mxu0 0.0
    %5162 = vmatpush1.msra.mxu0 0.0
    %5163 = vmatprep.subr.mxu0 0.0
    %5164 = vmatpush1.msra.mxu0 0.0
    %5165 = vmatprep.subr.mxu0 0.0
    %5166 = vmatpush1.msra.mxu0 0.0
    %5167 = vmatprep.subr.mxu0 0.0
    %5168 = vmatpush1.msra.mxu0 0.0
    %5169 = vmatprep.subr.mxu0 0.0
    %5170 = vmatpush1.msra.mxu0 0.0
    %5171 = vmatprep.subr.mxu0 0.0
    %5172 = vmatpush1.msra.mxu0 0.0
    %5173 = vmatprep.subr.mxu0 0.0
    %5174 = vmatpush1.msra.mxu0 0.0
    %5175 = vmatprep.subr.mxu0 0.0
    %5176 = vmatpush1.msra.mxu0 0.0
    %5177 = vmatprep.subr.mxu0 0.0
    %5178 = vmatpush1.msra.mxu0 0.0
    %5179 = vmatprep.subr.mxu0 0.0
    %5180 = vmatpush1.msra.mxu0 0.0
    %5181 = vmatprep.subr.mxu0 0.0
    %5182 = vmatpush1.msra.mxu0 0.0
    %5183 = vmatprep.subr.mxu0 0.0
    %5184 = vmatpush1.msra.mxu0 0.0
    %5185 = vmatprep.subr.mxu0 0.0
    %5186 = vmatpush1.msra.mxu0 0.0
    %5187 = vmatprep.subr.mxu0 0.0
    %5188 = vmatpush1.msra.mxu0 0.0
    %5189 = vmatprep.subr.mxu0 0.0
    %5190 = vmatpush1.msra.mxu0 0.0
    %5191 = vmatprep.subr.mxu0 0.0
    %5192 = vmatpush1.msra.mxu0 0.0
    %5193 = vmatprep.subr.mxu0 0.0
    %5194 = vmatpush1.msra.mxu0 0.0
    %5195 = vmatprep.subr.mxu0 0.0
    %5196 = vmatpush1.msra.mxu0 0.0
    %5197 = vmatprep.subr.mxu0 0.0
    %5198 = vmatpush1.msra.mxu0 0.0
    %5199 = vmatprep.subr.mxu0 0.0
    %5200 = vmatpush1.msra.mxu0 0.0
    %5201 = vmatprep.subr.mxu0 0.0
    %5202 = vmatpush1.msra.mxu0 0.0
    %5203 = vmatprep.subr.mxu0 0.0
    %5204 = vmatpush1.msra.mxu0 0.0
    %5205 = vmatprep.mubr.f32.mxu0 0.0
    %5206 = vmatmul.mubr.f32.gmra.mrb[0].mxu0 %v5136
    %v5207 = vpop.f32.mrb[0].mxu0
    %v5208 = vadd.f32 0.0, %v5207
    %v5209 = vpop.f32.mrb[0].mxu0
    %5210 = vmatprep.mubr.f32.mxu0 0.0
    %5211 = vmatmul.mubr.f32.gmra.mrb[0].mxu0 %v5139
    %v5212 = vpop.f32.mrb[0].mxu0
    %v5213 = vadd.f32 0.0, %v5212
    %v5214 = vpop.f32.mrb[0].mxu0
    %5215 = vdwg.mxu0
    %v5216 = vld [vmem:[%s144 + $0xf0] sm:$0xff]
    %v5218 = vsel %vm413, %v5208, 0
    %v5221 = vsel %vm413, %v5213, 0
    %5223 = vmatprep.subr.mxu0 0.0
    %5224 = vmatpush1.msra.mxu0 %v5216
    %5225 = vmatprep.subr.mxu0 0.0
    %5226 = vmatpush1.msra.mxu0 0.0
    %5227 = vmatprep.subr.mxu0 0.0
    %5228 = vmatpush1.msra.mxu0 0.0
    %5229 = vmatprep.subr.mxu0 0.0
    %5230 = vmatpush1.msra.mxu0 0.0
    %5231 = vmatprep.subr.mxu0 0.0
    %5232 = vmatpush1.msra.mxu0 0.0
    %5233 = vmatprep.subr.mxu0 0.0
    %5234 = vmatpush1.msra.mxu0 0.0
    %5235 = vmatprep.subr.mxu0 0.0
    %5236 = vmatpush1.msra.mxu0 0.0
    %5237 = vmatprep.subr.mxu0 0.0
    %5238 = vmatpush1.msra.mxu0 0.0
    %5239 = vmatprep.subr.mxu0 0.0
    %5240 = vmatpush1.msra.mxu0 0.0
    %5241 = vmatprep.subr.mxu0 0.0
    %5242 = vmatpush1.msra.mxu0 0.0
    %5243 = vmatprep.subr.mxu0 0.0
    %5244 = vmatpush1.msra.mxu0 0.0
    %5245 = vmatprep.subr.mxu0 0.0
    %5246 = vmatpush1.msra.mxu0 0.0
    %5247 = vmatprep.subr.mxu0 0.0
    %5248 = vmatpush1.msra.mxu0 0.0
    %5249 = vmatprep.subr.mxu0 0.0
    %5250 = vmatpush1.msra.mxu0 0.0
    %5251 = vmatprep.subr.mxu0 0.0
    %5252 = vmatpush1.msra.mxu0 0.0
    %5253 = vmatprep.subr.mxu0 0.0
    %5254 = vmatpush1.msra.mxu0 0.0
    %5255 = vmatprep.subr.mxu0 0.0
    %5256 = vmatpush1.msra.mxu0 0.0
    %5257 = vmatprep.subr.mxu0 0.0
    %5258 = vmatpush1.msra.mxu0 0.0
    %5259 = vmatprep.subr.mxu0 0.0
    %5260 = vmatpush1.msra.mxu0 0.0
    %5261 = vmatprep.subr.mxu0 0.0
    %5262 = vmatpush1.msra.mxu0 0.0
    %5263 = vmatprep.subr.mxu0 0.0
    %5264 = vmatpush1.msra.mxu0 0.0
    %5265 = vmatprep.subr.mxu0 0.0
    %5266 = vmatpush1.msra.mxu0 0.0
    %5267 = vmatprep.subr.mxu0 0.0
    %5268 = vmatpush1.msra.mxu0 0.0
    %5269 = vmatprep.subr.mxu0 0.0
    %5270 = vmatpush1.msra.mxu0 0.0
    %5271 = vmatprep.subr.mxu0 0.0
    %5272 = vmatpush1.msra.mxu0 0.0
    %5273 = vmatprep.subr.mxu0 0.0
    %5274 = vmatpush1.msra.mxu0 0.0
    %5275 = vmatprep.subr.mxu0 0.0
    %5276 = vmatpush1.msra.mxu0 0.0
    %5277 = vmatprep.subr.mxu0 0.0
    %5278 = vmatpush1.msra.mxu0 0.0
    %5279 = vmatprep.subr.mxu0 0.0
    %5280 = vmatpush1.msra.mxu0 0.0
    %5281 = vmatprep.subr.mxu0 0.0
    %5282 = vmatpush1.msra.mxu0 0.0
    %5283 = vmatprep.subr.mxu0 0.0
    %5284 = vmatpush1.msra.mxu0 0.0
    %5285 = vmatprep.subr.mxu0 0.0
    %5286 = vmatpush1.msra.mxu0 0.0
    %5287 = vmatprep.mubr.f32.mxu0 0.0
    %5288 = vmatmul.mubr.f32.gmra.mrb[0].mxu0 %v5218
    %v5289 = vpop.f32.mrb[0].mxu0
    %v5290 = vadd.f32 0.0, %v5289
    %v5291 = vpop.f32.mrb[0].mxu0
    %5292 = vmatprep.mubr.f32.mxu0 0.0
    %5293 = vmatmul.mubr.f32.gmra.mrb[0].mxu0 %v5221
    %v5294 = vpop.f32.mrb[0].mxu0
    %v5295 = vadd.f32 0.0, %v5294
    %v5296 = vpop.f32.mrb[0].mxu0
    %5297 = vdwg.mxu0
    %v5298 = vadd.f32 %v5014, %v5290
    %v5299 = vadd.f32 %v5015, %v5295
    %5300 = vrot.lane.b32.xlu0 %v4444, 104
    %v5301 = vpop.permute.xlu0 %5300
    %5302 = vrot.lane.b32.xlu0 %v4449, 104
    %v5303 = vpop.permute.xlu0 %5302
    %5304 = vrot.lane.b32.xlu0 %v244, 104
    %v5305 = vpop.permute.xlu0 %5304
    %5306 = vrot.lane.b32.xlu0 %v249, 104
    %v5307 = vpop.permute.xlu0 %5306
    %v5308 = vsel %vm413, %v5301, 0
    %v5310 = vsel %vm413, %v5303, 0
    %v5312 = vsel %vm413, %v5305, 0
    %v5314 = vsel %vm413, %v5307, 0
    %5316 = vmatprep.subr.mxu0 0.0
    %5317 = vmatpush1.xpose.msra.mxu0 %v5312
    %5318 = vmatprep.subr.mxu0 0.0
    %5319 = vmatpush1.xpose.msra.mxu0 %v5314
    %5320 = vmatprep.subr.mxu0 0.0
    %5321 = vmatpush1.xpose.msra.mxu0 0.0
    %5322 = vmatprep.subr.mxu0 0.0
    %5323 = vmatpush1.xpose.msra.mxu0 0.0
    %5324 = vmatprep.subr.mxu0 0.0
    %5325 = vmatpush1.xpose.msra.mxu0 0.0
    %5326 = vmatprep.subr.mxu0 0.0
    %5327 = vmatpush1.xpose.msra.mxu0 0.0
    %5328 = vmatprep.subr.mxu0 0.0
    %5329 = vmatpush1.xpose.msra.mxu0 0.0
    %5330 = vmatprep.subr.mxu0 0.0
    %5331 = vmatpush1.xpose.msra.mxu0 0.0
    %5332 = vmatprep.subr.mxu0 0.0
    %5333 = vmatpush1.xpose.msra.mxu0 0.0
    %5334 = vmatprep.subr.mxu0 0.0
    %5335 = vmatpush1.xpose.msra.mxu0 0.0
    %5336 = vmatprep.subr.mxu0 0.0
    %5337 = vmatpush1.xpose.msra.mxu0 0.0
    %5338 = vmatprep.subr.mxu0 0.0
    %5339 = vmatpush1.xpose.msra.mxu0 0.0
    %5340 = vmatprep.subr.mxu0 0.0
    %5341 = vmatpush1.xpose.msra.mxu0 0.0
    %5342 = vmatprep.subr.mxu0 0.0
    %5343 = vmatpush1.xpose.msra.mxu0 0.0
    %5344 = vmatprep.subr.mxu0 0.0
    %5345 = vmatpush1.xpose.msra.mxu0 0.0
    %5346 = vmatprep.subr.mxu0 0.0
    %5347 = vmatpush1.xpose.msra.mxu0 0.0
    %5348 = vmatprep.subr.mxu0 0.0
    %5349 = vmatpush1.xpose.msra.mxu0 0.0
    %5350 = vmatprep.subr.mxu0 0.0
    %5351 = vmatpush1.xpose.msra.mxu0 0.0
    %5352 = vmatprep.subr.mxu0 0.0
    %5353 = vmatpush1.xpose.msra.mxu0 0.0
    %5354 = vmatprep.subr.mxu0 0.0
    %5355 = vmatpush1.xpose.msra.mxu0 0.0
    %5356 = vmatprep.subr.mxu0 0.0
    %5357 = vmatpush1.xpose.msra.mxu0 0.0
    %5358 = vmatprep.subr.mxu0 0.0
    %5359 = vmatpush1.xpose.msra.mxu0 0.0
    %5360 = vmatprep.subr.mxu0 0.0
    %5361 = vmatpush1.xpose.msra.mxu0 0.0
    %5362 = vmatprep.subr.mxu0 0.0
    %5363 = vmatpush1.xpose.msra.mxu0 0.0
    %5364 = vmatprep.subr.mxu0 0.0
    %5365 = vmatpush1.xpose.msra.mxu0 0.0
    %5366 = vmatprep.subr.mxu0 0.0
    %5367 = vmatpush1.xpose.msra.mxu0 0.0
    %5368 = vmatprep.subr.mxu0 0.0
    %5369 = vmatpush1.xpose.msra.mxu0 0.0
    %5370 = vmatprep.subr.mxu0 0.0
    %5371 = vmatpush1.xpose.msra.mxu0 0.0
    %5372 = vmatprep.subr.mxu0 0.0
    %5373 = vmatpush1.xpose.msra.mxu0 0.0
    %5374 = vmatprep.subr.mxu0 0.0
    %5375 = vmatpush1.xpose.msra.mxu0 0.0
    %5376 = vmatprep.subr.mxu0 0.0
    %5377 = vmatpush1.xpose.msra.mxu0 0.0
    %5378 = vmatprep.subr.mxu0 0.0
    %5379 = vmatpush1.xpose.msra.mxu0 0.0
    %5380 = vmatprep.mubr.f32.mxu0 0.0
    %5381 = vmatmul.mubr.f32.gmra.mrb[0].mxu0 %v5308
    %v5382 = vpop.f32.mrb[0].mxu0
    %v5383 = vadd.f32 %v28, %v5382
    %v5384 = vpop.f32.mrb[0].mxu0
    %5385 = vmatprep.mubr.f32.mxu0 0.0
    %5386 = vmatmul.mubr.f32.gmra.mrb[0].mxu0 %v5310
    %v5387 = vpop.f32.mrb[0].mxu0
    %v5388 = vadd.f32 %v29, %v5387
    %v5389 = vpop.f32.mrb[0].mxu0
    %5390 = vdwg.mxu0
    %v5391 = vsel %vm497, %v5383, -inf
    %5392 = vmax.xlane.f32.xlu0 %v5391
    %v5393 = vpop.xlane.xlu0 %5392
    %v5394 = vsel %vm497, %v5388, -inf
    %5395 = vmax.xlane.f32.xlu0 %v5394
    %v5396 = vpop.xlane.xlu0 %5395
    %v5397 = vsub.f32 %v5383, %v5393
    %v5398 = vsub.f32 %v5388, %v5396
    %v5399 = vmul.f32 %v5397, 1.442695
    %v5400 = vpow.pop %v5399
    %v5401 = vmul.f32 %v5398, 1.442695
    %v5402 = vpow.pop %v5401
    %v5403 = vsel %vm497, %v5400, 0.0
    %5404 = vadd.xlane.f32.xlu0 %v5403
    %v5405 = vpop.xlane.xlu0 %5404
    %v5406 = vsel %vm497, %v5402, 0.0
    %5407 = vadd.xlane.f32.xlu0 %v5406
    %v5408 = vpop.xlane.xlu0 %5407
    %v5409 = vrcp.pop %v5405
    %v5410 = vmul.f32 %v5400, %v5409
    %v5411 = vrcp.pop %v5408
    %v5412 = vmul.f32 %v5402, %v5411
    %5413 = vrot.lane.b32.xlu0 %v244, 72
    %v5414 = vpop.permute.xlu0 %5413
    %5415 = vrot.lane.b32.xlu0 %v249, 72
    %v5416 = vpop.permute.xlu0 %5415
    %v5420 = vsel %vm497, %v5410, 0
    %v5423 = vsel %vm497, %v5412, 0
    %5425 = vmatprep.subr.mxu0 0.0
    %5426 = vmatpush1.msra.mxu0 %v5414
    %5427 = vmatprep.subr.mxu0 0.0
    %5428 = vmatpush1.msra.mxu0 %v5416
    %5429 = vmatprep.subr.mxu0 0.0
    %5430 = vmatpush1.msra.mxu0 0.0
    %5431 = vmatprep.subr.mxu0 0.0
    %5432 = vmatpush1.msra.mxu0 0.0
    %5433 = vmatprep.subr.mxu0 0.0
    %5434 = vmatpush1.msra.mxu0 0.0
    %5435 = vmatprep.subr.mxu0 0.0
    %5436 = vmatpush1.msra.mxu0 0.0
    %5437 = vmatprep.subr.mxu0 0.0
    %5438 = vmatpush1.msra.mxu0 0.0
    %5439 = vmatprep.subr.mxu0 0.0
    %5440 = vmatpush1.msra.mxu0 0.0
    %5441 = vmatprep.subr.mxu0 0.0
    %5442 = vmatpush1.msra.mxu0 0.0
    %5443 = vmatprep.subr.mxu0 0.0
    %5444 = vmatpush1.msra.mxu0 0.0
    %5445 = vmatprep.subr.mxu0 0.0
    %5446 = vmatpush1.msra.mxu0 0.0
    %5447 = vmatprep.subr.mxu0 0.0
    %5448 = vmatpush1.msra.mxu0 0.0
    %5449 = vmatprep.subr.mxu0 0.0
    %5450 = vmatpush1.msra.mxu0 0.0
    %5451 = vmatprep.subr.mxu0 0.0
    %5452 = vmatpush1.msra.mxu0 0.0
    %5453 = vmatprep.subr.mxu0 0.0
    %5454 = vmatpush1.msra.mxu0 0.0
    %5455 = vmatprep.subr.mxu0 0.0
    %5456 = vmatpush1.msra.mxu0 0.0
    %5457 = vmatprep.subr.mxu0 0.0
    %5458 = vmatpush1.msra.mxu0 0.0
    %5459 = vmatprep.subr.mxu0 0.0
    %5460 = vmatpush1.msra.mxu0 0.0
    %5461 = vmatprep.subr.mxu0 0.0
    %5462 = vmatpush1.msra.mxu0 0.0
    %5463 = vmatprep.subr.mxu0 0.0
    %5464 = vmatpush1.msra.mxu0 0.0
    %5465 = vmatprep.subr.mxu0 0.0
    %5466 = vmatpush1.msra.mxu0 0.0
    %5467 = vmatprep.subr.mxu0 0.0
    %5468 = vmatpush1.msra.mxu0 0.0
    %5469 = vmatprep.subr.mxu0 0.0
    %5470 = vmatpush1.msra.mxu0 0.0
    %5471 = vmatprep.subr.mxu0 0.0
    %5472 = vmatpush1.msra.mxu0 0.0
    %5473 = vmatprep.subr.mxu0 0.0
    %5474 = vmatpush1.msra.mxu0 0.0
    %5475 = vmatprep.subr.mxu0 0.0
    %5476 = vmatpush1.msra.mxu0 0.0
    %5477 = vmatprep.subr.mxu0 0.0
    %5478 = vmatpush1.msra.mxu0 0.0
    %5479 = vmatprep.subr.mxu0 0.0
    %5480 = vmatpush1.msra.mxu0 0.0
    %5481 = vmatprep.subr.mxu0 0.0
    %5482 = vmatpush1.msra.mxu0 0.0
    %5483 = vmatprep.subr.mxu0 0.0
    %5484 = vmatpush1.msra.mxu0 0.0
    %5485 = vmatprep.subr.mxu0 0.0
    %5486 = vmatpush1.msra.mxu0 0.0
    %5487 = vmatprep.subr.mxu0 0.0
    %5488 = vmatpush1.msra.mxu0 0.0
    %5489 = vmatprep.mubr.f32.mxu0 0.0
    %5490 = vmatmul.mubr.f32.gmra.mrb[0].mxu0 %v5420
    %v5491 = vpop.f32.mrb[0].mxu0
    %v5492 = vadd.f32 0.0, %v5491
    %v5493 = vpop.f32.mrb[0].mxu0
    %5494 = vmatprep.mubr.f32.mxu0 0.0
    %5495 = vmatmul.mubr.f32.gmra.mrb[0].mxu0 %v5423
    %v5496 = vpop.f32.mrb[0].mxu0
    %v5497 = vadd.f32 0.0, %v5496
    %v5498 = vpop.f32.mrb[0].mxu0
    %5499 = vdwg.mxu0
    %v5500 = vld [vmem:[%s144 + $0xf8] sm:$0xff]
    %v5502 = vsel %vm413, %v5492, 0
    %v5505 = vsel %vm413, %v5497, 0
    %5507 = vmatprep.subr.mxu0 0.0
    %5508 = vmatpush1.msra.mxu0 %v5500
    %5509 = vmatprep.subr.mxu0 0.0
    %5510 = vmatpush1.msra.mxu0 0.0
    %5511 = vmatprep.subr.mxu0 0.0
    %5512 = vmatpush1.msra.mxu0 0.0
    %5513 = vmatprep.subr.mxu0 0.0
    %5514 = vmatpush1.msra.mxu0 0.0
    %5515 = vmatprep.subr.mxu0 0.0
    %5516 = vmatpush1.msra.mxu0 0.0
    %5517 = vmatprep.subr.mxu0 0.0
    %5518 = vmatpush1.msra.mxu0 0.0
    %5519 = vmatprep.subr.mxu0 0.0
    %5520 = vmatpush1.msra.mxu0 0.0
    %5521 = vmatprep.subr.mxu0 0.0
    %5522 = vmatpush1.msra.mxu0 0.0
    %5523 = vmatprep.subr.mxu0 0.0
    %5524 = vmatpush1.msra.mxu0 0.0
    %5525 = vmatprep.subr.mxu0 0.0
    %5526 = vmatpush1.msra.mxu0 0.0
    %5527 = vmatprep.subr.mxu0 0.0
    %5528 = vmatpush1.msra.mxu0 0.0
    %5529 = vmatprep.subr.mxu0 0.0
    %5530 = vmatpush1.msra.mxu0 0.0
    %5531 = vmatprep.subr.mxu0 0.0
    %5532 = vmatpush1.msra.mxu0 0.0
    %5533 = vmatprep.subr.mxu0 0.0
    %5534 = vmatpush1.msra.mxu0 0.0
    %5535 = vmatprep.subr.mxu0 0.0
    %5536 = vmatpush1.msra.mxu0 0.0
    %5537 = vmatprep.subr.mxu0 0.0
    %5538 = vmatpush1.msra.mxu0 0.0
    %5539 = vmatprep.subr.mxu0 0.0
    %5540 = vmatpush1.msra.mxu0 0.0
    %5541 = vmatprep.subr.mxu0 0.0
    %5542 = vmatpush1.msra.mxu0 0.0
    %5543 = vmatprep.subr.mxu0 0.0
    %5544 = vmatpush1.msra.mxu0 0.0
    %5545 = vmatprep.subr.mxu0 0.0
    %5546 = vmatpush1.msra.mxu0 0.0
    %5547 = vmatprep.subr.mxu0 0.0
    %5548 = vmatpush1.msra.mxu0 0.0
    %5549 = vmatprep.subr.mxu0 0.0
    %5550 = vmatpush1.msra.mxu0 0.0
    %5551 = vmatprep.subr.mxu0 0.0
    %5552 = vmatpush1.msra.mxu0 0.0
    %5553 = vmatprep.subr.mxu0 0.0
    %5554 = vmatpush1.msra.mxu0 0.0
    %5555 = vmatprep.subr.mxu0 0.0
    %5556 = vmatpush1.msra.mxu0 0.0
    %5557 = vmatprep.subr.mxu0 0.0
    %5558 = vmatpush1.msra.mxu0 0.0
    %5559 = vmatprep.subr.mxu0 0.0
    %5560 = vmatpush1.msra.mxu0 0.0
    %5561 = vmatprep.subr.mxu0 0.0
    %5562 = vmatpush1.msra.mxu0 0.0
    %5563 = vmatprep.subr.mxu0 0.0
    %5564 = vmatpush1.msra.mxu0 0.0
    %5565 = vmatprep.subr.mxu0 0.0
    %5566 = vmatpush1.msra.mxu0 0.0
    %5567 = vmatprep.subr.mxu0 0.0
    %5568 = vmatpush1.msra.mxu0 0.0
    %5569 = vmatprep.subr.mxu0 0.0
    %5570 = vmatpush1.msra.mxu0 0.0
    %5571 = vmatprep.mubr.f32.mxu0 0.0
    %5572 = vmatmul.mubr.f32.gmra.mrb[0].mxu0 %v5502
    %v5573 = vpop.f32.mrb[0].mxu0
    %v5574 = vadd.f32 0.0, %v5573
    %v5575 = vpop.f32.mrb[0].mxu0
    %5576 = vmatprep.mubr.f32.mxu0 0.0
    %5577 = vmatmul.mubr.f32.gmra.mrb[0].mxu0 %v5505
    %v5578 = vpop.f32.mrb[0].mxu0
    %v5579 = vadd.f32 0.0, %v5578
    %v5580 = vpop.f32.mrb[0].mxu0
    %5581 = vdwg.mxu0
    %v5582 = vadd.f32 %v5298, %v5574
    %v5583 = vadd.f32 %v5299, %v5579
    %v5584 = vld [vmem:[%s5 + $0x5] sm:$0x1]
    %v5585 = vmul.f32 %v5582, %v5582
    %v5586 = vmul.f32 %v5583, %v5583
    %v5587 = vsel %vm38, %v5585, 0.0
    %5588 = vadd.xlane.f32.xlu0 %v5587
    %v5589 = vpop.xlane.xlu0 %5588
    %v5590 = vsel %vm38, %v5586, 0.0
    %5591 = vadd.xlane.f32.xlu0 %v5590
    %v5592 = vpop.xlane.xlu0 %5591
    %v5593 = vmul.f32 %v5589, %v261
    %v5594 = vmul.f32 %v5592, %v261
    %v5595 = vadd.f32 %v5593, 1e-06
    %v5596 = vadd.f32 %v5594, 1e-06
    %v5597 = vrsqrt.pop %v5595
    %v5598 = vrsqrt.pop %v5596
    %v5599 = vmul.f32 %v5582, %v5597
    %v5600 = vmul.f32 %v5583, %v5598
    %v5601 = vlaneseq
    %v5602 = vshrl.u32 %v5601, 7
    %v5603 = vsub.s32 0, %v5602
    %v5604 = vrot.slane %v5584, %v5603
    %v5605 = vmul.f32 %v5599, %v5604
    %v5606 = vmul.f32 %v5600, %v5604
    %v5607 = vld [vmem:[%s144 + $0x80] sm:$0xff]
    %v5608 = vld [vmem:[%s144 + $0x88] sm:$0xff]
    %v5609 = vld [vmem:[%s144 + $0x90] sm:$0xff]
    %v5610 = vld [vmem:[%s144 + $0x98] sm:$0xff]
    %v5611 = vld [vmem:[%s144 + $0xa0] sm:$0xff]
    %v5612 = vld [vmem:[%s144 + $0xa8] sm:$0xff]
    %v5613 = vld [vmem:[%s144 + $0xb0] sm:$0xff]
    %v5614 = vld [vmem:[%s144 + $0xb8] sm:$0xff]
    %v5616 = vsel %vm38, %v5605, 0
    %v5619 = vsel %vm38, %v5606, 0
    %v5622 = vsel %vm38, %v5607, 0
    %v5625 = vsel %vm38, %v5608, 0
    %v5628 = vsel %vm38, %v5609, 0
    %v5631 = vsel %vm38, %v5610, 0
    %v5634 = vsel %vm38, %v5611, 0
    %v5637 = vsel %vm38, %v5612, 0
    %v5640 = vsel %vm38, %v5613, 0
    %v5643 = vsel %vm38, %v5614, 0
    %5645 = vmatprep.subr.mxu0 0.0
    %5646 = vmatpush1.xpose.msra.mxu0 %v5622
    %5647 = vmatprep.subr.mxu0 0.0
    %5648 = vmatpush1.xpose.msra.mxu0 %v5625
    %5649 = vmatprep.subr.mxu0 0.0
    %5650 = vmatpush1.xpose.msra.mxu0 %v5628
    %5651 = vmatprep.subr.mxu0 0.0
    %5652 = vmatpush1.xpose.msra.mxu0 %v5631
    %5653 = vmatprep.subr.mxu0 0.0
    %5654 = vmatpush1.xpose.msra.mxu0 %v5634
    %5655 = vmatprep.subr.mxu0 0.0
    %5656 = vmatpush1.xpose.msra.mxu0 %v5637
    %5657 = vmatprep.subr.mxu0 0.0
    %5658 = vmatpush1.xpose.msra.mxu0 %v5640
    %5659 = vmatprep.subr.mxu0 0.0
    %5660 = vmatpush1.xpose.msra.mxu0 %v5643
    %5661 = vmatprep.subr.mxu0 0.0
    %5662 = vmatpush1.xpose.msra.mxu0 0.0
    %5663 = vmatprep.subr.mxu0 0.0
    %5664 = vmatpush1.xpose.msra.mxu0 0.0
    %5665 = vmatprep.subr.mxu0 0.0
    %5666 = vmatpush1.xpose.msra.mxu0 0.0
    %5667 = vmatprep.subr.mxu0 0.0
    %5668 = vmatpush1.xpose.msra.mxu0 0.0
    %5669 = vmatprep.subr.mxu0 0.0
    %5670 = vmatpush1.xpose.msra.mxu0 0.0
    %5671 = vmatprep.subr.mxu0 0.0
    %5672 = vmatpush1.xpose.msra.mxu0 0.0
    %5673 = vmatprep.subr.mxu0 0.0
    %5674 = vmatpush1.xpose.msra.mxu0 0.0
    %5675 = vmatprep.subr.mxu0 0.0
    %5676 = vmatpush1.xpose.msra.mxu0 0.0
    %5677 = vmatprep.subr.mxu0 0.0
    %5678 = vmatpush1.xpose.msra.mxu0 0.0
    %5679 = vmatprep.subr.mxu0 0.0
    %5680 = vmatpush1.xpose.msra.mxu0 0.0
    %5681 = vmatprep.subr.mxu0 0.0
    %5682 = vmatpush1.xpose.msra.mxu0 0.0
    %5683 = vmatprep.subr.mxu0 0.0
    %5684 = vmatpush1.xpose.msra.mxu0 0.0
    %5685 = vmatprep.subr.mxu0 0.0
    %5686 = vmatpush1.xpose.msra.mxu0 0.0
    %5687 = vmatprep.subr.mxu0 0.0
    %5688 = vmatpush1.xpose.msra.mxu0 0.0
    %5689 = vmatprep.subr.mxu0 0.0
    %5690 = vmatpush1.xpose.msra.mxu0 0.0
    %5691 = vmatprep.subr.mxu0 0.0
    %5692 = vmatpush1.xpose.msra.mxu0 0.0
    %5693 = vmatprep.subr.mxu0 0.0
    %5694 = vmatpush1.xpose.msra.mxu0 0.0
    %5695 = vmatprep.subr.mxu0 0.0
    %5696 = vmatpush1.xpose.msra.mxu0 0.0
    %5697 = vmatprep.subr.mxu0 0.0
    %5698 = vmatpush1.xpose.msra.mxu0 0.0
    %5699 = vmatprep.subr.mxu0 0.0
    %5700 = vmatpush1.xpose.msra.mxu0 0.0
    %5701 = vmatprep.subr.mxu0 0.0
    %5702 = vmatpush1.xpose.msra.mxu0 0.0
    %5703 = vmatprep.subr.mxu0 0.0
    %5704 = vmatpush1.xpose.msra.mxu0 0.0
    %5705 = vmatprep.subr.mxu0 0.0
    %5706 = vmatpush1.xpose.msra.mxu0 0.0
    %5707 = vmatprep.subr.mxu0 0.0
    %5708 = vmatpush1.xpose.msra.mxu0 0.0
    %5709 = vmatprep.mubr.f32.mxu0 0.0
    %5710 = vmatmul.mubr.f32.gmra.mrb[0].mxu0 %v5616
    %v5711 = vpop.f32.mrb[0].mxu0
    %v5712 = vadd.f32 0.0, %v5711
    %v5713 = vpop.f32.mrb[0].mxu0
    %5714 = vmatprep.mubr.f32.mxu0 0.0
    %5715 = vmatmul.mubr.f32.gmra.mrb[0].mxu0 %v5619
    %v5716 = vpop.f32.mrb[0].mxu0
    %v5717 = vadd.f32 0.0, %v5716
    %v5718 = vpop.f32.mrb[0].mxu0
    %5719 = vdwg.mxu0
    %v5720 = vmax.f32 %v5712, 0.0
    %v5721 = vmax.f32 %v5717, 0.0
    %v5722 = vld [vmem:[%s144 + $0x100] sm:$0xff]
    %v5723 = vld [vmem:[%s144 + $0x108] sm:$0xff]
    %v5724 = vld [vmem:[%s144 + $0x110] sm:$0xff]
    %v5725 = vld [vmem:[%s144 + $0x118] sm:$0xff]
    %v5726 = vld [vmem:[%s144 + $0x120] sm:$0xff]
    %v5727 = vld [vmem:[%s144 + $0x128] sm:$0xff]
    %v5728 = vld [vmem:[%s144 + $0x130] sm:$0xff]
    %v5729 = vld [vmem:[%s144 + $0x138] sm:$0xff]
    %v5731 = vsel %vm2950, %v5720, 0
    %v5734 = vsel %vm2950, %v5721, 0
    %5736 = vmatprep.subr.mxu0 0.0
    %5737 = vmatpush1.msra.mxu0 %v5722
    %5738 = vmatprep.subr.mxu0 0.0
    %5739 = vmatpush1.msra.mxu0 %v5723
    %5740 = vmatprep.subr.mxu0 0.0
    %5741 = vmatpush1.msra.mxu0 %v5724
    %5742 = vmatprep.subr.mxu0 0.0
    %5743 = vmatpush1.msra.mxu0 %v5725
    %5744 = vmatprep.subr.mxu0 0.0
    %5745 = vmatpush1.msra.mxu0 %v5726
    %5746 = vmatprep.subr.mxu0 0.0
    %5747 = vmatpush1.msra.mxu0 %v5727
    %5748 = vmatprep.subr.mxu0 0.0
    %5749 = vmatpush1.msra.mxu0 %v5728
    %5750 = vmatprep.subr.mxu0 0.0
    %5751 = vmatpush1.msra.mxu0 %v5729
    %5752 = vmatprep.subr.mxu0 0.0
    %5753 = vmatpush1.msra.mxu0 0.0
    %5754 = vmatprep.subr.mxu0 0.0
    %5755 = vmatpush1.msra.mxu0 0.0
    %5756 = vmatprep.subr.mxu0 0.0
    %5757 = vmatpush1.msra.mxu0 0.0
    %5758 = vmatprep.subr.mxu0 0.0
    %5759 = vmatpush1.msra.mxu0 0.0
    %5760 = vmatprep.subr.mxu0 0.0
    %5761 = vmatpush1.msra.mxu0 0.0
    %5762 = vmatprep.subr.mxu0 0.0
    %5763 = vmatpush1.msra.mxu0 0.0
    %5764 = vmatprep.subr.mxu0 0.0
    %5765 = vmatpush1.msra.mxu0 0.0
    %5766 = vmatprep.subr.mxu0 0.0
    %5767 = vmatpush1.msra.mxu0 0.0
    %5768 = vmatprep.subr.mxu0 0.0
    %5769 = vmatpush1.msra.mxu0 0.0
    %5770 = vmatprep.subr.mxu0 0.0
    %5771 = vmatpush1.msra.mxu0 0.0
    %5772 = vmatprep.subr.mxu0 0.0
    %5773 = vmatpush1.msra.mxu0 0.0
    %5774 = vmatprep.subr.mxu0 0.0
    %5775 = vmatpush1.msra.mxu0 0.0
    %5776 = vmatprep.subr.mxu0 0.0
    %5777 = vmatpush1.msra.mxu0 0.0
    %5778 = vmatprep.subr.mxu0 0.0
    %5779 = vmatpush1.msra.mxu0 0.0
    %5780 = vmatprep.subr.mxu0 0.0
    %5781 = vmatpush1.msra.mxu0 0.0
    %5782 = vmatprep.subr.mxu0 0.0
    %5783 = vmatpush1.msra.mxu0 0.0
    %5784 = vmatprep.subr.mxu0 0.0
    %5785 = vmatpush1.msra.mxu0 0.0
    %5786 = vmatprep.subr.mxu0 0.0
    %5787 = vmatpush1.msra.mxu0 0.0
    %5788 = vmatprep.subr.mxu0 0.0
    %5789 = vmatpush1.msra.mxu0 0.0
    %5790 = vmatprep.subr.mxu0 0.0
    %5791 = vmatpush1.msra.mxu0 0.0
    %5792 = vmatprep.subr.mxu0 0.0
    %5793 = vmatpush1.msra.mxu0 0.0
    %5794 = vmatprep.subr.mxu0 0.0
    %5795 = vmatpush1.msra.mxu0 0.0
    %5796 = vmatprep.subr.mxu0 0.0
    %5797 = vmatpush1.msra.mxu0 0.0
    %5798 = vmatprep.subr.mxu0 0.0
    %5799 = vmatpush1.msra.mxu0 0.0
    %5800 = vmatprep.mubr.f32.mxu0 0.0
    %5801 = vmatmul.mubr.f32.gmra.mrb[0].mxu0 %v5731
    %v5802 = vpop.f32.mrb[0].mxu0
    %v5803 = vadd.f32 0.0, %v5802
    %v5804 = vpop.f32.mrb[0].mxu0
    %5805 = vmatprep.mubr.f32.mxu0 0.0
    %5806 = vmatmul.mubr.f32.gmra.mrb[0].mxu0 %v5734
    %v5807 = vpop.f32.mrb[0].mxu0
    %v5808 = vadd.f32 0.0, %v5807
    %v5809 = vpop.f32.mrb[0].mxu0
    %5810 = vdwg.mxu0
    %v5811 = vadd.f32 %v5582, %v5803
    %v5812 = vadd.f32 %v5583, %v5808
    %v5813 = vld [vmem:[%s5 + $0x6] sm:$0x1]
    %v5814 = vmul.f32 %v5811, %v5811
    %v5815 = vmul.f32 %v5812, %v5812
    %v5816 = vsel %vm38, %v5814, 0.0
    %5817 = vadd.xlane.f32.xlu0 %v5816
    %v5818 = vpop.xlane.xlu0 %5817
    %v5819 = vsel %vm38, %v5815, 0.0
    %5820 = vadd.xlane.f32.xlu0 %v5819
    %v5821 = vpop.xlane.xlu0 %5820
    %v5822 = vmul.f32 %v5818, %v261
    %v5823 = vmul.f32 %v5821, %v261
    %v5824 = vadd.f32 %v5822, 1e-06
    %v5825 = vadd.f32 %v5823, 1e-06
    %v5826 = vrsqrt.pop %v5824
    %v5827 = vrsqrt.pop %v5825
    %v5828 = vmul.f32 %v5811, %v5826
    %v5829 = vmul.f32 %v5812, %v5827
    %v5830 = vlaneseq
    %v5831 = vshrl.u32 %v5830, 7
    %v5832 = vsub.s32 0, %v5831
    %v5833 = vrot.slane %v5813, %v5832
    %v5834 = vmul.f32 %v5828, %v5833
    %v5835 = vmul.f32 %v5829, %v5833
    %5836 = vst.msk [vmem:[#allocation2] sm:$0xff] %vm38, %v5834
    %5837 = vst.msk [vmem:[#allocation2 + $0x8] sm:$0xff] %vm38, %v5835
    // Predicated region
    $region26: #{custom_t5_decoder_with_segment.1} parent=1 // pred_check
      _
    $region27: #{custom_t5_decoder_with_segment.1} parent=1 // pred_check_branch
      %5839 = sbr.rel (0) target = $region29
    $region28: #{custom_t5_decoder_with_segment.1} parent=1 // pred_region
      %s5841 = ssub.s32 256, 256
      %5842 = vsyncadd [#allocation3], %s5841
      %s5843 = sshll.u32 [#allocation2], 4
      %s5844 = int_to_ptr.vmem [resolvable:$true] %s5843
      %5849 = dma.vmem_to_hbm [thread:$0]  %s5844, 256, %s6, [#allocation3], 128, 128, 8
    $region29: #{custom_t5_decoder_with_segment.1} parent=1 // pred_fallthru
      _
    // Predicated region
    $region30: #{custom_t5_decoder_with_segment.1} parent=1 // pred_check
      _
    $region31: #{custom_t5_decoder_with_segment.1} parent=1 // pred_check_branch
      %5851 = sbr.rel (0) target = $region33
    $region32: #{custom_t5_decoder_with_segment.1} parent=1 // pred_region
      %5852 = dma.done [#allocation3], 256
    $region33: #{custom_t5_decoder_with_segment.1} parent=1 // pred_fallthru
      _
    %5853 = vsyncpa [#allocation3], 1

</llo_original>
